<compile_context>
chip_gen: v5e
topology: v5e:2x2
jax: 0.10.0
libtpu: 0.0.40
codegen_flags: <defaults>
</compile_context>

<pallas_src>
import jax
import jax.numpy as jnp
from jax import lax
from jax.experimental import pallas as pl
from jax.experimental.pallas import tpu as pltpu

_LANE = 128


def _round_up(n, m):
    return ((n + m - 1) // m) * m


# ----------------------------------------------------------------------------
# Fused Pallas kernel: [conv3x3 + BN(folded) + ReLU] x 2, one image / grid step
# ----------------------------------------------------------------------------
def _base_conv_fused_kernel(x_ref, w1_ref, b1_ref, w2_ref, b2_ref, o_ref,
                            xpad_ref, hpad_ref):
    # x_ref   : (H, W, Cin)       bf16  one image (batch dim squeezed), real cin
    # w1_ref  : (9, CinK, Cop)    bf16  BN1-scale-folded taps, tap k = dy*3+dx
    # b1_ref  : (1, Cop)          f32   folded BN1 bias = beta - mean*scale
    # w2_ref  : (9, Cop, Cop)     bf16  BN2-scale-folded taps
    # b2_ref  : (1, Cop)          f32
    # o_ref   : (H, W, Cout)      bf16  real cout channels only
    # scratch:
    #   xpad_ref : (H+2, W+2, CinK) bf16  zero-halo input slab
    #   hpad_ref : (H+2, W+2, Cop)  bf16  zero-halo intermediate (VMEM only)
    H, W, Cin = x_ref.shape
    CinK = xpad_ref.shape[-1]
    Cop = hpad_ref.shape[-1]
    Cout = o_ref.shape[-1]
    TR = max(1, min(H, 128 // max(W, 1)))          # ~128 output pixels per chunk

    def zero_border(pad_ref):
        Hp, Wp, C = pad_ref.shape
        pad_ref[0:1, :, :] = jnp.zeros((1, Wp, C), pad_ref.dtype)
        pad_ref[Hp - 1:Hp, :, :] = jnp.zeros((1, Wp, C), pad_ref.dtype)
        pad_ref[:, 0:1, :] = jnp.zeros((Hp, 1, C), pad_ref.dtype)
        pad_ref[:, Wp - 1:Wp, :] = jnp.zeros((Hp, 1, C), pad_ref.dtype)

    # Zero only the 1-pixel borders every step; interiors are fully rewritten.
    zero_border(xpad_ref)
    zero_border(hpad_ref)
    xpad_ref[1:H + 1, 1:W + 1, 0:Cin] = x_ref[...]
    if CinK > Cin:   # sublane-pad K inside the kernel; input HBM stays at cin
        xpad_ref[1:H + 1, 1:W + 1, Cin:CinK] = jnp.zeros(
            (H, W, CinK - Cin), xpad_ref.dtype)

    def conv3x3_bias_relu(pad_ref, w_ref, b_ref, r0, tr, k_dim):
        # 9 accumulating MXU matmuls over shifted views (no materialized im2col).
        acc = None
        for k in range(9):
            dy, dx = divmod(k, 3)
            lhs = pad_ref[r0 + dy:r0 + dy + tr, dx:dx + W, :].reshape(tr * W, k_dim)
            part = jnp.dot(lhs, w_ref[k], preferred_element_type=jnp.float32)
            acc = part if acc is None else acc + part
        return jnp.maximum(acc + b_ref[...], 0.0)          # BN bias + ReLU (f32)

    # ----- stage 1: conv3x3 -> BN(eval, scale folded) -> ReLU; h stays in VMEM
    for r0 in range(0, H, TR):
        tr = min(TR, H - r0)
        h1 = conv3x3_bias_relu(xpad_ref, w1_ref, b1_ref, r0, tr, CinK)
        hpad_ref[1 + r0:1 + r0 + tr, 1:W + 1, :] = (
            h1.astype(hpad_ref.dtype).reshape(tr, W, Cop))   # single f32->bf16 cast

    # Dropout2d(p=0.0) == identity.

    # ----- stage 2: conv3x3 -> BN -> ReLU; store only real cout channels, bf16
    for r0 in range(0, H, TR):
        tr = min(TR, H - r0)
        y = conv3x3_bias_relu(hpad_ref, w2_ref, b2_ref, r0, tr, Cop)
        o_ref[r0:r0 + tr, :, :] = (
            y[:, :Cout].astype(o_ref.dtype).reshape(tr, W, Cout))


# ----------------------------------------------------------------------------
# VMEM budget: derived from actual scratch/weight/block sizes, per generation
# ----------------------------------------------------------------------------
def _vmem_limit_bytes(h, w, cin, cin_k, cop, cout):
    bf16 = 2
    slabs = (h + 2) * (w + 2) * (cin_k + cop) * bf16            # xpad + hpad
    weights = (9 * cin_k * cop + 9 * cop * cop) * bf16 * 2      # double-buffered
    biases = 2 * (cop * 4) * 2
    io = (h * w * cin + h * w * cout) * bf16 * 2                # in/out blocks x2
    need = slabs + weights + biases + io + (8 << 20)            # compiler headroom
    need = max(need, 16 << 20)
    cap = None
    try:
        cap = getattr(pltpu.get_tpu_info(), "vmem_capacity_bytes", None)
    except Exception:
        cap = None
    if cap:
        need = min(need, int(cap) * 9 // 10)
    return int(need)


# ----------------------------------------------------------------------------
# BaseConv forward (NCHW in / NCHW out, matching the PyTorch module)
# ----------------------------------------------------------------------------
@jax.jit
def base_conv_forward(x_nchw, params):
    n, cin, h, w = x_nchw.shape
    w1p, w2p = params["w1p"], params["w2p"]
    cin_k = w1p.shape[1]             # K of stage 1 (sublane-padded cin)
    cop = w1p.shape[2]               # lane-padded cout (N of both matmuls)
    cout = params["w1_hwio"].shape[3]

    x = jnp.transpose(x_nchw, (0, 2, 3, 1)).astype(jnp.bfloat16)   # NCHW -> NHWC
    # NOTE: no host-side channel lane-padding; kernel pads K inside its slab.

    out_nhwc = pl.pallas_call(
        _base_conv_fused_kernel,
        out_shape=jax.ShapeDtypeStruct((n, h, w, cout), jnp.bfloat16),
        grid_spec=pltpu.PrefetchScalarGridSpec(
            num_scalar_prefetch=0,
            grid=(n,),                                             # one image / step
            in_specs=[
                pl.BlockSpec((None, h, w, cin), lambda i: (i, 0, 0, 0)),
                pl.BlockSpec((9, cin_k, cop), lambda i: (0, 0, 0)),  # weights resident
                pl.BlockSpec((1, cop), lambda i: (0, 0)),
                pl.BlockSpec((9, cop, cop), lambda i: (0, 0, 0)),
                pl.BlockSpec((1, cop), lambda i: (0, 0)),
            ],
            out_specs=pl.BlockSpec((None, h, w, cout), lambda i: (i, 0, 0, 0)),
            scratch_shapes=[
                pltpu.VMEM((h + 2, w + 2, cin_k), jnp.bfloat16),   # xpad (bf16 halo)
                pltpu.VMEM((h + 2, w + 2, cop), jnp.bfloat16),     # hpad (bf16 halo)
            ],
        ),
        compiler_params=pltpu.CompilerParams(
            dimension_semantics=("parallel",),   # shard batch across TCs (v7x megacore)
            vmem_limit_bytes=_vmem_limit_bytes(h, w, cin, cin_k, cop, cout),
        ),
    )(x, w1p, params["b1p"], w2p, params["b2p"])

    return jnp.transpose(out_nhwc, (0, 3, 1, 2)).astype(jnp.float32)  # NHWC -> NCHW


# ----------------------------------------------------------------------------
# Parameter setup (deterministic, synthetic; eval-mode BN folded, scale->weights)
# ----------------------------------------------------------------------------
def make_params(key, in_channels, out_channels):
    k1, k2, k3, k4, k5, k6 = jax.random.split(key, 6)
    w1 = 0.1 * jax.random.normal(k1, (3, 3, in_channels, out_channels), jnp.float32)
    w2 = 0.1 * jax.random.normal(k2, (3, 3, out_channels, out_channels), jnp.float32)
    eps = 1e-5

    def bn(kg, kb, c):
        gamma = 1.0 + 0.1 * jax.random.normal(kg, (c,), jnp.float32)
        beta = 0.1 * jax.random.normal(kb, (c,), jnp.float32)
        mean = 0.05 * jax.random.normal(jax.random.fold_in(kg, 1), (c,), jnp.float32)
        var = jnp.abs(0.2 * jax.random.normal(jax.random.fold_in(kb, 1), (c,),
                                              jnp.float32)) + 0.8
        scale = gamma / jnp.sqrt(var + eps)
        bias = beta - mean * scale
        return scale, bias

    s1, b1 = bn(k3, k4, out_channels)
    s2, b2 = bn(k5, k6, out_channels)

    cin_k = _round_up(in_channels, 8)        # sublane-align K only (NOT 128)
    cop = _round_up(out_channels, _LANE)     # lane-align N
    # TODO(synk): on v6e/v7x, if out_channels > 128, pad N to a multiple of 256
    #             for full MXU width (at cout=8 the kernel is memory-bound).

    def pack(w_hwio, scale, ci_pad, co_pad):
        kh, kw, ci, co = w_hwio.shape
        wf = w_hwio * scale                                  # fold BN scale (per co)
        wp = jnp.zeros((kh * kw, ci_pad, co_pad), jnp.float32)
        wp = wp.at[:, :ci, :co].set(wf.reshape(kh * kw, ci, co))
        return wp.astype(jnp.bfloat16)                       # (9, Kpad, Npad), tap=dy*3+dx

    def pad_bias(v, co_pad):
        return jnp.zeros((1, co_pad), jnp.float32).at[0, :v.shape[0]].set(v)

    return dict(
        w1_hwio=w1, w2_hwio=w2,
        bn1_scale=s1, bn1_bias=b1, bn2_scale=s2, bn2_bias=b2,
        w1p=pack(w1, s1, cin_k, cop),
        w2p=pack(w2, s2, cop, cop),
        b1p=pad_bias(b1, cop),
        b2p=pad_bias(b2, cop),
    )


# ----------------------------------------------------------------------------
# Pure-JAX reference (mirrors the kernel's math: folded bf16 weights, f32 accum,
# bf16 intermediate, bf16 output)
# ----------------------------------------------------------------------------
def base_conv_ref(x_nchw, params):
    x = jnp.transpose(x_nchw, (0, 2, 3, 1)).astype(jnp.bfloat16)

    def stage(t, w_hwio, scale, bias):
        wf = (w_hwio * scale).astype(jnp.bfloat16)           # same fold+cast as kernel
        y = lax.conv_general_dilated(
            t, wf, window_strides=(1, 1), padding="SAME",
            dimension_numbers=("NHWC", "HWIO", "NHWC"),
            preferred_element_type=jnp.float32)
        return jnp.maximum(y + bias, 0.0)

    h = stage(x, params["w1_hwio"], params["bn1_scale"], params["bn1_bias"])
    y = stage(h.astype(jnp.bfloat16), params["w2_hwio"],
              params["bn2_scale"], params["bn2_bias"])
    y = y.astype(jnp.bfloat16)                                # kernel emits bf16
    return jnp.transpose(y, (0, 3, 1, 2)).astype(jnp.float32)


if __name__ == "__main__":
    key = jax.random.PRNGKey(0)
    kx, kp = jax.random.split(key)

    N, Cin, Cout, H, W = 2, 4, 8, 16, 16
    x = jax.random.normal(kx, (N, Cin, H, W), jnp.float32)    # NCHW like PyTorch
    params = make_params(kp, Cin, Cout)

    out = jax.block_until_ready(base_conv_forward(x, params))
    ref = base_conv_ref(x, params)

    assert out.shape == (N, Cout, H, W), out.shape
    max_err = float(jnp.max(jnp.abs(out - ref)))
    assert jnp.allclose(out, ref, rtol=2e-2, atol=2e-2), f"mismatch: {max_err}"

    print("KERNEL_OK")
</pallas_src>

<mosaic_0001>
module attributes {stable_mosaic.version = 11 : i64} {
  func.func @_base_conv_fused_kernel(%arg0: i32, %arg1: memref<1x16x16x4xbf16, #tpu.memory_space<vmem>>, %arg2: memref<9x8x128xbf16, #tpu.memory_space<vmem>>, %arg3: memref<1x128xf32, #tpu.memory_space<vmem>>, %arg4: memref<9x128x128xbf16, #tpu.memory_space<vmem>>, %arg5: memref<1x128xf32, #tpu.memory_space<vmem>>, %arg6: memref<1x16x16x8xbf16, #tpu.memory_space<vmem>>, %arg7: memref<18x18x8xbf16, #tpu.memory_space<vmem>>, %arg8: memref<18x18x128xbf16, #tpu.memory_space<vmem>>) attributes {dimension_semantics = [#tpu.dimension_semantics<parallel>], iteration_bounds = array<i64: 2>, scalar_prefetch = 0 : i64, scratch_operands = 2 : i64, tpu.core_type = #tpu.core_type<tc>, window_params = [{transform_indices = @transform_0, window_bounds = array<i64: 1, 16, 16, 4>}, {pipeline_mode = #tpu.pipeline_mode<synchronous>, transform_indices = @transform_1, window_bounds = array<i64: 9, 8, 128>}, {pipeline_mode = #tpu.pipeline_mode<synchronous>, transform_indices = @transform_2, window_bounds = array<i64: 1, 128>}, {pipeline_mode = #tpu.pipeline_mode<synchronous>, transform_indices = @transform_3, window_bounds = array<i64: 9, 128, 128>}, {pipeline_mode = #tpu.pipeline_mode<synchronous>, transform_indices = @transform_4, window_bounds = array<i64: 1, 128>}, {transform_indices = @transform_5, window_bounds = array<i64: 1, 16, 16, 8>}]} {
    %cst = arith.constant 0.000000e+00 : bf16
    %0 = vector.broadcast %cst : bf16 to vector<1x18x8xbf16>
    %c0 = arith.constant 0 : index
    %c0_0 = arith.constant 0 : index
    %c0_1 = arith.constant 0 : index
    %1 = vector.load %arg7[%c0, %c0_0, %c0_1] : memref<18x18x8xbf16, #tpu.memory_space<vmem>>, vector<1x18x8xbf16>
    tpu.vector_store %arg7[%c0, %c0_0, %c0_1], %0 {strides = array<i32>} : memref<18x18x8xbf16, #tpu.memory_space<vmem>>, vector<1x18x8xbf16>,
    %cst_2 = arith.constant 0.000000e+00 : bf16
    %2 = vector.broadcast %cst_2 : bf16 to vector<1x18x8xbf16>
    %c17 = arith.constant 17 : index
    %c0_3 = arith.constant 0 : index
    %c0_4 = arith.constant 0 : index
    %3 = vector.load %arg7[%c17, %c0_3, %c0_4] : memref<18x18x8xbf16, #tpu.memory_space<vmem>>, vector<1x18x8xbf16>
    tpu.vector_store %arg7[%c17, %c0_3, %c0_4], %2 {strides = array<i32>} : memref<18x18x8xbf16, #tpu.memory_space<vmem>>, vector<1x18x8xbf16>,
    %cst_5 = arith.constant 0.000000e+00 : bf16
    %4 = vector.broadcast %cst_5 : bf16 to vector<18x1x8xbf16>
    %c0_6 = arith.constant 0 : index
    %c0_7 = arith.constant 0 : index
    %c0_8 = arith.constant 0 : index
    %5 = vector.load %arg7[%c0_6, %c0_7, %c0_8] : memref<18x18x8xbf16, #tpu.memory_space<vmem>>, vector<18x1x8xbf16>
    tpu.vector_store %arg7[%c0_6, %c0_7, %c0_8], %4 {strides = array<i32>} : memref<18x18x8xbf16, #tpu.memory_space<vmem>>, vector<18x1x8xbf16>,
    %cst_9 = arith.constant 0.000000e+00 : bf16
    %6 = vector.broadcast %cst_9 : bf16 to vector<18x1x8xbf16>
    %c0_10 = arith.constant 0 : index
    %c17_11 = arith.constant 17 : index
    %c0_12 = arith.constant 0 : index
    %7 = vector.load %arg7[%c0_10, %c17_11, %c0_12] : memref<18x18x8xbf16, #tpu.memory_space<vmem>>, vector<18x1x8xbf16>
    tpu.vector_store %arg7[%c0_10, %c17_11, %c0_12], %6 {strides = array<i32>} : memref<18x18x8xbf16, #tpu.memory_space<vmem>>, vector<18x1x8xbf16>,
    %cst_13 = arith.constant 0.000000e+00 : bf16
    %8 = vector.broadcast %cst_13 : bf16 to vector<1x18x128xbf16>
    %c0_14 = arith.constant 0 : index
    %c0_15 = arith.constant 0 : index
    %c0_16 = arith.constant 0 : index
    %9 = vector.load %arg8[%c0_14, %c0_15, %c0_16] : memref<18x18x128xbf16, #tpu.memory_space<vmem>>, vector<1x18x128xbf16>
    tpu.vector_store %arg8[%c0_14, %c0_15, %c0_16], %8 {strides = array<i32>} : memref<18x18x128xbf16, #tpu.memory_space<vmem>>, vector<1x18x128xbf16>,
    %cst_17 = arith.constant 0.000000e+00 : bf16
    %10 = vector.broadcast %cst_17 : bf16 to vector<1x18x128xbf16>
    %c17_18 = arith.constant 17 : index
    %c0_19 = arith.constant 0 : index
    %c0_20 = arith.constant 0 : index
    %11 = vector.load %arg8[%c17_18, %c0_19, %c0_20] : memref<18x18x128xbf16, #tpu.memory_space<vmem>>, vector<1x18x128xbf16>
    tpu.vector_store %arg8[%c17_18, %c0_19, %c0_20], %10 {strides = array<i32>} : memref<18x18x128xbf16, #tpu.memory_space<vmem>>, vector<1x18x128xbf16>,
    %cst_21 = arith.constant 0.000000e+00 : bf16
    %12 = vector.broadcast %cst_21 : bf16 to vector<18x1x128xbf16>
    %c0_22 = arith.constant 0 : index
    %c0_23 = arith.constant 0 : index
    %c0_24 = arith.constant 0 : index
    %13 = vector.load %arg8[%c0_22, %c0_23, %c0_24] : memref<18x18x128xbf16, #tpu.memory_space<vmem>>, vector<18x1x128xbf16>
    tpu.vector_store %arg8[%c0_22, %c0_23, %c0_24], %12 {strides = array<i32>} : memref<18x18x128xbf16, #tpu.memory_space<vmem>>, vector<18x1x128xbf16>,
    %cst_25 = arith.constant 0.000000e+00 : bf16
    %14 = vector.broadcast %cst_25 : bf16 to vector<18x1x128xbf16>
    %c0_26 = arith.constant 0 : index
    %c17_27 = arith.constant 17 : index
    %c0_28 = arith.constant 0 : index
    %15 = vector.load %arg8[%c0_26, %c17_27, %c0_28] : memref<18x18x128xbf16, #tpu.memory_space<vmem>>, vector<18x1x128xbf16>
    tpu.vector_store %arg8[%c0_26, %c17_27, %c0_28], %14 {strides = array<i32>} : memref<18x18x128xbf16, #tpu.memory_space<vmem>>, vector<18x1x128xbf16>,
    %c0_29 = arith.constant 0 : index
    %c0_30 = arith.constant 0 : index
    %c0_31 = arith.constant 0 : index
    %c0_32 = arith.constant 0 : index
    %16 = vector.load %arg1[%c0_29, %c0_30, %c0_31, %c0_32] : memref<1x16x16x4xbf16, #tpu.memory_space<vmem>>, vector<1x16x16x4xbf16>
    %17 = vector.shape_cast %16 : vector<1x16x16x4xbf16> to vector<16x16x4xbf16>
    %c1 = arith.constant 1 : index
    %c1_33 = arith.constant 1 : index
    %c0_34 = arith.constant 0 : index
    %18 = vector.load %arg7[%c1, %c1_33, %c0_34] : memref<18x18x8xbf16, #tpu.memory_space<vmem>>, vector<16x16x4xbf16>
    tpu.vector_store %arg7[%c1, %c1_33, %c0_34], %17 {strides = array<i32>} : memref<18x18x8xbf16, #tpu.memory_space<vmem>>, vector<16x16x4xbf16>,
    %cst_35 = arith.constant 0.000000e+00 : bf16
    %19 = vector.broadcast %cst_35 : bf16 to vector<16x16x4xbf16>
    %c1_36 = arith.constant 1 : index
    %c1_37 = arith.constant 1 : index
    %c4 = arith.constant 4 : index
    %20 = vector.load %arg7[%c1_36, %c1_37, %c4] : memref<18x18x8xbf16, #tpu.memory_space<vmem>>, vector<16x16x4xbf16>
    tpu.vector_store %arg7[%c1_36, %c1_37, %c4], %19 {strides = array<i32>} : memref<18x18x8xbf16, #tpu.memory_space<vmem>>, vector<16x16x4xbf16>,
    %c0_38 = arith.constant 0 : index
    %c0_39 = arith.constant 0 : index
    %c0_40 = arith.constant 0 : index
    %21 = vector.load %arg7[%c0_38, %c0_39, %c0_40] : memref<18x18x8xbf16, #tpu.memory_space<vmem>>, vector<8x16x8xbf16>
    %22 = vector.shape_cast %21 : vector<8x16x8xbf16> to vector<128x8xbf16>
    %c0_41 = arith.constant 0 : index
    %c0_42 = arith.constant 0 : index
    %c0_43 = arith.constant 0 : index
    %23 = vector.load %arg2[%c0_41, %c0_42, %c0_43] : memref<9x8x128xbf16, #tpu.memory_space<vmem>>, vector<1x8x128xbf16>
    %24 = vector.shape_cast %23 : vector<1x8x128xbf16> to vector<8x128xbf16>
    %cst_44 = arith.constant dense<0.000000e+00> : vector<128x128xf32>
    %25 = tpu.matmul %22, %24, %cst_44 {dimension_numbers = #tpu.dot_dimension_numbers<[1], [0], [0], [1], [0, 0, 1, 1], [], []>} : vector<128x8xbf16>, vector<8x128xbf16>, vector<128x128xf32> -> vector<128x128xf32>
    %c0_45 = arith.constant 0 : index
    %c1_46 = arith.constant 1 : index
    %c0_47 = arith.constant 0 : index
    %26 = vector.load %arg7[%c0_45, %c1_46, %c0_47] : memref<18x18x8xbf16, #tpu.memory_space<vmem>>, vector<8x16x8xbf16>
    %27 = vector.shape_cast %26 : vector<8x16x8xbf16> to vector<128x8xbf16>
    %c1_48 = arith.constant 1 : index
    %c0_49 = arith.constant 0 : index
    %c0_50 = arith.constant 0 : index
    %28 = vector.load %arg2[%c1_48, %c0_49, %c0_50] : memref<9x8x128xbf16, #tpu.memory_space<vmem>>, vector<1x8x128xbf16>
    %29 = vector.shape_cast %28 : vector<1x8x128xbf16> to vector<8x128xbf16>
    %cst_51 = arith.constant dense<0.000000e+00> : vector<128x128xf32>
    %30 = tpu.matmul %27, %29, %cst_51 {dimension_numbers = #tpu.dot_dimension_numbers<[1], [0], [0], [1], [0, 0, 1, 1], [], []>} : vector<128x8xbf16>, vector<8x128xbf16>, vector<128x128xf32> -> vector<128x128xf32>
    %31 = arith.addf %25, %30 : vector<128x128xf32>
    %c0_52 = arith.constant 0 : index
    %c2 = arith.constant 2 : index
    %c0_53 = arith.constant 0 : index
    %32 = vector.load %arg7[%c0_52, %c2, %c0_53] : memref<18x18x8xbf16, #tpu.memory_space<vmem>>, vector<8x16x8xbf16>
    %33 = vector.shape_cast %32 : vector<8x16x8xbf16> to vector<128x8xbf16>
    %c2_54 = arith.constant 2 : index
    %c0_55 = arith.constant 0 : index
    %c0_56 = arith.constant 0 : index
    %34 = vector.load %arg2[%c2_54, %c0_55, %c0_56] : memref<9x8x128xbf16, #tpu.memory_space<vmem>>, vector<1x8x128xbf16>
    %35 = vector.shape_cast %34 : vector<1x8x128xbf16> to vector<8x128xbf16>
    %cst_57 = arith.constant dense<0.000000e+00> : vector<128x128xf32>
    %36 = tpu.matmul %33, %35, %cst_57 {dimension_numbers = #tpu.dot_dimension_numbers<[1], [0], [0], [1], [0, 0, 1, 1], [], []>} : vector<128x8xbf16>, vector<8x128xbf16>, vector<128x128xf32> -> vector<128x128xf32>
    %37 = arith.addf %31, %36 : vector<128x128xf32>
    %c1_58 = arith.constant 1 : index
    %c0_59 = arith.constant 0 : index
    %c0_60 = arith.constant 0 : index
    %38 = vector.load %arg7[%c1_58, %c0_59, %c0_60] : memref<18x18x8xbf16, #tpu.memory_space<vmem>>, vector<8x16x8xbf16>
    %39 = vector.shape_cast %38 : vector<8x16x8xbf16> to vector<128x8xbf16>
    %c3 = arith.constant 3 : index
    %c0_61 = arith.constant 0 : index
    %c0_62 = arith.constant 0 : index
    %40 = vector.load %arg2[%c3, %c0_61, %c0_62] : memref<9x8x128xbf16, #tpu.memory_space<vmem>>, vector<1x8x128xbf16>
    %41 = vector.shape_cast %40 : vector<1x8x128xbf16> to vector<8x128xbf16>
    %cst_63 = arith.constant dense<0.000000e+00> : vector<128x128xf32>
    %42 = tpu.matmul %39, %41, %cst_63 {dimension_numbers = #tpu.dot_dimension_numbers<[1], [0], [0], [1], [0, 0, 1, 1], [], []>} : vector<128x8xbf16>, vector<8x128xbf16>, vector<128x128xf32> -> vector<128x128xf32>
    %43 = arith.addf %37, %42 : vector<128x128xf32>
    %c1_64 = arith.constant 1 : index
    %c1_65 = arith.constant 1 : index
    %c0_66 = arith.constant 0 : index
    %44 = vector.load %arg7[%c1_64, %c1_65, %c0_66] : memref<18x18x8xbf16, #tpu.memory_space<vmem>>, vector<8x16x8xbf16>
    %45 = vector.shape_cast %44 : vector<8x16x8xbf16> to vector<128x8xbf16>
    %c4_67 = arith.constant 4 : index
    %c0_68 = arith.constant 0 : index
    %c0_69 = arith.constant 0 : index
    %46 = vector.load %arg2[%c4_67, %c0_68, %c0_69] : memref<9x8x128xbf16, #tpu.memory_space<vmem>>, vector<1x8x128xbf16>
    %47 = vector.shape_cast %46 : vector<1x8x128xbf16> to vector<8x128xbf16>
    %cst_70 = arith.constant dense<0.000000e+00> : vector<128x128xf32>
    %48 = tpu.matmul %45, %47, %cst_70 {dimension_numbers = #tpu.dot_dimension_numbers<[1], [0], [0], [1], [0, 0, 1, 1], [], []>} : vector<128x8xbf16>, vector<8x128xbf16>, vector<128x128xf32> -> vector<128x128xf32>
    %49 = arith.addf %43, %48 : vector<128x128xf32>
    %c1_71 = arith.constant 1 : index
    %c2_72 = arith.constant 2 : index
    %c0_73 = arith.constant 0 : index
    %50 = vector.load %arg7[%c1_71, %c2_72, %c0_73] : memref<18x18x8xbf16, #tpu.memory_space<vmem>>, vector<8x16x8xbf16>
    %51 = vector.shape_cast %50 : vector<8x16x8xbf16> to vector<128x8xbf16>
    %c5 = arith.constant 5 : index
    %c0_74 = arith.constant 0 : index
    %c0_75 = arith.constant 0 : index
    %52 = vector.load %arg2[%c5, %c0_74, %c0_75] : memref<9x8x128xbf16, #tpu.memory_space<vmem>>, vector<1x8x128xbf16>
    %53 = vector.shape_cast %52 : vector<1x8x128xbf16> to vector<8x128xbf16>
    %cst_76 = arith.constant dense<0.000000e+00> : vector<128x128xf32>
    %54 = tpu.matmul %51, %53, %cst_76 {dimension_numbers = #tpu.dot_dimension_numbers<[1], [0], [0], [1], [0, 0, 1, 1], [], []>} : vector<128x8xbf16>, vector<8x128xbf16>, vector<128x128xf32> -> vector<128x128xf32>
    %55 = arith.addf %49, %54 : vector<128x128xf32>
    %c2_77 = arith.constant 2 : index
    %c0_78 = arith.constant 0 : index
    %c0_79 = arith.constant 0 : index
    %56 = vector.load %arg7[%c2_77, %c0_78, %c0_79] : memref<18x18x8xbf16, #tpu.memory_space<vmem>>, vector<8x16x8xbf16>
    %57 = vector.shape_cast %56 : vector<8x16x8xbf16> to vector<128x8xbf16>
    %c6 = arith.constant 6 : index
    %c0_80 = arith.constant 0 : index
    %c0_81 = arith.constant 0 : index
    %58 = vector.load %arg2[%c6, %c0_80, %c0_81] : memref<9x8x128xbf16, #tpu.memory_space<vmem>>, vector<1x8x128xbf16>
    %59 = vector.shape_cast %58 : vector<1x8x128xbf16> to vector<8x128xbf16>
    %cst_82 = arith.constant dense<0.000000e+00> : vector<128x128xf32>
    %60 = tpu.matmul %57, %59, %cst_82 {dimension_numbers = #tpu.dot_dimension_numbers<[1], [0], [0], [1], [0, 0, 1, 1], [], []>} : vector<128x8xbf16>, vector<8x128xbf16>, vector<128x128xf32> -> vector<128x128xf32>
    %61 = arith.addf %55, %60 : vector<128x128xf32>
    %c2_83 = arith.constant 2 : index
    %c1_84 = arith.constant 1 : index
    %c0_85 = arith.constant 0 : index
    %62 = vector.load %arg7[%c2_83, %c1_84, %c0_85] : memref<18x18x8xbf16, #tpu.memory_space<vmem>>, vector<8x16x8xbf16>
    %63 = vector.shape_cast %62 : vector<8x16x8xbf16> to vector<128x8xbf16>
    %c7 = arith.constant 7 : index
    %c0_86 = arith.constant 0 : index
    %c0_87 = arith.constant 0 : index
    %64 = vector.load %arg2[%c7, %c0_86, %c0_87] : memref<9x8x128xbf16, #tpu.memory_space<vmem>>, vector<1x8x128xbf16>
    %65 = vector.shape_cast %64 : vector<1x8x128xbf16> to vector<8x128xbf16>
    %cst_88 = arith.constant dense<0.000000e+00> : vector<128x128xf32>
    %66 = tpu.matmul %63, %65, %cst_88 {dimension_numbers = #tpu.dot_dimension_numbers<[1], [0], [0], [1], [0, 0, 1, 1], [], []>} : vector<128x8xbf16>, vector<8x128xbf16>, vector<128x128xf32> -> vector<128x128xf32>
    %67 = arith.addf %61, %66 : vector<128x128xf32>
    %c2_89 = arith.constant 2 : index
    %c2_90 = arith.constant 2 : index
    %c0_91 = arith.constant 0 : index
    %68 = vector.load %arg7[%c2_89, %c2_90, %c0_91] : memref<18x18x8xbf16, #tpu.memory_space<vmem>>, vector<8x16x8xbf16>
    %69 = vector.shape_cast %68 : vector<8x16x8xbf16> to vector<128x8xbf16>
    %c8 = arith.constant 8 : index
    %c0_92 = arith.constant 0 : index
    %c0_93 = arith.constant 0 : index
    %70 = vector.load %arg2[%c8, %c0_92, %c0_93] : memref<9x8x128xbf16, #tpu.memory_space<vmem>>, vector<1x8x128xbf16>
    %71 = vector.shape_cast %70 : vector<1x8x128xbf16> to vector<8x128xbf16>
    %cst_94 = arith.constant dense<0.000000e+00> : vector<128x128xf32>
    %72 = tpu.matmul %69, %71, %cst_94 {dimension_numbers = #tpu.dot_dimension_numbers<[1], [0], [0], [1], [0, 0, 1, 1], [], []>} : vector<128x8xbf16>, vector<8x128xbf16>, vector<128x128xf32> -> vector<128x128xf32>
    %73 = arith.addf %67, %72 : vector<128x128xf32>
    %c0_95 = arith.constant 0 : index
    %c0_96 = arith.constant 0 : index
    %74 = vector.load %arg3[%c0_95, %c0_96] : memref<1x128xf32, #tpu.memory_space<vmem>>, vector<1x128xf32>
    %75 = vector.broadcast %74 : vector<1x128xf32> to vector<128x128xf32>
    %76 = arith.addf %73, %75 : vector<128x128xf32>
    %cst_97 = arith.constant 0.000000e+00 : f32
    %77 = vector.broadcast %cst_97 : f32 to vector<128x128xf32>
    %78 = arith.maximumf %76, %77 : vector<128x128xf32>
    %79 = arith.truncf %78 : vector<128x128xf32> to vector<128x128xbf16>
    %80 = vector.shape_cast %79 : vector<128x128xbf16> to vector<8x16x128xbf16>
    %c1_98 = arith.constant 1 : index
    %c1_99 = arith.constant 1 : index
    %c0_100 = arith.constant 0 : index
    %81 = vector.load %arg8[%c1_98, %c1_99, %c0_100] : memref<18x18x128xbf16, #tpu.memory_space<vmem>>, vector<8x16x128xbf16>
    tpu.vector_store %arg8[%c1_98, %c1_99, %c0_100], %80 {strides = array<i32>} : memref<18x18x128xbf16, #tpu.memory_space<vmem>>, vector<8x16x128xbf16>,
    %c8_101 = arith.constant 8 : index
    %c0_102 = arith.constant 0 : index
    %c0_103 = arith.constant 0 : index
    %82 = vector.load %arg7[%c8_101, %c0_102, %c0_103] : memref<18x18x8xbf16, #tpu.memory_space<vmem>>, vector<8x16x8xbf16>
    %83 = vector.shape_cast %82 : vector<8x16x8xbf16> to vector<128x8xbf16>
    %c0_104 = arith.constant 0 : index
    %c0_105 = arith.constant 0 : index
    %c0_106 = arith.constant 0 : index
    %84 = vector.load %arg2[%c0_104, %c0_105, %c0_106] : memref<9x8x128xbf16, #tpu.memory_space<vmem>>, vector<1x8x128xbf16>
    %85 = vector.shape_cast %84 : vector<1x8x128xbf16> to vector<8x128xbf16>
    %cst_107 = arith.constant dense<0.000000e+00> : vector<128x128xf32>
    %86 = tpu.matmul %83, %85, %cst_107 {dimension_numbers = #tpu.dot_dimension_numbers<[1], [0], [0], [1], [0, 0, 1, 1], [], []>} : vector<128x8xbf16>, vector<8x128xbf16>, vector<128x128xf32> -> vector<128x128xf32>
    %c8_108 = arith.constant 8 : index
    %c1_109 = arith.constant 1 : index
    %c0_110 = arith.constant 0 : index
    %87 = vector.load %arg7[%c8_108, %c1_109, %c0_110] : memref<18x18x8xbf16, #tpu.memory_space<vmem>>, vector<8x16x8xbf16>
    %88 = vector.shape_cast %87 : vector<8x16x8xbf16> to vector<128x8xbf16>
    %c1_111 = arith.constant 1 : index
    %c0_112 = arith.constant 0 : index
    %c0_113 = arith.constant 0 : index
    %89 = vector.load %arg2[%c1_111, %c0_112, %c0_113] : memref<9x8x128xbf16, #tpu.memory_space<vmem>>, vector<1x8x128xbf16>
    %90 = vector.shape_cast %89 : vector<1x8x128xbf16> to vector<8x128xbf16>
    %cst_114 = arith.constant dense<0.000000e+00> : vector<128x128xf32>
    %91 = tpu.matmul %88, %90, %cst_114 {dimension_numbers = #tpu.dot_dimension_numbers<[1], [0], [0], [1], [0, 0, 1, 1], [], []>} : vector<128x8xbf16>, vector<8x128xbf16>, vector<128x128xf32> -> vector<128x128xf32>
    %92 = arith.addf %86, %91 : vector<128x128xf32>
    %c8_115 = arith.constant 8 : index
    %c2_116 = arith.constant 2 : index
    %c0_117 = arith.constant 0 : index
    %93 = vector.load %arg7[%c8_115, %c2_116, %c0_117] : memref<18x18x8xbf16, #tpu.memory_space<vmem>>, vector<8x16x8xbf16>
    %94 = vector.shape_cast %93 : vector<8x16x8xbf16> to vector<128x8xbf16>
    %c2_118 = arith.constant 2 : index
    %c0_119 = arith.constant 0 : index
    %c0_120 = arith.constant 0 : index
    %95 = vector.load %arg2[%c2_118, %c0_119, %c0_120] : memref<9x8x128xbf16, #tpu.memory_space<vmem>>, vector<1x8x128xbf16>
    %96 = vector.shape_cast %95 : vector<1x8x128xbf16> to vector<8x128xbf16>
    %cst_121 = arith.constant dense<0.000000e+00> : vector<128x128xf32>
    %97 = tpu.matmul %94, %96, %cst_121 {dimension_numbers = #tpu.dot_dimension_numbers<[1], [0], [0], [1], [0, 0, 1, 1], [], []>} : vector<128x8xbf16>, vector<8x128xbf16>, vector<128x128xf32> -> vector<128x128xf32>
    %98 = arith.addf %92, %97 : vector<128x128xf32>
    %c9 = arith.constant 9 : index
    %c0_122 = arith.constant 0 : index
    %c0_123 = arith.constant 0 : index
    %99 = vector.load %arg7[%c9, %c0_122, %c0_123] : memref<18x18x8xbf16, #tpu.memory_space<vmem>>, vector<8x16x8xbf16>
    %100 = vector.shape_cast %99 : vector<8x16x8xbf16> to vector<128x8xbf16>
    %c3_124 = arith.constant 3 : index
    %c0_125 = arith.constant 0 : index
    %c0_126 = arith.constant 0 : index
    %101 = vector.load %arg2[%c3_124, %c0_125, %c0_126] : memref<9x8x128xbf16, #tpu.memory_space<vmem>>, vector<1x8x128xbf16>
    %102 = vector.shape_cast %101 : vector<1x8x128xbf16> to vector<8x128xbf16>
    %cst_127 = arith.constant dense<0.000000e+00> : vector<128x128xf32>
    %103 = tpu.matmul %100, %102, %cst_127 {dimension_numbers = #tpu.dot_dimension_numbers<[1], [0], [0], [1], [0, 0, 1, 1], [], []>} : vector<128x8xbf16>, vector<8x128xbf16>, vector<128x128xf32> -> vector<128x128xf32>
    %104 = arith.addf %98, %103 : vector<128x128xf32>
    %c9_128 = arith.constant 9 : index
    %c1_129 = arith.constant 1 : index
    %c0_130 = arith.constant 0 : index
    %105 = vector.load %arg7[%c9_128, %c1_129, %c0_130] : memref<18x18x8xbf16, #tpu.memory_space<vmem>>, vector<8x16x8xbf16>
    %106 = vector.shape_cast %105 : vector<8x16x8xbf16> to vector<128x8xbf16>
    %c4_131 = arith.constant 4 : index
    %c0_132 = arith.constant 0 : index
    %c0_133 = arith.constant 0 : index
    %107 = vector.load %arg2[%c4_131, %c0_132, %c0_133] : memref<9x8x128xbf16, #tpu.memory_space<vmem>>, vector<1x8x128xbf16>
    %108 = vector.shape_cast %107 : vector<1x8x128xbf16> to vector<8x128xbf16>
    %cst_134 = arith.constant dense<0.000000e+00> : vector<128x128xf32>
    %109 = tpu.matmul %106, %108, %cst_134 {dimension_numbers = #tpu.dot_dimension_numbers<[1], [0], [0], [1], [0, 0, 1, 1], [], []>} : vector<128x8xbf16>, vector<8x128xbf16>, vector<128x128xf32> -> vector<128x128xf32>
    %110 = arith.addf %104, %109 : vector<128x128xf32>
    %c9_135 = arith.constant 9 : index
    %c2_136 = arith.constant 2 : index
    %c0_137 = arith.constant 0 : index
    %111 = vector.load %arg7[%c9_135, %c2_136, %c0_137] : memref<18x18x8xbf16, #tpu.memory_space<vmem>>, vector<8x16x8xbf16>
    %112 = vector.shape_cast %111 : vector<8x16x8xbf16> to vector<128x8xbf16>
    %c5_138 = arith.constant 5 : index
    %c0_139 = arith.constant 0 : index
    %c0_140 = arith.constant 0 : index
    %113 = vector.load %arg2[%c5_138, %c0_139, %c0_140] : memref<9x8x128xbf16, #tpu.memory_space<vmem>>, vector<1x8x128xbf16>
    %114 = vector.shape_cast %113 : vector<1x8x128xbf16> to vector<8x128xbf16>
    %cst_141 = arith.constant dense<0.000000e+00> : vector<128x128xf32>
    %115 = tpu.matmul %112, %114, %cst_141 {dimension_numbers = #tpu.dot_dimension_numbers<[1], [0], [0], [1], [0, 0, 1, 1], [], []>} : vector<128x8xbf16>, vector<8x128xbf16>, vector<128x128xf32> -> vector<128x128xf32>
    %116 = arith.addf %110, %115 : vector<128x128xf32>
    %c10 = arith.constant 10 : index
    %c0_142 = arith.constant 0 : index
    %c0_143 = arith.constant 0 : index
    %117 = vector.load %arg7[%c10, %c0_142, %c0_143] : memref<18x18x8xbf16, #tpu.memory_space<vmem>>, vector<8x16x8xbf16>
    %118 = vector.shape_cast %117 : vector<8x16x8xbf16> to vector<128x8xbf16>
    %c6_144 = arith.constant 6 : index
    %c0_145 = arith.constant 0 : index
    %c0_146 = arith.constant 0 : index
    %119 = vector.load %arg2[%c6_144, %c0_145, %c0_146] : memref<9x8x128xbf16, #tpu.memory_space<vmem>>, vector<1x8x128xbf16>
    %120 = vector.shape_cast %119 : vector<1x8x128xbf16> to vector<8x128xbf16>
    %cst_147 = arith.constant dense<0.000000e+00> : vector<128x128xf32>
    %121 = tpu.matmul %118, %120, %cst_147 {dimension_numbers = #tpu.dot_dimension_numbers<[1], [0], [0], [1], [0, 0, 1, 1], [], []>} : vector<128x8xbf16>, vector<8x128xbf16>, vector<128x128xf32> -> vector<128x128xf32>
    %122 = arith.addf %116, %121 : vector<128x128xf32>
    %c10_148 = arith.constant 10 : index
    %c1_149 = arith.constant 1 : index
    %c0_150 = arith.constant 0 : index
    %123 = vector.load %arg7[%c10_148, %c1_149, %c0_150] : memref<18x18x8xbf16, #tpu.memory_space<vmem>>, vector<8x16x8xbf16>
    %124 = vector.shape_cast %123 : vector<8x16x8xbf16> to vector<128x8xbf16>
    %c7_151 = arith.constant 7 : index
    %c0_152 = arith.constant 0 : index
    %c0_153 = arith.constant 0 : index
    %125 = vector.load %arg2[%c7_151, %c0_152, %c0_153] : memref<9x8x128xbf16, #tpu.memory_space<vmem>>, vector<1x8x128xbf16>
    %126 = vector.shape_cast %125 : vector<1x8x128xbf16> to vector<8x128xbf16>
    %cst_154 = arith.constant dense<0.000000e+00> : vector<128x128xf32>
    %127 = tpu.matmul %124, %126, %cst_154 {dimension_numbers = #tpu.dot_dimension_numbers<[1], [0], [0], [1], [0, 0, 1, 1], [], []>} : vector<128x8xbf16>, vector<8x128xbf16>, vector<128x128xf32> -> vector<128x128xf32>
    %128 = arith.addf %122, %127 : vector<128x128xf32>
    %c10_155 = arith.constant 10 : index
    %c2_156 = arith.constant 2 : index
    %c0_157 = arith.constant 0 : index
    %129 = vector.load %arg7[%c10_155, %c2_156, %c0_157] : memref<18x18x8xbf16, #tpu.memory_space<vmem>>, vector<8x16x8xbf16>
    %130 = vector.shape_cast %129 : vector<8x16x8xbf16> to vector<128x8xbf16>
    %c8_158 = arith.constant 8 : index
    %c0_159 = arith.constant 0 : index
    %c0_160 = arith.constant 0 : index
    %131 = vector.load %arg2[%c8_158, %c0_159, %c0_160] : memref<9x8x128xbf16, #tpu.memory_space<vmem>>, vector<1x8x128xbf16>
    %132 = vector.shape_cast %131 : vector<1x8x128xbf16> to vector<8x128xbf16>
    %cst_161 = arith.constant dense<0.000000e+00> : vector<128x128xf32>
    %133 = tpu.matmul %130, %132, %cst_161 {dimension_numbers = #tpu.dot_dimension_numbers<[1], [0], [0], [1], [0, 0, 1, 1], [], []>} : vector<128x8xbf16>, vector<8x128xbf16>, vector<128x128xf32> -> vector<128x128xf32>
    %134 = arith.addf %128, %133 : vector<128x128xf32>
    %c0_162 = arith.constant 0 : index
    %c0_163 = arith.constant 0 : index
    %135 = vector.load %arg3[%c0_162, %c0_163] : memref<1x128xf32, #tpu.memory_space<vmem>>, vector<1x128xf32>
    %136 = vector.broadcast %135 : vector<1x128xf32> to vector<128x128xf32>
    %137 = arith.addf %134, %136 : vector<128x128xf32>
    %cst_164 = arith.constant 0.000000e+00 : f32
    %138 = vector.broadcast %cst_164 : f32 to vector<128x128xf32>
    %139 = arith.maximumf %137, %138 : vector<128x128xf32>
    %140 = arith.truncf %139 : vector<128x128xf32> to vector<128x128xbf16>
    %141 = vector.shape_cast %140 : vector<128x128xbf16> to vector<8x16x128xbf16>
    %c9_165 = arith.constant 9 : index
    %c1_166 = arith.constant 1 : index
    %c0_167 = arith.constant 0 : index
    %142 = vector.load %arg8[%c9_165, %c1_166, %c0_167] : memref<18x18x128xbf16, #tpu.memory_space<vmem>>, vector<8x16x128xbf16>
    tpu.vector_store %arg8[%c9_165, %c1_166, %c0_167], %141 {strides = array<i32>} : memref<18x18x128xbf16, #tpu.memory_space<vmem>>, vector<8x16x128xbf16>,
    %c0_168 = arith.constant 0 : index
    %c0_169 = arith.constant 0 : index
    %c0_170 = arith.constant 0 : index
    %143 = vector.load %arg8[%c0_168, %c0_169, %c0_170] : memref<18x18x128xbf16, #tpu.memory_space<vmem>>, vector<8x16x128xbf16>
    %144 = vector.shape_cast %143 : vector<8x16x128xbf16> to vector<128x128xbf16>
    %c0_171 = arith.constant 0 : index
    %c0_172 = arith.constant 0 : index
    %c0_173 = arith.constant 0 : index
    %145 = vector.load %arg4[%c0_171, %c0_172, %c0_173] : memref<9x128x128xbf16, #tpu.memory_space<vmem>>, vector<1x128x128xbf16>
    %146 = vector.shape_cast %145 : vector<1x128x128xbf16> to vector<128x128xbf16>
    %cst_174 = arith.constant dense<0.000000e+00> : vector<128x128xf32>
    %147 = tpu.matmul %144, %146, %cst_174 {dimension_numbers = #tpu.dot_dimension_numbers<[1], [0], [0], [1], [0, 0, 1, 1], [], []>} : vector<128x128xbf16>, vector<128x128xbf16>, vector<128x128xf32> -> vector<128x128xf32>
    %c0_175 = arith.constant 0 : index
    %c1_176 = arith.constant 1 : index
    %c0_177 = arith.constant 0 : index
    %148 = vector.load %arg8[%c0_175, %c1_176, %c0_177] : memref<18x18x128xbf16, #tpu.memory_space<vmem>>, vector<8x16x128xbf16>
    %149 = vector.shape_cast %148 : vector<8x16x128xbf16> to vector<128x128xbf16>
    %c1_178 = arith.constant 1 : index
    %c0_179 = arith.constant 0 : index
    %c0_180 = arith.constant 0 : index
    %150 = vector.load %arg4[%c1_178, %c0_179, %c0_180] : memref<9x128x128xbf16, #tpu.memory_space<vmem>>, vector<1x128x128xbf16>
    %151 = vector.shape_cast %150 : vector<1x128x128xbf16> to vector<128x128xbf16>
    %cst_181 = arith.constant dense<0.000000e+00> : vector<128x128xf32>
    %152 = tpu.matmul %149, %151, %cst_181 {dimension_numbers = #tpu.dot_dimension_numbers<[1], [0], [0], [1], [0, 0, 1, 1], [], []>} : vector<128x128xbf16>, vector<128x128xbf16>, vector<128x128xf32> -> vector<128x128xf32>
    %153 = arith.addf %147, %152 : vector<128x128xf32>
    %c0_182 = arith.constant 0 : index
    %c2_183 = arith.constant 2 : index
    %c0_184 = arith.constant 0 : index
    %154 = vector.load %arg8[%c0_182, %c2_183, %c0_184] : memref<18x18x128xbf16, #tpu.memory_space<vmem>>, vector<8x16x128xbf16>
    %155 = vector.shape_cast %154 : vector<8x16x128xbf16> to vector<128x128xbf16>
    %c2_185 = arith.constant 2 : index
    %c0_186 = arith.constant 0 : index
    %c0_187 = arith.constant 0 : index
    %156 = vector.load %arg4[%c2_185, %c0_186, %c0_187] : memref<9x128x128xbf16, #tpu.memory_space<vmem>>, vector<1x128x128xbf16>
    %157 = vector.shape_cast %156 : vector<1x128x128xbf16> to vector<128x128xbf16>
    %cst_188 = arith.constant dense<0.000000e+00> : vector<128x128xf32>
    %158 = tpu.matmul %155, %157, %cst_188 {dimension_numbers = #tpu.dot_dimension_numbers<[1], [0], [0], [1], [0, 0, 1, 1], [], []>} : vector<128x128xbf16>, vector<128x128xbf16>, vector<128x128xf32> -> vector<128x128xf32>
    %159 = arith.addf %153, %158 : vector<128x128xf32>
    %c1_189 = arith.constant 1 : index
    %c0_190 = arith.constant 0 : index
    %c0_191 = arith.constant 0 : index
    %160 = vector.load %arg8[%c1_189, %c0_190, %c0_191] : memref<18x18x128xbf16, #tpu.memory_space<vmem>>, vector<8x16x128xbf16>
    %161 = vector.shape_cast %160 : vector<8x16x128xbf16> to vector<128x128xbf16>
    %c3_192 = arith.constant 3 : index
    %c0_193 = arith.constant 0 : index
    %c0_194 = arith.constant 0 : index
    %162 = vector.load %arg4[%c3_192, %c0_193, %c0_194] : memref<9x128x128xbf16, #tpu.memory_space<vmem>>, vector<1x128x128xbf16>
    %163 = vector.shape_cast %162 : vector<1x128x128xbf16> to vector<128x128xbf16>
    %cst_195 = arith.constant dense<0.000000e+00> : vector<128x128xf32>
    %164 = tpu.matmul %161, %163, %cst_195 {dimension_numbers = #tpu.dot_dimension_numbers<[1], [0], [0], [1], [0, 0, 1, 1], [], []>} : vector<128x128xbf16>, vector<128x128xbf16>, vector<128x128xf32> -> vector<128x128xf32>
    %165 = arith.addf %159, %164 : vector<128x128xf32>
    %c1_196 = arith.constant 1 : index
    %c1_197 = arith.constant 1 : index
    %c0_198 = arith.constant 0 : index
    %166 = vector.load %arg8[%c1_196, %c1_197, %c0_198] : memref<18x18x128xbf16, #tpu.memory_space<vmem>>, vector<8x16x128xbf16>
    %167 = vector.shape_cast %166 : vector<8x16x128xbf16> to vector<128x128xbf16>
    %c4_199 = arith.constant 4 : index
    %c0_200 = arith.constant 0 : index
    %c0_201 = arith.constant 0 : index
    %168 = vector.load %arg4[%c4_199, %c0_200, %c0_201] : memref<9x128x128xbf16, #tpu.memory_space<vmem>>, vector<1x128x128xbf16>
    %169 = vector.shape_cast %168 : vector<1x128x128xbf16> to vector<128x128xbf16>
    %cst_202 = arith.constant dense<0.000000e+00> : vector<128x128xf32>
    %170 = tpu.matmul %167, %169, %cst_202 {dimension_numbers = #tpu.dot_dimension_numbers<[1], [0], [0], [1], [0, 0, 1, 1], [], []>} : vector<128x128xbf16>, vector<128x128xbf16>, vector<128x128xf32> -> vector<128x128xf32>
    %171 = arith.addf %165, %170 : vector<128x128xf32>
    %c1_203 = arith.constant 1 : index
    %c2_204 = arith.constant 2 : index
    %c0_205 = arith.constant 0 : index
    %172 = vector.load %arg8[%c1_203, %c2_204, %c0_205] : memref<18x18x128xbf16, #tpu.memory_space<vmem>>, vector<8x16x128xbf16>
    %173 = vector.shape_cast %172 : vector<8x16x128xbf16> to vector<128x128xbf16>
    %c5_206 = arith.constant 5 : index
    %c0_207 = arith.constant 0 : index
    %c0_208 = arith.constant 0 : index
    %174 = vector.load %arg4[%c5_206, %c0_207, %c0_208] : memref<9x128x128xbf16, #tpu.memory_space<vmem>>, vector<1x128x128xbf16>
    %175 = vector.shape_cast %174 : vector<1x128x128xbf16> to vector<128x128xbf16>
    %cst_209 = arith.constant dense<0.000000e+00> : vector<128x128xf32>
    %176 = tpu.matmul %173, %175, %cst_209 {dimension_numbers = #tpu.dot_dimension_numbers<[1], [0], [0], [1], [0, 0, 1, 1], [], []>} : vector<128x128xbf16>, vector<128x128xbf16>, vector<128x128xf32> -> vector<128x128xf32>
    %177 = arith.addf %171, %176 : vector<128x128xf32>
    %c2_210 = arith.constant 2 : index
    %c0_211 = arith.constant 0 : index
    %c0_212 = arith.constant 0 : index
    %178 = vector.load %arg8[%c2_210, %c0_211, %c0_212] : memref<18x18x128xbf16, #tpu.memory_space<vmem>>, vector<8x16x128xbf16>
    %179 = vector.shape_cast %178 : vector<8x16x128xbf16> to vector<128x128xbf16>
    %c6_213 = arith.constant 6 : index
    %c0_214 = arith.constant 0 : index
    %c0_215 = arith.constant 0 : index
    %180 = vector.load %arg4[%c6_213, %c0_214, %c0_215] : memref<9x128x128xbf16, #tpu.memory_space<vmem>>, vector<1x128x128xbf16>
    %181 = vector.shape_cast %180 : vector<1x128x128xbf16> to vector<128x128xbf16>
    %cst_216 = arith.constant dense<0.000000e+00> : vector<128x128xf32>
    %182 = tpu.matmul %179, %181, %cst_216 {dimension_numbers = #tpu.dot_dimension_numbers<[1], [0], [0], [1], [0, 0, 1, 1], [], []>} : vector<128x128xbf16>, vector<128x128xbf16>, vector<128x128xf32> -> vector<128x128xf32>
    %183 = arith.addf %177, %182 : vector<128x128xf32>
    %c2_217 = arith.constant 2 : index
    %c1_218 = arith.constant 1 : index
    %c0_219 = arith.constant 0 : index
    %184 = vector.load %arg8[%c2_217, %c1_218, %c0_219] : memref<18x18x128xbf16, #tpu.memory_space<vmem>>, vector<8x16x128xbf16>
    %185 = vector.shape_cast %184 : vector<8x16x128xbf16> to vector<128x128xbf16>
    %c7_220 = arith.constant 7 : index
    %c0_221 = arith.constant 0 : index
    %c0_222 = arith.constant 0 : index
    %186 = vector.load %arg4[%c7_220, %c0_221, %c0_222] : memref<9x128x128xbf16, #tpu.memory_space<vmem>>, vector<1x128x128xbf16>
    %187 = vector.shape_cast %186 : vector<1x128x128xbf16> to vector<128x128xbf16>
    %cst_223 = arith.constant dense<0.000000e+00> : vector<128x128xf32>
    %188 = tpu.matmul %185, %187, %cst_223 {dimension_numbers = #tpu.dot_dimension_numbers<[1], [0], [0], [1], [0, 0, 1, 1], [], []>} : vector<128x128xbf16>, vector<128x128xbf16>, vector<128x128xf32> -> vector<128x128xf32>
    %189 = arith.addf %183, %188 : vector<128x128xf32>
    %c2_224 = arith.constant 2 : index
    %c2_225 = arith.constant 2 : index
    %c0_226 = arith.constant 0 : index
    %190 = vector.load %arg8[%c2_224, %c2_225, %c0_226] : memref<18x18x128xbf16, #tpu.memory_space<vmem>>, vector<8x16x128xbf16>
    %191 = vector.shape_cast %190 : vector<8x16x128xbf16> to vector<128x128xbf16>
    %c8_227 = arith.constant 8 : index
    %c0_228 = arith.constant 0 : index
    %c0_229 = arith.constant 0 : index
    %192 = vector.load %arg4[%c8_227, %c0_228, %c0_229] : memref<9x128x128xbf16, #tpu.memory_space<vmem>>, vector<1x128x128xbf16>
    %193 = vector.shape_cast %192 : vector<1x128x128xbf16> to vector<128x128xbf16>
    %cst_230 = arith.constant dense<0.000000e+00> : vector<128x128xf32>
    %194 = tpu.matmul %191, %193, %cst_230 {dimension_numbers = #tpu.dot_dimension_numbers<[1], [0], [0], [1], [0, 0, 1, 1], [], []>} : vector<128x128xbf16>, vector<128x128xbf16>, vector<128x128xf32> -> vector<128x128xf32>
    %195 = arith.addf %189, %194 : vector<128x128xf32>
    %c0_231 = arith.constant 0 : index
    %c0_232 = arith.constant 0 : index
    %196 = vector.load %arg5[%c0_231, %c0_232] : memref<1x128xf32, #tpu.memory_space<vmem>>, vector<1x128xf32>
    %197 = vector.broadcast %196 : vector<1x128xf32> to vector<128x128xf32>
    %198 = arith.addf %195, %197 : vector<128x128xf32>
    %cst_233 = arith.constant 0.000000e+00 : f32
    %199 = vector.broadcast %cst_233 : f32 to vector<128x128xf32>
    %200 = arith.maximumf %198, %199 : vector<128x128xf32>
    %201 = vector.extract_strided_slice %200 {offsets = [0, 0], sizes = [128, 8], strides = [1, 1]} : vector<128x128xf32> to vector<128x8xf32>
    %202 = arith.truncf %201 : vector<128x8xf32> to vector<128x8xbf16>
    %203 = vector.shape_cast %202 : vector<128x8xbf16> to vector<8x16x8xbf16>
    %c0_234 = arith.constant 0 : index
    %c0_235 = arith.constant 0 : index
    %c0_236 = arith.constant 0 : index
    %c0_237 = arith.constant 0 : index
    %204 = vector.load %arg6[%c0_234, %c0_235, %c0_236, %c0_237] : memref<1x16x16x8xbf16, #tpu.memory_space<vmem>>, vector<1x8x16x8xbf16>
    %205 = vector.shape_cast %204 : vector<1x8x16x8xbf16> to vector<8x16x8xbf16>
    %206 = vector.shape_cast %203 : vector<8x16x8xbf16> to vector<1x8x16x8xbf16>
    tpu.vector_store %arg6[%c0_234, %c0_235, %c0_236, %c0_237], %206 {strides = array<i32>} : memref<1x16x16x8xbf16, #tpu.memory_space<vmem>>, vector<1x8x16x8xbf16>,
    %c8_238 = arith.constant 8 : index
    %c0_239 = arith.constant 0 : index
    %c0_240 = arith.constant 0 : index
    %207 = vector.load %arg8[%c8_238, %c0_239, %c0_240] : memref<18x18x128xbf16, #tpu.memory_space<vmem>>, vector<8x16x128xbf16>
    %208 = vector.shape_cast %207 : vector<8x16x128xbf16> to vector<128x128xbf16>
    %c0_241 = arith.constant 0 : index
    %c0_242 = arith.constant 0 : index
    %c0_243 = arith.constant 0 : index
    %209 = vector.load %arg4[%c0_241, %c0_242, %c0_243] : memref<9x128x128xbf16, #tpu.memory_space<vmem>>, vector<1x128x128xbf16>
    %210 = vector.shape_cast %209 : vector<1x128x128xbf16> to vector<128x128xbf16>
    %cst_244 = arith.constant dense<0.000000e+00> : vector<128x128xf32>
    %211 = tpu.matmul %208, %210, %cst_244 {dimension_numbers = #tpu.dot_dimension_numbers<[1], [0], [0], [1], [0, 0, 1, 1], [], []>} : vector<128x128xbf16>, vector<128x128xbf16>, vector<128x128xf32> -> vector<128x128xf32>
    %c8_245 = arith.constant 8 : index
    %c1_246 = arith.constant 1 : index
    %c0_247 = arith.constant 0 : index
    %212 = vector.load %arg8[%c8_245, %c1_246, %c0_247] : memref<18x18x128xbf16, #tpu.memory_space<vmem>>, vector<8x16x128xbf16>
    %213 = vector.shape_cast %212 : vector<8x16x128xbf16> to vector<128x128xbf16>
    %c1_248 = arith.constant 1 : index
    %c0_249 = arith.constant 0 : index
    %c0_250 = arith.constant 0 : index
    %214 = vector.load %arg4[%c1_248, %c0_249, %c0_250] : memref<9x128x128xbf16, #tpu.memory_space<vmem>>, vector<1x128x128xbf16>
    %215 = vector.shape_cast %214 : vector<1x128x128xbf16> to vector<128x128xbf16>
    %cst_251 = arith.constant dense<0.000000e+00> : vector<128x128xf32>
    %216 = tpu.matmul %213, %215, %cst_251 {dimension_numbers = #tpu.dot_dimension_numbers<[1], [0], [0], [1], [0, 0, 1, 1], [], []>} : vector<128x128xbf16>, vector<128x128xbf16>, vector<128x128xf32> -> vector<128x128xf32>
    %217 = arith.addf %211, %216 : vector<128x128xf32>
    %c8_252 = arith.constant 8 : index
    %c2_253 = arith.constant 2 : index
    %c0_254 = arith.constant 0 : index
    %218 = vector.load %arg8[%c8_252, %c2_253, %c0_254] : memref<18x18x128xbf16, #tpu.memory_space<vmem>>, vector<8x16x128xbf16>
    %219 = vector.shape_cast %218 : vector<8x16x128xbf16> to vector<128x128xbf16>
    %c2_255 = arith.constant 2 : index
    %c0_256 = arith.constant 0 : index
    %c0_257 = arith.constant 0 : index
    %220 = vector.load %arg4[%c2_255, %c0_256, %c0_257] : memref<9x128x128xbf16, #tpu.memory_space<vmem>>, vector<1x128x128xbf16>
    %221 = vector.shape_cast %220 : vector<1x128x128xbf16> to vector<128x128xbf16>
    %cst_258 = arith.constant dense<0.000000e+00> : vector<128x128xf32>
    %222 = tpu.matmul %219, %221, %cst_258 {dimension_numbers = #tpu.dot_dimension_numbers<[1], [0], [0], [1], [0, 0, 1, 1], [], []>} : vector<128x128xbf16>, vector<128x128xbf16>, vector<128x128xf32> -> vector<128x128xf32>
    %223 = arith.addf %217, %222 : vector<128x128xf32>
    %c9_259 = arith.constant 9 : index
    %c0_260 = arith.constant 0 : index
    %c0_261 = arith.constant 0 : index
    %224 = vector.load %arg8[%c9_259, %c0_260, %c0_261] : memref<18x18x128xbf16, #tpu.memory_space<vmem>>, vector<8x16x128xbf16>
    %225 = vector.shape_cast %224 : vector<8x16x128xbf16> to vector<128x128xbf16>
    %c3_262 = arith.constant 3 : index
    %c0_263 = arith.constant 0 : index
    %c0_264 = arith.constant 0 : index
    %226 = vector.load %arg4[%c3_262, %c0_263, %c0_264] : memref<9x128x128xbf16, #tpu.memory_space<vmem>>, vector<1x128x128xbf16>
    %227 = vector.shape_cast %226 : vector<1x128x128xbf16> to vector<128x128xbf16>
    %cst_265 = arith.constant dense<0.000000e+00> : vector<128x128xf32>
    %228 = tpu.matmul %225, %227, %cst_265 {dimension_numbers = #tpu.dot_dimension_numbers<[1], [0], [0], [1], [0, 0, 1, 1], [], []>} : vector<128x128xbf16>, vector<128x128xbf16>, vector<128x128xf32> -> vector<128x128xf32>
    %229 = arith.addf %223, %228 : vector<128x128xf32>
    %c9_266 = arith.constant 9 : index
    %c1_267 = arith.constant 1 : index
    %c0_268 = arith.constant 0 : index
    %230 = vector.load %arg8[%c9_266, %c1_267, %c0_268] : memref<18x18x128xbf16, #tpu.memory_space<vmem>>, vector<8x16x128xbf16>
    %231 = vector.shape_cast %230 : vector<8x16x128xbf16> to vector<128x128xbf16>
    %c4_269 = arith.constant 4 : index
    %c0_270 = arith.constant 0 : index
    %c0_271 = arith.constant 0 : index
    %232 = vector.load %arg4[%c4_269, %c0_270, %c0_271] : memref<9x128x128xbf16, #tpu.memory_space<vmem>>, vector<1x128x128xbf16>
    %233 = vector.shape_cast %232 : vector<1x128x128xbf16> to vector<128x128xbf16>
    %cst_272 = arith.constant dense<0.000000e+00> : vector<128x128xf32>
    %234 = tpu.matmul %231, %233, %cst_272 {dimension_numbers = #tpu.dot_dimension_numbers<[1], [0], [0], [1], [0, 0, 1, 1], [], []>} : vector<128x128xbf16>, vector<128x128xbf16>, vector<128x128xf32> -> vector<128x128xf32>
    %235 = arith.addf %229, %234 : vector<128x128xf32>
    %c9_273 = arith.constant 9 : index
    %c2_274 = arith.constant 2 : index
    %c0_275 = arith.constant 0 : index
    %236 = vector.load %arg8[%c9_273, %c2_274, %c0_275] : memref<18x18x128xbf16, #tpu.memory_space<vmem>>, vector<8x16x128xbf16>
    %237 = vector.shape_cast %236 : vector<8x16x128xbf16> to vector<128x128xbf16>
    %c5_276 = arith.constant 5 : index
    %c0_277 = arith.constant 0 : index
    %c0_278 = arith.constant 0 : index
    %238 = vector.load %arg4[%c5_276, %c0_277, %c0_278] : memref<9x128x128xbf16, #tpu.memory_space<vmem>>, vector<1x128x128xbf16>
    %239 = vector.shape_cast %238 : vector<1x128x128xbf16> to vector<128x128xbf16>
    %cst_279 = arith.constant dense<0.000000e+00> : vector<128x128xf32>
    %240 = tpu.matmul %237, %239, %cst_279 {dimension_numbers = #tpu.dot_dimension_numbers<[1], [0], [0], [1], [0, 0, 1, 1], [], []>} : vector<128x128xbf16>, vector<128x128xbf16>, vector<128x128xf32> -> vector<128x128xf32>
    %241 = arith.addf %235, %240 : vector<128x128xf32>
    %c10_280 = arith.constant 10 : index
    %c0_281 = arith.constant 0 : index
    %c0_282 = arith.constant 0 : index
    %242 = vector.load %arg8[%c10_280, %c0_281, %c0_282] : memref<18x18x128xbf16, #tpu.memory_space<vmem>>, vector<8x16x128xbf16>
    %243 = vector.shape_cast %242 : vector<8x16x128xbf16> to vector<128x128xbf16>
    %c6_283 = arith.constant 6 : index
    %c0_284 = arith.constant 0 : index
    %c0_285 = arith.constant 0 : index
    %244 = vector.load %arg4[%c6_283, %c0_284, %c0_285] : memref<9x128x128xbf16, #tpu.memory_space<vmem>>, vector<1x128x128xbf16>
    %245 = vector.shape_cast %244 : vector<1x128x128xbf16> to vector<128x128xbf16>
    %cst_286 = arith.constant dense<0.000000e+00> : vector<128x128xf32>
    %246 = tpu.matmul %243, %245, %cst_286 {dimension_numbers = #tpu.dot_dimension_numbers<[1], [0], [0], [1], [0, 0, 1, 1], [], []>} : vector<128x128xbf16>, vector<128x128xbf16>, vector<128x128xf32> -> vector<128x128xf32>
    %247 = arith.addf %241, %246 : vector<128x128xf32>
    %c10_287 = arith.constant 10 : index
    %c1_288 = arith.constant 1 : index
    %c0_289 = arith.constant 0 : index
    %248 = vector.load %arg8[%c10_287, %c1_288, %c0_289] : memref<18x18x128xbf16, #tpu.memory_space<vmem>>, vector<8x16x128xbf16>
    %249 = vector.shape_cast %248 : vector<8x16x128xbf16> to vector<128x128xbf16>
    %c7_290 = arith.constant 7 : index
    %c0_291 = arith.constant 0 : index
    %c0_292 = arith.constant 0 : index
    %250 = vector.load %arg4[%c7_290, %c0_291, %c0_292] : memref<9x128x128xbf16, #tpu.memory_space<vmem>>, vector<1x128x128xbf16>
    %251 = vector.shape_cast %250 : vector<1x128x128xbf16> to vector<128x128xbf16>
    %cst_293 = arith.constant dense<0.000000e+00> : vector<128x128xf32>
    %252 = tpu.matmul %249, %251, %cst_293 {dimension_numbers = #tpu.dot_dimension_numbers<[1], [0], [0], [1], [0, 0, 1, 1], [], []>} : vector<128x128xbf16>, vector<128x128xbf16>, vector<128x128xf32> -> vector<128x128xf32>
    %253 = arith.addf %247, %252 : vector<128x128xf32>
    %c10_294 = arith.constant 10 : index
    %c2_295 = arith.constant 2 : index
    %c0_296 = arith.constant 0 : index
    %254 = vector.load %arg8[%c10_294, %c2_295, %c0_296] : memref<18x18x128xbf16, #tpu.memory_space<vmem>>, vector<8x16x128xbf16>
    %255 = vector.shape_cast %254 : vector<8x16x128xbf16> to vector<128x128xbf16>
    %c8_297 = arith.constant 8 : index
    %c0_298 = arith.constant 0 : index
    %c0_299 = arith.constant 0 : index
    %256 = vector.load %arg4[%c8_297, %c0_298, %c0_299] : memref<9x128x128xbf16, #tpu.memory_space<vmem>>, vector<1x128x128xbf16>
    %257 = vector.shape_cast %256 : vector<1x128x128xbf16> to vector<128x128xbf16>
    %cst_300 = arith.constant dense<0.000000e+00> : vector<128x128xf32>
    %258 = tpu.matmul %255, %257, %cst_300 {dimension_numbers = #tpu.dot_dimension_numbers<[1], [0], [0], [1], [0, 0, 1, 1], [], []>} : vector<128x128xbf16>, vector<128x128xbf16>, vector<128x128xf32> -> vector<128x128xf32>
    %259 = arith.addf %253, %258 : vector<128x128xf32>
    %c0_301 = arith.constant 0 : index
    %c0_302 = arith.constant 0 : index
    %260 = vector.load %arg5[%c0_301, %c0_302] : memref<1x128xf32, #tpu.memory_space<vmem>>, vector<1x128xf32>
    %261 = vector.broadcast %260 : vector<1x128xf32> to vector<128x128xf32>
    %262 = arith.addf %259, %261 : vector<128x128xf32>
    %cst_303 = arith.constant 0.000000e+00 : f32
    %263 = vector.broadcast %cst_303 : f32 to vector<128x128xf32>
    %264 = arith.maximumf %262, %263 : vector<128x128xf32>
    %265 = vector.extract_strided_slice %264 {offsets = [0, 0], sizes = [128, 8], strides = [1, 1]} : vector<128x128xf32> to vector<128x8xf32>
    %266 = arith.truncf %265 : vector<128x8xf32> to vector<128x8xbf16>
    %267 = vector.shape_cast %266 : vector<128x8xbf16> to vector<8x16x8xbf16>
    %c0_304 = arith.constant 0 : index
    %c8_305 = arith.constant 8 : index
    %c0_306 = arith.constant 0 : index
    %c0_307 = arith.constant 0 : index
    %268 = vector.load %arg6[%c0_304, %c8_305, %c0_306, %c0_307] : memref<1x16x16x8xbf16, #tpu.memory_space<vmem>>, vector<1x8x16x8xbf16>
    %269 = vector.shape_cast %268 : vector<1x8x16x8xbf16> to vector<8x16x8xbf16>
    %270 = vector.shape_cast %267 : vector<8x16x8xbf16> to vector<1x8x16x8xbf16>
    tpu.vector_store %arg6[%c0_304, %c8_305, %c0_306, %c0_307], %270 {strides = array<i32>} : memref<1x16x16x8xbf16, #tpu.memory_space<vmem>>, vector<1x8x16x8xbf16>,
    return
  }
  func.func @transform_0(%arg0: i32) -> (i32, i32, i32, i32) {
    %c0_i32 = arith.constant 0 : i32
    %c0_i32_0 = arith.constant 0 : i32
    %c0_i32_1 = arith.constant 0 : i32
    %c0_i32_2 = arith.constant 0 : i32
    return %arg0, %c0_i32, %c0_i32_0, %c0_i32_1 : i32, i32, i32, i32
  }
  func.func @transform_1(%arg0: i32) -> (i32, i32, i32) {
    %c0_i32 = arith.constant 0 : i32
    %c0_i32_0 = arith.constant 0 : i32
    %c0_i32_1 = arith.constant 0 : i32
    %c0_i32_2 = arith.constant 0 : i32
    return %c0_i32, %c0_i32_0, %c0_i32_1 : i32, i32, i32
  }
  func.func @transform_2(%arg0: i32) -> (i32, i32) {
    %c0_i32 = arith.constant 0 : i32
    %c0_i32_0 = arith.constant 0 : i32
    %c0_i32_1 = arith.constant 0 : i32
    return %c0_i32, %c0_i32_0 : i32, i32
  }
  func.func @transform_3(%arg0: i32) -> (i32, i32, i32) {
    %c0_i32 = arith.constant 0 : i32
    %c0_i32_0 = arith.constant 0 : i32
    %c0_i32_1 = arith.constant 0 : i32
    %c0_i32_2 = arith.constant 0 : i32
    return %c0_i32, %c0_i32_0, %c0_i32_1 : i32, i32, i32
  }
  func.func @transform_4(%arg0: i32) -> (i32, i32) {
    %c0_i32 = arith.constant 0 : i32
    %c0_i32_0 = arith.constant 0 : i32
    %c0_i32_1 = arith.constant 0 : i32
    return %c0_i32, %c0_i32_0 : i32, i32
  }
  func.func @transform_5(%arg0: i32) -> (i32, i32, i32, i32) {
    %c0_i32 = arith.constant 0 : i32
    %c0_i32_0 = arith.constant 0 : i32
    %c0_i32_1 = arith.constant 0 : i32
    %c0_i32_2 = arith.constant 0 : i32
    return %arg0, %c0_i32, %c0_i32_0, %c0_i32_1 : i32, i32, i32, i32
  }
}

</mosaic_0001>

<llo_original>
// kernel: base_conv_forward.1
$region0: #{base_conv_forward.1}
  #allocation0 [shape = 'u32[]', space=smem, size = 0x4, offset = 0x4, fixed_abs, tag = 'smem constant byte address 0x4 - core index']
  #allocation1 [shape = 'u32[72,128]{1,0:T(1,128)}', space=vmem, size = 0x9000, scoped, tag = 'internal scratch']
  #allocation2 [shape = 'bf16[18,18,8]{2,1,0:T(8,128)(2,1)}', space=vmem, size = 0x1b000, scoped, tag = 'scratch operand']
  #allocation3 [shape = 'bf16[18,18,128]{2,1,0:T(8,128)(2,1)}', space=vmem, size = 0x1b000, scoped, tag = 'scratch operand']
  %s0 = inlined_call_operand.vmem [shape: bf16[2,16,16,4], index: 0, kind: input, shape index: {}]
  %s1 = inlined_call_operand.vmem [shape: bf16[9,8,128], index: 1, kind: input, shape index: {}]
  %s2 = inlined_call_operand.vmem [shape: f32[1,128], index: 2, kind: input, shape index: {}]
  %s3 = inlined_call_operand.hbm [shape: bf16[9,128,128], index: 3, kind: input, shape index: {}]
  %s4 = inlined_call_operand.vmem [shape: f32[1,128], index: 4, kind: input, shape index: {}]
  %s5 = inlined_call_operand.vmem [shape: bf16[2,16,16,8], index: 5, kind: output, shape index: {}]
  %s6 = sld [smem:[#allocation0]]
  $region57: #{base_conv_forward.1} parent=0
    _
  %s8 = ssub.s32 1, %s6
  %s9 = scalar_select 0, %s8, %s6
  $region1: #{base_conv_forward.1} parent=0
    #allocation4 [shape = 'u8[294912]{0}', space=vmem, size = 0x48000, scoped, tag = 'input window, operand 3, single buffered']
    #allocation5 [shape = 's32[2]{0}', space=sflag, size = 0x8, scoped, tag = 'scoped memory for base_conv_forward.1']
    %10 = vsyncpa [#allocation5], 0
    loop: start=0, step=1, limit=4
    $region2: #{base_conv_forward.1} parent=1 // loop_pre_header
      _
    $region3: #{base_conv_forward.1} parent=1 // loop_header
      %s12 = sphi 0, %s16
      %p13 = scmp.ge.s32.totalorder %s12, 4
      %s22 = sphi 0, %s24
      %s25 = sphi 0, %s22
      %s26 = sphi 0, %s25
      %s42 = sphi 0, %s26
      %s46 = sphi 0, %s46
      %s48 = sphi 0, %s46
      %s49 = sphi 0, %s48
      %s63 = sphi 0, %s49
      %s67 = sphi 0, %s67
      %s69 = sphi 0, %s67
      %s70 = sphi 0, %s69
      %s84 = sphi 0, %s70
      %s88 = sphi 0, %s88
      %s90 = sphi 0, %s88
      %s91 = sphi 0, %s90
      %s105 = sphi 0, %s91
      %s109 = sphi 0, %s109
      %s111 = sphi 0, %s109
      %s112 = sphi 0, %s111
      %s126 = sphi 0, %s112
      %s132 = sphi 0, %s134
      %s135 = sphi 0, %s132
      %s136 = sphi 0, %s135
      %s152 = sphi 0, %s136
    $region4: #{base_conv_forward.1} parent=1 // loop_header_branch
      %15 = sbr.rel (%p13) target = $region8
    $region5: #{base_conv_forward.1} parent=1 // loop_body
      %s17 = ssub.s32 %s12, 1
      %s18 = ssub.s32 %s12, 2
      %s19 = sadd.s32 %s12, 1
      %s20 = ssub.s32 %s12, %s19
      %p21 = scmp.eq.s32.totalorder %s20, 0
      %s23 = sadd.s32 %s22, 1
      %s24 = scalar_select %p21, %s22, %s23
      %p27 = pneg %p21
      %p28 = scmp.eq.s32.totalorder %s12, 1
      %p29 = por %p27, %p28
      %p30 = scmp.ne.s32.totalorder %s22, %s25
      %p31 = scmp.eq.s32.totalorder %s12, 0
      %p32 = por %p30, %p31
      %p33 = scmp.ne.s32.totalorder %s22, %s25
      %p34 = scmp.eq.s32.totalorder %s17, 1
      %p35 = por %p33, %p34
      %p36 = scmp.ne.s32.totalorder %s25, %s26
      %p37 = scmp.eq.s32.totalorder %s17, 0
      %p38 = por %p36, %p37
      %p39 = scmp.ne.s32.totalorder %s25, %s26
      %p40 = scmp.eq.s32.totalorder %s18, 1
      %p41 = por %p39, %p40
      %p43 = scmp.ne.s32.totalorder %s26, %s42
      %p44 = scmp.eq.s32.totalorder %s18, 0
      %p45 = por %p43, %p44
      %s47 = sadd.s32 %s46, 1
      %p50 = scmp.eq.s32.totalorder %s12, 1
      %p51 = scmp.ne.s32.totalorder %s46, %s48
      %p52 = scmp.eq.s32.totalorder %s12, 0
      %p53 = por %p51, %p52
      %p54 = scmp.ne.s32.totalorder %s46, %s48
      %p55 = scmp.eq.s32.totalorder %s17, 1
      %p56 = por %p54, %p55
      %p57 = scmp.ne.s32.totalorder %s48, %s49
      %p58 = scmp.eq.s32.totalorder %s17, 0
      %p59 = por %p57, %p58
      %p60 = scmp.ne.s32.totalorder %s48, %s49
      %p61 = scmp.eq.s32.totalorder %s18, 1
      %p62 = por %p60, %p61
      %p64 = scmp.ne.s32.totalorder %s49, %s63
      %p65 = scmp.eq.s32.totalorder %s18, 0
      %p66 = por %p64, %p65
      %s68 = sadd.s32 %s67, 1
      %p71 = scmp.eq.s32.totalorder %s12, 1
      %p72 = scmp.ne.s32.totalorder %s67, %s69
      %p73 = scmp.eq.s32.totalorder %s12, 0
      %p74 = por %p72, %p73
      %p75 = scmp.ne.s32.totalorder %s67, %s69
      %p76 = scmp.eq.s32.totalorder %s17, 1
      %p77 = por %p75, %p76
      %p78 = scmp.ne.s32.totalorder %s69, %s70
      %p79 = scmp.eq.s32.totalorder %s17, 0
      %p80 = por %p78, %p79
      %p81 = scmp.ne.s32.totalorder %s69, %s70
      %p82 = scmp.eq.s32.totalorder %s18, 1
      %p83 = por %p81, %p82
      %p85 = scmp.ne.s32.totalorder %s70, %s84
      %p86 = scmp.eq.s32.totalorder %s18, 0
      %p87 = por %p85, %p86
      %s89 = sadd.s32 %s88, 1
      %p92 = scmp.eq.s32.totalorder %s12, 1
      %p93 = scmp.ne.s32.totalorder %s88, %s90
      %p94 = scmp.eq.s32.totalorder %s12, 0
      %p95 = por %p93, %p94
      %p96 = scmp.ne.s32.totalorder %s88, %s90
      %p97 = scmp.eq.s32.totalorder %s17, 1
      %p98 = por %p96, %p97
      %p99 = scmp.ne.s32.totalorder %s90, %s91
      %p100 = scmp.eq.s32.totalorder %s17, 0
      %p101 = por %p99, %p100
      %p102 = scmp.ne.s32.totalorder %s90, %s91
      %p103 = scmp.eq.s32.totalorder %s18, 1
      %p104 = por %p102, %p103
      %p106 = scmp.ne.s32.totalorder %s91, %s105
      %p107 = scmp.eq.s32.totalorder %s18, 0
      %p108 = por %p106, %p107
      %s110 = sadd.s32 %s109, 1
      %p113 = scmp.eq.s32.totalorder %s12, 1
      %p114 = scmp.ne.s32.totalorder %s109, %s111
      %p115 = scmp.eq.s32.totalorder %s12, 0
      %p116 = por %p114, %p115
      %p117 = scmp.ne.s32.totalorder %s109, %s111
      %p118 = scmp.eq.s32.totalorder %s17, 1
      %p119 = por %p117, %p118
      %p120 = scmp.ne.s32.totalorder %s111, %s112
      %p121 = scmp.eq.s32.totalorder %s17, 0
      %p122 = por %p120, %p121
      %p123 = scmp.ne.s32.totalorder %s111, %s112
      %p124 = scmp.eq.s32.totalorder %s18, 1
      %p125 = por %p123, %p124
      %p127 = scmp.ne.s32.totalorder %s112, %s126
      %p128 = scmp.eq.s32.totalorder %s18, 0
      %p129 = por %p127, %p128
      %s130 = ssub.s32 %s12, %s19
      %p131 = scmp.eq.s32.totalorder %s130, 0
      %s133 = sadd.s32 %s132, 1
      %s134 = scalar_select %p131, %s132, %s133
      %p137 = pneg %p131
      %p138 = scmp.eq.s32.totalorder %s12, 1
      %p139 = por %p137, %p138
      %p140 = scmp.ne.s32.totalorder %s132, %s135
      %p141 = scmp.eq.s32.totalorder %s12, 0
      %p142 = por %p140, %p141
      %p143 = scmp.ne.s32.totalorder %s132, %s135
      %p144 = scmp.eq.s32.totalorder %s17, 1
      %p145 = por %p143, %p144
      %p146 = scmp.ne.s32.totalorder %s135, %s136
      %p147 = scmp.eq.s32.totalorder %s17, 0
      %p148 = por %p146, %p147
      %p149 = scmp.ne.s32.totalorder %s135, %s136
      %p150 = scmp.eq.s32.totalorder %s18, 1
      %p151 = por %p149, %p150
      %p153 = scmp.ne.s32.totalorder %s136, %s152
      %p154 = scmp.eq.s32.totalorder %s18, 0
      %p155 = por %p153, %p154
      %p156 = scmp.le.s32.totalorder 1, %s12
      %p157 = scmp.lt.s32.totalorder %s12, 3
      %p158 = pnand %p156, %p157
      %p159 = pneg %p158
      // Predicated region
      $region9: #{base_conv_forward.1} parent=5 // pred_check
        _
      $region10: #{base_conv_forward.1} parent=5 // pred_check_branch
        %161 = sbr.rel (%p158) target = $region12
      $region11: #{base_conv_forward.1} parent=5 // pred_region
        %s162 = ssub.s32 %s12, 1
        // Predicated region
        $region13: #{base_conv_forward.1} parent=11 // pred_check
          %p163 = pneg %p59
        $region14: #{base_conv_forward.1} parent=11 // pred_check_branch
          %165 = sbr.rel (%p163) target = $region16
        $region15: #{base_conv_forward.1} parent=11 // pred_region
          _
        $region16: #{base_conv_forward.1} parent=11 // pred_fallthru
          _
        // Predicated region
        $region17: #{base_conv_forward.1} parent=11 // pred_check
          %p166 = pneg %p80
        $region18: #{base_conv_forward.1} parent=11 // pred_check_branch
          %168 = sbr.rel (%p166) target = $region20
        $region19: #{base_conv_forward.1} parent=11 // pred_region
          _
        $region20: #{base_conv_forward.1} parent=11 // pred_fallthru
          _
        // Predicated region
        $region21: #{base_conv_forward.1} parent=11 // pred_check
          %p169 = pneg %p101
        $region22: #{base_conv_forward.1} parent=11 // pred_check_branch
          %171 = sbr.rel (%p169) target = $region24
        $region23: #{base_conv_forward.1} parent=11 // pred_region
          %173 = vsyncadd [#allocation5], 0
          %s174 = sshll.u32 %s3, 4
          %s175 = int_to_ptr.hbm [resolvable:$true] %s174
          %s176 = sshll.u32 [#allocation4], 4
          %s177 = int_to_ptr.vmem [resolvable:$true] %s176
          %182 = dma.hbm_to_vmem [thread:$0]  %s175, 9216, %s177, [#allocation5], 64, 64, 4
        $region24: #{base_conv_forward.1} parent=11 // pred_fallthru
          _
        // Predicated region
        $region25: #{base_conv_forward.1} parent=11 // pred_check
          %p183 = pneg %p122
        $region26: #{base_conv_forward.1} parent=11 // pred_check_branch
          %185 = sbr.rel (%p183) target = $region28
        $region27: #{base_conv_forward.1} parent=11 // pred_region
          _
        $region28: #{base_conv_forward.1} parent=11 // pred_fallthru
          _
      $region12: #{base_conv_forward.1} parent=5 // pred_fallthru
        _
      %p186 = scmp.lt.s32.totalorder %s12, 2
      // Predicated region
      $region29: #{base_conv_forward.1} parent=5 // pred_check
        %p187 = pneg %p186
      $region30: #{base_conv_forward.1} parent=5 // pred_check_branch
        %189 = sbr.rel (%p187) target = $region32
      $region31: #{base_conv_forward.1} parent=5 // pred_region
        // Predicated region
        $region33: #{base_conv_forward.1} parent=31 // pred_check
          %p190 = pneg %p32
        $region34: #{base_conv_forward.1} parent=31 // pred_check_branch
          %192 = sbr.rel (%p190) target = $region36
        $region35: #{base_conv_forward.1} parent=31 // pred_region
          %p193 = scmp.lt.s32.totalorder %s12, 1
          %s194 = scalar_select %p193, %s12, 1
          %s195 = smul.addr %s194, 32
          %s196 = smul.addr %s195, 4
          %s197 = scalar_lea.vmem %s0, %s196
        $region36: #{base_conv_forward.1} parent=31 // pred_fallthru
          _
      $region32: #{base_conv_forward.1} parent=5 // pred_fallthru
        _
      %p198 = scmp.le.s32.totalorder 1, %s12
      %p199 = scmp.lt.s32.totalorder %s12, 3
      %p200 = pnand %p198, %p199
      %p201 = pneg %p200
      // Predicated region
      $region37: #{base_conv_forward.1} parent=5 // pred_check
        _
      $region38: #{base_conv_forward.1} parent=5 // pred_check_branch
        %203 = sbr.rel (%p200) target = $region40
      $region39: #{base_conv_forward.1} parent=5 // pred_region
        %s204 = ssub.s32 %s12, 1
        // Predicated region
        $region41: #{base_conv_forward.1} parent=39 // pred_check
          %p205 = pneg %p101
        $region42: #{base_conv_forward.1} parent=39 // pred_check_branch
          %207 = sbr.rel (%p205) target = $region44
        $region43: #{base_conv_forward.1} parent=39 // pred_region
          %209 = dma.done [#allocation5], 9216
        $region44: #{base_conv_forward.1} parent=39 // pred_fallthru
          _
        %p210 = scmp.lt.s32.totalorder %s17, 1
        %s211 = scalar_select %p210, %s17, 1
        %s212 = smul.addr %s211, 32
        %s213 = smul.addr %s212, 4
        %s214 = scalar_lea.vmem %s0, %s213
        %p215 = pneg %p38
        %p216 = pneg %p35
        %p217 = pneg %p59
        %p218 = pneg %p56
        %p219 = pneg %p80
        %p220 = pneg %p77
        %p221 = pneg %p101
        %p222 = pneg %p98
        %p223 = pneg %p122
        %p224 = pneg %p119
        %p225 = pneg %p148
        %p226 = pneg %p145
        %p227 = scmp.lt.s32.totalorder %s17, 1
        %s228 = scalar_select %p227, %s17, 1
        %s229 = smul.addr %s228, 32
        %s230 = smul.addr %s229, 4
        %s231 = scalar_lea.vmem %s5, %s230
        %p232 = scmp.lt.s32.totalorder %s17, 1
        %s233 = scalar_select %p232, %s17, 1
        %s234 = smul.addr %s233, 32
        %s235 = smul.addr %s234, 4
        %s236 = scalar_lea.vmem %s0, %s235
        %p237 = scmp.lt.s32.totalorder %s17, 1
        %s238 = scalar_select %p237, %s17, 1
        %s239 = smul.addr %s238, 32
        %s240 = smul.addr %s239, 4
        %s241 = scalar_lea.vmem %s5, %s240
        %vm243 = vcmask 60416
        %244 = vst.msk [vmem:[#allocation2] sm:$0xf] %vm243, 0
        %245 = vst.msk [vmem:[#allocation2 + $0x4] sm:$0xf] %vm243, 0
        %vm246 = vcmask 57344
        %247 = vst.msk [vmem:[#allocation2 + $0x8] sm:$0x1] %vm246, 0
        %s248 = scalar_lea.vmem [#allocation2], 204
        %249 = vst.msk [vmem:[%s248] sm:$0xf] %vm243, 0
        %250 = vst.msk [vmem:[%s248 + $0x4] sm:$0xf] %vm243, 0
        %251 = vst.msk [vmem:[%s248 + $0x8] sm:$0x1] %vm246, 0
        %vm252 = vcmask 57344
        %vm253 = vsmask.f32 256
        %vm254 = vmand %vm252, %vm253
        %v255 = vld [vmem:[#allocation2] sm:$0x1]
        %v256 = vsel %vm254, 0, %v255
        %257 = vst [vmem:[#allocation2] sm:$0x1] %v256
        %v258 = vld [vmem:[#allocation2 + $0xc] sm:$0x1]
        %v259 = vsel %vm254, 0, %v258
        %260 = vst [vmem:[#allocation2 + $0xc] sm:$0x1] %v259
        %v261 = vld [vmem:[#allocation2 + $0x18] sm:$0x1]
        %v262 = vsel %vm254, 0, %v261
        %263 = vst [vmem:[#allocation2 + $0x18] sm:$0x1] %v262
        %v264 = vld [vmem:[#allocation2 + $0x24] sm:$0x1]
        %v265 = vsel %vm254, 0, %v264
        %266 = vst [vmem:[#allocation2 + $0x24] sm:$0x1] %v265
        %v267 = vld [vmem:[#allocation2 + $0x30] sm:$0x1]
        %v268 = vsel %vm254, 0, %v267
        %269 = vst [vmem:[#allocation2 + $0x30] sm:$0x1] %v268
        %v270 = vld [vmem:[#allocation2 + $0x3c] sm:$0x1]
        %v271 = vsel %vm254, 0, %v270
        %272 = vst [vmem:[#allocation2 + $0x3c] sm:$0x1] %v271
        %v273 = vld [vmem:[#allocation2 + $0x48] sm:$0x1]
        %v274 = vsel %vm254, 0, %v273
        %275 = vst [vmem:[#allocation2 + $0x48] sm:$0x1] %v274
        %v276 = vld [vmem:[#allocation2 + $0x54] sm:$0x1]
        %v277 = vsel %vm254, 0, %v276
        %278 = vst [vmem:[#allocation2 + $0x54] sm:$0x1] %v277
        %v279 = vld [vmem:[#allocation2 + $0x60] sm:$0x1]
        %v280 = vsel %vm254, 0, %v279
        %281 = vst [vmem:[#allocation2 + $0x60] sm:$0x1] %v280
        %v282 = vld [vmem:[#allocation2 + $0x6c] sm:$0x1]
        %v283 = vsel %vm254, 0, %v282
        %284 = vst [vmem:[#allocation2 + $0x6c] sm:$0x1] %v283
        %v285 = vld [vmem:[#allocation2 + $0x78] sm:$0x1]
        %v286 = vsel %vm254, 0, %v285
        %287 = vst [vmem:[#allocation2 + $0x78] sm:$0x1] %v286
        %v288 = vld [vmem:[#allocation2 + $0x84] sm:$0x1]
        %v289 = vsel %vm254, 0, %v288
        %290 = vst [vmem:[#allocation2 + $0x84] sm:$0x1] %v289
        %v291 = vld [vmem:[#allocation2 + $0x90] sm:$0x1]
        %v292 = vsel %vm254, 0, %v291
        %293 = vst [vmem:[#allocation2 + $0x90] sm:$0x1] %v292
        %v294 = vld [vmem:[#allocation2 + $0x9c] sm:$0x1]
        %v295 = vsel %vm254, 0, %v294
        %296 = vst [vmem:[#allocation2 + $0x9c] sm:$0x1] %v295
        %v297 = vld [vmem:[#allocation2 + $0xa8] sm:$0x1]
        %v298 = vsel %vm254, 0, %v297
        %299 = vst [vmem:[#allocation2 + $0xa8] sm:$0x1] %v298
        %v300 = vld [vmem:[#allocation2 + $0xb4] sm:$0x1]
        %v301 = vsel %vm254, 0, %v300
        %302 = vst [vmem:[#allocation2 + $0xb4] sm:$0x1] %v301
        %v303 = vld [vmem:[#allocation2 + $0xc0] sm:$0x1]
        %v304 = vsel %vm254, 0, %v303
        %305 = vst [vmem:[#allocation2 + $0xc0] sm:$0x1] %v304
        %v306 = vld [vmem:[#allocation2 + $0xcc] sm:$0x1]
        %v307 = vsel %vm254, 0, %v306
        %308 = vst [vmem:[#allocation2 + $0xcc] sm:$0x1] %v307
        %vm309 = vsmask.f32 7938
        %vm310 = vmand %vm252, %vm309
        %v311 = vld [vmem:[#allocation2 + $0x8] sm:$0x1]
        %v312 = vsel %vm310, 0, %v311
        %313 = vst [vmem:[#allocation2 + $0x8] sm:$0x1] %v312
        %v314 = vld [vmem:[#allocation2 + $0x14] sm:$0x1]
        %v315 = vsel %vm310, 0, %v314
        %316 = vst [vmem:[#allocation2 + $0x14] sm:$0x1] %v315
        %v317 = vld [vmem:[#allocation2 + $0x20] sm:$0x1]
        %v318 = vsel %vm310, 0, %v317
        %319 = vst [vmem:[#allocation2 + $0x20] sm:$0x1] %v318
        %v320 = vld [vmem:[#allocation2 + $0x2c] sm:$0x1]
        %v321 = vsel %vm310, 0, %v320
        %322 = vst [vmem:[#allocation2 + $0x2c] sm:$0x1] %v321
        %v323 = vld [vmem:[#allocation2 + $0x38] sm:$0x1]
        %v324 = vsel %vm310, 0, %v323
        %325 = vst [vmem:[#allocation2 + $0x38] sm:$0x1] %v324
        %v326 = vld [vmem:[#allocation2 + $0x44] sm:$0x1]
        %v327 = vsel %vm310, 0, %v326
        %328 = vst [vmem:[#allocation2 + $0x44] sm:$0x1] %v327
        %v329 = vld [vmem:[#allocation2 + $0x50] sm:$0x1]
        %v330 = vsel %vm310, 0, %v329
        %331 = vst [vmem:[#allocation2 + $0x50] sm:$0x1] %v330
        %v332 = vld [vmem:[#allocation2 + $0x5c] sm:$0x1]
        %v333 = vsel %vm310, 0, %v332
        %334 = vst [vmem:[#allocation2 + $0x5c] sm:$0x1] %v333
        %v335 = vld [vmem:[#allocation2 + $0x68] sm:$0x1]
        %v336 = vsel %vm310, 0, %v335
        %337 = vst [vmem:[#allocation2 + $0x68] sm:$0x1] %v336
        %v338 = vld [vmem:[#allocation2 + $0x74] sm:$0x1]
        %v339 = vsel %vm310, 0, %v338
        %340 = vst [vmem:[#allocation2 + $0x74] sm:$0x1] %v339
        %v341 = vld [vmem:[#allocation2 + $0x80] sm:$0x1]
        %v342 = vsel %vm310, 0, %v341
        %343 = vst [vmem:[#allocation2 + $0x80] sm:$0x1] %v342
        %v344 = vld [vmem:[#allocation2 + $0x8c] sm:$0x1]
        %v345 = vsel %vm310, 0, %v344
        %346 = vst [vmem:[#allocation2 + $0x8c] sm:$0x1] %v345
        %v347 = vld [vmem:[#allocation2 + $0x98] sm:$0x1]
        %v348 = vsel %vm310, 0, %v347
        %349 = vst [vmem:[#allocation2 + $0x98] sm:$0x1] %v348
        %v350 = vld [vmem:[#allocation2 + $0xa4] sm:$0x1]
        %v351 = vsel %vm310, 0, %v350
        %352 = vst [vmem:[#allocation2 + $0xa4] sm:$0x1] %v351
        %v353 = vld [vmem:[#allocation2 + $0xb0] sm:$0x1]
        %v354 = vsel %vm310, 0, %v353
        %355 = vst [vmem:[#allocation2 + $0xb0] sm:$0x1] %v354
        %v356 = vld [vmem:[#allocation2 + $0xbc] sm:$0x1]
        %v357 = vsel %vm310, 0, %v356
        %358 = vst [vmem:[#allocation2 + $0xbc] sm:$0x1] %v357
        %v359 = vld [vmem:[#allocation2 + $0xc8] sm:$0x1]
        %v360 = vsel %vm310, 0, %v359
        %361 = vst [vmem:[#allocation2 + $0xc8] sm:$0x1] %v360
        %v362 = vld [vmem:[#allocation2 + $0xd4] sm:$0x1]
        %v363 = vsel %vm310, 0, %v362
        %364 = vst [vmem:[#allocation2 + $0xd4] sm:$0x1] %v363
        %365 = vst [vmem:[#allocation3] sm:$0xf] 0
        %366 = vst [vmem:[#allocation3 + $0x4] sm:$0xf] 0
        %367 = vst [vmem:[#allocation3 + $0x8] sm:$0x1] 0
        %s368 = scalar_lea.vmem [#allocation3], 204
        %369 = vst [vmem:[%s368] sm:$0xf] 0
        %370 = vst [vmem:[%s368 + $0x4] sm:$0xf] 0
        %371 = vst [vmem:[%s368 + $0x8] sm:$0x1] 0
        %vm372 = vcmask 1040384
        %vm373 = vmand %vm372, %vm253
        %v374 = vld [vmem:[#allocation3] sm:$0x1]
        %v375 = vsel %vm373, 0, %v374
        %376 = vst [vmem:[#allocation3] sm:$0x1] %v375
        %v377 = vld [vmem:[#allocation3 + $0xc] sm:$0x1]
        %v378 = vsel %vm373, 0, %v377
        %379 = vst [vmem:[#allocation3 + $0xc] sm:$0x1] %v378
        %v380 = vld [vmem:[#allocation3 + $0x18] sm:$0x1]
        %v381 = vsel %vm373, 0, %v380
        %382 = vst [vmem:[#allocation3 + $0x18] sm:$0x1] %v381
        %v383 = vld [vmem:[#allocation3 + $0x24] sm:$0x1]
        %v384 = vsel %vm373, 0, %v383
        %385 = vst [vmem:[#allocation3 + $0x24] sm:$0x1] %v384
        %v386 = vld [vmem:[#allocation3 + $0x30] sm:$0x1]
        %v387 = vsel %vm373, 0, %v386
        %388 = vst [vmem:[#allocation3 + $0x30] sm:$0x1] %v387
        %v389 = vld [vmem:[#allocation3 + $0x3c] sm:$0x1]
        %v390 = vsel %vm373, 0, %v389
        %391 = vst [vmem:[#allocation3 + $0x3c] sm:$0x1] %v390
        %v392 = vld [vmem:[#allocation3 + $0x48] sm:$0x1]
        %v393 = vsel %vm373, 0, %v392
        %394 = vst [vmem:[#allocation3 + $0x48] sm:$0x1] %v393
        %v395 = vld [vmem:[#allocation3 + $0x54] sm:$0x1]
        %v396 = vsel %vm373, 0, %v395
        %397 = vst [vmem:[#allocation3 + $0x54] sm:$0x1] %v396
        %v398 = vld [vmem:[#allocation3 + $0x60] sm:$0x1]
        %v399 = vsel %vm373, 0, %v398
        %400 = vst [vmem:[#allocation3 + $0x60] sm:$0x1] %v399
        %v401 = vld [vmem:[#allocation3 + $0x6c] sm:$0x1]
        %v402 = vsel %vm373, 0, %v401
        %403 = vst [vmem:[#allocation3 + $0x6c] sm:$0x1] %v402
        %v404 = vld [vmem:[#allocation3 + $0x78] sm:$0x1]
        %v405 = vsel %vm373, 0, %v404
        %406 = vst [vmem:[#allocation3 + $0x78] sm:$0x1] %v405
        %v407 = vld [vmem:[#allocation3 + $0x84] sm:$0x1]
        %v408 = vsel %vm373, 0, %v407
        %409 = vst [vmem:[#allocation3 + $0x84] sm:$0x1] %v408
        %v410 = vld [vmem:[#allocation3 + $0x90] sm:$0x1]
        %v411 = vsel %vm373, 0, %v410
        %412 = vst [vmem:[#allocation3 + $0x90] sm:$0x1] %v411
        %v413 = vld [vmem:[#allocation3 + $0x9c] sm:$0x1]
        %v414 = vsel %vm373, 0, %v413
        %415 = vst [vmem:[#allocation3 + $0x9c] sm:$0x1] %v414
        %v416 = vld [vmem:[#allocation3 + $0xa8] sm:$0x1]
        %v417 = vsel %vm373, 0, %v416
        %418 = vst [vmem:[#allocation3 + $0xa8] sm:$0x1] %v417
        %v419 = vld [vmem:[#allocation3 + $0xb4] sm:$0x1]
        %v420 = vsel %vm373, 0, %v419
        %421 = vst [vmem:[#allocation3 + $0xb4] sm:$0x1] %v420
        %v422 = vld [vmem:[#allocation3 + $0xc0] sm:$0x1]
        %v423 = vsel %vm373, 0, %v422
        %424 = vst [vmem:[#allocation3 + $0xc0] sm:$0x1] %v423
        %v425 = vld [vmem:[#allocation3 + $0xcc] sm:$0x1]
        %v426 = vsel %vm373, 0, %v425
        %427 = vst [vmem:[#allocation3 + $0xcc] sm:$0x1] %v426
        %vm428 = vmand %vm372, %vm309
        %v429 = vld [vmem:[#allocation3 + $0x8] sm:$0x1]
        %v430 = vsel %vm428, 0, %v429
        %431 = vst [vmem:[#allocation3 + $0x8] sm:$0x1] %v430
        %v432 = vld [vmem:[#allocation3 + $0x14] sm:$0x1]
        %v433 = vsel %vm428, 0, %v432
        %434 = vst [vmem:[#allocation3 + $0x14] sm:$0x1] %v433
        %v435 = vld [vmem:[#allocation3 + $0x20] sm:$0x1]
        %v436 = vsel %vm428, 0, %v435
        %437 = vst [vmem:[#allocation3 + $0x20] sm:$0x1] %v436
        %v438 = vld [vmem:[#allocation3 + $0x2c] sm:$0x1]
        %v439 = vsel %vm428, 0, %v438
        %440 = vst [vmem:[#allocation3 + $0x2c] sm:$0x1] %v439
        %v441 = vld [vmem:[#allocation3 + $0x38] sm:$0x1]
        %v442 = vsel %vm428, 0, %v441
        %443 = vst [vmem:[#allocation3 + $0x38] sm:$0x1] %v442
        %v444 = vld [vmem:[#allocation3 + $0x44] sm:$0x1]
        %v445 = vsel %vm428, 0, %v444
        %446 = vst [vmem:[#allocation3 + $0x44] sm:$0x1] %v445
        %v447 = vld [vmem:[#allocation3 + $0x50] sm:$0x1]
        %v448 = vsel %vm428, 0, %v447
        %449 = vst [vmem:[#allocation3 + $0x50] sm:$0x1] %v448
        %v450 = vld [vmem:[#allocation3 + $0x5c] sm:$0x1]
        %v451 = vsel %vm428, 0, %v450
        %452 = vst [vmem:[#allocation3 + $0x5c] sm:$0x1] %v451
        %v453 = vld [vmem:[#allocation3 + $0x68] sm:$0x1]
        %v454 = vsel %vm428, 0, %v453
        %455 = vst [vmem:[#allocation3 + $0x68] sm:$0x1] %v454
        %v456 = vld [vmem:[#allocation3 + $0x74] sm:$0x1]
        %v457 = vsel %vm428, 0, %v456
        %458 = vst [vmem:[#allocation3 + $0x74] sm:$0x1] %v457
        %v459 = vld [vmem:[#allocation3 + $0x80] sm:$0x1]
        %v460 = vsel %vm428, 0, %v459
        %461 = vst [vmem:[#allocation3 + $0x80] sm:$0x1] %v460
        %v462 = vld [vmem:[#allocation3 + $0x8c] sm:$0x1]
        %v463 = vsel %vm428, 0, %v462
        %464 = vst [vmem:[#allocation3 + $0x8c] sm:$0x1] %v463
        %v465 = vld [vmem:[#allocation3 + $0x98] sm:$0x1]
        %v466 = vsel %vm428, 0, %v465
        %467 = vst [vmem:[#allocation3 + $0x98] sm:$0x1] %v466
        %v468 = vld [vmem:[#allocation3 + $0xa4] sm:$0x1]
        %v469 = vsel %vm428, 0, %v468
        %470 = vst [vmem:[#allocation3 + $0xa4] sm:$0x1] %v469
        %v471 = vld [vmem:[#allocation3 + $0xb0] sm:$0x1]
        %v472 = vsel %vm428, 0, %v471
        %473 = vst [vmem:[#allocation3 + $0xb0] sm:$0x1] %v472
        %v474 = vld [vmem:[#allocation3 + $0xbc] sm:$0x1]
        %v475 = vsel %vm428, 0, %v474
        %476 = vst [vmem:[#allocation3 + $0xbc] sm:$0x1] %v475
        %v477 = vld [vmem:[#allocation3 + $0xc8] sm:$0x1]
        %v478 = vsel %vm428, 0, %v477
        %479 = vst [vmem:[#allocation3 + $0xc8] sm:$0x1] %v478
        %v480 = vld [vmem:[#allocation3 + $0xd4] sm:$0x1]
        %v481 = vsel %vm428, 0, %v480
        %482 = vst [vmem:[#allocation3 + $0xd4] sm:$0x1] %v481
        %v483 = vld [vmem:[%s236] sm:$0xf]
        %v484 = vld [vmem:[%s236 + $0x4] sm:$0xf]
        %v485 = vld [vmem:[%s236 + $0x8] sm:$0xf]
        %v486 = vld [vmem:[%s236 + $0xc] sm:$0xf]
        %v487 = vld [vmem:[%s236 + $0x10] sm:$0xf]
        %v488 = vld [vmem:[%s236 + $0x14] sm:$0xf]
        %v489 = vld [vmem:[%s236 + $0x18] sm:$0xf]
        %v490 = vld [vmem:[%s236 + $0x1c] sm:$0xf]
        %v491 = vld [vmem:[%s236 + $0x20] sm:$0xf]
        %v492 = vld [vmem:[%s236 + $0x24] sm:$0xf]
        %v493 = vld [vmem:[%s236 + $0x28] sm:$0xf]
        %v494 = vld [vmem:[%s236 + $0x2c] sm:$0xf]
        %v495 = vld [vmem:[%s236 + $0x30] sm:$0xf]
        %v496 = vld [vmem:[%s236 + $0x34] sm:$0xf]
        %v497 = vld [vmem:[%s236 + $0x38] sm:$0xf]
        %v498 = vld [vmem:[%s236 + $0x3c] sm:$0xf]
        %v499 = vld [vmem:[%s236 + $0x40] sm:$0xf]
        %v500 = vld [vmem:[%s236 + $0x44] sm:$0xf]
        %v501 = vld [vmem:[%s236 + $0x48] sm:$0xf]
        %v502 = vld [vmem:[%s236 + $0x4c] sm:$0xf]
        %v503 = vld [vmem:[%s236 + $0x50] sm:$0xf]
        %v504 = vld [vmem:[%s236 + $0x54] sm:$0xf]
        %v505 = vld [vmem:[%s236 + $0x58] sm:$0xf]
        %v506 = vld [vmem:[%s236 + $0x5c] sm:$0xf]
        %v507 = vld [vmem:[%s236 + $0x60] sm:$0xf]
        %v508 = vld [vmem:[%s236 + $0x64] sm:$0xf]
        %v509 = vld [vmem:[%s236 + $0x68] sm:$0xf]
        %v510 = vld [vmem:[%s236 + $0x6c] sm:$0xf]
        %v511 = vld [vmem:[%s236 + $0x70] sm:$0xf]
        %v512 = vld [vmem:[%s236 + $0x74] sm:$0xf]
        %v513 = vld [vmem:[%s236 + $0x78] sm:$0xf]
        %v514 = vld [vmem:[%s236 + $0x7c] sm:$0xf]
        %vm515 = vsmask.f32 4368
        %vm516 = vmor %vm253, %vm515
        %v518 = vshrl.u32 %v483, 16
        %v520 = vrot.slane %v518, 7
        %v521 = vshll.u32 %v483, 16
        %v523 = vor.u32 %v520, %v521
        %v524 = vrot.slane %v520, 4
        %v526 = vshrl.u32 %v484, 16
        %v528 = vrot.slane %v526, 7
        %v529 = vshll.u32 %v484, 16
        %v531 = vor.u32 %v528, %v529
        %v532 = vsel %vm516, %v524, %v531
        %v533 = vrot.slane %v528, 4
        %v535 = vshrl.u32 %v485, 16
        %v537 = vrot.slane %v535, 7
        %v538 = vshll.u32 %v485, 16
        %v540 = vor.u32 %v537, %v538
        %v541 = vrot.slane %v537, 4
        %v543 = vshrl.u32 %v486, 16
        %v545 = vrot.slane %v543, 7
        %v546 = vshll.u32 %v486, 16
        %v548 = vor.u32 %v545, %v546
        %v549 = vsel %vm516, %v541, %v548
        %v550 = vrot.slane %v545, 4
        %v552 = vshrl.u32 %v487, 16
        %v554 = vrot.slane %v552, 7
        %v555 = vshll.u32 %v487, 16
        %v557 = vor.u32 %v554, %v555
        %v558 = vrot.slane %v554, 4
        %v560 = vshrl.u32 %v488, 16
        %v562 = vrot.slane %v560, 7
        %v563 = vshll.u32 %v488, 16
        %v565 = vor.u32 %v562, %v563
        %v566 = vsel %vm516, %v558, %v565
        %v567 = vrot.slane %v562, 4
        %v569 = vshrl.u32 %v489, 16
        %v571 = vrot.slane %v569, 7
        %v572 = vshll.u32 %v489, 16
        %v574 = vor.u32 %v571, %v572
        %v575 = vrot.slane %v571, 4
        %v577 = vshrl.u32 %v490, 16
        %v579 = vrot.slane %v577, 7
        %v580 = vshll.u32 %v490, 16
        %v582 = vor.u32 %v579, %v580
        %v583 = vsel %vm516, %v575, %v582
        %v584 = vrot.slane %v579, 4
        %v586 = vshrl.u32 %v491, 16
        %v588 = vrot.slane %v586, 7
        %v589 = vshll.u32 %v491, 16
        %v591 = vor.u32 %v588, %v589
        %v592 = vrot.slane %v588, 4
        %v594 = vshrl.u32 %v492, 16
        %v596 = vrot.slane %v594, 7
        %v597 = vshll.u32 %v492, 16
        %v599 = vor.u32 %v596, %v597
        %v600 = vsel %vm516, %v592, %v599
        %v601 = vrot.slane %v596, 4
        %v603 = vshrl.u32 %v493, 16
        %v605 = vrot.slane %v603, 7
        %v606 = vshll.u32 %v493, 16
        %v608 = vor.u32 %v605, %v606
        %v609 = vrot.slane %v605, 4
        %v611 = vshrl.u32 %v494, 16
        %v613 = vrot.slane %v611, 7
        %v614 = vshll.u32 %v494, 16
        %v616 = vor.u32 %v613, %v614
        %v617 = vsel %vm516, %v609, %v616
        %v618 = vrot.slane %v613, 4
        %v620 = vshrl.u32 %v495, 16
        %v622 = vrot.slane %v620, 7
        %v623 = vshll.u32 %v495, 16
        %v625 = vor.u32 %v622, %v623
        %v626 = vrot.slane %v622, 4
        %v628 = vshrl.u32 %v496, 16
        %v630 = vrot.slane %v628, 7
        %v631 = vshll.u32 %v496, 16
        %v633 = vor.u32 %v630, %v631
        %v634 = vsel %vm516, %v626, %v633
        %v635 = vrot.slane %v630, 4
        %v637 = vshrl.u32 %v497, 16
        %v639 = vrot.slane %v637, 7
        %v640 = vshll.u32 %v497, 16
        %v642 = vor.u32 %v639, %v640
        %v643 = vrot.slane %v639, 4
        %v645 = vshrl.u32 %v498, 16
        %v647 = vrot.slane %v645, 7
        %v648 = vshll.u32 %v498, 16
        %v650 = vor.u32 %v647, %v648
        %v651 = vsel %vm516, %v643, %v650
        %v652 = vrot.slane %v647, 4
        %v654 = vshrl.u32 %v499, 16
        %v656 = vrot.slane %v654, 7
        %v657 = vshll.u32 %v499, 16
        %v659 = vor.u32 %v656, %v657
        %v660 = vrot.slane %v656, 4
        %v662 = vshrl.u32 %v500, 16
        %v664 = vrot.slane %v662, 7
        %v665 = vshll.u32 %v500, 16
        %v667 = vor.u32 %v664, %v665
        %v668 = vsel %vm516, %v660, %v667
        %v669 = vrot.slane %v664, 4
        %v671 = vshrl.u32 %v501, 16
        %v673 = vrot.slane %v671, 7
        %v674 = vshll.u32 %v501, 16
        %v676 = vor.u32 %v673, %v674
        %v677 = vrot.slane %v673, 4
        %v679 = vshrl.u32 %v502, 16
        %v681 = vrot.slane %v679, 7
        %v682 = vshll.u32 %v502, 16
        %v684 = vor.u32 %v681, %v682
        %v685 = vsel %vm516, %v677, %v684
        %v686 = vrot.slane %v681, 4
        %v688 = vshrl.u32 %v503, 16
        %v690 = vrot.slane %v688, 7
        %v691 = vshll.u32 %v503, 16
        %v693 = vor.u32 %v690, %v691
        %v694 = vrot.slane %v690, 4
        %v696 = vshrl.u32 %v504, 16
        %v698 = vrot.slane %v696, 7
        %v699 = vshll.u32 %v504, 16
        %v701 = vor.u32 %v698, %v699
        %v702 = vsel %vm516, %v694, %v701
        %v703 = vrot.slane %v698, 4
        %v705 = vshrl.u32 %v505, 16
        %v707 = vrot.slane %v705, 7
        %v708 = vshll.u32 %v505, 16
        %v710 = vor.u32 %v707, %v708
        %v711 = vrot.slane %v707, 4
        %v713 = vshrl.u32 %v506, 16
        %v715 = vrot.slane %v713, 7
        %v716 = vshll.u32 %v506, 16
        %v718 = vor.u32 %v715, %v716
        %v719 = vsel %vm516, %v711, %v718
        %v720 = vrot.slane %v715, 4
        %v722 = vshrl.u32 %v507, 16
        %v724 = vrot.slane %v722, 7
        %v725 = vshll.u32 %v507, 16
        %v727 = vor.u32 %v724, %v725
        %v728 = vrot.slane %v724, 4
        %v730 = vshrl.u32 %v508, 16
        %v732 = vrot.slane %v730, 7
        %v733 = vshll.u32 %v508, 16
        %v735 = vor.u32 %v732, %v733
        %v736 = vsel %vm516, %v728, %v735
        %v737 = vrot.slane %v732, 4
        %v739 = vshrl.u32 %v509, 16
        %v741 = vrot.slane %v739, 7
        %v742 = vshll.u32 %v509, 16
        %v744 = vor.u32 %v741, %v742
        %v745 = vrot.slane %v741, 4
        %v747 = vshrl.u32 %v510, 16
        %v749 = vrot.slane %v747, 7
        %v750 = vshll.u32 %v510, 16
        %v752 = vor.u32 %v749, %v750
        %v753 = vsel %vm516, %v745, %v752
        %v754 = vrot.slane %v749, 4
        %v756 = vshrl.u32 %v511, 16
        %v758 = vrot.slane %v756, 7
        %v759 = vshll.u32 %v511, 16
        %v761 = vor.u32 %v758, %v759
        %v762 = vrot.slane %v758, 4
        %v764 = vshrl.u32 %v512, 16
        %v766 = vrot.slane %v764, 7
        %v767 = vshll.u32 %v512, 16
        %v769 = vor.u32 %v766, %v767
        %v770 = vsel %vm516, %v762, %v769
        %v771 = vrot.slane %v766, 4
        %v773 = vshrl.u32 %v513, 16
        %v775 = vrot.slane %v773, 7
        %v776 = vshll.u32 %v513, 16
        %v778 = vor.u32 %v775, %v776
        %v779 = vrot.slane %v775, 4
        %v781 = vshrl.u32 %v514, 16
        %v783 = vrot.slane %v781, 7
        %v784 = vshll.u32 %v514, 16
        %v786 = vor.u32 %v783, %v784
        %v787 = vsel %vm516, %v779, %v786
        %v788 = vrot.slane %v783, 4
        %s837 = scalar_lea.vmem [#allocation2], 12
        %vm838 = vcmask 27648
        %vm839 = vmand %vm838, %vm309
        %v840 = vld [vmem:[%s837] sm:$0xf]
        %v841 = vsel %vm839, %v523, %v840
        %842 = vst [vmem:[%s837] sm:$0xf] %v841
        %vm843 = vcmask 27648
        %844 = vst.msk [vmem:[%s837 + $0x4] sm:$0xf] %vm843, %v532
        %vm845 = vcmask 24576
        %vm846 = vmand %vm845, %vm253
        %v847 = vld [vmem:[%s837 + $0x8] sm:$0x1]
        %v848 = vsel %vm846, %v533, %v847
        %849 = vst [vmem:[%s837 + $0x8] sm:$0x1] %v848
        %v850 = vld [vmem:[%s837 + $0xc] sm:$0xf]
        %v851 = vsel %vm839, %v540, %v850
        %852 = vst [vmem:[%s837 + $0xc] sm:$0xf] %v851
        %853 = vst.msk [vmem:[%s837 + $0x10] sm:$0xf] %vm843, %v549
        %v854 = vld [vmem:[%s837 + $0x14] sm:$0x1]
        %v855 = vsel %vm846, %v550, %v854
        %856 = vst [vmem:[%s837 + $0x14] sm:$0x1] %v855
        %v857 = vld [vmem:[%s837 + $0x18] sm:$0xf]
        %v858 = vsel %vm839, %v557, %v857
        %859 = vst [vmem:[%s837 + $0x18] sm:$0xf] %v858
        %860 = vst.msk [vmem:[%s837 + $0x1c] sm:$0xf] %vm843, %v566
        %v861 = vld [vmem:[%s837 + $0x20] sm:$0x1]
        %v862 = vsel %vm846, %v567, %v861
        %863 = vst [vmem:[%s837 + $0x20] sm:$0x1] %v862
        %v864 = vld [vmem:[%s837 + $0x24] sm:$0xf]
        %v865 = vsel %vm839, %v574, %v864
        %866 = vst [vmem:[%s837 + $0x24] sm:$0xf] %v865
        %867 = vst.msk [vmem:[%s837 + $0x28] sm:$0xf] %vm843, %v583
        %v868 = vld [vmem:[%s837 + $0x2c] sm:$0x1]
        %v869 = vsel %vm846, %v584, %v868
        %870 = vst [vmem:[%s837 + $0x2c] sm:$0x1] %v869
        %v871 = vld [vmem:[%s837 + $0x30] sm:$0xf]
        %v872 = vsel %vm839, %v591, %v871
        %873 = vst [vmem:[%s837 + $0x30] sm:$0xf] %v872
        %874 = vst.msk [vmem:[%s837 + $0x34] sm:$0xf] %vm843, %v600
        %v875 = vld [vmem:[%s837 + $0x38] sm:$0x1]
        %v876 = vsel %vm846, %v601, %v875
        %877 = vst [vmem:[%s837 + $0x38] sm:$0x1] %v876
        %v878 = vld [vmem:[%s837 + $0x3c] sm:$0xf]
        %v879 = vsel %vm839, %v608, %v878
        %880 = vst [vmem:[%s837 + $0x3c] sm:$0xf] %v879
        %881 = vst.msk [vmem:[%s837 + $0x40] sm:$0xf] %vm843, %v617
        %v882 = vld [vmem:[%s837 + $0x44] sm:$0x1]
        %v883 = vsel %vm846, %v618, %v882
        %884 = vst [vmem:[%s837 + $0x44] sm:$0x1] %v883
        %v885 = vld [vmem:[%s837 + $0x48] sm:$0xf]
        %v886 = vsel %vm839, %v625, %v885
        %887 = vst [vmem:[%s837 + $0x48] sm:$0xf] %v886
        %888 = vst.msk [vmem:[%s837 + $0x4c] sm:$0xf] %vm843, %v634
        %v889 = vld [vmem:[%s837 + $0x50] sm:$0x1]
        %v890 = vsel %vm846, %v635, %v889
        %891 = vst [vmem:[%s837 + $0x50] sm:$0x1] %v890
        %v892 = vld [vmem:[%s837 + $0x54] sm:$0xf]
        %v893 = vsel %vm839, %v642, %v892
        %894 = vst [vmem:[%s837 + $0x54] sm:$0xf] %v893
        %895 = vst.msk [vmem:[%s837 + $0x58] sm:$0xf] %vm843, %v651
        %v896 = vld [vmem:[%s837 + $0x5c] sm:$0x1]
        %v897 = vsel %vm846, %v652, %v896
        %898 = vst [vmem:[%s837 + $0x5c] sm:$0x1] %v897
        %v899 = vld [vmem:[%s837 + $0x60] sm:$0xf]
        %v900 = vsel %vm839, %v659, %v899
        %901 = vst [vmem:[%s837 + $0x60] sm:$0xf] %v900
        %902 = vst.msk [vmem:[%s837 + $0x64] sm:$0xf] %vm843, %v668
        %v903 = vld [vmem:[%s837 + $0x68] sm:$0x1]
        %v904 = vsel %vm846, %v669, %v903
        %905 = vst [vmem:[%s837 + $0x68] sm:$0x1] %v904
        %v906 = vld [vmem:[%s837 + $0x6c] sm:$0xf]
        %v907 = vsel %vm839, %v676, %v906
        %908 = vst [vmem:[%s837 + $0x6c] sm:$0xf] %v907
        %909 = vst.msk [vmem:[%s837 + $0x70] sm:$0xf] %vm843, %v685
        %v910 = vld [vmem:[%s837 + $0x74] sm:$0x1]
        %v911 = vsel %vm846, %v686, %v910
        %912 = vst [vmem:[%s837 + $0x74] sm:$0x1] %v911
        %v913 = vld [vmem:[%s837 + $0x78] sm:$0xf]
        %v914 = vsel %vm839, %v693, %v913
        %915 = vst [vmem:[%s837 + $0x78] sm:$0xf] %v914
        %916 = vst.msk [vmem:[%s837 + $0x7c] sm:$0xf] %vm843, %v702
        %v917 = vld [vmem:[%s837 + $0x80] sm:$0x1]
        %v918 = vsel %vm846, %v703, %v917
        %919 = vst [vmem:[%s837 + $0x80] sm:$0x1] %v918
        %v920 = vld [vmem:[%s837 + $0x84] sm:$0xf]
        %v921 = vsel %vm839, %v710, %v920
        %922 = vst [vmem:[%s837 + $0x84] sm:$0xf] %v921
        %923 = vst.msk [vmem:[%s837 + $0x88] sm:$0xf] %vm843, %v719
        %v924 = vld [vmem:[%s837 + $0x8c] sm:$0x1]
        %v925 = vsel %vm846, %v720, %v924
        %926 = vst [vmem:[%s837 + $0x8c] sm:$0x1] %v925
        %v927 = vld [vmem:[%s837 + $0x90] sm:$0xf]
        %v928 = vsel %vm839, %v727, %v927
        %929 = vst [vmem:[%s837 + $0x90] sm:$0xf] %v928
        %930 = vst.msk [vmem:[%s837 + $0x94] sm:$0xf] %vm843, %v736
        %v931 = vld [vmem:[%s837 + $0x98] sm:$0x1]
        %v932 = vsel %vm846, %v737, %v931
        %933 = vst [vmem:[%s837 + $0x98] sm:$0x1] %v932
        %v934 = vld [vmem:[%s837 + $0x9c] sm:$0xf]
        %v935 = vsel %vm839, %v744, %v934
        %936 = vst [vmem:[%s837 + $0x9c] sm:$0xf] %v935
        %937 = vst.msk [vmem:[%s837 + $0xa0] sm:$0xf] %vm843, %v753
        %v938 = vld [vmem:[%s837 + $0xa4] sm:$0x1]
        %v939 = vsel %vm846, %v754, %v938
        %940 = vst [vmem:[%s837 + $0xa4] sm:$0x1] %v939
        %v941 = vld [vmem:[%s837 + $0xa8] sm:$0xf]
        %v942 = vsel %vm839, %v761, %v941
        %943 = vst [vmem:[%s837 + $0xa8] sm:$0xf] %v942
        %944 = vst.msk [vmem:[%s837 + $0xac] sm:$0xf] %vm843, %v770
        %v945 = vld [vmem:[%s837 + $0xb0] sm:$0x1]
        %v946 = vsel %vm846, %v771, %v945
        %947 = vst [vmem:[%s837 + $0xb0] sm:$0x1] %v946
        %v948 = vld [vmem:[%s837 + $0xb4] sm:$0xf]
        %v949 = vsel %vm839, %v778, %v948
        %950 = vst [vmem:[%s837 + $0xb4] sm:$0xf] %v949
        %951 = vst.msk [vmem:[%s837 + $0xb8] sm:$0xf] %vm843, %v787
        %v952 = vld [vmem:[%s837 + $0xbc] sm:$0x1]
        %v953 = vsel %vm846, %v788, %v952
        %954 = vst [vmem:[%s837 + $0xbc] sm:$0x1] %v953
        %vm955 = vcmask 60448
        %vm956 = vmand %vm955, %vm309
        %v957 = vld [vmem:[%s837] sm:$0xf]
        %v958 = vsel %vm956, 0, %v957
        %959 = vst [vmem:[%s837] sm:$0xf] %v958
        %vm960 = vcmask 60448
        %961 = vst.msk [vmem:[%s837 + $0x4] sm:$0xf] %vm960, 0
        %vm962 = vcmask 57376
        %vm963 = vmand %vm962, %vm253
        %v964 = vld [vmem:[%s837 + $0x8] sm:$0x1]
        %v965 = vsel %vm963, 0, %v964
        %966 = vst [vmem:[%s837 + $0x8] sm:$0x1] %v965
        %v967 = vld [vmem:[%s837 + $0xc] sm:$0xf]
        %v968 = vsel %vm956, 0, %v967
        %969 = vst [vmem:[%s837 + $0xc] sm:$0xf] %v968
        %970 = vst.msk [vmem:[%s837 + $0x10] sm:$0xf] %vm960, 0
        %v971 = vld [vmem:[%s837 + $0x14] sm:$0x1]
        %v972 = vsel %vm963, 0, %v971
        %973 = vst [vmem:[%s837 + $0x14] sm:$0x1] %v972
        %v974 = vld [vmem:[%s837 + $0x18] sm:$0xf]
        %v975 = vsel %vm956, 0, %v974
        %976 = vst [vmem:[%s837 + $0x18] sm:$0xf] %v975
        %977 = vst.msk [vmem:[%s837 + $0x1c] sm:$0xf] %vm960, 0
        %v978 = vld [vmem:[%s837 + $0x20] sm:$0x1]
        %v979 = vsel %vm963, 0, %v978
        %980 = vst [vmem:[%s837 + $0x20] sm:$0x1] %v979
        %v981 = vld [vmem:[%s837 + $0x24] sm:$0xf]
        %v982 = vsel %vm956, 0, %v981
        %983 = vst [vmem:[%s837 + $0x24] sm:$0xf] %v982
        %984 = vst.msk [vmem:[%s837 + $0x28] sm:$0xf] %vm960, 0
        %v985 = vld [vmem:[%s837 + $0x2c] sm:$0x1]
        %v986 = vsel %vm963, 0, %v985
        %987 = vst [vmem:[%s837 + $0x2c] sm:$0x1] %v986
        %v988 = vld [vmem:[%s837 + $0x30] sm:$0xf]
        %v989 = vsel %vm956, 0, %v988
        %990 = vst [vmem:[%s837 + $0x30] sm:$0xf] %v989
        %991 = vst.msk [vmem:[%s837 + $0x34] sm:$0xf] %vm960, 0
        %v992 = vld [vmem:[%s837 + $0x38] sm:$0x1]
        %v993 = vsel %vm963, 0, %v992
        %994 = vst [vmem:[%s837 + $0x38] sm:$0x1] %v993
        %v995 = vld [vmem:[%s837 + $0x3c] sm:$0xf]
        %v996 = vsel %vm956, 0, %v995
        %997 = vst [vmem:[%s837 + $0x3c] sm:$0xf] %v996
        %998 = vst.msk [vmem:[%s837 + $0x40] sm:$0xf] %vm960, 0
        %v999 = vld [vmem:[%s837 + $0x44] sm:$0x1]
        %v1000 = vsel %vm963, 0, %v999
        %1001 = vst [vmem:[%s837 + $0x44] sm:$0x1] %v1000
        %v1002 = vld [vmem:[%s837 + $0x48] sm:$0xf]
        %v1003 = vsel %vm956, 0, %v1002
        %1004 = vst [vmem:[%s837 + $0x48] sm:$0xf] %v1003
        %1005 = vst.msk [vmem:[%s837 + $0x4c] sm:$0xf] %vm960, 0
        %v1006 = vld [vmem:[%s837 + $0x50] sm:$0x1]
        %v1007 = vsel %vm963, 0, %v1006
        %1008 = vst [vmem:[%s837 + $0x50] sm:$0x1] %v1007
        %v1009 = vld [vmem:[%s837 + $0x54] sm:$0xf]
        %v1010 = vsel %vm956, 0, %v1009
        %1011 = vst [vmem:[%s837 + $0x54] sm:$0xf] %v1010
        %1012 = vst.msk [vmem:[%s837 + $0x58] sm:$0xf] %vm960, 0
        %v1013 = vld [vmem:[%s837 + $0x5c] sm:$0x1]
        %v1014 = vsel %vm963, 0, %v1013
        %1015 = vst [vmem:[%s837 + $0x5c] sm:$0x1] %v1014
        %v1016 = vld [vmem:[%s837 + $0x60] sm:$0xf]
        %v1017 = vsel %vm956, 0, %v1016
        %1018 = vst [vmem:[%s837 + $0x60] sm:$0xf] %v1017
        %1019 = vst.msk [vmem:[%s837 + $0x64] sm:$0xf] %vm960, 0
        %v1020 = vld [vmem:[%s837 + $0x68] sm:$0x1]
        %v1021 = vsel %vm963, 0, %v1020
        %1022 = vst [vmem:[%s837 + $0x68] sm:$0x1] %v1021
        %v1023 = vld [vmem:[%s837 + $0x6c] sm:$0xf]
        %v1024 = vsel %vm956, 0, %v1023
        %1025 = vst [vmem:[%s837 + $0x6c] sm:$0xf] %v1024
        %1026 = vst.msk [vmem:[%s837 + $0x70] sm:$0xf] %vm960, 0
        %v1027 = vld [vmem:[%s837 + $0x74] sm:$0x1]
        %v1028 = vsel %vm963, 0, %v1027
        %1029 = vst [vmem:[%s837 + $0x74] sm:$0x1] %v1028
        %v1030 = vld [vmem:[%s837 + $0x78] sm:$0xf]
        %v1031 = vsel %vm956, 0, %v1030
        %1032 = vst [vmem:[%s837 + $0x78] sm:$0xf] %v1031
        %1033 = vst.msk [vmem:[%s837 + $0x7c] sm:$0xf] %vm960, 0
        %v1034 = vld [vmem:[%s837 + $0x80] sm:$0x1]
        %v1035 = vsel %vm963, 0, %v1034
        %1036 = vst [vmem:[%s837 + $0x80] sm:$0x1] %v1035
        %v1037 = vld [vmem:[%s837 + $0x84] sm:$0xf]
        %v1038 = vsel %vm956, 0, %v1037
        %1039 = vst [vmem:[%s837 + $0x84] sm:$0xf] %v1038
        %1040 = vst.msk [vmem:[%s837 + $0x88] sm:$0xf] %vm960, 0
        %v1041 = vld [vmem:[%s837 + $0x8c] sm:$0x1]
        %v1042 = vsel %vm963, 0, %v1041
        %1043 = vst [vmem:[%s837 + $0x8c] sm:$0x1] %v1042
        %v1044 = vld [vmem:[%s837 + $0x90] sm:$0xf]
        %v1045 = vsel %vm956, 0, %v1044
        %1046 = vst [vmem:[%s837 + $0x90] sm:$0xf] %v1045
        %1047 = vst.msk [vmem:[%s837 + $0x94] sm:$0xf] %vm960, 0
        %v1048 = vld [vmem:[%s837 + $0x98] sm:$0x1]
        %v1049 = vsel %vm963, 0, %v1048
        %1050 = vst [vmem:[%s837 + $0x98] sm:$0x1] %v1049
        %v1051 = vld [vmem:[%s837 + $0x9c] sm:$0xf]
        %v1052 = vsel %vm956, 0, %v1051
        %1053 = vst [vmem:[%s837 + $0x9c] sm:$0xf] %v1052
        %1054 = vst.msk [vmem:[%s837 + $0xa0] sm:$0xf] %vm960, 0
        %v1055 = vld [vmem:[%s837 + $0xa4] sm:$0x1]
        %v1056 = vsel %vm963, 0, %v1055
        %1057 = vst [vmem:[%s837 + $0xa4] sm:$0x1] %v1056
        %v1058 = vld [vmem:[%s837 + $0xa8] sm:$0xf]
        %v1059 = vsel %vm956, 0, %v1058
        %1060 = vst [vmem:[%s837 + $0xa8] sm:$0xf] %v1059
        %1061 = vst.msk [vmem:[%s837 + $0xac] sm:$0xf] %vm960, 0
        %v1062 = vld [vmem:[%s837 + $0xb0] sm:$0x1]
        %v1063 = vsel %vm963, 0, %v1062
        %1064 = vst [vmem:[%s837 + $0xb0] sm:$0x1] %v1063
        %v1065 = vld [vmem:[%s837 + $0xb4] sm:$0xf]
        %v1066 = vsel %vm956, 0, %v1065
        %1067 = vst [vmem:[%s837 + $0xb4] sm:$0xf] %v1066
        %1068 = vst.msk [vmem:[%s837 + $0xb8] sm:$0xf] %vm960, 0
        %v1069 = vld [vmem:[%s837 + $0xbc] sm:$0x1]
        %v1070 = vsel %vm963, 0, %v1069
        %1071 = vst [vmem:[%s837 + $0xbc] sm:$0x1] %v1070
        %v1072 = vld [vmem:[#allocation2] sm:$0xf]
        %v1073 = vld [vmem:[#allocation2 + $0x4] sm:$0xf]
        %v1074 = vld [vmem:[#allocation2 + $0xc] sm:$0xf]
        %v1075 = vld [vmem:[#allocation2 + $0x10] sm:$0xf]
        %v1076 = vld [vmem:[#allocation2 + $0x18] sm:$0xf]
        %v1077 = vld [vmem:[#allocation2 + $0x1c] sm:$0xf]
        %v1078 = vld [vmem:[#allocation2 + $0x24] sm:$0xf]
        %v1079 = vld [vmem:[#allocation2 + $0x28] sm:$0xf]
        %v1080 = vld [vmem:[#allocation2 + $0x30] sm:$0xf]
        %v1081 = vld [vmem:[#allocation2 + $0x34] sm:$0xf]
        %v1082 = vld [vmem:[#allocation2 + $0x3c] sm:$0xf]
        %v1083 = vld [vmem:[#allocation2 + $0x40] sm:$0xf]
        %v1084 = vld [vmem:[#allocation2 + $0x48] sm:$0xf]
        %v1085 = vld [vmem:[#allocation2 + $0x4c] sm:$0xf]
        %v1086 = vld [vmem:[#allocation2 + $0x54] sm:$0xf]
        %v1087 = vld [vmem:[#allocation2 + $0x58] sm:$0xf]
        %v1088 = vld [vmem:[%s1] sm:$0xf]
        %v1089 = vld [vmem:[#allocation2 + $0x8] sm:$0x1]
        %v1090 = vld [vmem:[#allocation2 + $0x14] sm:$0x1]
        %v1091 = vld [vmem:[#allocation2 + $0x20] sm:$0x1]
        %v1092 = vld [vmem:[#allocation2 + $0x2c] sm:$0x1]
        %v1093 = vld [vmem:[#allocation2 + $0x38] sm:$0x1]
        %v1094 = vld [vmem:[#allocation2 + $0x44] sm:$0x1]
        %v1095 = vld [vmem:[#allocation2 + $0x50] sm:$0x1]
        %v1096 = vld [vmem:[#allocation2 + $0x5c] sm:$0x1]
        %vm1097 = vsmask.f32 3328
        %vm1098 = vsmask.f32 7440
        %vm1099 = vmor %vm1097, %vm1098
        %v1101 = vshrl.u32 %v1072, 16
        %v1103 = vrot.slane %v1101, 4
        %v1104 = vshll.u32 %v1072, 16
        %v1106 = vrot.slane %v1104, 5
        %v1107 = vor.u32 %v1103, %v1106
        %v1108 = vrot.slane %v1107, 4
        %v1110 = vshll.u32 %v1073, 16
        %v1112 = vrot.slane %v1110, 5
        %v1113 = vsel %vm1099, %v1108, %v1112
        %v1114 = vshrl.u32 %v1073, 16
        %v1116 = vrot.slane %v1114, 4
        %v1117 = vor.u32 %v1116, %v1112
        %v1118 = vrot.slane %v1117, 4
        %v1120 = vshll.u32 %v1089, 16
        %v1122 = vrot.slane %v1120, 5
        %v1123 = vsel %vm1099, %v1118, %v1122
        %v1125 = vshrl.u32 %v1074, 16
        %v1127 = vrot.slane %v1125, 4
        %v1128 = vshll.u32 %v1074, 16
        %v1130 = vrot.slane %v1128, 5
        %v1131 = vor.u32 %v1127, %v1130
        %v1132 = vrot.slane %v1131, 4
        %v1134 = vshll.u32 %v1075, 16
        %v1136 = vrot.slane %v1134, 5
        %v1137 = vsel %vm1099, %v1132, %v1136
        %v1138 = vshrl.u32 %v1075, 16
        %v1140 = vrot.slane %v1138, 4
        %v1141 = vor.u32 %v1140, %v1136
        %v1142 = vrot.slane %v1141, 4
        %v1144 = vshll.u32 %v1090, 16
        %v1146 = vrot.slane %v1144, 5
        %v1147 = vsel %vm1099, %v1142, %v1146
        %v1149 = vshrl.u32 %v1076, 16
        %v1151 = vrot.slane %v1149, 4
        %v1152 = vshll.u32 %v1076, 16
        %v1154 = vrot.slane %v1152, 5
        %v1155 = vor.u32 %v1151, %v1154
        %v1156 = vrot.slane %v1155, 4
        %v1158 = vshll.u32 %v1077, 16
        %v1160 = vrot.slane %v1158, 5
        %v1161 = vsel %vm1099, %v1156, %v1160
        %v1162 = vshrl.u32 %v1077, 16
        %v1164 = vrot.slane %v1162, 4
        %v1165 = vor.u32 %v1164, %v1160
        %v1166 = vrot.slane %v1165, 4
        %v1168 = vshll.u32 %v1091, 16
        %v1170 = vrot.slane %v1168, 5
        %v1171 = vsel %vm1099, %v1166, %v1170
        %v1173 = vshrl.u32 %v1078, 16
        %v1175 = vrot.slane %v1173, 4
        %v1176 = vshll.u32 %v1078, 16
        %v1178 = vrot.slane %v1176, 5
        %v1179 = vor.u32 %v1175, %v1178
        %v1180 = vrot.slane %v1179, 4
        %v1182 = vshll.u32 %v1079, 16
        %v1184 = vrot.slane %v1182, 5
        %v1185 = vsel %vm1099, %v1180, %v1184
        %v1186 = vshrl.u32 %v1079, 16
        %v1188 = vrot.slane %v1186, 4
        %v1189 = vor.u32 %v1188, %v1184
        %v1190 = vrot.slane %v1189, 4
        %v1192 = vshll.u32 %v1092, 16
        %v1194 = vrot.slane %v1192, 5
        %v1195 = vsel %vm1099, %v1190, %v1194
        %v1197 = vshrl.u32 %v1080, 16
        %v1199 = vrot.slane %v1197, 4
        %v1200 = vshll.u32 %v1080, 16
        %v1202 = vrot.slane %v1200, 5
        %v1203 = vor.u32 %v1199, %v1202
        %v1204 = vrot.slane %v1203, 4
        %v1206 = vshll.u32 %v1081, 16
        %v1208 = vrot.slane %v1206, 5
        %v1209 = vsel %vm1099, %v1204, %v1208
        %v1210 = vshrl.u32 %v1081, 16
        %v1212 = vrot.slane %v1210, 4
        %v1213 = vor.u32 %v1212, %v1208
        %v1214 = vrot.slane %v1213, 4
        %v1216 = vshll.u32 %v1093, 16
        %v1218 = vrot.slane %v1216, 5
        %v1219 = vsel %vm1099, %v1214, %v1218
        %v1221 = vshrl.u32 %v1082, 16
        %v1223 = vrot.slane %v1221, 4
        %v1224 = vshll.u32 %v1082, 16
        %v1226 = vrot.slane %v1224, 5
        %v1227 = vor.u32 %v1223, %v1226
        %v1228 = vrot.slane %v1227, 4
        %v1230 = vshll.u32 %v1083, 16
        %v1232 = vrot.slane %v1230, 5
        %v1233 = vsel %vm1099, %v1228, %v1232
        %v1234 = vshrl.u32 %v1083, 16
        %v1236 = vrot.slane %v1234, 4
        %v1237 = vor.u32 %v1236, %v1232
        %v1238 = vrot.slane %v1237, 4
        %v1240 = vshll.u32 %v1094, 16
        %v1242 = vrot.slane %v1240, 5
        %v1243 = vsel %vm1099, %v1238, %v1242
        %v1245 = vshrl.u32 %v1084, 16
        %v1247 = vrot.slane %v1245, 4
        %v1248 = vshll.u32 %v1084, 16
        %v1250 = vrot.slane %v1248, 5
        %v1251 = vor.u32 %v1247, %v1250
        %v1252 = vrot.slane %v1251, 4
        %v1254 = vshll.u32 %v1085, 16
        %v1256 = vrot.slane %v1254, 5
        %v1257 = vsel %vm1099, %v1252, %v1256
        %v1258 = vshrl.u32 %v1085, 16
        %v1260 = vrot.slane %v1258, 4
        %v1261 = vor.u32 %v1260, %v1256
        %v1262 = vrot.slane %v1261, 4
        %v1264 = vshll.u32 %v1095, 16
        %v1266 = vrot.slane %v1264, 5
        %v1267 = vsel %vm1099, %v1262, %v1266
        %v1269 = vshrl.u32 %v1086, 16
        %v1271 = vrot.slane %v1269, 4
        %v1272 = vshll.u32 %v1086, 16
        %v1274 = vrot.slane %v1272, 5
        %v1275 = vor.u32 %v1271, %v1274
        %v1276 = vrot.slane %v1275, 4
        %v1278 = vshll.u32 %v1087, 16
        %v1280 = vrot.slane %v1278, 5
        %v1281 = vsel %vm1099, %v1276, %v1280
        %v1282 = vshrl.u32 %v1087, 16
        %v1284 = vrot.slane %v1282, 4
        %v1285 = vor.u32 %v1284, %v1280
        %v1286 = vrot.slane %v1285, 4
        %v1288 = vshll.u32 %v1096, 16
        %v1290 = vrot.slane %v1288, 5
        %v1291 = vsel %vm1099, %v1286, %v1290
        %s1292 = scalar_lea.vmem %s1, 4
        %v1293 = vld [vmem:[%s1292] sm:$0xf]
        %v1294 = vunpack.c.l.b16 %v1113
        %v1295 = vunpack.c.l.b16 %v1123
        %v1296 = vunpack.c.l.b16 %v1137
        %v1297 = vunpack.c.l.b16 %v1147
        %v1298 = vunpack.c.l.b16 %v1161
        %v1299 = vunpack.c.l.b16 %v1171
        %v1300 = vunpack.c.l.b16 %v1185
        %v1301 = vunpack.c.l.b16 %v1195
        %v1302 = vunpack.c.l.b16 %v1209
        %v1303 = vunpack.c.l.b16 %v1219
        %v1304 = vunpack.c.l.b16 %v1233
        %v1305 = vunpack.c.l.b16 %v1243
        %v1306 = vunpack.c.l.b16 %v1257
        %v1307 = vunpack.c.l.b16 %v1267
        %v1308 = vunpack.c.l.b16 %v1281
        %v1309 = vunpack.c.l.b16 %v1291
        %v1310 = vpack.c.b16 %v1295, %v1294
        %v1311 = vpack.c.b16 %v1297, %v1296
        %v1312 = vpack.c.b16 %v1299, %v1298
        %v1313 = vpack.c.b16 %v1301, %v1300
        %v1314 = vpack.c.b16 %v1303, %v1302
        %v1315 = vpack.c.b16 %v1305, %v1304
        %v1316 = vpack.c.b16 %v1307, %v1306
        %v1317 = vpack.c.b16 %v1309, %v1308
        %vm1318 = vcmask 64512
        %v1320 = vsel %vm1318, %v1310, 0
        %v1323 = vsel %vm1318, %v1311, 0
        %v1326 = vsel %vm1318, %v1312, 0
        %v1329 = vsel %vm1318, %v1313, 0
        %v1332 = vsel %vm1318, %v1314, 0
        %v1335 = vsel %vm1318, %v1315, 0
        %v1338 = vsel %vm1318, %v1316, 0
        %v1341 = vsel %vm1318, %v1317, 0
        %vm1343 = vcmask 1043456
        %v1345 = vsel %vm1343, %v1293, 0
        %1347 = vmatpush.bf16.msra.mxu0 0
        %1348 = vmatpush.bf16.msra.mxu0 0
        %1349 = vmatpush.bf16.msra.mxu0 0
        %1350 = vmatpush.bf16.msra.mxu0 0
        %1351 = vmatpush.bf16.msra.mxu0 0
        %1352 = vmatpush.bf16.msra.mxu0 0
        %1353 = vmatpush.bf16.msra.mxu0 0
        %1354 = vmatpush.bf16.msra.mxu0 %v1345
        %1355 = vmatmul.bf16.gmra.mxu0 %v1320
        %v1356 = vpop.f32.mrf.mxu0
        %v1357 = vadd.f32 0.0, %v1356
        %v1358 = vpop.f32.mrf.mxu0
        %v1359 = vadd.f32 0.0, %v1358
        %1360 = vmatmul.bf16.gmra.mxu0 %v1323
        %v1361 = vpop.f32.mrf.mxu0
        %v1362 = vadd.f32 0.0, %v1361
        %v1363 = vpop.f32.mrf.mxu0
        %v1364 = vadd.f32 0.0, %v1363
        %1365 = vmatmul.bf16.gmra.mxu0 %v1326
        %v1366 = vpop.f32.mrf.mxu0
        %v1367 = vadd.f32 0.0, %v1366
        %v1368 = vpop.f32.mrf.mxu0
        %v1369 = vadd.f32 0.0, %v1368
        %1370 = vmatmul.bf16.gmra.mxu0 %v1329
        %v1371 = vpop.f32.mrf.mxu0
        %v1372 = vadd.f32 0.0, %v1371
        %v1373 = vpop.f32.mrf.mxu0
        %v1374 = vadd.f32 0.0, %v1373
        %1375 = vmatmul.bf16.gmra.mxu0 %v1332
        %v1376 = vpop.f32.mrf.mxu0
        %v1377 = vadd.f32 0.0, %v1376
        %v1378 = vpop.f32.mrf.mxu0
        %v1379 = vadd.f32 0.0, %v1378
        %1380 = vmatmul.bf16.gmra.mxu0 %v1335
        %v1381 = vpop.f32.mrf.mxu0
        %v1382 = vadd.f32 0.0, %v1381
        %v1383 = vpop.f32.mrf.mxu0
        %v1384 = vadd.f32 0.0, %v1383
        %1385 = vmatmul.bf16.gmra.mxu0 %v1338
        %v1386 = vpop.f32.mrf.mxu0
        %v1387 = vadd.f32 0.0, %v1386
        %v1388 = vpop.f32.mrf.mxu0
        %v1389 = vadd.f32 0.0, %v1388
        %1390 = vmatmul.bf16.gmra.mxu0 %v1341
        %v1391 = vpop.f32.mrf.mxu0
        %v1392 = vadd.f32 0.0, %v1391
        %v1393 = vpop.f32.mrf.mxu0
        %v1394 = vadd.f32 0.0, %v1393
        %1395 = vdwg.mxu0
        %v1412 = vunpack.c.l.b16 %v1072
        %v1413 = vunpack.c.l.b16 %v1073
        %v1414 = vunpack.c.l.b16 %v1074
        %v1415 = vunpack.c.l.b16 %v1075
        %v1416 = vunpack.c.l.b16 %v1076
        %v1417 = vunpack.c.l.b16 %v1077
        %v1418 = vunpack.c.l.b16 %v1078
        %v1419 = vunpack.c.l.b16 %v1079
        %v1420 = vunpack.c.l.b16 %v1080
        %v1421 = vunpack.c.l.b16 %v1081
        %v1422 = vunpack.c.l.b16 %v1082
        %v1423 = vunpack.c.l.b16 %v1083
        %v1424 = vunpack.c.l.b16 %v1084
        %v1425 = vunpack.c.l.b16 %v1085
        %v1426 = vunpack.c.l.b16 %v1086
        %v1427 = vunpack.c.l.b16 %v1087
        %v1428 = vpack.c.b16 %v1413, %v1412
        %v1429 = vpack.c.b16 %v1415, %v1414
        %v1430 = vpack.c.b16 %v1417, %v1416
        %v1431 = vpack.c.b16 %v1419, %v1418
        %v1432 = vpack.c.b16 %v1421, %v1420
        %v1433 = vpack.c.b16 %v1423, %v1422
        %v1434 = vpack.c.b16 %v1425, %v1424
        %v1435 = vpack.c.b16 %v1427, %v1426
        %v1437 = vsel %vm1318, %v1428, 0
        %v1440 = vsel %vm1318, %v1429, 0
        %v1443 = vsel %vm1318, %v1430, 0
        %v1446 = vsel %vm1318, %v1431, 0
        %v1449 = vsel %vm1318, %v1432, 0
        %v1452 = vsel %vm1318, %v1433, 0
        %v1455 = vsel %vm1318, %v1434, 0
        %v1458 = vsel %vm1318, %v1435, 0
        %v1461 = vsel %vm1343, %v1088, 0
        %1463 = vmatpush.bf16.msra.mxu0 0
        %1464 = vmatpush.bf16.msra.mxu0 0
        %1465 = vmatpush.bf16.msra.mxu0 0
        %1466 = vmatpush.bf16.msra.mxu0 0
        %1467 = vmatpush.bf16.msra.mxu0 0
        %1468 = vmatpush.bf16.msra.mxu0 0
        %1469 = vmatpush.bf16.msra.mxu0 0
        %1470 = vmatpush.bf16.msra.mxu0 %v1461
        %1471 = vmatmul.bf16.gmra.mxu0 %v1437
        %v1472 = vpop.f32.mrf.mxu0
        %v1473 = vadd.f32 %v1357, %v1472
        %v1474 = vpop.f32.mrf.mxu0
        %v1475 = vadd.f32 %v1359, %v1474
        %1476 = vmatmul.bf16.gmra.mxu0 %v1440
        %v1477 = vpop.f32.mrf.mxu0
        %v1478 = vadd.f32 %v1362, %v1477
        %v1479 = vpop.f32.mrf.mxu0
        %v1480 = vadd.f32 %v1364, %v1479
        %1481 = vmatmul.bf16.gmra.mxu0 %v1443
        %v1482 = vpop.f32.mrf.mxu0
        %v1483 = vadd.f32 %v1367, %v1482
        %v1484 = vpop.f32.mrf.mxu0
        %v1485 = vadd.f32 %v1369, %v1484
        %1486 = vmatmul.bf16.gmra.mxu0 %v1446
        %v1487 = vpop.f32.mrf.mxu0
        %v1488 = vadd.f32 %v1372, %v1487
        %v1489 = vpop.f32.mrf.mxu0
        %v1490 = vadd.f32 %v1374, %v1489
        %1491 = vmatmul.bf16.gmra.mxu0 %v1449
        %v1492 = vpop.f32.mrf.mxu0
        %v1493 = vadd.f32 %v1377, %v1492
        %v1494 = vpop.f32.mrf.mxu0
        %v1495 = vadd.f32 %v1379, %v1494
        %1496 = vmatmul.bf16.gmra.mxu0 %v1452
        %v1497 = vpop.f32.mrf.mxu0
        %v1498 = vadd.f32 %v1382, %v1497
        %v1499 = vpop.f32.mrf.mxu0
        %v1500 = vadd.f32 %v1384, %v1499
        %1501 = vmatmul.bf16.gmra.mxu0 %v1455
        %v1502 = vpop.f32.mrf.mxu0
        %v1503 = vadd.f32 %v1387, %v1502
        %v1504 = vpop.f32.mrf.mxu0
        %v1505 = vadd.f32 %v1389, %v1504
        %1506 = vmatmul.bf16.gmra.mxu0 %v1458
        %v1507 = vpop.f32.mrf.mxu0
        %v1508 = vadd.f32 %v1392, %v1507
        %v1509 = vpop.f32.mrf.mxu0
        %v1510 = vadd.f32 %v1394, %v1509
        %1511 = vdwg.mxu0
        %v1512 = vld [vmem:[#allocation2] sm:$0xe]
        %v1513 = vld [vmem:[#allocation2 + $0xc] sm:$0xe]
        %v1514 = vld [vmem:[#allocation2 + $0x18] sm:$0xe]
        %v1515 = vld [vmem:[#allocation2 + $0x24] sm:$0xe]
        %v1516 = vld [vmem:[#allocation2 + $0x30] sm:$0xe]
        %v1517 = vld [vmem:[#allocation2 + $0x3c] sm:$0xe]
        %v1518 = vld [vmem:[#allocation2 + $0x48] sm:$0xe]
        %v1519 = vld [vmem:[#allocation2 + $0x54] sm:$0xe]
        %vm1536 = vcmask 1042432
        %vm1537 = vcmask 1046532
        %vm1538 = vmor %vm1536, %vm1537
        %v1539 = vrot.slane %v1512, 5
        %v1540 = vrot.slane %v1539, 4
        %v1541 = vrot.slane %v1073, 5
        %v1542 = vsel %vm1538, %v1540, %v1541
        %v1543 = vrot.slane %v1541, 4
        %v1544 = vrot.slane %v1089, 5
        %v1545 = vsel %vm1538, %v1543, %v1544
        %v1546 = vrot.slane %v1513, 5
        %v1547 = vrot.slane %v1546, 4
        %v1548 = vrot.slane %v1075, 5
        %v1549 = vsel %vm1538, %v1547, %v1548
        %v1550 = vrot.slane %v1548, 4
        %v1551 = vrot.slane %v1090, 5
        %v1552 = vsel %vm1538, %v1550, %v1551
        %v1553 = vrot.slane %v1514, 5
        %v1554 = vrot.slane %v1553, 4
        %v1555 = vrot.slane %v1077, 5
        %v1556 = vsel %vm1538, %v1554, %v1555
        %v1557 = vrot.slane %v1555, 4
        %v1558 = vrot.slane %v1091, 5
        %v1559 = vsel %vm1538, %v1557, %v1558
        %v1560 = vrot.slane %v1515, 5
        %v1561 = vrot.slane %v1560, 4
        %v1562 = vrot.slane %v1079, 5
        %v1563 = vsel %vm1538, %v1561, %v1562
        %v1564 = vrot.slane %v1562, 4
        %v1565 = vrot.slane %v1092, 5
        %v1566 = vsel %vm1538, %v1564, %v1565
        %v1567 = vrot.slane %v1516, 5
        %v1568 = vrot.slane %v1567, 4
        %v1569 = vrot.slane %v1081, 5
        %v1570 = vsel %vm1538, %v1568, %v1569
        %v1571 = vrot.slane %v1569, 4
        %v1572 = vrot.slane %v1093, 5
        %v1573 = vsel %vm1538, %v1571, %v1572
        %v1574 = vrot.slane %v1517, 5
        %v1575 = vrot.slane %v1574, 4
        %v1576 = vrot.slane %v1083, 5
        %v1577 = vsel %vm1538, %v1575, %v1576
        %v1578 = vrot.slane %v1576, 4
        %v1579 = vrot.slane %v1094, 5
        %v1580 = vsel %vm1538, %v1578, %v1579
        %v1581 = vrot.slane %v1518, 5
        %v1582 = vrot.slane %v1581, 4
        %v1583 = vrot.slane %v1085, 5
        %v1584 = vsel %vm1538, %v1582, %v1583
        %v1585 = vrot.slane %v1583, 4
        %v1586 = vrot.slane %v1095, 5
        %v1587 = vsel %vm1538, %v1585, %v1586
        %v1588 = vrot.slane %v1519, 5
        %v1589 = vrot.slane %v1588, 4
        %v1590 = vrot.slane %v1087, 5
        %v1591 = vsel %vm1538, %v1589, %v1590
        %v1592 = vrot.slane %v1590, 4
        %v1593 = vrot.slane %v1096, 5
        %v1594 = vsel %vm1538, %v1592, %v1593
        %s1595 = scalar_lea.vmem %s1, 8
        %v1596 = vld [vmem:[%s1595] sm:$0xf]
        %v1597 = vunpack.c.l.b16 %v1542
        %v1598 = vunpack.c.l.b16 %v1545
        %v1599 = vunpack.c.l.b16 %v1549
        %v1600 = vunpack.c.l.b16 %v1552
        %v1601 = vunpack.c.l.b16 %v1556
        %v1602 = vunpack.c.l.b16 %v1559
        %v1603 = vunpack.c.l.b16 %v1563
        %v1604 = vunpack.c.l.b16 %v1566
        %v1605 = vunpack.c.l.b16 %v1570
        %v1606 = vunpack.c.l.b16 %v1573
        %v1607 = vunpack.c.l.b16 %v1577
        %v1608 = vunpack.c.l.b16 %v1580
        %v1609 = vunpack.c.l.b16 %v1584
        %v1610 = vunpack.c.l.b16 %v1587
        %v1611 = vunpack.c.l.b16 %v1591
        %v1612 = vunpack.c.l.b16 %v1594
        %v1613 = vpack.c.b16 %v1598, %v1597
        %v1614 = vpack.c.b16 %v1600, %v1599
        %v1615 = vpack.c.b16 %v1602, %v1601
        %v1616 = vpack.c.b16 %v1604, %v1603
        %v1617 = vpack.c.b16 %v1606, %v1605
        %v1618 = vpack.c.b16 %v1608, %v1607
        %v1619 = vpack.c.b16 %v1610, %v1609
        %v1620 = vpack.c.b16 %v1612, %v1611
        %v1622 = vsel %vm1318, %v1613, 0
        %v1625 = vsel %vm1318, %v1614, 0
        %v1628 = vsel %vm1318, %v1615, 0
        %v1631 = vsel %vm1318, %v1616, 0
        %v1634 = vsel %vm1318, %v1617, 0
        %v1637 = vsel %vm1318, %v1618, 0
        %v1640 = vsel %vm1318, %v1619, 0
        %v1643 = vsel %vm1318, %v1620, 0
        %v1646 = vsel %vm1343, %v1596, 0
        %1648 = vmatpush.bf16.msra.mxu0 0
        %1649 = vmatpush.bf16.msra.mxu0 0
        %1650 = vmatpush.bf16.msra.mxu0 0
        %1651 = vmatpush.bf16.msra.mxu0 0
        %1652 = vmatpush.bf16.msra.mxu0 0
        %1653 = vmatpush.bf16.msra.mxu0 0
        %1654 = vmatpush.bf16.msra.mxu0 0
        %1655 = vmatpush.bf16.msra.mxu0 %v1646
        %1656 = vmatmul.bf16.gmra.mxu0 %v1622
        %v1657 = vpop.f32.mrf.mxu0
        %v1658 = vadd.f32 0.0, %v1657
        %v1659 = vpop.f32.mrf.mxu0
        %v1660 = vadd.f32 0.0, %v1659
        %1661 = vmatmul.bf16.gmra.mxu0 %v1625
        %v1662 = vpop.f32.mrf.mxu0
        %v1663 = vadd.f32 0.0, %v1662
        %v1664 = vpop.f32.mrf.mxu0
        %v1665 = vadd.f32 0.0, %v1664
        %1666 = vmatmul.bf16.gmra.mxu0 %v1628
        %v1667 = vpop.f32.mrf.mxu0
        %v1668 = vadd.f32 0.0, %v1667
        %v1669 = vpop.f32.mrf.mxu0
        %v1670 = vadd.f32 0.0, %v1669
        %1671 = vmatmul.bf16.gmra.mxu0 %v1631
        %v1672 = vpop.f32.mrf.mxu0
        %v1673 = vadd.f32 0.0, %v1672
        %v1674 = vpop.f32.mrf.mxu0
        %v1675 = vadd.f32 0.0, %v1674
        %1676 = vmatmul.bf16.gmra.mxu0 %v1634
        %v1677 = vpop.f32.mrf.mxu0
        %v1678 = vadd.f32 0.0, %v1677
        %v1679 = vpop.f32.mrf.mxu0
        %v1680 = vadd.f32 0.0, %v1679
        %1681 = vmatmul.bf16.gmra.mxu0 %v1637
        %v1682 = vpop.f32.mrf.mxu0
        %v1683 = vadd.f32 0.0, %v1682
        %v1684 = vpop.f32.mrf.mxu0
        %v1685 = vadd.f32 0.0, %v1684
        %1686 = vmatmul.bf16.gmra.mxu0 %v1640
        %v1687 = vpop.f32.mrf.mxu0
        %v1688 = vadd.f32 0.0, %v1687
        %v1689 = vpop.f32.mrf.mxu0
        %v1690 = vadd.f32 0.0, %v1689
        %1691 = vmatmul.bf16.gmra.mxu0 %v1643
        %v1692 = vpop.f32.mrf.mxu0
        %v1693 = vadd.f32 0.0, %v1692
        %v1694 = vpop.f32.mrf.mxu0
        %v1695 = vadd.f32 0.0, %v1694
        %1696 = vdwg.mxu0
        %v1697 = vadd.f32 %v1473, %v1658
        %v1698 = vadd.f32 %v1475, %v1660
        %v1699 = vadd.f32 %v1478, %v1663
        %v1700 = vadd.f32 %v1480, %v1665
        %v1701 = vadd.f32 %v1483, %v1668
        %v1702 = vadd.f32 %v1485, %v1670
        %v1703 = vadd.f32 %v1488, %v1673
        %v1704 = vadd.f32 %v1490, %v1675
        %v1705 = vadd.f32 %v1493, %v1678
        %v1706 = vadd.f32 %v1495, %v1680
        %v1707 = vadd.f32 %v1498, %v1683
        %v1708 = vadd.f32 %v1500, %v1685
        %v1709 = vadd.f32 %v1503, %v1688
        %v1710 = vadd.f32 %v1505, %v1690
        %v1711 = vadd.f32 %v1508, %v1693
        %v1712 = vadd.f32 %v1510, %v1695
        %v1713 = vld [vmem:[%s837] sm:$0xf]
        %v1714 = vld [vmem:[%s837 + $0x4] sm:$0xf]
        %v1715 = vld [vmem:[%s837 + $0xc] sm:$0xf]
        %v1716 = vld [vmem:[%s837 + $0x10] sm:$0xf]
        %v1717 = vld [vmem:[%s837 + $0x18] sm:$0xf]
        %v1718 = vld [vmem:[%s837 + $0x1c] sm:$0xf]
        %v1719 = vld [vmem:[%s837 + $0x24] sm:$0xf]
        %v1720 = vld [vmem:[%s837 + $0x28] sm:$0xf]
        %v1721 = vld [vmem:[%s837 + $0x30] sm:$0xf]
        %v1722 = vld [vmem:[%s837 + $0x34] sm:$0xf]
        %v1723 = vld [vmem:[%s837 + $0x3c] sm:$0xf]
        %v1724 = vld [vmem:[%s837 + $0x40] sm:$0xf]
        %v1725 = vld [vmem:[%s837 + $0x48] sm:$0xf]
        %v1726 = vld [vmem:[%s837 + $0x4c] sm:$0xf]
        %v1727 = vld [vmem:[%s837 + $0x54] sm:$0xf]
        %v1728 = vld [vmem:[%s837 + $0x58] sm:$0xf]
        %s1729 = scalar_lea.vmem %s1, 12
        %v1730 = vld [vmem:[%s1729] sm:$0xf]
        %v1747 = vunpack.c.l.b16 %v1713
        %v1748 = vunpack.c.l.b16 %v1714
        %v1749 = vunpack.c.l.b16 %v1715
        %v1750 = vunpack.c.l.b16 %v1716
        %v1751 = vunpack.c.l.b16 %v1717
        %v1752 = vunpack.c.l.b16 %v1718
        %v1753 = vunpack.c.l.b16 %v1719
        %v1754 = vunpack.c.l.b16 %v1720
        %v1755 = vunpack.c.l.b16 %v1721
        %v1756 = vunpack.c.l.b16 %v1722
        %v1757 = vunpack.c.l.b16 %v1723
        %v1758 = vunpack.c.l.b16 %v1724
        %v1759 = vunpack.c.l.b16 %v1725
        %v1760 = vunpack.c.l.b16 %v1726
        %v1761 = vunpack.c.l.b16 %v1727
        %v1762 = vunpack.c.l.b16 %v1728
        %v1763 = vpack.c.b16 %v1748, %v1747
        %v1764 = vpack.c.b16 %v1750, %v1749
        %v1765 = vpack.c.b16 %v1752, %v1751
        %v1766 = vpack.c.b16 %v1754, %v1753
        %v1767 = vpack.c.b16 %v1756, %v1755
        %v1768 = vpack.c.b16 %v1758, %v1757
        %v1769 = vpack.c.b16 %v1760, %v1759
        %v1770 = vpack.c.b16 %v1762, %v1761
        %v1772 = vsel %vm1318, %v1763, 0
        %v1775 = vsel %vm1318, %v1764, 0
        %v1778 = vsel %vm1318, %v1765, 0
        %v1781 = vsel %vm1318, %v1766, 0
        %v1784 = vsel %vm1318, %v1767, 0
        %v1787 = vsel %vm1318, %v1768, 0
        %v1790 = vsel %vm1318, %v1769, 0
        %v1793 = vsel %vm1318, %v1770, 0
        %v1796 = vsel %vm1343, %v1730, 0
        %1798 = vmatpush.bf16.msra.mxu0 0
        %1799 = vmatpush.bf16.msra.mxu0 0
        %1800 = vmatpush.bf16.msra.mxu0 0
        %1801 = vmatpush.bf16.msra.mxu0 0
        %1802 = vmatpush.bf16.msra.mxu0 0
        %1803 = vmatpush.bf16.msra.mxu0 0
        %1804 = vmatpush.bf16.msra.mxu0 0
        %1805 = vmatpush.bf16.msra.mxu0 %v1796
        %1806 = vmatmul.bf16.gmra.mxu0 %v1772
        %v1807 = vpop.f32.mrf.mxu0
        %v1808 = vadd.f32 0.0, %v1807
        %v1809 = vpop.f32.mrf.mxu0
        %v1810 = vadd.f32 0.0, %v1809
        %1811 = vmatmul.bf16.gmra.mxu0 %v1775
        %v1812 = vpop.f32.mrf.mxu0
        %v1813 = vadd.f32 0.0, %v1812
        %v1814 = vpop.f32.mrf.mxu0
        %v1815 = vadd.f32 0.0, %v1814
        %1816 = vmatmul.bf16.gmra.mxu0 %v1778
        %v1817 = vpop.f32.mrf.mxu0
        %v1818 = vadd.f32 0.0, %v1817
        %v1819 = vpop.f32.mrf.mxu0
        %v1820 = vadd.f32 0.0, %v1819
        %1821 = vmatmul.bf16.gmra.mxu0 %v1781
        %v1822 = vpop.f32.mrf.mxu0
        %v1823 = vadd.f32 0.0, %v1822
        %v1824 = vpop.f32.mrf.mxu0
        %v1825 = vadd.f32 0.0, %v1824
        %1826 = vmatmul.bf16.gmra.mxu0 %v1784
        %v1827 = vpop.f32.mrf.mxu0
        %v1828 = vadd.f32 0.0, %v1827
        %v1829 = vpop.f32.mrf.mxu0
        %v1830 = vadd.f32 0.0, %v1829
        %1831 = vmatmul.bf16.gmra.mxu0 %v1787
        %v1832 = vpop.f32.mrf.mxu0
        %v1833 = vadd.f32 0.0, %v1832
        %v1834 = vpop.f32.mrf.mxu0
        %v1835 = vadd.f32 0.0, %v1834
        %1836 = vmatmul.bf16.gmra.mxu0 %v1790
        %v1837 = vpop.f32.mrf.mxu0
        %v1838 = vadd.f32 0.0, %v1837
        %v1839 = vpop.f32.mrf.mxu0
        %v1840 = vadd.f32 0.0, %v1839
        %1841 = vmatmul.bf16.gmra.mxu0 %v1793
        %v1842 = vpop.f32.mrf.mxu0
        %v1843 = vadd.f32 0.0, %v1842
        %v1844 = vpop.f32.mrf.mxu0
        %v1845 = vadd.f32 0.0, %v1844
        %1846 = vdwg.mxu0
        %v1847 = vadd.f32 %v1697, %v1808
        %v1848 = vadd.f32 %v1698, %v1810
        %v1849 = vadd.f32 %v1699, %v1813
        %v1850 = vadd.f32 %v1700, %v1815
        %v1851 = vadd.f32 %v1701, %v1818
        %v1852 = vadd.f32 %v1702, %v1820
        %v1853 = vadd.f32 %v1703, %v1823
        %v1854 = vadd.f32 %v1704, %v1825
        %v1855 = vadd.f32 %v1705, %v1828
        %v1856 = vadd.f32 %v1706, %v1830
        %v1857 = vadd.f32 %v1707, %v1833
        %v1858 = vadd.f32 %v1708, %v1835
        %v1859 = vadd.f32 %v1709, %v1838
        %v1860 = vadd.f32 %v1710, %v1840
        %v1861 = vadd.f32 %v1711, %v1843
        %v1862 = vadd.f32 %v1712, %v1845
        %v1863 = vld [vmem:[%s837] sm:$0xf]
        %v1864 = vld [vmem:[%s837 + $0x4] sm:$0xf]
        %v1865 = vld [vmem:[%s837 + $0x8] sm:$0x1]
        %v1866 = vld [vmem:[%s837 + $0xc] sm:$0xf]
        %v1867 = vld [vmem:[%s837 + $0x10] sm:$0xf]
        %v1868 = vld [vmem:[%s837 + $0x14] sm:$0x1]
        %v1869 = vld [vmem:[%s837 + $0x18] sm:$0xf]
        %v1870 = vld [vmem:[%s837 + $0x1c] sm:$0xf]
        %v1871 = vld [vmem:[%s837 + $0x20] sm:$0x1]
        %v1872 = vld [vmem:[%s837 + $0x24] sm:$0xf]
        %v1873 = vld [vmem:[%s837 + $0x28] sm:$0xf]
        %v1874 = vld [vmem:[%s837 + $0x2c] sm:$0x1]
        %v1875 = vld [vmem:[%s837 + $0x30] sm:$0xf]
        %v1876 = vld [vmem:[%s837 + $0x34] sm:$0xf]
        %v1877 = vld [vmem:[%s837 + $0x38] sm:$0x1]
        %v1878 = vld [vmem:[%s837 + $0x3c] sm:$0xf]
        %v1879 = vld [vmem:[%s837 + $0x40] sm:$0xf]
        %v1880 = vld [vmem:[%s837 + $0x44] sm:$0x1]
        %v1881 = vld [vmem:[%s837 + $0x48] sm:$0xf]
        %v1882 = vld [vmem:[%s837 + $0x4c] sm:$0xf]
        %v1883 = vld [vmem:[%s837 + $0x50] sm:$0x1]
        %v1884 = vld [vmem:[%s837 + $0x54] sm:$0xf]
        %v1885 = vld [vmem:[%s837 + $0x58] sm:$0xf]
        %v1886 = vld [vmem:[%s837 + $0x5c] sm:$0x1]
        %v1888 = vshrl.u32 %v1863, 16
        %v1890 = vrot.slane %v1888, 4
        %v1891 = vshll.u32 %v1863, 16
        %v1893 = vrot.slane %v1891, 5
        %v1894 = vor.u32 %v1890, %v1893
        %v1895 = vrot.slane %v1894, 4
        %v1897 = vshll.u32 %v1864, 16
        %v1899 = vrot.slane %v1897, 5
        %v1900 = vsel %vm1099, %v1895, %v1899
        %v1901 = vshrl.u32 %v1864, 16
        %v1903 = vrot.slane %v1901, 4
        %v1904 = vor.u32 %v1903, %v1899
        %v1905 = vrot.slane %v1904, 4
        %v1907 = vshll.u32 %v1865, 16
        %v1909 = vrot.slane %v1907, 5
        %v1910 = vsel %vm1099, %v1905, %v1909
        %v1912 = vshrl.u32 %v1866, 16
        %v1914 = vrot.slane %v1912, 4
        %v1915 = vshll.u32 %v1866, 16
        %v1917 = vrot.slane %v1915, 5
        %v1918 = vor.u32 %v1914, %v1917
        %v1919 = vrot.slane %v1918, 4
        %v1921 = vshll.u32 %v1867, 16
        %v1923 = vrot.slane %v1921, 5
        %v1924 = vsel %vm1099, %v1919, %v1923
        %v1925 = vshrl.u32 %v1867, 16
        %v1927 = vrot.slane %v1925, 4
        %v1928 = vor.u32 %v1927, %v1923
        %v1929 = vrot.slane %v1928, 4
        %v1931 = vshll.u32 %v1868, 16
        %v1933 = vrot.slane %v1931, 5
        %v1934 = vsel %vm1099, %v1929, %v1933
        %v1936 = vshrl.u32 %v1869, 16
        %v1938 = vrot.slane %v1936, 4
        %v1939 = vshll.u32 %v1869, 16
        %v1941 = vrot.slane %v1939, 5
        %v1942 = vor.u32 %v1938, %v1941
        %v1943 = vrot.slane %v1942, 4
        %v1945 = vshll.u32 %v1870, 16
        %v1947 = vrot.slane %v1945, 5
        %v1948 = vsel %vm1099, %v1943, %v1947
        %v1949 = vshrl.u32 %v1870, 16
        %v1951 = vrot.slane %v1949, 4
        %v1952 = vor.u32 %v1951, %v1947
        %v1953 = vrot.slane %v1952, 4
        %v1955 = vshll.u32 %v1871, 16
        %v1957 = vrot.slane %v1955, 5
        %v1958 = vsel %vm1099, %v1953, %v1957
        %v1960 = vshrl.u32 %v1872, 16
        %v1962 = vrot.slane %v1960, 4
        %v1963 = vshll.u32 %v1872, 16
        %v1965 = vrot.slane %v1963, 5
        %v1966 = vor.u32 %v1962, %v1965
        %v1967 = vrot.slane %v1966, 4
        %v1969 = vshll.u32 %v1873, 16
        %v1971 = vrot.slane %v1969, 5
        %v1972 = vsel %vm1099, %v1967, %v1971
        %v1973 = vshrl.u32 %v1873, 16
        %v1975 = vrot.slane %v1973, 4
        %v1976 = vor.u32 %v1975, %v1971
        %v1977 = vrot.slane %v1976, 4
        %v1979 = vshll.u32 %v1874, 16
        %v1981 = vrot.slane %v1979, 5
        %v1982 = vsel %vm1099, %v1977, %v1981
        %v1984 = vshrl.u32 %v1875, 16
        %v1986 = vrot.slane %v1984, 4
        %v1987 = vshll.u32 %v1875, 16
        %v1989 = vrot.slane %v1987, 5
        %v1990 = vor.u32 %v1986, %v1989
        %v1991 = vrot.slane %v1990, 4
        %v1993 = vshll.u32 %v1876, 16
        %v1995 = vrot.slane %v1993, 5
        %v1996 = vsel %vm1099, %v1991, %v1995
        %v1997 = vshrl.u32 %v1876, 16
        %v1999 = vrot.slane %v1997, 4
        %v2000 = vor.u32 %v1999, %v1995
        %v2001 = vrot.slane %v2000, 4
        %v2003 = vshll.u32 %v1877, 16
        %v2005 = vrot.slane %v2003, 5
        %v2006 = vsel %vm1099, %v2001, %v2005
        %v2008 = vshrl.u32 %v1878, 16
        %v2010 = vrot.slane %v2008, 4
        %v2011 = vshll.u32 %v1878, 16
        %v2013 = vrot.slane %v2011, 5
        %v2014 = vor.u32 %v2010, %v2013
        %v2015 = vrot.slane %v2014, 4
        %v2017 = vshll.u32 %v1879, 16
        %v2019 = vrot.slane %v2017, 5
        %v2020 = vsel %vm1099, %v2015, %v2019
        %v2021 = vshrl.u32 %v1879, 16
        %v2023 = vrot.slane %v2021, 4
        %v2024 = vor.u32 %v2023, %v2019
        %v2025 = vrot.slane %v2024, 4
        %v2027 = vshll.u32 %v1880, 16
        %v2029 = vrot.slane %v2027, 5
        %v2030 = vsel %vm1099, %v2025, %v2029
        %v2032 = vshrl.u32 %v1881, 16
        %v2034 = vrot.slane %v2032, 4
        %v2035 = vshll.u32 %v1881, 16
        %v2037 = vrot.slane %v2035, 5
        %v2038 = vor.u32 %v2034, %v2037
        %v2039 = vrot.slane %v2038, 4
        %v2041 = vshll.u32 %v1882, 16
        %v2043 = vrot.slane %v2041, 5
        %v2044 = vsel %vm1099, %v2039, %v2043
        %v2045 = vshrl.u32 %v1882, 16
        %v2047 = vrot.slane %v2045, 4
        %v2048 = vor.u32 %v2047, %v2043
        %v2049 = vrot.slane %v2048, 4
        %v2051 = vshll.u32 %v1883, 16
        %v2053 = vrot.slane %v2051, 5
        %v2054 = vsel %vm1099, %v2049, %v2053
        %v2056 = vshrl.u32 %v1884, 16
        %v2058 = vrot.slane %v2056, 4
        %v2059 = vshll.u32 %v1884, 16
        %v2061 = vrot.slane %v2059, 5
        %v2062 = vor.u32 %v2058, %v2061
        %v2063 = vrot.slane %v2062, 4
        %v2065 = vshll.u32 %v1885, 16
        %v2067 = vrot.slane %v2065, 5
        %v2068 = vsel %vm1099, %v2063, %v2067
        %v2069 = vshrl.u32 %v1885, 16
        %v2071 = vrot.slane %v2069, 4
        %v2072 = vor.u32 %v2071, %v2067
        %v2073 = vrot.slane %v2072, 4
        %v2075 = vshll.u32 %v1886, 16
        %v2077 = vrot.slane %v2075, 5
        %v2078 = vsel %vm1099, %v2073, %v2077
        %s2079 = scalar_lea.vmem %s1, 16
        %v2080 = vld [vmem:[%s2079] sm:$0xf]
        %v2081 = vunpack.c.l.b16 %v1900
        %v2082 = vunpack.c.l.b16 %v1910
        %v2083 = vunpack.c.l.b16 %v1924
        %v2084 = vunpack.c.l.b16 %v1934
        %v2085 = vunpack.c.l.b16 %v1948
        %v2086 = vunpack.c.l.b16 %v1958
        %v2087 = vunpack.c.l.b16 %v1972
        %v2088 = vunpack.c.l.b16 %v1982
        %v2089 = vunpack.c.l.b16 %v1996
        %v2090 = vunpack.c.l.b16 %v2006
        %v2091 = vunpack.c.l.b16 %v2020
        %v2092 = vunpack.c.l.b16 %v2030
        %v2093 = vunpack.c.l.b16 %v2044
        %v2094 = vunpack.c.l.b16 %v2054
        %v2095 = vunpack.c.l.b16 %v2068
        %v2096 = vunpack.c.l.b16 %v2078
        %v2097 = vpack.c.b16 %v2082, %v2081
        %v2098 = vpack.c.b16 %v2084, %v2083
        %v2099 = vpack.c.b16 %v2086, %v2085
        %v2100 = vpack.c.b16 %v2088, %v2087
        %v2101 = vpack.c.b16 %v2090, %v2089
        %v2102 = vpack.c.b16 %v2092, %v2091
        %v2103 = vpack.c.b16 %v2094, %v2093
        %v2104 = vpack.c.b16 %v2096, %v2095
        %v2106 = vsel %vm1318, %v2097, 0
        %v2109 = vsel %vm1318, %v2098, 0
        %v2112 = vsel %vm1318, %v2099, 0
        %v2115 = vsel %vm1318, %v2100, 0
        %v2118 = vsel %vm1318, %v2101, 0
        %v2121 = vsel %vm1318, %v2102, 0
        %v2124 = vsel %vm1318, %v2103, 0
        %v2127 = vsel %vm1318, %v2104, 0
        %v2130 = vsel %vm1343, %v2080, 0
        %2132 = vmatpush.bf16.msra.mxu0 0
        %2133 = vmatpush.bf16.msra.mxu0 0
        %2134 = vmatpush.bf16.msra.mxu0 0
        %2135 = vmatpush.bf16.msra.mxu0 0
        %2136 = vmatpush.bf16.msra.mxu0 0
        %2137 = vmatpush.bf16.msra.mxu0 0
        %2138 = vmatpush.bf16.msra.mxu0 0
        %2139 = vmatpush.bf16.msra.mxu0 %v2130
        %2140 = vmatmul.bf16.gmra.mxu0 %v2106
        %v2141 = vpop.f32.mrf.mxu0
        %v2142 = vadd.f32 0.0, %v2141
        %v2143 = vpop.f32.mrf.mxu0
        %v2144 = vadd.f32 0.0, %v2143
        %2145 = vmatmul.bf16.gmra.mxu0 %v2109
        %v2146 = vpop.f32.mrf.mxu0
        %v2147 = vadd.f32 0.0, %v2146
        %v2148 = vpop.f32.mrf.mxu0
        %v2149 = vadd.f32 0.0, %v2148
        %2150 = vmatmul.bf16.gmra.mxu0 %v2112
        %v2151 = vpop.f32.mrf.mxu0
        %v2152 = vadd.f32 0.0, %v2151
        %v2153 = vpop.f32.mrf.mxu0
        %v2154 = vadd.f32 0.0, %v2153
        %2155 = vmatmul.bf16.gmra.mxu0 %v2115
        %v2156 = vpop.f32.mrf.mxu0
        %v2157 = vadd.f32 0.0, %v2156
        %v2158 = vpop.f32.mrf.mxu0
        %v2159 = vadd.f32 0.0, %v2158
        %2160 = vmatmul.bf16.gmra.mxu0 %v2118
        %v2161 = vpop.f32.mrf.mxu0
        %v2162 = vadd.f32 0.0, %v2161
        %v2163 = vpop.f32.mrf.mxu0
        %v2164 = vadd.f32 0.0, %v2163
        %2165 = vmatmul.bf16.gmra.mxu0 %v2121
        %v2166 = vpop.f32.mrf.mxu0
        %v2167 = vadd.f32 0.0, %v2166
        %v2168 = vpop.f32.mrf.mxu0
        %v2169 = vadd.f32 0.0, %v2168
        %2170 = vmatmul.bf16.gmra.mxu0 %v2124
        %v2171 = vpop.f32.mrf.mxu0
        %v2172 = vadd.f32 0.0, %v2171
        %v2173 = vpop.f32.mrf.mxu0
        %v2174 = vadd.f32 0.0, %v2173
        %2175 = vmatmul.bf16.gmra.mxu0 %v2127
        %v2176 = vpop.f32.mrf.mxu0
        %v2177 = vadd.f32 0.0, %v2176
        %v2178 = vpop.f32.mrf.mxu0
        %v2179 = vadd.f32 0.0, %v2178
        %2180 = vdwg.mxu0
        %v2181 = vadd.f32 %v1847, %v2142
        %v2182 = vadd.f32 %v1848, %v2144
        %v2183 = vadd.f32 %v1849, %v2147
        %v2184 = vadd.f32 %v1850, %v2149
        %v2185 = vadd.f32 %v1851, %v2152
        %v2186 = vadd.f32 %v1852, %v2154
        %v2187 = vadd.f32 %v1853, %v2157
        %v2188 = vadd.f32 %v1854, %v2159
        %v2189 = vadd.f32 %v1855, %v2162
        %v2190 = vadd.f32 %v1856, %v2164
        %v2191 = vadd.f32 %v1857, %v2167
        %v2192 = vadd.f32 %v1858, %v2169
        %v2193 = vadd.f32 %v1859, %v2172
        %v2194 = vadd.f32 %v1860, %v2174
        %v2195 = vadd.f32 %v1861, %v2177
        %v2196 = vadd.f32 %v1862, %v2179
        %v2197 = vld [vmem:[%s837] sm:$0xe]
        %v2198 = vld [vmem:[%s837 + $0xc] sm:$0xe]
        %v2199 = vld [vmem:[%s837 + $0x18] sm:$0xe]
        %v2200 = vld [vmem:[%s837 + $0x24] sm:$0xe]
        %v2201 = vld [vmem:[%s837 + $0x30] sm:$0xe]
        %v2202 = vld [vmem:[%s837 + $0x3c] sm:$0xe]
        %v2203 = vld [vmem:[%s837 + $0x48] sm:$0xe]
        %v2204 = vld [vmem:[%s837 + $0x54] sm:$0xe]
        %v2229 = vrot.slane %v2197, 5
        %v2230 = vrot.slane %v2229, 4
        %v2231 = vrot.slane %v1864, 5
        %v2232 = vsel %vm1538, %v2230, %v2231
        %v2233 = vrot.slane %v2231, 4
        %v2234 = vrot.slane %v1865, 5
        %v2235 = vsel %vm1538, %v2233, %v2234
        %v2236 = vrot.slane %v2198, 5
        %v2237 = vrot.slane %v2236, 4
        %v2238 = vrot.slane %v1867, 5
        %v2239 = vsel %vm1538, %v2237, %v2238
        %v2240 = vrot.slane %v2238, 4
        %v2241 = vrot.slane %v1868, 5
        %v2242 = vsel %vm1538, %v2240, %v2241
        %v2243 = vrot.slane %v2199, 5
        %v2244 = vrot.slane %v2243, 4
        %v2245 = vrot.slane %v1870, 5
        %v2246 = vsel %vm1538, %v2244, %v2245
        %v2247 = vrot.slane %v2245, 4
        %v2248 = vrot.slane %v1871, 5
        %v2249 = vsel %vm1538, %v2247, %v2248
        %v2250 = vrot.slane %v2200, 5
        %v2251 = vrot.slane %v2250, 4
        %v2252 = vrot.slane %v1873, 5
        %v2253 = vsel %vm1538, %v2251, %v2252
        %v2254 = vrot.slane %v2252, 4
        %v2255 = vrot.slane %v1874, 5
        %v2256 = vsel %vm1538, %v2254, %v2255
        %v2257 = vrot.slane %v2201, 5
        %v2258 = vrot.slane %v2257, 4
        %v2259 = vrot.slane %v1876, 5
        %v2260 = vsel %vm1538, %v2258, %v2259
        %v2261 = vrot.slane %v2259, 4
        %v2262 = vrot.slane %v1877, 5
        %v2263 = vsel %vm1538, %v2261, %v2262
        %v2264 = vrot.slane %v2202, 5
        %v2265 = vrot.slane %v2264, 4
        %v2266 = vrot.slane %v1879, 5
        %v2267 = vsel %vm1538, %v2265, %v2266
        %v2268 = vrot.slane %v2266, 4
        %v2269 = vrot.slane %v1880, 5
        %v2270 = vsel %vm1538, %v2268, %v2269
        %v2271 = vrot.slane %v2203, 5
        %v2272 = vrot.slane %v2271, 4
        %v2273 = vrot.slane %v1882, 5
        %v2274 = vsel %vm1538, %v2272, %v2273
        %v2275 = vrot.slane %v2273, 4
        %v2276 = vrot.slane %v1883, 5
        %v2277 = vsel %vm1538, %v2275, %v2276
        %v2278 = vrot.slane %v2204, 5
        %v2279 = vrot.slane %v2278, 4
        %v2280 = vrot.slane %v1885, 5
        %v2281 = vsel %vm1538, %v2279, %v2280
        %v2282 = vrot.slane %v2280, 4
        %v2283 = vrot.slane %v1886, 5
        %v2284 = vsel %vm1538, %v2282, %v2283
        %s2285 = scalar_lea.vmem %s1, 20
        %v2286 = vld [vmem:[%s2285] sm:$0xf]
        %v2287 = vunpack.c.l.b16 %v2232
        %v2288 = vunpack.c.l.b16 %v2235
        %v2289 = vunpack.c.l.b16 %v2239
        %v2290 = vunpack.c.l.b16 %v2242
        %v2291 = vunpack.c.l.b16 %v2246
        %v2292 = vunpack.c.l.b16 %v2249
        %v2293 = vunpack.c.l.b16 %v2253
        %v2294 = vunpack.c.l.b16 %v2256
        %v2295 = vunpack.c.l.b16 %v2260
        %v2296 = vunpack.c.l.b16 %v2263
        %v2297 = vunpack.c.l.b16 %v2267
        %v2298 = vunpack.c.l.b16 %v2270
        %v2299 = vunpack.c.l.b16 %v2274
        %v2300 = vunpack.c.l.b16 %v2277
        %v2301 = vunpack.c.l.b16 %v2281
        %v2302 = vunpack.c.l.b16 %v2284
        %v2303 = vpack.c.b16 %v2288, %v2287
        %v2304 = vpack.c.b16 %v2290, %v2289
        %v2305 = vpack.c.b16 %v2292, %v2291
        %v2306 = vpack.c.b16 %v2294, %v2293
        %v2307 = vpack.c.b16 %v2296, %v2295
        %v2308 = vpack.c.b16 %v2298, %v2297
        %v2309 = vpack.c.b16 %v2300, %v2299
        %v2310 = vpack.c.b16 %v2302, %v2301
        %v2312 = vsel %vm1318, %v2303, 0
        %v2315 = vsel %vm1318, %v2304, 0
        %v2318 = vsel %vm1318, %v2305, 0
        %v2321 = vsel %vm1318, %v2306, 0
        %v2324 = vsel %vm1318, %v2307, 0
        %v2327 = vsel %vm1318, %v2308, 0
        %v2330 = vsel %vm1318, %v2309, 0
        %v2333 = vsel %vm1318, %v2310, 0
        %v2336 = vsel %vm1343, %v2286, 0
        %2338 = vmatpush.bf16.msra.mxu0 0
        %2339 = vmatpush.bf16.msra.mxu0 0
        %2340 = vmatpush.bf16.msra.mxu0 0
        %2341 = vmatpush.bf16.msra.mxu0 0
        %2342 = vmatpush.bf16.msra.mxu0 0
        %2343 = vmatpush.bf16.msra.mxu0 0
        %2344 = vmatpush.bf16.msra.mxu0 0
        %2345 = vmatpush.bf16.msra.mxu0 %v2336
        %2346 = vmatmul.bf16.gmra.mxu0 %v2312
        %v2347 = vpop.f32.mrf.mxu0
        %v2348 = vadd.f32 0.0, %v2347
        %v2349 = vpop.f32.mrf.mxu0
        %v2350 = vadd.f32 0.0, %v2349
        %2351 = vmatmul.bf16.gmra.mxu0 %v2315
        %v2352 = vpop.f32.mrf.mxu0
        %v2353 = vadd.f32 0.0, %v2352
        %v2354 = vpop.f32.mrf.mxu0
        %v2355 = vadd.f32 0.0, %v2354
        %2356 = vmatmul.bf16.gmra.mxu0 %v2318
        %v2357 = vpop.f32.mrf.mxu0
        %v2358 = vadd.f32 0.0, %v2357
        %v2359 = vpop.f32.mrf.mxu0
        %v2360 = vadd.f32 0.0, %v2359
        %2361 = vmatmul.bf16.gmra.mxu0 %v2321
        %v2362 = vpop.f32.mrf.mxu0
        %v2363 = vadd.f32 0.0, %v2362
        %v2364 = vpop.f32.mrf.mxu0
        %v2365 = vadd.f32 0.0, %v2364
        %2366 = vmatmul.bf16.gmra.mxu0 %v2324
        %v2367 = vpop.f32.mrf.mxu0
        %v2368 = vadd.f32 0.0, %v2367
        %v2369 = vpop.f32.mrf.mxu0
        %v2370 = vadd.f32 0.0, %v2369
        %2371 = vmatmul.bf16.gmra.mxu0 %v2327
        %v2372 = vpop.f32.mrf.mxu0
        %v2373 = vadd.f32 0.0, %v2372
        %v2374 = vpop.f32.mrf.mxu0
        %v2375 = vadd.f32 0.0, %v2374
        %2376 = vmatmul.bf16.gmra.mxu0 %v2330
        %v2377 = vpop.f32.mrf.mxu0
        %v2378 = vadd.f32 0.0, %v2377
        %v2379 = vpop.f32.mrf.mxu0
        %v2380 = vadd.f32 0.0, %v2379
        %2381 = vmatmul.bf16.gmra.mxu0 %v2333
        %v2382 = vpop.f32.mrf.mxu0
        %v2383 = vadd.f32 0.0, %v2382
        %v2384 = vpop.f32.mrf.mxu0
        %v2385 = vadd.f32 0.0, %v2384
        %2386 = vdwg.mxu0
        %v2387 = vadd.f32 %v2181, %v2348
        %v2388 = vadd.f32 %v2182, %v2350
        %v2389 = vadd.f32 %v2183, %v2353
        %v2390 = vadd.f32 %v2184, %v2355
        %v2391 = vadd.f32 %v2185, %v2358
        %v2392 = vadd.f32 %v2186, %v2360
        %v2393 = vadd.f32 %v2187, %v2363
        %v2394 = vadd.f32 %v2188, %v2365
        %v2395 = vadd.f32 %v2189, %v2368
        %v2396 = vadd.f32 %v2190, %v2370
        %v2397 = vadd.f32 %v2191, %v2373
        %v2398 = vadd.f32 %v2192, %v2375
        %v2399 = vadd.f32 %v2193, %v2378
        %v2400 = vadd.f32 %v2194, %v2380
        %v2401 = vadd.f32 %v2195, %v2383
        %v2402 = vadd.f32 %v2196, %v2385
        %s2403 = scalar_lea.vmem [#allocation2], 24
        %v2404 = vld [vmem:[%s2403] sm:$0xf]
        %v2405 = vld [vmem:[%s2403 + $0x4] sm:$0xf]
        %v2406 = vld [vmem:[%s2403 + $0xc] sm:$0xf]
        %v2407 = vld [vmem:[%s2403 + $0x10] sm:$0xf]
        %v2408 = vld [vmem:[%s2403 + $0x18] sm:$0xf]
        %v2409 = vld [vmem:[%s2403 + $0x1c] sm:$0xf]
        %v2410 = vld [vmem:[%s2403 + $0x24] sm:$0xf]
        %v2411 = vld [vmem:[%s2403 + $0x28] sm:$0xf]
        %v2412 = vld [vmem:[%s2403 + $0x30] sm:$0xf]
        %v2413 = vld [vmem:[%s2403 + $0x34] sm:$0xf]
        %v2414 = vld [vmem:[%s2403 + $0x3c] sm:$0xf]
        %v2415 = vld [vmem:[%s2403 + $0x40] sm:$0xf]
        %v2416 = vld [vmem:[%s2403 + $0x48] sm:$0xf]
        %v2417 = vld [vmem:[%s2403 + $0x4c] sm:$0xf]
        %v2418 = vld [vmem:[%s2403 + $0x54] sm:$0xf]
        %v2419 = vld [vmem:[%s2403 + $0x58] sm:$0xf]
        %s2420 = scalar_lea.vmem %s1, 24
        %v2421 = vld [vmem:[%s2420] sm:$0xf]
        %v2438 = vunpack.c.l.b16 %v2404
        %v2439 = vunpack.c.l.b16 %v2405
        %v2440 = vunpack.c.l.b16 %v2406
        %v2441 = vunpack.c.l.b16 %v2407
        %v2442 = vunpack.c.l.b16 %v2408
        %v2443 = vunpack.c.l.b16 %v2409
        %v2444 = vunpack.c.l.b16 %v2410
        %v2445 = vunpack.c.l.b16 %v2411
        %v2446 = vunpack.c.l.b16 %v2412
        %v2447 = vunpack.c.l.b16 %v2413
        %v2448 = vunpack.c.l.b16 %v2414
        %v2449 = vunpack.c.l.b16 %v2415
        %v2450 = vunpack.c.l.b16 %v2416
        %v2451 = vunpack.c.l.b16 %v2417
        %v2452 = vunpack.c.l.b16 %v2418
        %v2453 = vunpack.c.l.b16 %v2419
        %v2454 = vpack.c.b16 %v2439, %v2438
        %v2455 = vpack.c.b16 %v2441, %v2440
        %v2456 = vpack.c.b16 %v2443, %v2442
        %v2457 = vpack.c.b16 %v2445, %v2444
        %v2458 = vpack.c.b16 %v2447, %v2446
        %v2459 = vpack.c.b16 %v2449, %v2448
        %v2460 = vpack.c.b16 %v2451, %v2450
        %v2461 = vpack.c.b16 %v2453, %v2452
        %v2463 = vsel %vm1318, %v2454, 0
        %v2466 = vsel %vm1318, %v2455, 0
        %v2469 = vsel %vm1318, %v2456, 0
        %v2472 = vsel %vm1318, %v2457, 0
        %v2475 = vsel %vm1318, %v2458, 0
        %v2478 = vsel %vm1318, %v2459, 0
        %v2481 = vsel %vm1318, %v2460, 0
        %v2484 = vsel %vm1318, %v2461, 0
        %v2487 = vsel %vm1343, %v2421, 0
        %2489 = vmatpush.bf16.msra.mxu0 0
        %2490 = vmatpush.bf16.msra.mxu0 0
        %2491 = vmatpush.bf16.msra.mxu0 0
        %2492 = vmatpush.bf16.msra.mxu0 0
        %2493 = vmatpush.bf16.msra.mxu0 0
        %2494 = vmatpush.bf16.msra.mxu0 0
        %2495 = vmatpush.bf16.msra.mxu0 0
        %2496 = vmatpush.bf16.msra.mxu0 %v2487
        %2497 = vmatmul.bf16.gmra.mxu0 %v2463
        %v2498 = vpop.f32.mrf.mxu0
        %v2499 = vadd.f32 0.0, %v2498
        %v2500 = vpop.f32.mrf.mxu0
        %v2501 = vadd.f32 0.0, %v2500
        %2502 = vmatmul.bf16.gmra.mxu0 %v2466
        %v2503 = vpop.f32.mrf.mxu0
        %v2504 = vadd.f32 0.0, %v2503
        %v2505 = vpop.f32.mrf.mxu0
        %v2506 = vadd.f32 0.0, %v2505
        %2507 = vmatmul.bf16.gmra.mxu0 %v2469
        %v2508 = vpop.f32.mrf.mxu0
        %v2509 = vadd.f32 0.0, %v2508
        %v2510 = vpop.f32.mrf.mxu0
        %v2511 = vadd.f32 0.0, %v2510
        %2512 = vmatmul.bf16.gmra.mxu0 %v2472
        %v2513 = vpop.f32.mrf.mxu0
        %v2514 = vadd.f32 0.0, %v2513
        %v2515 = vpop.f32.mrf.mxu0
        %v2516 = vadd.f32 0.0, %v2515
        %2517 = vmatmul.bf16.gmra.mxu0 %v2475
        %v2518 = vpop.f32.mrf.mxu0
        %v2519 = vadd.f32 0.0, %v2518
        %v2520 = vpop.f32.mrf.mxu0
        %v2521 = vadd.f32 0.0, %v2520
        %2522 = vmatmul.bf16.gmra.mxu0 %v2478
        %v2523 = vpop.f32.mrf.mxu0
        %v2524 = vadd.f32 0.0, %v2523
        %v2525 = vpop.f32.mrf.mxu0
        %v2526 = vadd.f32 0.0, %v2525
        %2527 = vmatmul.bf16.gmra.mxu0 %v2481
        %v2528 = vpop.f32.mrf.mxu0
        %v2529 = vadd.f32 0.0, %v2528
        %v2530 = vpop.f32.mrf.mxu0
        %v2531 = vadd.f32 0.0, %v2530
        %2532 = vmatmul.bf16.gmra.mxu0 %v2484
        %v2533 = vpop.f32.mrf.mxu0
        %v2534 = vadd.f32 0.0, %v2533
        %v2535 = vpop.f32.mrf.mxu0
        %v2536 = vadd.f32 0.0, %v2535
        %2537 = vdwg.mxu0
        %v2538 = vadd.f32 %v2387, %v2499
        %v2539 = vadd.f32 %v2388, %v2501
        %v2540 = vadd.f32 %v2389, %v2504
        %v2541 = vadd.f32 %v2390, %v2506
        %v2542 = vadd.f32 %v2391, %v2509
        %v2543 = vadd.f32 %v2392, %v2511
        %v2544 = vadd.f32 %v2393, %v2514
        %v2545 = vadd.f32 %v2394, %v2516
        %v2546 = vadd.f32 %v2395, %v2519
        %v2547 = vadd.f32 %v2396, %v2521
        %v2548 = vadd.f32 %v2397, %v2524
        %v2549 = vadd.f32 %v2398, %v2526
        %v2550 = vadd.f32 %v2399, %v2529
        %v2551 = vadd.f32 %v2400, %v2531
        %v2552 = vadd.f32 %v2401, %v2534
        %v2553 = vadd.f32 %v2402, %v2536
        %v2554 = vld [vmem:[%s2403] sm:$0xf]
        %v2555 = vld [vmem:[%s2403 + $0x4] sm:$0xf]
        %v2556 = vld [vmem:[%s2403 + $0x8] sm:$0x1]
        %v2557 = vld [vmem:[%s2403 + $0xc] sm:$0xf]
        %v2558 = vld [vmem:[%s2403 + $0x10] sm:$0xf]
        %v2559 = vld [vmem:[%s2403 + $0x14] sm:$0x1]
        %v2560 = vld [vmem:[%s2403 + $0x18] sm:$0xf]
        %v2561 = vld [vmem:[%s2403 + $0x1c] sm:$0xf]
        %v2562 = vld [vmem:[%s2403 + $0x20] sm:$0x1]
        %v2563 = vld [vmem:[%s2403 + $0x24] sm:$0xf]
        %v2564 = vld [vmem:[%s2403 + $0x28] sm:$0xf]
        %v2565 = vld [vmem:[%s2403 + $0x2c] sm:$0x1]
        %v2566 = vld [vmem:[%s2403 + $0x30] sm:$0xf]
        %v2567 = vld [vmem:[%s2403 + $0x34] sm:$0xf]
        %v2568 = vld [vmem:[%s2403 + $0x38] sm:$0x1]
        %v2569 = vld [vmem:[%s2403 + $0x3c] sm:$0xf]
        %v2570 = vld [vmem:[%s2403 + $0x40] sm:$0xf]
        %v2571 = vld [vmem:[%s2403 + $0x44] sm:$0x1]
        %v2572 = vld [vmem:[%s2403 + $0x48] sm:$0xf]
        %v2573 = vld [vmem:[%s2403 + $0x4c] sm:$0xf]
        %v2574 = vld [vmem:[%s2403 + $0x50] sm:$0x1]
        %v2575 = vld [vmem:[%s2403 + $0x54] sm:$0xf]
        %v2576 = vld [vmem:[%s2403 + $0x58] sm:$0xf]
        %v2577 = vld [vmem:[%s2403 + $0x5c] sm:$0x1]
        %v2579 = vshrl.u32 %v2554, 16
        %v2581 = vrot.slane %v2579, 4
        %v2582 = vshll.u32 %v2554, 16
        %v2584 = vrot.slane %v2582, 5
        %v2585 = vor.u32 %v2581, %v2584
        %v2586 = vrot.slane %v2585, 4
        %v2588 = vshll.u32 %v2555, 16
        %v2590 = vrot.slane %v2588, 5
        %v2591 = vsel %vm1099, %v2586, %v2590
        %v2592 = vshrl.u32 %v2555, 16
        %v2594 = vrot.slane %v2592, 4
        %v2595 = vor.u32 %v2594, %v2590
        %v2596 = vrot.slane %v2595, 4
        %v2598 = vshll.u32 %v2556, 16
        %v2600 = vrot.slane %v2598, 5
        %v2601 = vsel %vm1099, %v2596, %v2600
        %v2603 = vshrl.u32 %v2557, 16
        %v2605 = vrot.slane %v2603, 4
        %v2606 = vshll.u32 %v2557, 16
        %v2608 = vrot.slane %v2606, 5
        %v2609 = vor.u32 %v2605, %v2608
        %v2610 = vrot.slane %v2609, 4
        %v2612 = vshll.u32 %v2558, 16
        %v2614 = vrot.slane %v2612, 5
        %v2615 = vsel %vm1099, %v2610, %v2614
        %v2616 = vshrl.u32 %v2558, 16
        %v2618 = vrot.slane %v2616, 4
        %v2619 = vor.u32 %v2618, %v2614
        %v2620 = vrot.slane %v2619, 4
        %v2622 = vshll.u32 %v2559, 16
        %v2624 = vrot.slane %v2622, 5
        %v2625 = vsel %vm1099, %v2620, %v2624
        %v2627 = vshrl.u32 %v2560, 16
        %v2629 = vrot.slane %v2627, 4
        %v2630 = vshll.u32 %v2560, 16
        %v2632 = vrot.slane %v2630, 5
        %v2633 = vor.u32 %v2629, %v2632
        %v2634 = vrot.slane %v2633, 4
        %v2636 = vshll.u32 %v2561, 16
        %v2638 = vrot.slane %v2636, 5
        %v2639 = vsel %vm1099, %v2634, %v2638
        %v2640 = vshrl.u32 %v2561, 16
        %v2642 = vrot.slane %v2640, 4
        %v2643 = vor.u32 %v2642, %v2638
        %v2644 = vrot.slane %v2643, 4
        %v2646 = vshll.u32 %v2562, 16
        %v2648 = vrot.slane %v2646, 5
        %v2649 = vsel %vm1099, %v2644, %v2648
        %v2651 = vshrl.u32 %v2563, 16
        %v2653 = vrot.slane %v2651, 4
        %v2654 = vshll.u32 %v2563, 16
        %v2656 = vrot.slane %v2654, 5
        %v2657 = vor.u32 %v2653, %v2656
        %v2658 = vrot.slane %v2657, 4
        %v2660 = vshll.u32 %v2564, 16
        %v2662 = vrot.slane %v2660, 5
        %v2663 = vsel %vm1099, %v2658, %v2662
        %v2664 = vshrl.u32 %v2564, 16
        %v2666 = vrot.slane %v2664, 4
        %v2667 = vor.u32 %v2666, %v2662
        %v2668 = vrot.slane %v2667, 4
        %v2670 = vshll.u32 %v2565, 16
        %v2672 = vrot.slane %v2670, 5
        %v2673 = vsel %vm1099, %v2668, %v2672
        %v2675 = vshrl.u32 %v2566, 16
        %v2677 = vrot.slane %v2675, 4
        %v2678 = vshll.u32 %v2566, 16
        %v2680 = vrot.slane %v2678, 5
        %v2681 = vor.u32 %v2677, %v2680
        %v2682 = vrot.slane %v2681, 4
        %v2684 = vshll.u32 %v2567, 16
        %v2686 = vrot.slane %v2684, 5
        %v2687 = vsel %vm1099, %v2682, %v2686
        %v2688 = vshrl.u32 %v2567, 16
        %v2690 = vrot.slane %v2688, 4
        %v2691 = vor.u32 %v2690, %v2686
        %v2692 = vrot.slane %v2691, 4
        %v2694 = vshll.u32 %v2568, 16
        %v2696 = vrot.slane %v2694, 5
        %v2697 = vsel %vm1099, %v2692, %v2696
        %v2699 = vshrl.u32 %v2569, 16
        %v2701 = vrot.slane %v2699, 4
        %v2702 = vshll.u32 %v2569, 16
        %v2704 = vrot.slane %v2702, 5
        %v2705 = vor.u32 %v2701, %v2704
        %v2706 = vrot.slane %v2705, 4
        %v2708 = vshll.u32 %v2570, 16
        %v2710 = vrot.slane %v2708, 5
        %v2711 = vsel %vm1099, %v2706, %v2710
        %v2712 = vshrl.u32 %v2570, 16
        %v2714 = vrot.slane %v2712, 4
        %v2715 = vor.u32 %v2714, %v2710
        %v2716 = vrot.slane %v2715, 4
        %v2718 = vshll.u32 %v2571, 16
        %v2720 = vrot.slane %v2718, 5
        %v2721 = vsel %vm1099, %v2716, %v2720
        %v2723 = vshrl.u32 %v2572, 16
        %v2725 = vrot.slane %v2723, 4
        %v2726 = vshll.u32 %v2572, 16
        %v2728 = vrot.slane %v2726, 5
        %v2729 = vor.u32 %v2725, %v2728
        %v2730 = vrot.slane %v2729, 4
        %v2732 = vshll.u32 %v2573, 16
        %v2734 = vrot.slane %v2732, 5
        %v2735 = vsel %vm1099, %v2730, %v2734
        %v2736 = vshrl.u32 %v2573, 16
        %v2738 = vrot.slane %v2736, 4
        %v2739 = vor.u32 %v2738, %v2734
        %v2740 = vrot.slane %v2739, 4
        %v2742 = vshll.u32 %v2574, 16
        %v2744 = vrot.slane %v2742, 5
        %v2745 = vsel %vm1099, %v2740, %v2744
        %v2747 = vshrl.u32 %v2575, 16
        %v2749 = vrot.slane %v2747, 4
        %v2750 = vshll.u32 %v2575, 16
        %v2752 = vrot.slane %v2750, 5
        %v2753 = vor.u32 %v2749, %v2752
        %v2754 = vrot.slane %v2753, 4
        %v2756 = vshll.u32 %v2576, 16
        %v2758 = vrot.slane %v2756, 5
        %v2759 = vsel %vm1099, %v2754, %v2758
        %v2760 = vshrl.u32 %v2576, 16
        %v2762 = vrot.slane %v2760, 4
        %v2763 = vor.u32 %v2762, %v2758
        %v2764 = vrot.slane %v2763, 4
        %v2766 = vshll.u32 %v2577, 16
        %v2768 = vrot.slane %v2766, 5
        %v2769 = vsel %vm1099, %v2764, %v2768
        %s2770 = scalar_lea.vmem %s1, 28
        %v2771 = vld [vmem:[%s2770] sm:$0xf]
        %v2772 = vunpack.c.l.b16 %v2591
        %v2773 = vunpack.c.l.b16 %v2601
        %v2774 = vunpack.c.l.b16 %v2615
        %v2775 = vunpack.c.l.b16 %v2625
        %v2776 = vunpack.c.l.b16 %v2639
        %v2777 = vunpack.c.l.b16 %v2649
        %v2778 = vunpack.c.l.b16 %v2663
        %v2779 = vunpack.c.l.b16 %v2673
        %v2780 = vunpack.c.l.b16 %v2687
        %v2781 = vunpack.c.l.b16 %v2697
        %v2782 = vunpack.c.l.b16 %v2711
        %v2783 = vunpack.c.l.b16 %v2721
        %v2784 = vunpack.c.l.b16 %v2735
        %v2785 = vunpack.c.l.b16 %v2745
        %v2786 = vunpack.c.l.b16 %v2759
        %v2787 = vunpack.c.l.b16 %v2769
        %v2788 = vpack.c.b16 %v2773, %v2772
        %v2789 = vpack.c.b16 %v2775, %v2774
        %v2790 = vpack.c.b16 %v2777, %v2776
        %v2791 = vpack.c.b16 %v2779, %v2778
        %v2792 = vpack.c.b16 %v2781, %v2780
        %v2793 = vpack.c.b16 %v2783, %v2782
        %v2794 = vpack.c.b16 %v2785, %v2784
        %v2795 = vpack.c.b16 %v2787, %v2786
        %v2797 = vsel %vm1318, %v2788, 0
        %v2800 = vsel %vm1318, %v2789, 0
        %v2803 = vsel %vm1318, %v2790, 0
        %v2806 = vsel %vm1318, %v2791, 0
        %v2809 = vsel %vm1318, %v2792, 0
        %v2812 = vsel %vm1318, %v2793, 0
        %v2815 = vsel %vm1318, %v2794, 0
        %v2818 = vsel %vm1318, %v2795, 0
        %v2821 = vsel %vm1343, %v2771, 0
        %2823 = vmatpush.bf16.msra.mxu0 0
        %2824 = vmatpush.bf16.msra.mxu0 0
        %2825 = vmatpush.bf16.msra.mxu0 0
        %2826 = vmatpush.bf16.msra.mxu0 0
        %2827 = vmatpush.bf16.msra.mxu0 0
        %2828 = vmatpush.bf16.msra.mxu0 0
        %2829 = vmatpush.bf16.msra.mxu0 0
        %2830 = vmatpush.bf16.msra.mxu0 %v2821
        %2831 = vmatmul.bf16.gmra.mxu0 %v2797
        %v2832 = vpop.f32.mrf.mxu0
        %v2833 = vadd.f32 0.0, %v2832
        %v2834 = vpop.f32.mrf.mxu0
        %v2835 = vadd.f32 0.0, %v2834
        %2836 = vmatmul.bf16.gmra.mxu0 %v2800
        %v2837 = vpop.f32.mrf.mxu0
        %v2838 = vadd.f32 0.0, %v2837
        %v2839 = vpop.f32.mrf.mxu0
        %v2840 = vadd.f32 0.0, %v2839
        %2841 = vmatmul.bf16.gmra.mxu0 %v2803
        %v2842 = vpop.f32.mrf.mxu0
        %v2843 = vadd.f32 0.0, %v2842
        %v2844 = vpop.f32.mrf.mxu0
        %v2845 = vadd.f32 0.0, %v2844
        %2846 = vmatmul.bf16.gmra.mxu0 %v2806
        %v2847 = vpop.f32.mrf.mxu0
        %v2848 = vadd.f32 0.0, %v2847
        %v2849 = vpop.f32.mrf.mxu0
        %v2850 = vadd.f32 0.0, %v2849
        %2851 = vmatmul.bf16.gmra.mxu0 %v2809
        %v2852 = vpop.f32.mrf.mxu0
        %v2853 = vadd.f32 0.0, %v2852
        %v2854 = vpop.f32.mrf.mxu0
        %v2855 = vadd.f32 0.0, %v2854
        %2856 = vmatmul.bf16.gmra.mxu0 %v2812
        %v2857 = vpop.f32.mrf.mxu0
        %v2858 = vadd.f32 0.0, %v2857
        %v2859 = vpop.f32.mrf.mxu0
        %v2860 = vadd.f32 0.0, %v2859
        %2861 = vmatmul.bf16.gmra.mxu0 %v2815
        %v2862 = vpop.f32.mrf.mxu0
        %v2863 = vadd.f32 0.0, %v2862
        %v2864 = vpop.f32.mrf.mxu0
        %v2865 = vadd.f32 0.0, %v2864
        %2866 = vmatmul.bf16.gmra.mxu0 %v2818
        %v2867 = vpop.f32.mrf.mxu0
        %v2868 = vadd.f32 0.0, %v2867
        %v2869 = vpop.f32.mrf.mxu0
        %v2870 = vadd.f32 0.0, %v2869
        %2871 = vdwg.mxu0
        %v2872 = vadd.f32 %v2538, %v2833
        %v2873 = vadd.f32 %v2539, %v2835
        %v2874 = vadd.f32 %v2540, %v2838
        %v2875 = vadd.f32 %v2541, %v2840
        %v2876 = vadd.f32 %v2542, %v2843
        %v2877 = vadd.f32 %v2543, %v2845
        %v2878 = vadd.f32 %v2544, %v2848
        %v2879 = vadd.f32 %v2545, %v2850
        %v2880 = vadd.f32 %v2546, %v2853
        %v2881 = vadd.f32 %v2547, %v2855
        %v2882 = vadd.f32 %v2548, %v2858
        %v2883 = vadd.f32 %v2549, %v2860
        %v2884 = vadd.f32 %v2550, %v2863
        %v2885 = vadd.f32 %v2551, %v2865
        %v2886 = vadd.f32 %v2552, %v2868
        %v2887 = vadd.f32 %v2553, %v2870
        %v2888 = vld [vmem:[%s2403] sm:$0xe]
        %v2889 = vld [vmem:[%s2403 + $0xc] sm:$0xe]
        %v2890 = vld [vmem:[%s2403 + $0x18] sm:$0xe]
        %v2891 = vld [vmem:[%s2403 + $0x24] sm:$0xe]
        %v2892 = vld [vmem:[%s2403 + $0x30] sm:$0xe]
        %v2893 = vld [vmem:[%s2403 + $0x3c] sm:$0xe]
        %v2894 = vld [vmem:[%s2403 + $0x48] sm:$0xe]
        %v2895 = vld [vmem:[%s2403 + $0x54] sm:$0xe]
        %v2920 = vrot.slane %v2888, 5
        %v2921 = vrot.slane %v2920, 4
        %v2922 = vrot.slane %v2555, 5
        %v2923 = vsel %vm1538, %v2921, %v2922
        %v2924 = vrot.slane %v2922, 4
        %v2925 = vrot.slane %v2556, 5
        %v2926 = vsel %vm1538, %v2924, %v2925
        %v2927 = vrot.slane %v2889, 5
        %v2928 = vrot.slane %v2927, 4
        %v2929 = vrot.slane %v2558, 5
        %v2930 = vsel %vm1538, %v2928, %v2929
        %v2931 = vrot.slane %v2929, 4
        %v2932 = vrot.slane %v2559, 5
        %v2933 = vsel %vm1538, %v2931, %v2932
        %v2934 = vrot.slane %v2890, 5
        %v2935 = vrot.slane %v2934, 4
        %v2936 = vrot.slane %v2561, 5
        %v2937 = vsel %vm1538, %v2935, %v2936
        %v2938 = vrot.slane %v2936, 4
        %v2939 = vrot.slane %v2562, 5
        %v2940 = vsel %vm1538, %v2938, %v2939
        %v2941 = vrot.slane %v2891, 5
        %v2942 = vrot.slane %v2941, 4
        %v2943 = vrot.slane %v2564, 5
        %v2944 = vsel %vm1538, %v2942, %v2943
        %v2945 = vrot.slane %v2943, 4
        %v2946 = vrot.slane %v2565, 5
        %v2947 = vsel %vm1538, %v2945, %v2946
        %v2948 = vrot.slane %v2892, 5
        %v2949 = vrot.slane %v2948, 4
        %v2950 = vrot.slane %v2567, 5
        %v2951 = vsel %vm1538, %v2949, %v2950
        %v2952 = vrot.slane %v2950, 4
        %v2953 = vrot.slane %v2568, 5
        %v2954 = vsel %vm1538, %v2952, %v2953
        %v2955 = vrot.slane %v2893, 5
        %v2956 = vrot.slane %v2955, 4
        %v2957 = vrot.slane %v2570, 5
        %v2958 = vsel %vm1538, %v2956, %v2957
        %v2959 = vrot.slane %v2957, 4
        %v2960 = vrot.slane %v2571, 5
        %v2961 = vsel %vm1538, %v2959, %v2960
        %v2962 = vrot.slane %v2894, 5
        %v2963 = vrot.slane %v2962, 4
        %v2964 = vrot.slane %v2573, 5
        %v2965 = vsel %vm1538, %v2963, %v2964
        %v2966 = vrot.slane %v2964, 4
        %v2967 = vrot.slane %v2574, 5
        %v2968 = vsel %vm1538, %v2966, %v2967
        %v2969 = vrot.slane %v2895, 5
        %v2970 = vrot.slane %v2969, 4
        %v2971 = vrot.slane %v2576, 5
        %v2972 = vsel %vm1538, %v2970, %v2971
        %v2973 = vrot.slane %v2971, 4
        %v2974 = vrot.slane %v2577, 5
        %v2975 = vsel %vm1538, %v2973, %v2974
        %s2976 = scalar_lea.vmem %s1, 32
        %v2977 = vld [vmem:[%s2976] sm:$0xf]
        %v2978 = vunpack.c.l.b16 %v2923
        %v2979 = vunpack.c.l.b16 %v2926
        %v2980 = vunpack.c.l.b16 %v2930
        %v2981 = vunpack.c.l.b16 %v2933
        %v2982 = vunpack.c.l.b16 %v2937
        %v2983 = vunpack.c.l.b16 %v2940
        %v2984 = vunpack.c.l.b16 %v2944
        %v2985 = vunpack.c.l.b16 %v2947
        %v2986 = vunpack.c.l.b16 %v2951
        %v2987 = vunpack.c.l.b16 %v2954
        %v2988 = vunpack.c.l.b16 %v2958
        %v2989 = vunpack.c.l.b16 %v2961
        %v2990 = vunpack.c.l.b16 %v2965
        %v2991 = vunpack.c.l.b16 %v2968
        %v2992 = vunpack.c.l.b16 %v2972
        %v2993 = vunpack.c.l.b16 %v2975
        %v2994 = vpack.c.b16 %v2979, %v2978
        %v2995 = vpack.c.b16 %v2981, %v2980
        %v2996 = vpack.c.b16 %v2983, %v2982
        %v2997 = vpack.c.b16 %v2985, %v2984
        %v2998 = vpack.c.b16 %v2987, %v2986
        %v2999 = vpack.c.b16 %v2989, %v2988
        %v3000 = vpack.c.b16 %v2991, %v2990
        %v3001 = vpack.c.b16 %v2993, %v2992
        %v3003 = vsel %vm1318, %v2994, 0
        %v3006 = vsel %vm1318, %v2995, 0
        %v3009 = vsel %vm1318, %v2996, 0
        %v3012 = vsel %vm1318, %v2997, 0
        %v3015 = vsel %vm1318, %v2998, 0
        %v3018 = vsel %vm1318, %v2999, 0
        %v3021 = vsel %vm1318, %v3000, 0
        %v3024 = vsel %vm1318, %v3001, 0
        %v3027 = vsel %vm1343, %v2977, 0
        %3029 = vmatpush.bf16.msra.mxu0 0
        %3030 = vmatpush.bf16.msra.mxu0 0
        %3031 = vmatpush.bf16.msra.mxu0 0
        %3032 = vmatpush.bf16.msra.mxu0 0
        %3033 = vmatpush.bf16.msra.mxu0 0
        %3034 = vmatpush.bf16.msra.mxu0 0
        %3035 = vmatpush.bf16.msra.mxu0 0
        %3036 = vmatpush.bf16.msra.mxu0 %v3027
        %3037 = vmatmul.bf16.gmra.mxu0 %v3003
        %v3038 = vpop.f32.mrf.mxu0
        %v3039 = vadd.f32 0.0, %v3038
        %v3040 = vpop.f32.mrf.mxu0
        %v3041 = vadd.f32 0.0, %v3040
        %3042 = vmatmul.bf16.gmra.mxu0 %v3006
        %v3043 = vpop.f32.mrf.mxu0
        %v3044 = vadd.f32 0.0, %v3043
        %v3045 = vpop.f32.mrf.mxu0
        %v3046 = vadd.f32 0.0, %v3045
        %3047 = vmatmul.bf16.gmra.mxu0 %v3009
        %v3048 = vpop.f32.mrf.mxu0
        %v3049 = vadd.f32 0.0, %v3048
        %v3050 = vpop.f32.mrf.mxu0
        %v3051 = vadd.f32 0.0, %v3050
        %3052 = vmatmul.bf16.gmra.mxu0 %v3012
        %v3053 = vpop.f32.mrf.mxu0
        %v3054 = vadd.f32 0.0, %v3053
        %v3055 = vpop.f32.mrf.mxu0
        %v3056 = vadd.f32 0.0, %v3055
        %3057 = vmatmul.bf16.gmra.mxu0 %v3015
        %v3058 = vpop.f32.mrf.mxu0
        %v3059 = vadd.f32 0.0, %v3058
        %v3060 = vpop.f32.mrf.mxu0
        %v3061 = vadd.f32 0.0, %v3060
        %3062 = vmatmul.bf16.gmra.mxu0 %v3018
        %v3063 = vpop.f32.mrf.mxu0
        %v3064 = vadd.f32 0.0, %v3063
        %v3065 = vpop.f32.mrf.mxu0
        %v3066 = vadd.f32 0.0, %v3065
        %3067 = vmatmul.bf16.gmra.mxu0 %v3021
        %v3068 = vpop.f32.mrf.mxu0
        %v3069 = vadd.f32 0.0, %v3068
        %v3070 = vpop.f32.mrf.mxu0
        %v3071 = vadd.f32 0.0, %v3070
        %3072 = vmatmul.bf16.gmra.mxu0 %v3024
        %v3073 = vpop.f32.mrf.mxu0
        %v3074 = vadd.f32 0.0, %v3073
        %v3075 = vpop.f32.mrf.mxu0
        %v3076 = vadd.f32 0.0, %v3075
        %3077 = vdwg.mxu0
        %v3078 = vadd.f32 %v2872, %v3039
        %v3079 = vadd.f32 %v2873, %v3041
        %v3080 = vadd.f32 %v2874, %v3044
        %v3081 = vadd.f32 %v2875, %v3046
        %v3082 = vadd.f32 %v2876, %v3049
        %v3083 = vadd.f32 %v2877, %v3051
        %v3084 = vadd.f32 %v2878, %v3054
        %v3085 = vadd.f32 %v2879, %v3056
        %v3086 = vadd.f32 %v2880, %v3059
        %v3087 = vadd.f32 %v2881, %v3061
        %v3088 = vadd.f32 %v2882, %v3064
        %v3089 = vadd.f32 %v2883, %v3066
        %v3090 = vadd.f32 %v2884, %v3069
        %v3091 = vadd.f32 %v2885, %v3071
        %v3092 = vadd.f32 %v2886, %v3074
        %v3093 = vadd.f32 %v2887, %v3076
        %v3094 = vld [vmem:[%s2] sm:$0x1]
        %v3096 = vperm.slane %v3094, 0
        %v3098 = vadd.f32 %v3078, %v3096
        %v3099 = vadd.f32 %v3079, %v3096
        %v3100 = vadd.f32 %v3080, %v3096
        %v3101 = vadd.f32 %v3081, %v3096
        %v3102 = vadd.f32 %v3082, %v3096
        %v3103 = vadd.f32 %v3083, %v3096
        %v3104 = vadd.f32 %v3084, %v3096
        %v3105 = vadd.f32 %v3085, %v3096
        %v3106 = vadd.f32 %v3086, %v3096
        %v3107 = vadd.f32 %v3087, %v3096
        %v3108 = vadd.f32 %v3088, %v3096
        %v3109 = vadd.f32 %v3089, %v3096
        %v3110 = vadd.f32 %v3090, %v3096
        %v3111 = vadd.f32 %v3091, %v3096
        %v3112 = vadd.f32 %v3092, %v3096
        %v3113 = vadd.f32 %v3093, %v3096
        %v3114 = vmax.f32 %v3098, 0.0
        %v3115 = vmax.f32 %v3099, 0.0
        %v3116 = vmax.f32 %v3100, 0.0
        %v3117 = vmax.f32 %v3101, 0.0
        %v3118 = vmax.f32 %v3102, 0.0
        %v3119 = vmax.f32 %v3103, 0.0
        %v3120 = vmax.f32 %v3104, 0.0
        %v3121 = vmax.f32 %v3105, 0.0
        %v3122 = vmax.f32 %v3106, 0.0
        %v3123 = vmax.f32 %v3107, 0.0
        %v3124 = vmax.f32 %v3108, 0.0
        %v3125 = vmax.f32 %v3109, 0.0
        %v3126 = vmax.f32 %v3110, 0.0
        %v3127 = vmax.f32 %v3111, 0.0
        %v3128 = vmax.f32 %v3112, 0.0
        %v3129 = vmax.f32 %v3113, 0.0
        %v3130 = vpack.c.bf16 %v3114, %v3114
        %v3131 = vpack.c.bf16 %v3115, %v3115
        %v3132 = vpack.c.bf16 %v3116, %v3116
        %v3133 = vpack.c.bf16 %v3117, %v3117
        %v3134 = vpack.c.bf16 %v3118, %v3118
        %v3135 = vpack.c.bf16 %v3119, %v3119
        %v3136 = vpack.c.bf16 %v3120, %v3120
        %v3137 = vpack.c.bf16 %v3121, %v3121
        %v3138 = vpack.c.bf16 %v3122, %v3122
        %v3139 = vpack.c.bf16 %v3123, %v3123
        %v3140 = vpack.c.bf16 %v3124, %v3124
        %v3141 = vpack.c.bf16 %v3125, %v3125
        %v3142 = vpack.c.bf16 %v3126, %v3126
        %v3143 = vpack.c.bf16 %v3127, %v3127
        %v3144 = vpack.c.bf16 %v3128, %v3128
        %v3145 = vpack.c.bf16 %v3129, %v3129
        %v3147 = vshrl.u32 %v3130, 16
        %v3149 = vrot.slane %v3147, 7
        %v3150 = vshll.u32 %v3130, 16
        %v3152 = vor.u32 %v3149, %v3150
        %v3153 = vrot.slane %v3149, 4
        %v3155 = vshrl.u32 %v3131, 16
        %v3157 = vrot.slane %v3155, 7
        %v3158 = vshll.u32 %v3131, 16
        %v3160 = vor.u32 %v3157, %v3158
        %v3161 = vsel %vm516, %v3153, %v3160
        %v3162 = vrot.slane %v3157, 4
        %v3164 = vshrl.u32 %v3132, 16
        %v3166 = vrot.slane %v3164, 7
        %v3167 = vshll.u32 %v3132, 16
        %v3169 = vor.u32 %v3166, %v3167
        %v3170 = vrot.slane %v3166, 4
        %v3172 = vshrl.u32 %v3133, 16
        %v3174 = vrot.slane %v3172, 7
        %v3175 = vshll.u32 %v3133, 16
        %v3177 = vor.u32 %v3174, %v3175
        %v3178 = vsel %vm516, %v3170, %v3177
        %v3179 = vrot.slane %v3174, 4
        %v3181 = vshrl.u32 %v3134, 16
        %v3183 = vrot.slane %v3181, 7
        %v3184 = vshll.u32 %v3134, 16
        %v3186 = vor.u32 %v3183, %v3184
        %v3187 = vrot.slane %v3183, 4
        %v3189 = vshrl.u32 %v3135, 16
        %v3191 = vrot.slane %v3189, 7
        %v3192 = vshll.u32 %v3135, 16
        %v3194 = vor.u32 %v3191, %v3192
        %v3195 = vsel %vm516, %v3187, %v3194
        %v3196 = vrot.slane %v3191, 4
        %v3198 = vshrl.u32 %v3136, 16
        %v3200 = vrot.slane %v3198, 7
        %v3201 = vshll.u32 %v3136, 16
        %v3203 = vor.u32 %v3200, %v3201
        %v3204 = vrot.slane %v3200, 4
        %v3206 = vshrl.u32 %v3137, 16
        %v3208 = vrot.slane %v3206, 7
        %v3209 = vshll.u32 %v3137, 16
        %v3211 = vor.u32 %v3208, %v3209
        %v3212 = vsel %vm516, %v3204, %v3211
        %v3213 = vrot.slane %v3208, 4
        %v3215 = vshrl.u32 %v3138, 16
        %v3217 = vrot.slane %v3215, 7
        %v3218 = vshll.u32 %v3138, 16
        %v3220 = vor.u32 %v3217, %v3218
        %v3221 = vrot.slane %v3217, 4
        %v3223 = vshrl.u32 %v3139, 16
        %v3225 = vrot.slane %v3223, 7
        %v3226 = vshll.u32 %v3139, 16
        %v3228 = vor.u32 %v3225, %v3226
        %v3229 = vsel %vm516, %v3221, %v3228
        %v3230 = vrot.slane %v3225, 4
        %v3232 = vshrl.u32 %v3140, 16
        %v3234 = vrot.slane %v3232, 7
        %v3235 = vshll.u32 %v3140, 16
        %v3237 = vor.u32 %v3234, %v3235
        %v3238 = vrot.slane %v3234, 4
        %v3240 = vshrl.u32 %v3141, 16
        %v3242 = vrot.slane %v3240, 7
        %v3243 = vshll.u32 %v3141, 16
        %v3245 = vor.u32 %v3242, %v3243
        %v3246 = vsel %vm516, %v3238, %v3245
        %v3247 = vrot.slane %v3242, 4
        %v3249 = vshrl.u32 %v3142, 16
        %v3251 = vrot.slane %v3249, 7
        %v3252 = vshll.u32 %v3142, 16
        %v3254 = vor.u32 %v3251, %v3252
        %v3255 = vrot.slane %v3251, 4
        %v3257 = vshrl.u32 %v3143, 16
        %v3259 = vrot.slane %v3257, 7
        %v3260 = vshll.u32 %v3143, 16
        %v3262 = vor.u32 %v3259, %v3260
        %v3263 = vsel %vm516, %v3255, %v3262
        %v3264 = vrot.slane %v3259, 4
        %v3266 = vshrl.u32 %v3144, 16
        %v3268 = vrot.slane %v3266, 7
        %v3269 = vshll.u32 %v3144, 16
        %v3271 = vor.u32 %v3268, %v3269
        %v3272 = vrot.slane %v3268, 4
        %v3274 = vshrl.u32 %v3145, 16
        %v3276 = vrot.slane %v3274, 7
        %v3277 = vshll.u32 %v3145, 16
        %v3279 = vor.u32 %v3276, %v3277
        %v3280 = vsel %vm516, %v3272, %v3279
        %v3281 = vrot.slane %v3276, 4
        %s3306 = scalar_lea.vmem [#allocation3], 12
        %vm3307 = vcmask 1043456
        %vm3308 = vmand %vm3307, %vm309
        %v3309 = vld [vmem:[%s3306] sm:$0xf]
        %v3310 = vsel %vm3308, %v3152, %v3309
        %3311 = vst [vmem:[%s3306] sm:$0xf] %v3310
        %3312 = vst [vmem:[%s3306 + $0x4] sm:$0xf] %v3161
        %v3313 = vld [vmem:[%s3306 + $0x8] sm:$0x1]
        %v3314 = vsel %vm373, %v3162, %v3313
        %3315 = vst [vmem:[%s3306 + $0x8] sm:$0x1] %v3314
        %v3316 = vld [vmem:[%s3306 + $0xc] sm:$0xf]
        %v3317 = vsel %vm3308, %v3169, %v3316
        %3318 = vst [vmem:[%s3306 + $0xc] sm:$0xf] %v3317
        %3319 = vst [vmem:[%s3306 + $0x10] sm:$0xf] %v3178
        %v3320 = vld [vmem:[%s3306 + $0x14] sm:$0x1]
        %v3321 = vsel %vm373, %v3179, %v3320
        %3322 = vst [vmem:[%s3306 + $0x14] sm:$0x1] %v3321
        %v3323 = vld [vmem:[%s3306 + $0x18] sm:$0xf]
        %v3324 = vsel %vm3308, %v3186, %v3323
        %3325 = vst [vmem:[%s3306 + $0x18] sm:$0xf] %v3324
        %3326 = vst [vmem:[%s3306 + $0x1c] sm:$0xf] %v3195
        %v3327 = vld [vmem:[%s3306 + $0x20] sm:$0x1]
        %v3328 = vsel %vm373, %v3196, %v3327
        %3329 = vst [vmem:[%s3306 + $0x20] sm:$0x1] %v3328
        %v3330 = vld [vmem:[%s3306 + $0x24] sm:$0xf]
        %v3331 = vsel %vm3308, %v3203, %v3330
        %3332 = vst [vmem:[%s3306 + $0x24] sm:$0xf] %v3331
        %3333 = vst [vmem:[%s3306 + $0x28] sm:$0xf] %v3212
        %v3334 = vld [vmem:[%s3306 + $0x2c] sm:$0x1]
        %v3335 = vsel %vm373, %v3213, %v3334
        %3336 = vst [vmem:[%s3306 + $0x2c] sm:$0x1] %v3335
        %v3337 = vld [vmem:[%s3306 + $0x30] sm:$0xf]
        %v3338 = vsel %vm3308, %v3220, %v3337
        %3339 = vst [vmem:[%s3306 + $0x30] sm:$0xf] %v3338
        %3340 = vst [vmem:[%s3306 + $0x34] sm:$0xf] %v3229
        %v3341 = vld [vmem:[%s3306 + $0x38] sm:$0x1]
        %v3342 = vsel %vm373, %v3230, %v3341
        %3343 = vst [vmem:[%s3306 + $0x38] sm:$0x1] %v3342
        %v3344 = vld [vmem:[%s3306 + $0x3c] sm:$0xf]
        %v3345 = vsel %vm3308, %v3237, %v3344
        %3346 = vst [vmem:[%s3306 + $0x3c] sm:$0xf] %v3345
        %3347 = vst [vmem:[%s3306 + $0x40] sm:$0xf] %v3246
        %v3348 = vld [vmem:[%s3306 + $0x44] sm:$0x1]
        %v3349 = vsel %vm373, %v3247, %v3348
        %3350 = vst [vmem:[%s3306 + $0x44] sm:$0x1] %v3349
        %v3351 = vld [vmem:[%s3306 + $0x48] sm:$0xf]
        %v3352 = vsel %vm3308, %v3254, %v3351
        %3353 = vst [vmem:[%s3306 + $0x48] sm:$0xf] %v3352
        %3354 = vst [vmem:[%s3306 + $0x4c] sm:$0xf] %v3263
        %v3355 = vld [vmem:[%s3306 + $0x50] sm:$0x1]
        %v3356 = vsel %vm373, %v3264, %v3355
        %3357 = vst [vmem:[%s3306 + $0x50] sm:$0x1] %v3356
        %v3358 = vld [vmem:[%s3306 + $0x54] sm:$0xf]
        %v3359 = vsel %vm3308, %v3271, %v3358
        %3360 = vst [vmem:[%s3306 + $0x54] sm:$0xf] %v3359
        %3361 = vst [vmem:[%s3306 + $0x58] sm:$0xf] %v3280
        %v3362 = vld [vmem:[%s3306 + $0x5c] sm:$0x1]
        %v3363 = vsel %vm373, %v3281, %v3362
        %3364 = vst [vmem:[%s3306 + $0x5c] sm:$0x1] %v3363
        %s3365 = scalar_lea.vmem [#allocation2], 96
        %v3366 = vld [vmem:[%s3365] sm:$0xf]
        %v3367 = vld [vmem:[%s3365 + $0x4] sm:$0xf]
        %v3368 = vld [vmem:[%s3365 + $0xc] sm:$0xf]
        %v3369 = vld [vmem:[%s3365 + $0x10] sm:$0xf]
        %v3370 = vld [vmem:[%s3365 + $0x18] sm:$0xf]
        %v3371 = vld [vmem:[%s3365 + $0x1c] sm:$0xf]
        %v3372 = vld [vmem:[%s3365 + $0x24] sm:$0xf]
        %v3373 = vld [vmem:[%s3365 + $0x28] sm:$0xf]
        %v3374 = vld [vmem:[%s3365 + $0x30] sm:$0xf]
        %v3375 = vld [vmem:[%s3365 + $0x34] sm:$0xf]
        %v3376 = vld [vmem:[%s3365 + $0x3c] sm:$0xf]
        %v3377 = vld [vmem:[%s3365 + $0x40] sm:$0xf]
        %v3378 = vld [vmem:[%s3365 + $0x48] sm:$0xf]
        %v3379 = vld [vmem:[%s3365 + $0x4c] sm:$0xf]
        %v3380 = vld [vmem:[%s3365 + $0x54] sm:$0xf]
        %v3381 = vld [vmem:[%s3365 + $0x58] sm:$0xf]
        %v3382 = vld [vmem:[%s1] sm:$0xf]
        %v3383 = vld [vmem:[%s3365 + $0x8] sm:$0x1]
        %v3384 = vld [vmem:[%s3365 + $0x14] sm:$0x1]
        %v3385 = vld [vmem:[%s3365 + $0x20] sm:$0x1]
        %v3386 = vld [vmem:[%s3365 + $0x2c] sm:$0x1]
        %v3387 = vld [vmem:[%s3365 + $0x38] sm:$0x1]
        %v3388 = vld [vmem:[%s3365 + $0x44] sm:$0x1]
        %v3389 = vld [vmem:[%s3365 + $0x50] sm:$0x1]
        %v3390 = vld [vmem:[%s3365 + $0x5c] sm:$0x1]
        %v3392 = vshrl.u32 %v3366, 16
        %v3394 = vrot.slane %v3392, 4
        %v3395 = vshll.u32 %v3366, 16
        %v3397 = vrot.slane %v3395, 5
        %v3398 = vor.u32 %v3394, %v3397
        %v3399 = vrot.slane %v3398, 4
        %v3401 = vshll.u32 %v3367, 16
        %v3403 = vrot.slane %v3401, 5
        %v3404 = vsel %vm1099, %v3399, %v3403
        %v3405 = vshrl.u32 %v3367, 16
        %v3407 = vrot.slane %v3405, 4
        %v3408 = vor.u32 %v3407, %v3403
        %v3409 = vrot.slane %v3408, 4
        %v3411 = vshll.u32 %v3383, 16
        %v3413 = vrot.slane %v3411, 5
        %v3414 = vsel %vm1099, %v3409, %v3413
        %v3416 = vshrl.u32 %v3368, 16
        %v3418 = vrot.slane %v3416, 4
        %v3419 = vshll.u32 %v3368, 16
        %v3421 = vrot.slane %v3419, 5
        %v3422 = vor.u32 %v3418, %v3421
        %v3423 = vrot.slane %v3422, 4
        %v3425 = vshll.u32 %v3369, 16
        %v3427 = vrot.slane %v3425, 5
        %v3428 = vsel %vm1099, %v3423, %v3427
        %v3429 = vshrl.u32 %v3369, 16
        %v3431 = vrot.slane %v3429, 4
        %v3432 = vor.u32 %v3431, %v3427
        %v3433 = vrot.slane %v3432, 4
        %v3435 = vshll.u32 %v3384, 16
        %v3437 = vrot.slane %v3435, 5
        %v3438 = vsel %vm1099, %v3433, %v3437
        %v3440 = vshrl.u32 %v3370, 16
        %v3442 = vrot.slane %v3440, 4
        %v3443 = vshll.u32 %v3370, 16
        %v3445 = vrot.slane %v3443, 5
        %v3446 = vor.u32 %v3442, %v3445
        %v3447 = vrot.slane %v3446, 4
        %v3449 = vshll.u32 %v3371, 16
        %v3451 = vrot.slane %v3449, 5
        %v3452 = vsel %vm1099, %v3447, %v3451
        %v3453 = vshrl.u32 %v3371, 16
        %v3455 = vrot.slane %v3453, 4
        %v3456 = vor.u32 %v3455, %v3451
        %v3457 = vrot.slane %v3456, 4
        %v3459 = vshll.u32 %v3385, 16
        %v3461 = vrot.slane %v3459, 5
        %v3462 = vsel %vm1099, %v3457, %v3461
        %v3464 = vshrl.u32 %v3372, 16
        %v3466 = vrot.slane %v3464, 4
        %v3467 = vshll.u32 %v3372, 16
        %v3469 = vrot.slane %v3467, 5
        %v3470 = vor.u32 %v3466, %v3469
        %v3471 = vrot.slane %v3470, 4
        %v3473 = vshll.u32 %v3373, 16
        %v3475 = vrot.slane %v3473, 5
        %v3476 = vsel %vm1099, %v3471, %v3475
        %v3477 = vshrl.u32 %v3373, 16
        %v3479 = vrot.slane %v3477, 4
        %v3480 = vor.u32 %v3479, %v3475
        %v3481 = vrot.slane %v3480, 4
        %v3483 = vshll.u32 %v3386, 16
        %v3485 = vrot.slane %v3483, 5
        %v3486 = vsel %vm1099, %v3481, %v3485
        %v3488 = vshrl.u32 %v3374, 16
        %v3490 = vrot.slane %v3488, 4
        %v3491 = vshll.u32 %v3374, 16
        %v3493 = vrot.slane %v3491, 5
        %v3494 = vor.u32 %v3490, %v3493
        %v3495 = vrot.slane %v3494, 4
        %v3497 = vshll.u32 %v3375, 16
        %v3499 = vrot.slane %v3497, 5
        %v3500 = vsel %vm1099, %v3495, %v3499
        %v3501 = vshrl.u32 %v3375, 16
        %v3503 = vrot.slane %v3501, 4
        %v3504 = vor.u32 %v3503, %v3499
        %v3505 = vrot.slane %v3504, 4
        %v3507 = vshll.u32 %v3387, 16
        %v3509 = vrot.slane %v3507, 5
        %v3510 = vsel %vm1099, %v3505, %v3509
        %v3512 = vshrl.u32 %v3376, 16
        %v3514 = vrot.slane %v3512, 4
        %v3515 = vshll.u32 %v3376, 16
        %v3517 = vrot.slane %v3515, 5
        %v3518 = vor.u32 %v3514, %v3517
        %v3519 = vrot.slane %v3518, 4
        %v3521 = vshll.u32 %v3377, 16
        %v3523 = vrot.slane %v3521, 5
        %v3524 = vsel %vm1099, %v3519, %v3523
        %v3525 = vshrl.u32 %v3377, 16
        %v3527 = vrot.slane %v3525, 4
        %v3528 = vor.u32 %v3527, %v3523
        %v3529 = vrot.slane %v3528, 4
        %v3531 = vshll.u32 %v3388, 16
        %v3533 = vrot.slane %v3531, 5
        %v3534 = vsel %vm1099, %v3529, %v3533
        %v3536 = vshrl.u32 %v3378, 16
        %v3538 = vrot.slane %v3536, 4
        %v3539 = vshll.u32 %v3378, 16
        %v3541 = vrot.slane %v3539, 5
        %v3542 = vor.u32 %v3538, %v3541
        %v3543 = vrot.slane %v3542, 4
        %v3545 = vshll.u32 %v3379, 16
        %v3547 = vrot.slane %v3545, 5
        %v3548 = vsel %vm1099, %v3543, %v3547
        %v3549 = vshrl.u32 %v3379, 16
        %v3551 = vrot.slane %v3549, 4
        %v3552 = vor.u32 %v3551, %v3547
        %v3553 = vrot.slane %v3552, 4
        %v3555 = vshll.u32 %v3389, 16
        %v3557 = vrot.slane %v3555, 5
        %v3558 = vsel %vm1099, %v3553, %v3557
        %v3560 = vshrl.u32 %v3380, 16
        %v3562 = vrot.slane %v3560, 4
        %v3563 = vshll.u32 %v3380, 16
        %v3565 = vrot.slane %v3563, 5
        %v3566 = vor.u32 %v3562, %v3565
        %v3567 = vrot.slane %v3566, 4
        %v3569 = vshll.u32 %v3381, 16
        %v3571 = vrot.slane %v3569, 5
        %v3572 = vsel %vm1099, %v3567, %v3571
        %v3573 = vshrl.u32 %v3381, 16
        %v3575 = vrot.slane %v3573, 4
        %v3576 = vor.u32 %v3575, %v3571
        %v3577 = vrot.slane %v3576, 4
        %v3579 = vshll.u32 %v3390, 16
        %v3581 = vrot.slane %v3579, 5
        %v3582 = vsel %vm1099, %v3577, %v3581
        %v3583 = vld [vmem:[%s1292] sm:$0xf]
        %v3584 = vunpack.c.l.b16 %v3404
        %v3585 = vunpack.c.l.b16 %v3414
        %v3586 = vunpack.c.l.b16 %v3428
        %v3587 = vunpack.c.l.b16 %v3438
        %v3588 = vunpack.c.l.b16 %v3452
        %v3589 = vunpack.c.l.b16 %v3462
        %v3590 = vunpack.c.l.b16 %v3476
        %v3591 = vunpack.c.l.b16 %v3486
        %v3592 = vunpack.c.l.b16 %v3500
        %v3593 = vunpack.c.l.b16 %v3510
        %v3594 = vunpack.c.l.b16 %v3524
        %v3595 = vunpack.c.l.b16 %v3534
        %v3596 = vunpack.c.l.b16 %v3548
        %v3597 = vunpack.c.l.b16 %v3558
        %v3598 = vunpack.c.l.b16 %v3572
        %v3599 = vunpack.c.l.b16 %v3582
        %v3600 = vpack.c.b16 %v3585, %v3584
        %v3601 = vpack.c.b16 %v3587, %v3586
        %v3602 = vpack.c.b16 %v3589, %v3588
        %v3603 = vpack.c.b16 %v3591, %v3590
        %v3604 = vpack.c.b16 %v3593, %v3592
        %v3605 = vpack.c.b16 %v3595, %v3594
        %v3606 = vpack.c.b16 %v3597, %v3596
        %v3607 = vpack.c.b16 %v3599, %v3598
        %v3609 = vsel %vm1318, %v3600, 0
        %v3612 = vsel %vm1318, %v3601, 0
        %v3615 = vsel %vm1318, %v3602, 0
        %v3618 = vsel %vm1318, %v3603, 0
        %v3621 = vsel %vm1318, %v3604, 0
        %v3624 = vsel %vm1318, %v3605, 0
        %v3627 = vsel %vm1318, %v3606, 0
        %v3630 = vsel %vm1318, %v3607, 0
        %v3633 = vsel %vm1343, %v3583, 0
        %3635 = vmatpush.bf16.msra.mxu0 0
        %3636 = vmatpush.bf16.msra.mxu0 0
        %3637 = vmatpush.bf16.msra.mxu0 0
        %3638 = vmatpush.bf16.msra.mxu0 0
        %3639 = vmatpush.bf16.msra.mxu0 0
        %3640 = vmatpush.bf16.msra.mxu0 0
        %3641 = vmatpush.bf16.msra.mxu0 0
        %3642 = vmatpush.bf16.msra.mxu0 %v3633
        %3643 = vmatmul.bf16.gmra.mxu0 %v3609
        %v3644 = vpop.f32.mrf.mxu0
        %v3645 = vadd.f32 0.0, %v3644
        %v3646 = vpop.f32.mrf.mxu0
        %v3647 = vadd.f32 0.0, %v3646
        %3648 = vmatmul.bf16.gmra.mxu0 %v3612
        %v3649 = vpop.f32.mrf.mxu0
        %v3650 = vadd.f32 0.0, %v3649
        %v3651 = vpop.f32.mrf.mxu0
        %v3652 = vadd.f32 0.0, %v3651
        %3653 = vmatmul.bf16.gmra.mxu0 %v3615
        %v3654 = vpop.f32.mrf.mxu0
        %v3655 = vadd.f32 0.0, %v3654
        %v3656 = vpop.f32.mrf.mxu0
        %v3657 = vadd.f32 0.0, %v3656
        %3658 = vmatmul.bf16.gmra.mxu0 %v3618
        %v3659 = vpop.f32.mrf.mxu0
        %v3660 = vadd.f32 0.0, %v3659
        %v3661 = vpop.f32.mrf.mxu0
        %v3662 = vadd.f32 0.0, %v3661
        %3663 = vmatmul.bf16.gmra.mxu0 %v3621
        %v3664 = vpop.f32.mrf.mxu0
        %v3665 = vadd.f32 0.0, %v3664
        %v3666 = vpop.f32.mrf.mxu0
        %v3667 = vadd.f32 0.0, %v3666
        %3668 = vmatmul.bf16.gmra.mxu0 %v3624
        %v3669 = vpop.f32.mrf.mxu0
        %v3670 = vadd.f32 0.0, %v3669
        %v3671 = vpop.f32.mrf.mxu0
        %v3672 = vadd.f32 0.0, %v3671
        %3673 = vmatmul.bf16.gmra.mxu0 %v3627
        %v3674 = vpop.f32.mrf.mxu0
        %v3675 = vadd.f32 0.0, %v3674
        %v3676 = vpop.f32.mrf.mxu0
        %v3677 = vadd.f32 0.0, %v3676
        %3678 = vmatmul.bf16.gmra.mxu0 %v3630
        %v3679 = vpop.f32.mrf.mxu0
        %v3680 = vadd.f32 0.0, %v3679
        %v3681 = vpop.f32.mrf.mxu0
        %v3682 = vadd.f32 0.0, %v3681
        %3683 = vdwg.mxu0
        %v3700 = vunpack.c.l.b16 %v3366
        %v3701 = vunpack.c.l.b16 %v3367
        %v3702 = vunpack.c.l.b16 %v3368
        %v3703 = vunpack.c.l.b16 %v3369
        %v3704 = vunpack.c.l.b16 %v3370
        %v3705 = vunpack.c.l.b16 %v3371
        %v3706 = vunpack.c.l.b16 %v3372
        %v3707 = vunpack.c.l.b16 %v3373
        %v3708 = vunpack.c.l.b16 %v3374
        %v3709 = vunpack.c.l.b16 %v3375
        %v3710 = vunpack.c.l.b16 %v3376
        %v3711 = vunpack.c.l.b16 %v3377
        %v3712 = vunpack.c.l.b16 %v3378
        %v3713 = vunpack.c.l.b16 %v3379
        %v3714 = vunpack.c.l.b16 %v3380
        %v3715 = vunpack.c.l.b16 %v3381
        %v3716 = vpack.c.b16 %v3701, %v3700
        %v3717 = vpack.c.b16 %v3703, %v3702
        %v3718 = vpack.c.b16 %v3705, %v3704
        %v3719 = vpack.c.b16 %v3707, %v3706
        %v3720 = vpack.c.b16 %v3709, %v3708
        %v3721 = vpack.c.b16 %v3711, %v3710
        %v3722 = vpack.c.b16 %v3713, %v3712
        %v3723 = vpack.c.b16 %v3715, %v3714
        %v3725 = vsel %vm1318, %v3716, 0
        %v3728 = vsel %vm1318, %v3717, 0
        %v3731 = vsel %vm1318, %v3718, 0
        %v3734 = vsel %vm1318, %v3719, 0
        %v3737 = vsel %vm1318, %v3720, 0
        %v3740 = vsel %vm1318, %v3721, 0
        %v3743 = vsel %vm1318, %v3722, 0
        %v3746 = vsel %vm1318, %v3723, 0
        %v3749 = vsel %vm1343, %v3382, 0
        %3751 = vmatpush.bf16.msra.mxu0 0
        %3752 = vmatpush.bf16.msra.mxu0 0
        %3753 = vmatpush.bf16.msra.mxu0 0
        %3754 = vmatpush.bf16.msra.mxu0 0
        %3755 = vmatpush.bf16.msra.mxu0 0
        %3756 = vmatpush.bf16.msra.mxu0 0
        %3757 = vmatpush.bf16.msra.mxu0 0
        %3758 = vmatpush.bf16.msra.mxu0 %v3749
        %3759 = vmatmul.bf16.gmra.mxu0 %v3725
        %v3760 = vpop.f32.mrf.mxu0
        %v3761 = vadd.f32 %v3645, %v3760
        %v3762 = vpop.f32.mrf.mxu0
        %v3763 = vadd.f32 %v3647, %v3762
        %3764 = vmatmul.bf16.gmra.mxu0 %v3728
        %v3765 = vpop.f32.mrf.mxu0
        %v3766 = vadd.f32 %v3650, %v3765
        %v3767 = vpop.f32.mrf.mxu0
        %v3768 = vadd.f32 %v3652, %v3767
        %3769 = vmatmul.bf16.gmra.mxu0 %v3731
        %v3770 = vpop.f32.mrf.mxu0
        %v3771 = vadd.f32 %v3655, %v3770
        %v3772 = vpop.f32.mrf.mxu0
        %v3773 = vadd.f32 %v3657, %v3772
        %3774 = vmatmul.bf16.gmra.mxu0 %v3734
        %v3775 = vpop.f32.mrf.mxu0
        %v3776 = vadd.f32 %v3660, %v3775
        %v3777 = vpop.f32.mrf.mxu0
        %v3778 = vadd.f32 %v3662, %v3777
        %3779 = vmatmul.bf16.gmra.mxu0 %v3737
        %v3780 = vpop.f32.mrf.mxu0
        %v3781 = vadd.f32 %v3665, %v3780
        %v3782 = vpop.f32.mrf.mxu0
        %v3783 = vadd.f32 %v3667, %v3782
        %3784 = vmatmul.bf16.gmra.mxu0 %v3740
        %v3785 = vpop.f32.mrf.mxu0
        %v3786 = vadd.f32 %v3670, %v3785
        %v3787 = vpop.f32.mrf.mxu0
        %v3788 = vadd.f32 %v3672, %v3787
        %3789 = vmatmul.bf16.gmra.mxu0 %v3743
        %v3790 = vpop.f32.mrf.mxu0
        %v3791 = vadd.f32 %v3675, %v3790
        %v3792 = vpop.f32.mrf.mxu0
        %v3793 = vadd.f32 %v3677, %v3792
        %3794 = vmatmul.bf16.gmra.mxu0 %v3746
        %v3795 = vpop.f32.mrf.mxu0
        %v3796 = vadd.f32 %v3680, %v3795
        %v3797 = vpop.f32.mrf.mxu0
        %v3798 = vadd.f32 %v3682, %v3797
        %3799 = vdwg.mxu0
        %v3800 = vld [vmem:[%s3365] sm:$0xe]
        %v3801 = vld [vmem:[%s3365 + $0xc] sm:$0xe]
        %v3802 = vld [vmem:[%s3365 + $0x18] sm:$0xe]
        %v3803 = vld [vmem:[%s3365 + $0x24] sm:$0xe]
        %v3804 = vld [vmem:[%s3365 + $0x30] sm:$0xe]
        %v3805 = vld [vmem:[%s3365 + $0x3c] sm:$0xe]
        %v3806 = vld [vmem:[%s3365 + $0x48] sm:$0xe]
        %v3807 = vld [vmem:[%s3365 + $0x54] sm:$0xe]
        %v3824 = vrot.slane %v3800, 5
        %v3825 = vrot.slane %v3824, 4
        %v3826 = vrot.slane %v3367, 5
        %v3827 = vsel %vm1538, %v3825, %v3826
        %v3828 = vrot.slane %v3826, 4
        %v3829 = vrot.slane %v3383, 5
        %v3830 = vsel %vm1538, %v3828, %v3829
        %v3831 = vrot.slane %v3801, 5
        %v3832 = vrot.slane %v3831, 4
        %v3833 = vrot.slane %v3369, 5
        %v3834 = vsel %vm1538, %v3832, %v3833
        %v3835 = vrot.slane %v3833, 4
        %v3836 = vrot.slane %v3384, 5
        %v3837 = vsel %vm1538, %v3835, %v3836
        %v3838 = vrot.slane %v3802, 5
        %v3839 = vrot.slane %v3838, 4
        %v3840 = vrot.slane %v3371, 5
        %v3841 = vsel %vm1538, %v3839, %v3840
        %v3842 = vrot.slane %v3840, 4
        %v3843 = vrot.slane %v3385, 5
        %v3844 = vsel %vm1538, %v3842, %v3843
        %v3845 = vrot.slane %v3803, 5
        %v3846 = vrot.slane %v3845, 4
        %v3847 = vrot.slane %v3373, 5
        %v3848 = vsel %vm1538, %v3846, %v3847
        %v3849 = vrot.slane %v3847, 4
        %v3850 = vrot.slane %v3386, 5
        %v3851 = vsel %vm1538, %v3849, %v3850
        %v3852 = vrot.slane %v3804, 5
        %v3853 = vrot.slane %v3852, 4
        %v3854 = vrot.slane %v3375, 5
        %v3855 = vsel %vm1538, %v3853, %v3854
        %v3856 = vrot.slane %v3854, 4
        %v3857 = vrot.slane %v3387, 5
        %v3858 = vsel %vm1538, %v3856, %v3857
        %v3859 = vrot.slane %v3805, 5
        %v3860 = vrot.slane %v3859, 4
        %v3861 = vrot.slane %v3377, 5
        %v3862 = vsel %vm1538, %v3860, %v3861
        %v3863 = vrot.slane %v3861, 4
        %v3864 = vrot.slane %v3388, 5
        %v3865 = vsel %vm1538, %v3863, %v3864
        %v3866 = vrot.slane %v3806, 5
        %v3867 = vrot.slane %v3866, 4
        %v3868 = vrot.slane %v3379, 5
        %v3869 = vsel %vm1538, %v3867, %v3868
        %v3870 = vrot.slane %v3868, 4
        %v3871 = vrot.slane %v3389, 5
        %v3872 = vsel %vm1538, %v3870, %v3871
        %v3873 = vrot.slane %v3807, 5
        %v3874 = vrot.slane %v3873, 4
        %v3875 = vrot.slane %v3381, 5
        %v3876 = vsel %vm1538, %v3874, %v3875
        %v3877 = vrot.slane %v3875, 4
        %v3878 = vrot.slane %v3390, 5
        %v3879 = vsel %vm1538, %v3877, %v3878
        %v3880 = vld [vmem:[%s1595] sm:$0xf]
        %v3881 = vunpack.c.l.b16 %v3827
        %v3882 = vunpack.c.l.b16 %v3830
        %v3883 = vunpack.c.l.b16 %v3834
        %v3884 = vunpack.c.l.b16 %v3837
        %v3885 = vunpack.c.l.b16 %v3841
        %v3886 = vunpack.c.l.b16 %v3844
        %v3887 = vunpack.c.l.b16 %v3848
        %v3888 = vunpack.c.l.b16 %v3851
        %v3889 = vunpack.c.l.b16 %v3855
        %v3890 = vunpack.c.l.b16 %v3858
        %v3891 = vunpack.c.l.b16 %v3862
        %v3892 = vunpack.c.l.b16 %v3865
        %v3893 = vunpack.c.l.b16 %v3869
        %v3894 = vunpack.c.l.b16 %v3872
        %v3895 = vunpack.c.l.b16 %v3876
        %v3896 = vunpack.c.l.b16 %v3879
        %v3897 = vpack.c.b16 %v3882, %v3881
        %v3898 = vpack.c.b16 %v3884, %v3883
        %v3899 = vpack.c.b16 %v3886, %v3885
        %v3900 = vpack.c.b16 %v3888, %v3887
        %v3901 = vpack.c.b16 %v3890, %v3889
        %v3902 = vpack.c.b16 %v3892, %v3891
        %v3903 = vpack.c.b16 %v3894, %v3893
        %v3904 = vpack.c.b16 %v3896, %v3895
        %v3906 = vsel %vm1318, %v3897, 0
        %v3909 = vsel %vm1318, %v3898, 0
        %v3912 = vsel %vm1318, %v3899, 0
        %v3915 = vsel %vm1318, %v3900, 0
        %v3918 = vsel %vm1318, %v3901, 0
        %v3921 = vsel %vm1318, %v3902, 0
        %v3924 = vsel %vm1318, %v3903, 0
        %v3927 = vsel %vm1318, %v3904, 0
        %v3930 = vsel %vm1343, %v3880, 0
        %3932 = vmatpush.bf16.msra.mxu0 0
        %3933 = vmatpush.bf16.msra.mxu0 0
        %3934 = vmatpush.bf16.msra.mxu0 0
        %3935 = vmatpush.bf16.msra.mxu0 0
        %3936 = vmatpush.bf16.msra.mxu0 0
        %3937 = vmatpush.bf16.msra.mxu0 0
        %3938 = vmatpush.bf16.msra.mxu0 0
        %3939 = vmatpush.bf16.msra.mxu0 %v3930
        %3940 = vmatmul.bf16.gmra.mxu0 %v3906
        %v3941 = vpop.f32.mrf.mxu0
        %v3942 = vadd.f32 0.0, %v3941
        %v3943 = vpop.f32.mrf.mxu0
        %v3944 = vadd.f32 0.0, %v3943
        %3945 = vmatmul.bf16.gmra.mxu0 %v3909
        %v3946 = vpop.f32.mrf.mxu0
        %v3947 = vadd.f32 0.0, %v3946
        %v3948 = vpop.f32.mrf.mxu0
        %v3949 = vadd.f32 0.0, %v3948
        %3950 = vmatmul.bf16.gmra.mxu0 %v3912
        %v3951 = vpop.f32.mrf.mxu0
        %v3952 = vadd.f32 0.0, %v3951
        %v3953 = vpop.f32.mrf.mxu0
        %v3954 = vadd.f32 0.0, %v3953
        %3955 = vmatmul.bf16.gmra.mxu0 %v3915
        %v3956 = vpop.f32.mrf.mxu0
        %v3957 = vadd.f32 0.0, %v3956
        %v3958 = vpop.f32.mrf.mxu0
        %v3959 = vadd.f32 0.0, %v3958
        %3960 = vmatmul.bf16.gmra.mxu0 %v3918
        %v3961 = vpop.f32.mrf.mxu0
        %v3962 = vadd.f32 0.0, %v3961
        %v3963 = vpop.f32.mrf.mxu0
        %v3964 = vadd.f32 0.0, %v3963
        %3965 = vmatmul.bf16.gmra.mxu0 %v3921
        %v3966 = vpop.f32.mrf.mxu0
        %v3967 = vadd.f32 0.0, %v3966
        %v3968 = vpop.f32.mrf.mxu0
        %v3969 = vadd.f32 0.0, %v3968
        %3970 = vmatmul.bf16.gmra.mxu0 %v3924
        %v3971 = vpop.f32.mrf.mxu0
        %v3972 = vadd.f32 0.0, %v3971
        %v3973 = vpop.f32.mrf.mxu0
        %v3974 = vadd.f32 0.0, %v3973
        %3975 = vmatmul.bf16.gmra.mxu0 %v3927
        %v3976 = vpop.f32.mrf.mxu0
        %v3977 = vadd.f32 0.0, %v3976
        %v3978 = vpop.f32.mrf.mxu0
        %v3979 = vadd.f32 0.0, %v3978
        %3980 = vdwg.mxu0
        %v3981 = vadd.f32 %v3761, %v3942
        %v3982 = vadd.f32 %v3763, %v3944
        %v3983 = vadd.f32 %v3766, %v3947
        %v3984 = vadd.f32 %v3768, %v3949
        %v3985 = vadd.f32 %v3771, %v3952
        %v3986 = vadd.f32 %v3773, %v3954
        %v3987 = vadd.f32 %v3776, %v3957
        %v3988 = vadd.f32 %v3778, %v3959
        %v3989 = vadd.f32 %v3781, %v3962
        %v3990 = vadd.f32 %v3783, %v3964
        %v3991 = vadd.f32 %v3786, %v3967
        %v3992 = vadd.f32 %v3788, %v3969
        %v3993 = vadd.f32 %v3791, %v3972
        %v3994 = vadd.f32 %v3793, %v3974
        %v3995 = vadd.f32 %v3796, %v3977
        %v3996 = vadd.f32 %v3798, %v3979
        %s3997 = scalar_lea.vmem [#allocation2], 108
        %v3998 = vld [vmem:[%s3997] sm:$0xf]
        %v3999 = vld [vmem:[%s3997 + $0x4] sm:$0xf]
        %v4000 = vld [vmem:[%s3997 + $0xc] sm:$0xf]
        %v4001 = vld [vmem:[%s3997 + $0x10] sm:$0xf]
        %v4002 = vld [vmem:[%s3997 + $0x18] sm:$0xf]
        %v4003 = vld [vmem:[%s3997 + $0x1c] sm:$0xf]
        %v4004 = vld [vmem:[%s3997 + $0x24] sm:$0xf]
        %v4005 = vld [vmem:[%s3997 + $0x28] sm:$0xf]
        %v4006 = vld [vmem:[%s3997 + $0x30] sm:$0xf]
        %v4007 = vld [vmem:[%s3997 + $0x34] sm:$0xf]
        %v4008 = vld [vmem:[%s3997 + $0x3c] sm:$0xf]
        %v4009 = vld [vmem:[%s3997 + $0x40] sm:$0xf]
        %v4010 = vld [vmem:[%s3997 + $0x48] sm:$0xf]
        %v4011 = vld [vmem:[%s3997 + $0x4c] sm:$0xf]
        %v4012 = vld [vmem:[%s3997 + $0x54] sm:$0xf]
        %v4013 = vld [vmem:[%s3997 + $0x58] sm:$0xf]
        %v4014 = vld [vmem:[%s1729] sm:$0xf]
        %v4031 = vunpack.c.l.b16 %v3998
        %v4032 = vunpack.c.l.b16 %v3999
        %v4033 = vunpack.c.l.b16 %v4000
        %v4034 = vunpack.c.l.b16 %v4001
        %v4035 = vunpack.c.l.b16 %v4002
        %v4036 = vunpack.c.l.b16 %v4003
        %v4037 = vunpack.c.l.b16 %v4004
        %v4038 = vunpack.c.l.b16 %v4005
        %v4039 = vunpack.c.l.b16 %v4006
        %v4040 = vunpack.c.l.b16 %v4007
        %v4041 = vunpack.c.l.b16 %v4008
        %v4042 = vunpack.c.l.b16 %v4009
        %v4043 = vunpack.c.l.b16 %v4010
        %v4044 = vunpack.c.l.b16 %v4011
        %v4045 = vunpack.c.l.b16 %v4012
        %v4046 = vunpack.c.l.b16 %v4013
        %v4047 = vpack.c.b16 %v4032, %v4031
        %v4048 = vpack.c.b16 %v4034, %v4033
        %v4049 = vpack.c.b16 %v4036, %v4035
        %v4050 = vpack.c.b16 %v4038, %v4037
        %v4051 = vpack.c.b16 %v4040, %v4039
        %v4052 = vpack.c.b16 %v4042, %v4041
        %v4053 = vpack.c.b16 %v4044, %v4043
        %v4054 = vpack.c.b16 %v4046, %v4045
        %v4056 = vsel %vm1318, %v4047, 0
        %v4059 = vsel %vm1318, %v4048, 0
        %v4062 = vsel %vm1318, %v4049, 0
        %v4065 = vsel %vm1318, %v4050, 0
        %v4068 = vsel %vm1318, %v4051, 0
        %v4071 = vsel %vm1318, %v4052, 0
        %v4074 = vsel %vm1318, %v4053, 0
        %v4077 = vsel %vm1318, %v4054, 0
        %v4080 = vsel %vm1343, %v4014, 0
        %4082 = vmatpush.bf16.msra.mxu0 0
        %4083 = vmatpush.bf16.msra.mxu0 0
        %4084 = vmatpush.bf16.msra.mxu0 0
        %4085 = vmatpush.bf16.msra.mxu0 0
        %4086 = vmatpush.bf16.msra.mxu0 0
        %4087 = vmatpush.bf16.msra.mxu0 0
        %4088 = vmatpush.bf16.msra.mxu0 0
        %4089 = vmatpush.bf16.msra.mxu0 %v4080
        %4090 = vmatmul.bf16.gmra.mxu0 %v4056
        %v4091 = vpop.f32.mrf.mxu0
        %v4092 = vadd.f32 0.0, %v4091
        %v4093 = vpop.f32.mrf.mxu0
        %v4094 = vadd.f32 0.0, %v4093
        %4095 = vmatmul.bf16.gmra.mxu0 %v4059
        %v4096 = vpop.f32.mrf.mxu0
        %v4097 = vadd.f32 0.0, %v4096
        %v4098 = vpop.f32.mrf.mxu0
        %v4099 = vadd.f32 0.0, %v4098
        %4100 = vmatmul.bf16.gmra.mxu0 %v4062
        %v4101 = vpop.f32.mrf.mxu0
        %v4102 = vadd.f32 0.0, %v4101
        %v4103 = vpop.f32.mrf.mxu0
        %v4104 = vadd.f32 0.0, %v4103
        %4105 = vmatmul.bf16.gmra.mxu0 %v4065
        %v4106 = vpop.f32.mrf.mxu0
        %v4107 = vadd.f32 0.0, %v4106
        %v4108 = vpop.f32.mrf.mxu0
        %v4109 = vadd.f32 0.0, %v4108
        %4110 = vmatmul.bf16.gmra.mxu0 %v4068
        %v4111 = vpop.f32.mrf.mxu0
        %v4112 = vadd.f32 0.0, %v4111
        %v4113 = vpop.f32.mrf.mxu0
        %v4114 = vadd.f32 0.0, %v4113
        %4115 = vmatmul.bf16.gmra.mxu0 %v4071
        %v4116 = vpop.f32.mrf.mxu0
        %v4117 = vadd.f32 0.0, %v4116
        %v4118 = vpop.f32.mrf.mxu0
        %v4119 = vadd.f32 0.0, %v4118
        %4120 = vmatmul.bf16.gmra.mxu0 %v4074
        %v4121 = vpop.f32.mrf.mxu0
        %v4122 = vadd.f32 0.0, %v4121
        %v4123 = vpop.f32.mrf.mxu0
        %v4124 = vadd.f32 0.0, %v4123
        %4125 = vmatmul.bf16.gmra.mxu0 %v4077
        %v4126 = vpop.f32.mrf.mxu0
        %v4127 = vadd.f32 0.0, %v4126
        %v4128 = vpop.f32.mrf.mxu0
        %v4129 = vadd.f32 0.0, %v4128
        %4130 = vdwg.mxu0
        %v4131 = vadd.f32 %v3981, %v4092
        %v4132 = vadd.f32 %v3982, %v4094
        %v4133 = vadd.f32 %v3983, %v4097
        %v4134 = vadd.f32 %v3984, %v4099
        %v4135 = vadd.f32 %v3985, %v4102
        %v4136 = vadd.f32 %v3986, %v4104
        %v4137 = vadd.f32 %v3987, %v4107
        %v4138 = vadd.f32 %v3988, %v4109
        %v4139 = vadd.f32 %v3989, %v4112
        %v4140 = vadd.f32 %v3990, %v4114
        %v4141 = vadd.f32 %v3991, %v4117
        %v4142 = vadd.f32 %v3992, %v4119
        %v4143 = vadd.f32 %v3993, %v4122
        %v4144 = vadd.f32 %v3994, %v4124
        %v4145 = vadd.f32 %v3995, %v4127
        %v4146 = vadd.f32 %v3996, %v4129
        %v4147 = vld [vmem:[%s3997] sm:$0xf]
        %v4148 = vld [vmem:[%s3997 + $0x4] sm:$0xf]
        %v4149 = vld [vmem:[%s3997 + $0x8] sm:$0x1]
        %v4150 = vld [vmem:[%s3997 + $0xc] sm:$0xf]
        %v4151 = vld [vmem:[%s3997 + $0x10] sm:$0xf]
        %v4152 = vld [vmem:[%s3997 + $0x14] sm:$0x1]
        %v4153 = vld [vmem:[%s3997 + $0x18] sm:$0xf]
        %v4154 = vld [vmem:[%s3997 + $0x1c] sm:$0xf]
        %v4155 = vld [vmem:[%s3997 + $0x20] sm:$0x1]
        %v4156 = vld [vmem:[%s3997 + $0x24] sm:$0xf]
        %v4157 = vld [vmem:[%s3997 + $0x28] sm:$0xf]
        %v4158 = vld [vmem:[%s3997 + $0x2c] sm:$0x1]
        %v4159 = vld [vmem:[%s3997 + $0x30] sm:$0xf]
        %v4160 = vld [vmem:[%s3997 + $0x34] sm:$0xf]
        %v4161 = vld [vmem:[%s3997 + $0x38] sm:$0x1]
        %v4162 = vld [vmem:[%s3997 + $0x3c] sm:$0xf]
        %v4163 = vld [vmem:[%s3997 + $0x40] sm:$0xf]
        %v4164 = vld [vmem:[%s3997 + $0x44] sm:$0x1]
        %v4165 = vld [vmem:[%s3997 + $0x48] sm:$0xf]
        %v4166 = vld [vmem:[%s3997 + $0x4c] sm:$0xf]
        %v4167 = vld [vmem:[%s3997 + $0x50] sm:$0x1]
        %v4168 = vld [vmem:[%s3997 + $0x54] sm:$0xf]
        %v4169 = vld [vmem:[%s3997 + $0x58] sm:$0xf]
        %v4170 = vld [vmem:[%s3997 + $0x5c] sm:$0x1]
        %v4172 = vshrl.u32 %v4147, 16
        %v4174 = vrot.slane %v4172, 4
        %v4175 = vshll.u32 %v4147, 16
        %v4177 = vrot.slane %v4175, 5
        %v4178 = vor.u32 %v4174, %v4177
        %v4179 = vrot.slane %v4178, 4
        %v4181 = vshll.u32 %v4148, 16
        %v4183 = vrot.slane %v4181, 5
        %v4184 = vsel %vm1099, %v4179, %v4183
        %v4185 = vshrl.u32 %v4148, 16
        %v4187 = vrot.slane %v4185, 4
        %v4188 = vor.u32 %v4187, %v4183
        %v4189 = vrot.slane %v4188, 4
        %v4191 = vshll.u32 %v4149, 16
        %v4193 = vrot.slane %v4191, 5
        %v4194 = vsel %vm1099, %v4189, %v4193
        %v4196 = vshrl.u32 %v4150, 16
        %v4198 = vrot.slane %v4196, 4
        %v4199 = vshll.u32 %v4150, 16
        %v4201 = vrot.slane %v4199, 5
        %v4202 = vor.u32 %v4198, %v4201
        %v4203 = vrot.slane %v4202, 4
        %v4205 = vshll.u32 %v4151, 16
        %v4207 = vrot.slane %v4205, 5
        %v4208 = vsel %vm1099, %v4203, %v4207
        %v4209 = vshrl.u32 %v4151, 16
        %v4211 = vrot.slane %v4209, 4
        %v4212 = vor.u32 %v4211, %v4207
        %v4213 = vrot.slane %v4212, 4
        %v4215 = vshll.u32 %v4152, 16
        %v4217 = vrot.slane %v4215, 5
        %v4218 = vsel %vm1099, %v4213, %v4217
        %v4220 = vshrl.u32 %v4153, 16
        %v4222 = vrot.slane %v4220, 4
        %v4223 = vshll.u32 %v4153, 16
        %v4225 = vrot.slane %v4223, 5
        %v4226 = vor.u32 %v4222, %v4225
        %v4227 = vrot.slane %v4226, 4
        %v4229 = vshll.u32 %v4154, 16
        %v4231 = vrot.slane %v4229, 5
        %v4232 = vsel %vm1099, %v4227, %v4231
        %v4233 = vshrl.u32 %v4154, 16
        %v4235 = vrot.slane %v4233, 4
        %v4236 = vor.u32 %v4235, %v4231
        %v4237 = vrot.slane %v4236, 4
        %v4239 = vshll.u32 %v4155, 16
        %v4241 = vrot.slane %v4239, 5
        %v4242 = vsel %vm1099, %v4237, %v4241
        %v4244 = vshrl.u32 %v4156, 16
        %v4246 = vrot.slane %v4244, 4
        %v4247 = vshll.u32 %v4156, 16
        %v4249 = vrot.slane %v4247, 5
        %v4250 = vor.u32 %v4246, %v4249
        %v4251 = vrot.slane %v4250, 4
        %v4253 = vshll.u32 %v4157, 16
        %v4255 = vrot.slane %v4253, 5
        %v4256 = vsel %vm1099, %v4251, %v4255
        %v4257 = vshrl.u32 %v4157, 16
        %v4259 = vrot.slane %v4257, 4
        %v4260 = vor.u32 %v4259, %v4255
        %v4261 = vrot.slane %v4260, 4
        %v4263 = vshll.u32 %v4158, 16
        %v4265 = vrot.slane %v4263, 5
        %v4266 = vsel %vm1099, %v4261, %v4265
        %v4268 = vshrl.u32 %v4159, 16
        %v4270 = vrot.slane %v4268, 4
        %v4271 = vshll.u32 %v4159, 16
        %v4273 = vrot.slane %v4271, 5
        %v4274 = vor.u32 %v4270, %v4273
        %v4275 = vrot.slane %v4274, 4
        %v4277 = vshll.u32 %v4160, 16
        %v4279 = vrot.slane %v4277, 5
        %v4280 = vsel %vm1099, %v4275, %v4279
        %v4281 = vshrl.u32 %v4160, 16
        %v4283 = vrot.slane %v4281, 4
        %v4284 = vor.u32 %v4283, %v4279
        %v4285 = vrot.slane %v4284, 4
        %v4287 = vshll.u32 %v4161, 16
        %v4289 = vrot.slane %v4287, 5
        %v4290 = vsel %vm1099, %v4285, %v4289
        %v4292 = vshrl.u32 %v4162, 16
        %v4294 = vrot.slane %v4292, 4
        %v4295 = vshll.u32 %v4162, 16
        %v4297 = vrot.slane %v4295, 5
        %v4298 = vor.u32 %v4294, %v4297
        %v4299 = vrot.slane %v4298, 4
        %v4301 = vshll.u32 %v4163, 16
        %v4303 = vrot.slane %v4301, 5
        %v4304 = vsel %vm1099, %v4299, %v4303
        %v4305 = vshrl.u32 %v4163, 16
        %v4307 = vrot.slane %v4305, 4
        %v4308 = vor.u32 %v4307, %v4303
        %v4309 = vrot.slane %v4308, 4
        %v4311 = vshll.u32 %v4164, 16
        %v4313 = vrot.slane %v4311, 5
        %v4314 = vsel %vm1099, %v4309, %v4313
        %v4316 = vshrl.u32 %v4165, 16
        %v4318 = vrot.slane %v4316, 4
        %v4319 = vshll.u32 %v4165, 16
        %v4321 = vrot.slane %v4319, 5
        %v4322 = vor.u32 %v4318, %v4321
        %v4323 = vrot.slane %v4322, 4
        %v4325 = vshll.u32 %v4166, 16
        %v4327 = vrot.slane %v4325, 5
        %v4328 = vsel %vm1099, %v4323, %v4327
        %v4329 = vshrl.u32 %v4166, 16
        %v4331 = vrot.slane %v4329, 4
        %v4332 = vor.u32 %v4331, %v4327
        %v4333 = vrot.slane %v4332, 4
        %v4335 = vshll.u32 %v4167, 16
        %v4337 = vrot.slane %v4335, 5
        %v4338 = vsel %vm1099, %v4333, %v4337
        %v4340 = vshrl.u32 %v4168, 16
        %v4342 = vrot.slane %v4340, 4
        %v4343 = vshll.u32 %v4168, 16
        %v4345 = vrot.slane %v4343, 5
        %v4346 = vor.u32 %v4342, %v4345
        %v4347 = vrot.slane %v4346, 4
        %v4349 = vshll.u32 %v4169, 16
        %v4351 = vrot.slane %v4349, 5
        %v4352 = vsel %vm1099, %v4347, %v4351
        %v4353 = vshrl.u32 %v4169, 16
        %v4355 = vrot.slane %v4353, 4
        %v4356 = vor.u32 %v4355, %v4351
        %v4357 = vrot.slane %v4356, 4
        %v4359 = vshll.u32 %v4170, 16
        %v4361 = vrot.slane %v4359, 5
        %v4362 = vsel %vm1099, %v4357, %v4361
        %v4363 = vld [vmem:[%s2079] sm:$0xf]
        %v4364 = vunpack.c.l.b16 %v4184
        %v4365 = vunpack.c.l.b16 %v4194
        %v4366 = vunpack.c.l.b16 %v4208
        %v4367 = vunpack.c.l.b16 %v4218
        %v4368 = vunpack.c.l.b16 %v4232
        %v4369 = vunpack.c.l.b16 %v4242
        %v4370 = vunpack.c.l.b16 %v4256
        %v4371 = vunpack.c.l.b16 %v4266
        %v4372 = vunpack.c.l.b16 %v4280
        %v4373 = vunpack.c.l.b16 %v4290
        %v4374 = vunpack.c.l.b16 %v4304
        %v4375 = vunpack.c.l.b16 %v4314
        %v4376 = vunpack.c.l.b16 %v4328
        %v4377 = vunpack.c.l.b16 %v4338
        %v4378 = vunpack.c.l.b16 %v4352
        %v4379 = vunpack.c.l.b16 %v4362
        %v4380 = vpack.c.b16 %v4365, %v4364
        %v4381 = vpack.c.b16 %v4367, %v4366
        %v4382 = vpack.c.b16 %v4369, %v4368
        %v4383 = vpack.c.b16 %v4371, %v4370
        %v4384 = vpack.c.b16 %v4373, %v4372
        %v4385 = vpack.c.b16 %v4375, %v4374
        %v4386 = vpack.c.b16 %v4377, %v4376
        %v4387 = vpack.c.b16 %v4379, %v4378
        %v4389 = vsel %vm1318, %v4380, 0
        %v4392 = vsel %vm1318, %v4381, 0
        %v4395 = vsel %vm1318, %v4382, 0
        %v4398 = vsel %vm1318, %v4383, 0
        %v4401 = vsel %vm1318, %v4384, 0
        %v4404 = vsel %vm1318, %v4385, 0
        %v4407 = vsel %vm1318, %v4386, 0
        %v4410 = vsel %vm1318, %v4387, 0
        %v4413 = vsel %vm1343, %v4363, 0
        %4415 = vmatpush.bf16.msra.mxu0 0
        %4416 = vmatpush.bf16.msra.mxu0 0
        %4417 = vmatpush.bf16.msra.mxu0 0
        %4418 = vmatpush.bf16.msra.mxu0 0
        %4419 = vmatpush.bf16.msra.mxu0 0
        %4420 = vmatpush.bf16.msra.mxu0 0
        %4421 = vmatpush.bf16.msra.mxu0 0
        %4422 = vmatpush.bf16.msra.mxu0 %v4413
        %4423 = vmatmul.bf16.gmra.mxu0 %v4389
        %v4424 = vpop.f32.mrf.mxu0
        %v4425 = vadd.f32 0.0, %v4424
        %v4426 = vpop.f32.mrf.mxu0
        %v4427 = vadd.f32 0.0, %v4426
        %4428 = vmatmul.bf16.gmra.mxu0 %v4392
        %v4429 = vpop.f32.mrf.mxu0
        %v4430 = vadd.f32 0.0, %v4429
        %v4431 = vpop.f32.mrf.mxu0
        %v4432 = vadd.f32 0.0, %v4431
        %4433 = vmatmul.bf16.gmra.mxu0 %v4395
        %v4434 = vpop.f32.mrf.mxu0
        %v4435 = vadd.f32 0.0, %v4434
        %v4436 = vpop.f32.mrf.mxu0
        %v4437 = vadd.f32 0.0, %v4436
        %4438 = vmatmul.bf16.gmra.mxu0 %v4398
        %v4439 = vpop.f32.mrf.mxu0
        %v4440 = vadd.f32 0.0, %v4439
        %v4441 = vpop.f32.mrf.mxu0
        %v4442 = vadd.f32 0.0, %v4441
        %4443 = vmatmul.bf16.gmra.mxu0 %v4401
        %v4444 = vpop.f32.mrf.mxu0
        %v4445 = vadd.f32 0.0, %v4444
        %v4446 = vpop.f32.mrf.mxu0
        %v4447 = vadd.f32 0.0, %v4446
        %4448 = vmatmul.bf16.gmra.mxu0 %v4404
        %v4449 = vpop.f32.mrf.mxu0
        %v4450 = vadd.f32 0.0, %v4449
        %v4451 = vpop.f32.mrf.mxu0
        %v4452 = vadd.f32 0.0, %v4451
        %4453 = vmatmul.bf16.gmra.mxu0 %v4407
        %v4454 = vpop.f32.mrf.mxu0
        %v4455 = vadd.f32 0.0, %v4454
        %v4456 = vpop.f32.mrf.mxu0
        %v4457 = vadd.f32 0.0, %v4456
        %4458 = vmatmul.bf16.gmra.mxu0 %v4410
        %v4459 = vpop.f32.mrf.mxu0
        %v4460 = vadd.f32 0.0, %v4459
        %v4461 = vpop.f32.mrf.mxu0
        %v4462 = vadd.f32 0.0, %v4461
        %4463 = vdwg.mxu0
        %v4464 = vadd.f32 %v4131, %v4425
        %v4465 = vadd.f32 %v4132, %v4427
        %v4466 = vadd.f32 %v4133, %v4430
        %v4467 = vadd.f32 %v4134, %v4432
        %v4468 = vadd.f32 %v4135, %v4435
        %v4469 = vadd.f32 %v4136, %v4437
        %v4470 = vadd.f32 %v4137, %v4440
        %v4471 = vadd.f32 %v4138, %v4442
        %v4472 = vadd.f32 %v4139, %v4445
        %v4473 = vadd.f32 %v4140, %v4447
        %v4474 = vadd.f32 %v4141, %v4450
        %v4475 = vadd.f32 %v4142, %v4452
        %v4476 = vadd.f32 %v4143, %v4455
        %v4477 = vadd.f32 %v4144, %v4457
        %v4478 = vadd.f32 %v4145, %v4460
        %v4479 = vadd.f32 %v4146, %v4462
        %v4480 = vld [vmem:[%s3997] sm:$0xe]
        %v4481 = vld [vmem:[%s3997 + $0xc] sm:$0xe]
        %v4482 = vld [vmem:[%s3997 + $0x18] sm:$0xe]
        %v4483 = vld [vmem:[%s3997 + $0x24] sm:$0xe]
        %v4484 = vld [vmem:[%s3997 + $0x30] sm:$0xe]
        %v4485 = vld [vmem:[%s3997 + $0x3c] sm:$0xe]
        %v4486 = vld [vmem:[%s3997 + $0x48] sm:$0xe]
        %v4487 = vld [vmem:[%s3997 + $0x54] sm:$0xe]
        %v4512 = vrot.slane %v4480, 5
        %v4513 = vrot.slane %v4512, 4
        %v4514 = vrot.slane %v4148, 5
        %v4515 = vsel %vm1538, %v4513, %v4514
        %v4516 = vrot.slane %v4514, 4
        %v4517 = vrot.slane %v4149, 5
        %v4518 = vsel %vm1538, %v4516, %v4517
        %v4519 = vrot.slane %v4481, 5
        %v4520 = vrot.slane %v4519, 4
        %v4521 = vrot.slane %v4151, 5
        %v4522 = vsel %vm1538, %v4520, %v4521
        %v4523 = vrot.slane %v4521, 4
        %v4524 = vrot.slane %v4152, 5
        %v4525 = vsel %vm1538, %v4523, %v4524
        %v4526 = vrot.slane %v4482, 5
        %v4527 = vrot.slane %v4526, 4
        %v4528 = vrot.slane %v4154, 5
        %v4529 = vsel %vm1538, %v4527, %v4528
        %v4530 = vrot.slane %v4528, 4
        %v4531 = vrot.slane %v4155, 5
        %v4532 = vsel %vm1538, %v4530, %v4531
        %v4533 = vrot.slane %v4483, 5
        %v4534 = vrot.slane %v4533, 4
        %v4535 = vrot.slane %v4157, 5
        %v4536 = vsel %vm1538, %v4534, %v4535
        %v4537 = vrot.slane %v4535, 4
        %v4538 = vrot.slane %v4158, 5
        %v4539 = vsel %vm1538, %v4537, %v4538
        %v4540 = vrot.slane %v4484, 5
        %v4541 = vrot.slane %v4540, 4
        %v4542 = vrot.slane %v4160, 5
        %v4543 = vsel %vm1538, %v4541, %v4542
        %v4544 = vrot.slane %v4542, 4
        %v4545 = vrot.slane %v4161, 5
        %v4546 = vsel %vm1538, %v4544, %v4545
        %v4547 = vrot.slane %v4485, 5
        %v4548 = vrot.slane %v4547, 4
        %v4549 = vrot.slane %v4163, 5
        %v4550 = vsel %vm1538, %v4548, %v4549
        %v4551 = vrot.slane %v4549, 4
        %v4552 = vrot.slane %v4164, 5
        %v4553 = vsel %vm1538, %v4551, %v4552
        %v4554 = vrot.slane %v4486, 5
        %v4555 = vrot.slane %v4554, 4
        %v4556 = vrot.slane %v4166, 5
        %v4557 = vsel %vm1538, %v4555, %v4556
        %v4558 = vrot.slane %v4556, 4
        %v4559 = vrot.slane %v4167, 5
        %v4560 = vsel %vm1538, %v4558, %v4559
        %v4561 = vrot.slane %v4487, 5
        %v4562 = vrot.slane %v4561, 4
        %v4563 = vrot.slane %v4169, 5
        %v4564 = vsel %vm1538, %v4562, %v4563
        %v4565 = vrot.slane %v4563, 4
        %v4566 = vrot.slane %v4170, 5
        %v4567 = vsel %vm1538, %v4565, %v4566
        %v4568 = vld [vmem:[%s2285] sm:$0xf]
        %v4569 = vunpack.c.l.b16 %v4515
        %v4570 = vunpack.c.l.b16 %v4518
        %v4571 = vunpack.c.l.b16 %v4522
        %v4572 = vunpack.c.l.b16 %v4525
        %v4573 = vunpack.c.l.b16 %v4529
        %v4574 = vunpack.c.l.b16 %v4532
        %v4575 = vunpack.c.l.b16 %v4536
        %v4576 = vunpack.c.l.b16 %v4539
        %v4577 = vunpack.c.l.b16 %v4543
        %v4578 = vunpack.c.l.b16 %v4546
        %v4579 = vunpack.c.l.b16 %v4550
        %v4580 = vunpack.c.l.b16 %v4553
        %v4581 = vunpack.c.l.b16 %v4557
        %v4582 = vunpack.c.l.b16 %v4560
        %v4583 = vunpack.c.l.b16 %v4564
        %v4584 = vunpack.c.l.b16 %v4567
        %v4585 = vpack.c.b16 %v4570, %v4569
        %v4586 = vpack.c.b16 %v4572, %v4571
        %v4587 = vpack.c.b16 %v4574, %v4573
        %v4588 = vpack.c.b16 %v4576, %v4575
        %v4589 = vpack.c.b16 %v4578, %v4577
        %v4590 = vpack.c.b16 %v4580, %v4579
        %v4591 = vpack.c.b16 %v4582, %v4581
        %v4592 = vpack.c.b16 %v4584, %v4583
        %v4594 = vsel %vm1318, %v4585, 0
        %v4597 = vsel %vm1318, %v4586, 0
        %v4600 = vsel %vm1318, %v4587, 0
        %v4603 = vsel %vm1318, %v4588, 0
        %v4606 = vsel %vm1318, %v4589, 0
        %v4609 = vsel %vm1318, %v4590, 0
        %v4612 = vsel %vm1318, %v4591, 0
        %v4615 = vsel %vm1318, %v4592, 0
        %v4618 = vsel %vm1343, %v4568, 0
        %4620 = vmatpush.bf16.msra.mxu0 0
        %4621 = vmatpush.bf16.msra.mxu0 0
        %4622 = vmatpush.bf16.msra.mxu0 0
        %4623 = vmatpush.bf16.msra.mxu0 0
        %4624 = vmatpush.bf16.msra.mxu0 0
        %4625 = vmatpush.bf16.msra.mxu0 0
        %4626 = vmatpush.bf16.msra.mxu0 0
        %4627 = vmatpush.bf16.msra.mxu0 %v4618
        %4628 = vmatmul.bf16.gmra.mxu0 %v4594
        %v4629 = vpop.f32.mrf.mxu0
        %v4630 = vadd.f32 0.0, %v4629
        %v4631 = vpop.f32.mrf.mxu0
        %v4632 = vadd.f32 0.0, %v4631
        %4633 = vmatmul.bf16.gmra.mxu0 %v4597
        %v4634 = vpop.f32.mrf.mxu0
        %v4635 = vadd.f32 0.0, %v4634
        %v4636 = vpop.f32.mrf.mxu0
        %v4637 = vadd.f32 0.0, %v4636
        %4638 = vmatmul.bf16.gmra.mxu0 %v4600
        %v4639 = vpop.f32.mrf.mxu0
        %v4640 = vadd.f32 0.0, %v4639
        %v4641 = vpop.f32.mrf.mxu0
        %v4642 = vadd.f32 0.0, %v4641
        %4643 = vmatmul.bf16.gmra.mxu0 %v4603
        %v4644 = vpop.f32.mrf.mxu0
        %v4645 = vadd.f32 0.0, %v4644
        %v4646 = vpop.f32.mrf.mxu0
        %v4647 = vadd.f32 0.0, %v4646
        %4648 = vmatmul.bf16.gmra.mxu0 %v4606
        %v4649 = vpop.f32.mrf.mxu0
        %v4650 = vadd.f32 0.0, %v4649
        %v4651 = vpop.f32.mrf.mxu0
        %v4652 = vadd.f32 0.0, %v4651
        %4653 = vmatmul.bf16.gmra.mxu0 %v4609
        %v4654 = vpop.f32.mrf.mxu0
        %v4655 = vadd.f32 0.0, %v4654
        %v4656 = vpop.f32.mrf.mxu0
        %v4657 = vadd.f32 0.0, %v4656
        %4658 = vmatmul.bf16.gmra.mxu0 %v4612
        %v4659 = vpop.f32.mrf.mxu0
        %v4660 = vadd.f32 0.0, %v4659
        %v4661 = vpop.f32.mrf.mxu0
        %v4662 = vadd.f32 0.0, %v4661
        %4663 = vmatmul.bf16.gmra.mxu0 %v4615
        %v4664 = vpop.f32.mrf.mxu0
        %v4665 = vadd.f32 0.0, %v4664
        %v4666 = vpop.f32.mrf.mxu0
        %v4667 = vadd.f32 0.0, %v4666
        %4668 = vdwg.mxu0
        %v4669 = vadd.f32 %v4464, %v4630
        %v4670 = vadd.f32 %v4465, %v4632
        %v4671 = vadd.f32 %v4466, %v4635
        %v4672 = vadd.f32 %v4467, %v4637
        %v4673 = vadd.f32 %v4468, %v4640
        %v4674 = vadd.f32 %v4469, %v4642
        %v4675 = vadd.f32 %v4470, %v4645
        %v4676 = vadd.f32 %v4471, %v4647
        %v4677 = vadd.f32 %v4472, %v4650
        %v4678 = vadd.f32 %v4473, %v4652
        %v4679 = vadd.f32 %v4474, %v4655
        %v4680 = vadd.f32 %v4475, %v4657
        %v4681 = vadd.f32 %v4476, %v4660
        %v4682 = vadd.f32 %v4477, %v4662
        %v4683 = vadd.f32 %v4478, %v4665
        %v4684 = vadd.f32 %v4479, %v4667
        %s4685 = scalar_lea.vmem [#allocation2], 120
        %v4686 = vld [vmem:[%s4685] sm:$0xf]
        %v4687 = vld [vmem:[%s4685 + $0x4] sm:$0xf]
        %v4688 = vld [vmem:[%s4685 + $0xc] sm:$0xf]
        %v4689 = vld [vmem:[%s4685 + $0x10] sm:$0xf]
        %v4690 = vld [vmem:[%s4685 + $0x18] sm:$0xf]
        %v4691 = vld [vmem:[%s4685 + $0x1c] sm:$0xf]
        %v4692 = vld [vmem:[%s4685 + $0x24] sm:$0xf]
        %v4693 = vld [vmem:[%s4685 + $0x28] sm:$0xf]
        %v4694 = vld [vmem:[%s4685 + $0x30] sm:$0xf]
        %v4695 = vld [vmem:[%s4685 + $0x34] sm:$0xf]
        %v4696 = vld [vmem:[%s4685 + $0x3c] sm:$0xf]
        %v4697 = vld [vmem:[%s4685 + $0x40] sm:$0xf]
        %v4698 = vld [vmem:[%s4685 + $0x48] sm:$0xf]
        %v4699 = vld [vmem:[%s4685 + $0x4c] sm:$0xf]
        %v4700 = vld [vmem:[%s4685 + $0x54] sm:$0xf]
        %v4701 = vld [vmem:[%s4685 + $0x58] sm:$0xf]
        %v4702 = vld [vmem:[%s2420] sm:$0xf]
        %v4719 = vunpack.c.l.b16 %v4686
        %v4720 = vunpack.c.l.b16 %v4687
        %v4721 = vunpack.c.l.b16 %v4688
        %v4722 = vunpack.c.l.b16 %v4689
        %v4723 = vunpack.c.l.b16 %v4690
        %v4724 = vunpack.c.l.b16 %v4691
        %v4725 = vunpack.c.l.b16 %v4692
        %v4726 = vunpack.c.l.b16 %v4693
        %v4727 = vunpack.c.l.b16 %v4694
        %v4728 = vunpack.c.l.b16 %v4695
        %v4729 = vunpack.c.l.b16 %v4696
        %v4730 = vunpack.c.l.b16 %v4697
        %v4731 = vunpack.c.l.b16 %v4698
        %v4732 = vunpack.c.l.b16 %v4699
        %v4733 = vunpack.c.l.b16 %v4700
        %v4734 = vunpack.c.l.b16 %v4701
        %v4735 = vpack.c.b16 %v4720, %v4719
        %v4736 = vpack.c.b16 %v4722, %v4721
        %v4737 = vpack.c.b16 %v4724, %v4723
        %v4738 = vpack.c.b16 %v4726, %v4725
        %v4739 = vpack.c.b16 %v4728, %v4727
        %v4740 = vpack.c.b16 %v4730, %v4729
        %v4741 = vpack.c.b16 %v4732, %v4731
        %v4742 = vpack.c.b16 %v4734, %v4733
        %v4744 = vsel %vm1318, %v4735, 0
        %v4747 = vsel %vm1318, %v4736, 0
        %v4750 = vsel %vm1318, %v4737, 0
        %v4753 = vsel %vm1318, %v4738, 0
        %v4756 = vsel %vm1318, %v4739, 0
        %v4759 = vsel %vm1318, %v4740, 0
        %v4762 = vsel %vm1318, %v4741, 0
        %v4765 = vsel %vm1318, %v4742, 0
        %v4768 = vsel %vm1343, %v4702, 0
        %4770 = vmatpush.bf16.msra.mxu0 0
        %4771 = vmatpush.bf16.msra.mxu0 0
        %4772 = vmatpush.bf16.msra.mxu0 0
        %4773 = vmatpush.bf16.msra.mxu0 0
        %4774 = vmatpush.bf16.msra.mxu0 0
        %4775 = vmatpush.bf16.msra.mxu0 0
        %4776 = vmatpush.bf16.msra.mxu0 0
        %4777 = vmatpush.bf16.msra.mxu0 %v4768
        %4778 = vmatmul.bf16.gmra.mxu0 %v4744
        %v4779 = vpop.f32.mrf.mxu0
        %v4780 = vadd.f32 0.0, %v4779
        %v4781 = vpop.f32.mrf.mxu0
        %v4782 = vadd.f32 0.0, %v4781
        %4783 = vmatmul.bf16.gmra.mxu0 %v4747
        %v4784 = vpop.f32.mrf.mxu0
        %v4785 = vadd.f32 0.0, %v4784
        %v4786 = vpop.f32.mrf.mxu0
        %v4787 = vadd.f32 0.0, %v4786
        %4788 = vmatmul.bf16.gmra.mxu0 %v4750
        %v4789 = vpop.f32.mrf.mxu0
        %v4790 = vadd.f32 0.0, %v4789
        %v4791 = vpop.f32.mrf.mxu0
        %v4792 = vadd.f32 0.0, %v4791
        %4793 = vmatmul.bf16.gmra.mxu0 %v4753
        %v4794 = vpop.f32.mrf.mxu0
        %v4795 = vadd.f32 0.0, %v4794
        %v4796 = vpop.f32.mrf.mxu0
        %v4797 = vadd.f32 0.0, %v4796
        %4798 = vmatmul.bf16.gmra.mxu0 %v4756
        %v4799 = vpop.f32.mrf.mxu0
        %v4800 = vadd.f32 0.0, %v4799
        %v4801 = vpop.f32.mrf.mxu0
        %v4802 = vadd.f32 0.0, %v4801
        %4803 = vmatmul.bf16.gmra.mxu0 %v4759
        %v4804 = vpop.f32.mrf.mxu0
        %v4805 = vadd.f32 0.0, %v4804
        %v4806 = vpop.f32.mrf.mxu0
        %v4807 = vadd.f32 0.0, %v4806
        %4808 = vmatmul.bf16.gmra.mxu0 %v4762
        %v4809 = vpop.f32.mrf.mxu0
        %v4810 = vadd.f32 0.0, %v4809
        %v4811 = vpop.f32.mrf.mxu0
        %v4812 = vadd.f32 0.0, %v4811
        %4813 = vmatmul.bf16.gmra.mxu0 %v4765
        %v4814 = vpop.f32.mrf.mxu0
        %v4815 = vadd.f32 0.0, %v4814
        %v4816 = vpop.f32.mrf.mxu0
        %v4817 = vadd.f32 0.0, %v4816
        %4818 = vdwg.mxu0
        %v4819 = vadd.f32 %v4669, %v4780
        %v4820 = vadd.f32 %v4670, %v4782
        %v4821 = vadd.f32 %v4671, %v4785
        %v4822 = vadd.f32 %v4672, %v4787
        %v4823 = vadd.f32 %v4673, %v4790
        %v4824 = vadd.f32 %v4674, %v4792
        %v4825 = vadd.f32 %v4675, %v4795
        %v4826 = vadd.f32 %v4676, %v4797
        %v4827 = vadd.f32 %v4677, %v4800
        %v4828 = vadd.f32 %v4678, %v4802
        %v4829 = vadd.f32 %v4679, %v4805
        %v4830 = vadd.f32 %v4680, %v4807
        %v4831 = vadd.f32 %v4681, %v4810
        %v4832 = vadd.f32 %v4682, %v4812
        %v4833 = vadd.f32 %v4683, %v4815
        %v4834 = vadd.f32 %v4684, %v4817
        %v4835 = vld [vmem:[%s4685] sm:$0xf]
        %v4836 = vld [vmem:[%s4685 + $0x4] sm:$0xf]
        %v4837 = vld [vmem:[%s4685 + $0x8] sm:$0x1]
        %v4838 = vld [vmem:[%s4685 + $0xc] sm:$0xf]
        %v4839 = vld [vmem:[%s4685 + $0x10] sm:$0xf]
        %v4840 = vld [vmem:[%s4685 + $0x14] sm:$0x1]
        %v4841 = vld [vmem:[%s4685 + $0x18] sm:$0xf]
        %v4842 = vld [vmem:[%s4685 + $0x1c] sm:$0xf]
        %v4843 = vld [vmem:[%s4685 + $0x20] sm:$0x1]
        %v4844 = vld [vmem:[%s4685 + $0x24] sm:$0xf]
        %v4845 = vld [vmem:[%s4685 + $0x28] sm:$0xf]
        %v4846 = vld [vmem:[%s4685 + $0x2c] sm:$0x1]
        %v4847 = vld [vmem:[%s4685 + $0x30] sm:$0xf]
        %v4848 = vld [vmem:[%s4685 + $0x34] sm:$0xf]
        %v4849 = vld [vmem:[%s4685 + $0x38] sm:$0x1]
        %v4850 = vld [vmem:[%s4685 + $0x3c] sm:$0xf]
        %v4851 = vld [vmem:[%s4685 + $0x40] sm:$0xf]
        %v4852 = vld [vmem:[%s4685 + $0x44] sm:$0x1]
        %v4853 = vld [vmem:[%s4685 + $0x48] sm:$0xf]
        %v4854 = vld [vmem:[%s4685 + $0x4c] sm:$0xf]
        %v4855 = vld [vmem:[%s4685 + $0x50] sm:$0x1]
        %v4856 = vld [vmem:[%s4685 + $0x54] sm:$0xf]
        %v4857 = vld [vmem:[%s4685 + $0x58] sm:$0xf]
        %v4858 = vld [vmem:[%s4685 + $0x5c] sm:$0x1]
        %v4860 = vshrl.u32 %v4835, 16
        %v4862 = vrot.slane %v4860, 4
        %v4863 = vshll.u32 %v4835, 16
        %v4865 = vrot.slane %v4863, 5
        %v4866 = vor.u32 %v4862, %v4865
        %v4867 = vrot.slane %v4866, 4
        %v4869 = vshll.u32 %v4836, 16
        %v4871 = vrot.slane %v4869, 5
        %v4872 = vsel %vm1099, %v4867, %v4871
        %v4873 = vshrl.u32 %v4836, 16
        %v4875 = vrot.slane %v4873, 4
        %v4876 = vor.u32 %v4875, %v4871
        %v4877 = vrot.slane %v4876, 4
        %v4879 = vshll.u32 %v4837, 16
        %v4881 = vrot.slane %v4879, 5
        %v4882 = vsel %vm1099, %v4877, %v4881
        %v4884 = vshrl.u32 %v4838, 16
        %v4886 = vrot.slane %v4884, 4
        %v4887 = vshll.u32 %v4838, 16
        %v4889 = vrot.slane %v4887, 5
        %v4890 = vor.u32 %v4886, %v4889
        %v4891 = vrot.slane %v4890, 4
        %v4893 = vshll.u32 %v4839, 16
        %v4895 = vrot.slane %v4893, 5
        %v4896 = vsel %vm1099, %v4891, %v4895
        %v4897 = vshrl.u32 %v4839, 16
        %v4899 = vrot.slane %v4897, 4
        %v4900 = vor.u32 %v4899, %v4895
        %v4901 = vrot.slane %v4900, 4
        %v4903 = vshll.u32 %v4840, 16
        %v4905 = vrot.slane %v4903, 5
        %v4906 = vsel %vm1099, %v4901, %v4905
        %v4908 = vshrl.u32 %v4841, 16
        %v4910 = vrot.slane %v4908, 4
        %v4911 = vshll.u32 %v4841, 16
        %v4913 = vrot.slane %v4911, 5
        %v4914 = vor.u32 %v4910, %v4913
        %v4915 = vrot.slane %v4914, 4
        %v4917 = vshll.u32 %v4842, 16
        %v4919 = vrot.slane %v4917, 5
        %v4920 = vsel %vm1099, %v4915, %v4919
        %v4921 = vshrl.u32 %v4842, 16
        %v4923 = vrot.slane %v4921, 4
        %v4924 = vor.u32 %v4923, %v4919
        %v4925 = vrot.slane %v4924, 4
        %v4927 = vshll.u32 %v4843, 16
        %v4929 = vrot.slane %v4927, 5
        %v4930 = vsel %vm1099, %v4925, %v4929
        %v4932 = vshrl.u32 %v4844, 16
        %v4934 = vrot.slane %v4932, 4
        %v4935 = vshll.u32 %v4844, 16
        %v4937 = vrot.slane %v4935, 5
        %v4938 = vor.u32 %v4934, %v4937
        %v4939 = vrot.slane %v4938, 4
        %v4941 = vshll.u32 %v4845, 16
        %v4943 = vrot.slane %v4941, 5
        %v4944 = vsel %vm1099, %v4939, %v4943
        %v4945 = vshrl.u32 %v4845, 16
        %v4947 = vrot.slane %v4945, 4
        %v4948 = vor.u32 %v4947, %v4943
        %v4949 = vrot.slane %v4948, 4
        %v4951 = vshll.u32 %v4846, 16
        %v4953 = vrot.slane %v4951, 5
        %v4954 = vsel %vm1099, %v4949, %v4953
        %v4956 = vshrl.u32 %v4847, 16
        %v4958 = vrot.slane %v4956, 4
        %v4959 = vshll.u32 %v4847, 16
        %v4961 = vrot.slane %v4959, 5
        %v4962 = vor.u32 %v4958, %v4961
        %v4963 = vrot.slane %v4962, 4
        %v4965 = vshll.u32 %v4848, 16
        %v4967 = vrot.slane %v4965, 5
        %v4968 = vsel %vm1099, %v4963, %v4967
        %v4969 = vshrl.u32 %v4848, 16
        %v4971 = vrot.slane %v4969, 4
        %v4972 = vor.u32 %v4971, %v4967
        %v4973 = vrot.slane %v4972, 4
        %v4975 = vshll.u32 %v4849, 16
        %v4977 = vrot.slane %v4975, 5
        %v4978 = vsel %vm1099, %v4973, %v4977
        %v4980 = vshrl.u32 %v4850, 16
        %v4982 = vrot.slane %v4980, 4
        %v4983 = vshll.u32 %v4850, 16
        %v4985 = vrot.slane %v4983, 5
        %v4986 = vor.u32 %v4982, %v4985
        %v4987 = vrot.slane %v4986, 4
        %v4989 = vshll.u32 %v4851, 16
        %v4991 = vrot.slane %v4989, 5
        %v4992 = vsel %vm1099, %v4987, %v4991
        %v4993 = vshrl.u32 %v4851, 16
        %v4995 = vrot.slane %v4993, 4
        %v4996 = vor.u32 %v4995, %v4991
        %v4997 = vrot.slane %v4996, 4
        %v4999 = vshll.u32 %v4852, 16
        %v5001 = vrot.slane %v4999, 5
        %v5002 = vsel %vm1099, %v4997, %v5001
        %v5004 = vshrl.u32 %v4853, 16
        %v5006 = vrot.slane %v5004, 4
        %v5007 = vshll.u32 %v4853, 16
        %v5009 = vrot.slane %v5007, 5
        %v5010 = vor.u32 %v5006, %v5009
        %v5011 = vrot.slane %v5010, 4
        %v5013 = vshll.u32 %v4854, 16
        %v5015 = vrot.slane %v5013, 5
        %v5016 = vsel %vm1099, %v5011, %v5015
        %v5017 = vshrl.u32 %v4854, 16
        %v5019 = vrot.slane %v5017, 4
        %v5020 = vor.u32 %v5019, %v5015
        %v5021 = vrot.slane %v5020, 4
        %v5023 = vshll.u32 %v4855, 16
        %v5025 = vrot.slane %v5023, 5
        %v5026 = vsel %vm1099, %v5021, %v5025
        %v5028 = vshrl.u32 %v4856, 16
        %v5030 = vrot.slane %v5028, 4
        %v5031 = vshll.u32 %v4856, 16
        %v5033 = vrot.slane %v5031, 5
        %v5034 = vor.u32 %v5030, %v5033
        %v5035 = vrot.slane %v5034, 4
        %v5037 = vshll.u32 %v4857, 16
        %v5039 = vrot.slane %v5037, 5
        %v5040 = vsel %vm1099, %v5035, %v5039
        %v5041 = vshrl.u32 %v4857, 16
        %v5043 = vrot.slane %v5041, 4
        %v5044 = vor.u32 %v5043, %v5039
        %v5045 = vrot.slane %v5044, 4
        %v5047 = vshll.u32 %v4858, 16
        %v5049 = vrot.slane %v5047, 5
        %v5050 = vsel %vm1099, %v5045, %v5049
        %v5051 = vld [vmem:[%s2770] sm:$0xf]
        %v5052 = vunpack.c.l.b16 %v4872
        %v5053 = vunpack.c.l.b16 %v4882
        %v5054 = vunpack.c.l.b16 %v4896
        %v5055 = vunpack.c.l.b16 %v4906
        %v5056 = vunpack.c.l.b16 %v4920
        %v5057 = vunpack.c.l.b16 %v4930
        %v5058 = vunpack.c.l.b16 %v4944
        %v5059 = vunpack.c.l.b16 %v4954
        %v5060 = vunpack.c.l.b16 %v4968
        %v5061 = vunpack.c.l.b16 %v4978
        %v5062 = vunpack.c.l.b16 %v4992
        %v5063 = vunpack.c.l.b16 %v5002
        %v5064 = vunpack.c.l.b16 %v5016
        %v5065 = vunpack.c.l.b16 %v5026
        %v5066 = vunpack.c.l.b16 %v5040
        %v5067 = vunpack.c.l.b16 %v5050
        %v5068 = vpack.c.b16 %v5053, %v5052
        %v5069 = vpack.c.b16 %v5055, %v5054
        %v5070 = vpack.c.b16 %v5057, %v5056
        %v5071 = vpack.c.b16 %v5059, %v5058
        %v5072 = vpack.c.b16 %v5061, %v5060
        %v5073 = vpack.c.b16 %v5063, %v5062
        %v5074 = vpack.c.b16 %v5065, %v5064
        %v5075 = vpack.c.b16 %v5067, %v5066
        %v5077 = vsel %vm1318, %v5068, 0
        %v5080 = vsel %vm1318, %v5069, 0
        %v5083 = vsel %vm1318, %v5070, 0
        %v5086 = vsel %vm1318, %v5071, 0
        %v5089 = vsel %vm1318, %v5072, 0
        %v5092 = vsel %vm1318, %v5073, 0
        %v5095 = vsel %vm1318, %v5074, 0
        %v5098 = vsel %vm1318, %v5075, 0
        %v5101 = vsel %vm1343, %v5051, 0
        %5103 = vmatpush.bf16.msra.mxu0 0
        %5104 = vmatpush.bf16.msra.mxu0 0
        %5105 = vmatpush.bf16.msra.mxu0 0
        %5106 = vmatpush.bf16.msra.mxu0 0
        %5107 = vmatpush.bf16.msra.mxu0 0
        %5108 = vmatpush.bf16.msra.mxu0 0
        %5109 = vmatpush.bf16.msra.mxu0 0
        %5110 = vmatpush.bf16.msra.mxu0 %v5101
        %5111 = vmatmul.bf16.gmra.mxu0 %v5077
        %v5112 = vpop.f32.mrf.mxu0
        %v5113 = vadd.f32 0.0, %v5112
        %v5114 = vpop.f32.mrf.mxu0
        %v5115 = vadd.f32 0.0, %v5114
        %5116 = vmatmul.bf16.gmra.mxu0 %v5080
        %v5117 = vpop.f32.mrf.mxu0
        %v5118 = vadd.f32 0.0, %v5117
        %v5119 = vpop.f32.mrf.mxu0
        %v5120 = vadd.f32 0.0, %v5119
        %5121 = vmatmul.bf16.gmra.mxu0 %v5083
        %v5122 = vpop.f32.mrf.mxu0
        %v5123 = vadd.f32 0.0, %v5122
        %v5124 = vpop.f32.mrf.mxu0
        %v5125 = vadd.f32 0.0, %v5124
        %5126 = vmatmul.bf16.gmra.mxu0 %v5086
        %v5127 = vpop.f32.mrf.mxu0
        %v5128 = vadd.f32 0.0, %v5127
        %v5129 = vpop.f32.mrf.mxu0
        %v5130 = vadd.f32 0.0, %v5129
        %5131 = vmatmul.bf16.gmra.mxu0 %v5089
        %v5132 = vpop.f32.mrf.mxu0
        %v5133 = vadd.f32 0.0, %v5132
        %v5134 = vpop.f32.mrf.mxu0
        %v5135 = vadd.f32 0.0, %v5134
        %5136 = vmatmul.bf16.gmra.mxu0 %v5092
        %v5137 = vpop.f32.mrf.mxu0
        %v5138 = vadd.f32 0.0, %v5137
        %v5139 = vpop.f32.mrf.mxu0
        %v5140 = vadd.f32 0.0, %v5139
        %5141 = vmatmul.bf16.gmra.mxu0 %v5095
        %v5142 = vpop.f32.mrf.mxu0
        %v5143 = vadd.f32 0.0, %v5142
        %v5144 = vpop.f32.mrf.mxu0
        %v5145 = vadd.f32 0.0, %v5144
        %5146 = vmatmul.bf16.gmra.mxu0 %v5098
        %v5147 = vpop.f32.mrf.mxu0
        %v5148 = vadd.f32 0.0, %v5147
        %v5149 = vpop.f32.mrf.mxu0
        %v5150 = vadd.f32 0.0, %v5149
        %5151 = vdwg.mxu0
        %v5152 = vadd.f32 %v4819, %v5113
        %v5153 = vadd.f32 %v4820, %v5115
        %v5154 = vadd.f32 %v4821, %v5118
        %v5155 = vadd.f32 %v4822, %v5120
        %v5156 = vadd.f32 %v4823, %v5123
        %v5157 = vadd.f32 %v4824, %v5125
        %v5158 = vadd.f32 %v4825, %v5128
        %v5159 = vadd.f32 %v4826, %v5130
        %v5160 = vadd.f32 %v4827, %v5133
        %v5161 = vadd.f32 %v4828, %v5135
        %v5162 = vadd.f32 %v4829, %v5138
        %v5163 = vadd.f32 %v4830, %v5140
        %v5164 = vadd.f32 %v4831, %v5143
        %v5165 = vadd.f32 %v4832, %v5145
        %v5166 = vadd.f32 %v4833, %v5148
        %v5167 = vadd.f32 %v4834, %v5150
        %v5168 = vld [vmem:[%s4685] sm:$0xe]
        %v5169 = vld [vmem:[%s4685 + $0xc] sm:$0xe]
        %v5170 = vld [vmem:[%s4685 + $0x18] sm:$0xe]
        %v5171 = vld [vmem:[%s4685 + $0x24] sm:$0xe]
        %v5172 = vld [vmem:[%s4685 + $0x30] sm:$0xe]
        %v5173 = vld [vmem:[%s4685 + $0x3c] sm:$0xe]
        %v5174 = vld [vmem:[%s4685 + $0x48] sm:$0xe]
        %v5175 = vld [vmem:[%s4685 + $0x54] sm:$0xe]
        %v5200 = vrot.slane %v5168, 5
        %v5201 = vrot.slane %v5200, 4
        %v5202 = vrot.slane %v4836, 5
        %v5203 = vsel %vm1538, %v5201, %v5202
        %v5204 = vrot.slane %v5202, 4
        %v5205 = vrot.slane %v4837, 5
        %v5206 = vsel %vm1538, %v5204, %v5205
        %v5207 = vrot.slane %v5169, 5
        %v5208 = vrot.slane %v5207, 4
        %v5209 = vrot.slane %v4839, 5
        %v5210 = vsel %vm1538, %v5208, %v5209
        %v5211 = vrot.slane %v5209, 4
        %v5212 = vrot.slane %v4840, 5
        %v5213 = vsel %vm1538, %v5211, %v5212
        %v5214 = vrot.slane %v5170, 5
        %v5215 = vrot.slane %v5214, 4
        %v5216 = vrot.slane %v4842, 5
        %v5217 = vsel %vm1538, %v5215, %v5216
        %v5218 = vrot.slane %v5216, 4
        %v5219 = vrot.slane %v4843, 5
        %v5220 = vsel %vm1538, %v5218, %v5219
        %v5221 = vrot.slane %v5171, 5
        %v5222 = vrot.slane %v5221, 4
        %v5223 = vrot.slane %v4845, 5
        %v5224 = vsel %vm1538, %v5222, %v5223
        %v5225 = vrot.slane %v5223, 4
        %v5226 = vrot.slane %v4846, 5
        %v5227 = vsel %vm1538, %v5225, %v5226
        %v5228 = vrot.slane %v5172, 5
        %v5229 = vrot.slane %v5228, 4
        %v5230 = vrot.slane %v4848, 5
        %v5231 = vsel %vm1538, %v5229, %v5230
        %v5232 = vrot.slane %v5230, 4
        %v5233 = vrot.slane %v4849, 5
        %v5234 = vsel %vm1538, %v5232, %v5233
        %v5235 = vrot.slane %v5173, 5
        %v5236 = vrot.slane %v5235, 4
        %v5237 = vrot.slane %v4851, 5
        %v5238 = vsel %vm1538, %v5236, %v5237
        %v5239 = vrot.slane %v5237, 4
        %v5240 = vrot.slane %v4852, 5
        %v5241 = vsel %vm1538, %v5239, %v5240
        %v5242 = vrot.slane %v5174, 5
        %v5243 = vrot.slane %v5242, 4
        %v5244 = vrot.slane %v4854, 5
        %v5245 = vsel %vm1538, %v5243, %v5244
        %v5246 = vrot.slane %v5244, 4
        %v5247 = vrot.slane %v4855, 5
        %v5248 = vsel %vm1538, %v5246, %v5247
        %v5249 = vrot.slane %v5175, 5
        %v5250 = vrot.slane %v5249, 4
        %v5251 = vrot.slane %v4857, 5
        %v5252 = vsel %vm1538, %v5250, %v5251
        %v5253 = vrot.slane %v5251, 4
        %v5254 = vrot.slane %v4858, 5
        %v5255 = vsel %vm1538, %v5253, %v5254
        %v5256 = vld [vmem:[%s2976] sm:$0xf]
        %v5257 = vunpack.c.l.b16 %v5203
        %v5258 = vunpack.c.l.b16 %v5206
        %v5259 = vunpack.c.l.b16 %v5210
        %v5260 = vunpack.c.l.b16 %v5213
        %v5261 = vunpack.c.l.b16 %v5217
        %v5262 = vunpack.c.l.b16 %v5220
        %v5263 = vunpack.c.l.b16 %v5224
        %v5264 = vunpack.c.l.b16 %v5227
        %v5265 = vunpack.c.l.b16 %v5231
        %v5266 = vunpack.c.l.b16 %v5234
        %v5267 = vunpack.c.l.b16 %v5238
        %v5268 = vunpack.c.l.b16 %v5241
        %v5269 = vunpack.c.l.b16 %v5245
        %v5270 = vunpack.c.l.b16 %v5248
        %v5271 = vunpack.c.l.b16 %v5252
        %v5272 = vunpack.c.l.b16 %v5255
        %v5273 = vpack.c.b16 %v5258, %v5257
        %v5274 = vpack.c.b16 %v5260, %v5259
        %v5275 = vpack.c.b16 %v5262, %v5261
        %v5276 = vpack.c.b16 %v5264, %v5263
        %v5277 = vpack.c.b16 %v5266, %v5265
        %v5278 = vpack.c.b16 %v5268, %v5267
        %v5279 = vpack.c.b16 %v5270, %v5269
        %v5280 = vpack.c.b16 %v5272, %v5271
        %v5282 = vsel %vm1318, %v5273, 0
        %v5285 = vsel %vm1318, %v5274, 0
        %v5288 = vsel %vm1318, %v5275, 0
        %v5291 = vsel %vm1318, %v5276, 0
        %v5294 = vsel %vm1318, %v5277, 0
        %v5297 = vsel %vm1318, %v5278, 0
        %v5300 = vsel %vm1318, %v5279, 0
        %v5303 = vsel %vm1318, %v5280, 0
        %v5306 = vsel %vm1343, %v5256, 0
        %5308 = vmatpush.bf16.msra.mxu0 0
        %5309 = vmatpush.bf16.msra.mxu0 0
        %5310 = vmatpush.bf16.msra.mxu0 0
        %5311 = vmatpush.bf16.msra.mxu0 0
        %5312 = vmatpush.bf16.msra.mxu0 0
        %5313 = vmatpush.bf16.msra.mxu0 0
        %5314 = vmatpush.bf16.msra.mxu0 0
        %5315 = vmatpush.bf16.msra.mxu0 %v5306
        %5316 = vmatmul.bf16.gmra.mxu0 %v5282
        %v5317 = vpop.f32.mrf.mxu0
        %v5318 = vadd.f32 0.0, %v5317
        %v5319 = vpop.f32.mrf.mxu0
        %v5320 = vadd.f32 0.0, %v5319
        %5321 = vmatmul.bf16.gmra.mxu0 %v5285
        %v5322 = vpop.f32.mrf.mxu0
        %v5323 = vadd.f32 0.0, %v5322
        %v5324 = vpop.f32.mrf.mxu0
        %v5325 = vadd.f32 0.0, %v5324
        %5326 = vmatmul.bf16.gmra.mxu0 %v5288
        %v5327 = vpop.f32.mrf.mxu0
        %v5328 = vadd.f32 0.0, %v5327
        %v5329 = vpop.f32.mrf.mxu0
        %v5330 = vadd.f32 0.0, %v5329
        %5331 = vmatmul.bf16.gmra.mxu0 %v5291
        %v5332 = vpop.f32.mrf.mxu0
        %v5333 = vadd.f32 0.0, %v5332
        %v5334 = vpop.f32.mrf.mxu0
        %v5335 = vadd.f32 0.0, %v5334
        %5336 = vmatmul.bf16.gmra.mxu0 %v5294
        %v5337 = vpop.f32.mrf.mxu0
        %v5338 = vadd.f32 0.0, %v5337
        %v5339 = vpop.f32.mrf.mxu0
        %v5340 = vadd.f32 0.0, %v5339
        %5341 = vmatmul.bf16.gmra.mxu0 %v5297
        %v5342 = vpop.f32.mrf.mxu0
        %v5343 = vadd.f32 0.0, %v5342
        %v5344 = vpop.f32.mrf.mxu0
        %v5345 = vadd.f32 0.0, %v5344
        %5346 = vmatmul.bf16.gmra.mxu0 %v5300
        %v5347 = vpop.f32.mrf.mxu0
        %v5348 = vadd.f32 0.0, %v5347
        %v5349 = vpop.f32.mrf.mxu0
        %v5350 = vadd.f32 0.0, %v5349
        %5351 = vmatmul.bf16.gmra.mxu0 %v5303
        %v5352 = vpop.f32.mrf.mxu0
        %v5353 = vadd.f32 0.0, %v5352
        %v5354 = vpop.f32.mrf.mxu0
        %v5355 = vadd.f32 0.0, %v5354
        %5356 = vdwg.mxu0
        %v5357 = vadd.f32 %v5152, %v5318
        %v5358 = vadd.f32 %v5153, %v5320
        %v5359 = vadd.f32 %v5154, %v5323
        %v5360 = vadd.f32 %v5155, %v5325
        %v5361 = vadd.f32 %v5156, %v5328
        %v5362 = vadd.f32 %v5157, %v5330
        %v5363 = vadd.f32 %v5158, %v5333
        %v5364 = vadd.f32 %v5159, %v5335
        %v5365 = vadd.f32 %v5160, %v5338
        %v5366 = vadd.f32 %v5161, %v5340
        %v5367 = vadd.f32 %v5162, %v5343
        %v5368 = vadd.f32 %v5163, %v5345
        %v5369 = vadd.f32 %v5164, %v5348
        %v5370 = vadd.f32 %v5165, %v5350
        %v5371 = vadd.f32 %v5166, %v5353
        %v5372 = vadd.f32 %v5167, %v5355
        %v5373 = vld [vmem:[%s2] sm:$0x1]
        %v5375 = vperm.slane %v5373, 0
        %v5377 = vadd.f32 %v5357, %v5375
        %v5378 = vadd.f32 %v5358, %v5375
        %v5379 = vadd.f32 %v5359, %v5375
        %v5380 = vadd.f32 %v5360, %v5375
        %v5381 = vadd.f32 %v5361, %v5375
        %v5382 = vadd.f32 %v5362, %v5375
        %v5383 = vadd.f32 %v5363, %v5375
        %v5384 = vadd.f32 %v5364, %v5375
        %v5385 = vadd.f32 %v5365, %v5375
        %v5386 = vadd.f32 %v5366, %v5375
        %v5387 = vadd.f32 %v5367, %v5375
        %v5388 = vadd.f32 %v5368, %v5375
        %v5389 = vadd.f32 %v5369, %v5375
        %v5390 = vadd.f32 %v5370, %v5375
        %v5391 = vadd.f32 %v5371, %v5375
        %v5392 = vadd.f32 %v5372, %v5375
        %v5393 = vmax.f32 %v5377, 0.0
        %v5394 = vmax.f32 %v5378, 0.0
        %v5395 = vmax.f32 %v5379, 0.0
        %v5396 = vmax.f32 %v5380, 0.0
        %v5397 = vmax.f32 %v5381, 0.0
        %v5398 = vmax.f32 %v5382, 0.0
        %v5399 = vmax.f32 %v5383, 0.0
        %v5400 = vmax.f32 %v5384, 0.0
        %v5401 = vmax.f32 %v5385, 0.0
        %v5402 = vmax.f32 %v5386, 0.0
        %v5403 = vmax.f32 %v5387, 0.0
        %v5404 = vmax.f32 %v5388, 0.0
        %v5405 = vmax.f32 %v5389, 0.0
        %v5406 = vmax.f32 %v5390, 0.0
        %v5407 = vmax.f32 %v5391, 0.0
        %v5408 = vmax.f32 %v5392, 0.0
        %v5409 = vpack.c.bf16 %v5393, %v5393
        %v5410 = vpack.c.bf16 %v5394, %v5394
        %v5411 = vpack.c.bf16 %v5395, %v5395
        %v5412 = vpack.c.bf16 %v5396, %v5396
        %v5413 = vpack.c.bf16 %v5397, %v5397
        %v5414 = vpack.c.bf16 %v5398, %v5398
        %v5415 = vpack.c.bf16 %v5399, %v5399
        %v5416 = vpack.c.bf16 %v5400, %v5400
        %v5417 = vpack.c.bf16 %v5401, %v5401
        %v5418 = vpack.c.bf16 %v5402, %v5402
        %v5419 = vpack.c.bf16 %v5403, %v5403
        %v5420 = vpack.c.bf16 %v5404, %v5404
        %v5421 = vpack.c.bf16 %v5405, %v5405
        %v5422 = vpack.c.bf16 %v5406, %v5406
        %v5423 = vpack.c.bf16 %v5407, %v5407
        %v5424 = vpack.c.bf16 %v5408, %v5408
        %v5426 = vshrl.u32 %v5409, 16
        %v5428 = vrot.slane %v5426, 7
        %v5429 = vshll.u32 %v5409, 16
        %v5431 = vor.u32 %v5428, %v5429
        %v5432 = vrot.slane %v5428, 4
        %v5434 = vshrl.u32 %v5410, 16
        %v5436 = vrot.slane %v5434, 7
        %v5437 = vshll.u32 %v5410, 16
        %v5439 = vor.u32 %v5436, %v5437
        %v5440 = vsel %vm516, %v5432, %v5439
        %v5441 = vrot.slane %v5436, 4
        %v5443 = vshrl.u32 %v5411, 16
        %v5445 = vrot.slane %v5443, 7
        %v5446 = vshll.u32 %v5411, 16
        %v5448 = vor.u32 %v5445, %v5446
        %v5449 = vrot.slane %v5445, 4
        %v5451 = vshrl.u32 %v5412, 16
        %v5453 = vrot.slane %v5451, 7
        %v5454 = vshll.u32 %v5412, 16
        %v5456 = vor.u32 %v5453, %v5454
        %v5457 = vsel %vm516, %v5449, %v5456
        %v5458 = vrot.slane %v5453, 4
        %v5460 = vshrl.u32 %v5413, 16
        %v5462 = vrot.slane %v5460, 7
        %v5463 = vshll.u32 %v5413, 16
        %v5465 = vor.u32 %v5462, %v5463
        %v5466 = vrot.slane %v5462, 4
        %v5468 = vshrl.u32 %v5414, 16
        %v5470 = vrot.slane %v5468, 7
        %v5471 = vshll.u32 %v5414, 16
        %v5473 = vor.u32 %v5470, %v5471
        %v5474 = vsel %vm516, %v5466, %v5473
        %v5475 = vrot.slane %v5470, 4
        %v5477 = vshrl.u32 %v5415, 16
        %v5479 = vrot.slane %v5477, 7
        %v5480 = vshll.u32 %v5415, 16
        %v5482 = vor.u32 %v5479, %v5480
        %v5483 = vrot.slane %v5479, 4
        %v5485 = vshrl.u32 %v5416, 16
        %v5487 = vrot.slane %v5485, 7
        %v5488 = vshll.u32 %v5416, 16
        %v5490 = vor.u32 %v5487, %v5488
        %v5491 = vsel %vm516, %v5483, %v5490
        %v5492 = vrot.slane %v5487, 4
        %v5494 = vshrl.u32 %v5417, 16
        %v5496 = vrot.slane %v5494, 7
        %v5497 = vshll.u32 %v5417, 16
        %v5499 = vor.u32 %v5496, %v5497
        %v5500 = vrot.slane %v5496, 4
        %v5502 = vshrl.u32 %v5418, 16
        %v5504 = vrot.slane %v5502, 7
        %v5505 = vshll.u32 %v5418, 16
        %v5507 = vor.u32 %v5504, %v5505
        %v5508 = vsel %vm516, %v5500, %v5507
        %v5509 = vrot.slane %v5504, 4
        %v5511 = vshrl.u32 %v5419, 16
        %v5513 = vrot.slane %v5511, 7
        %v5514 = vshll.u32 %v5419, 16
        %v5516 = vor.u32 %v5513, %v5514
        %v5517 = vrot.slane %v5513, 4
        %v5519 = vshrl.u32 %v5420, 16
        %v5521 = vrot.slane %v5519, 7
        %v5522 = vshll.u32 %v5420, 16
        %v5524 = vor.u32 %v5521, %v5522
        %v5525 = vsel %vm516, %v5517, %v5524
        %v5526 = vrot.slane %v5521, 4
        %v5528 = vshrl.u32 %v5421, 16
        %v5530 = vrot.slane %v5528, 7
        %v5531 = vshll.u32 %v5421, 16
        %v5533 = vor.u32 %v5530, %v5531
        %v5534 = vrot.slane %v5530, 4
        %v5536 = vshrl.u32 %v5422, 16
        %v5538 = vrot.slane %v5536, 7
        %v5539 = vshll.u32 %v5422, 16
        %v5541 = vor.u32 %v5538, %v5539
        %v5542 = vsel %vm516, %v5534, %v5541
        %v5543 = vrot.slane %v5538, 4
        %v5545 = vshrl.u32 %v5423, 16
        %v5547 = vrot.slane %v5545, 7
        %v5548 = vshll.u32 %v5423, 16
        %v5550 = vor.u32 %v5547, %v5548
        %v5551 = vrot.slane %v5547, 4
        %v5553 = vshrl.u32 %v5424, 16
        %v5555 = vrot.slane %v5553, 7
        %v5556 = vshll.u32 %v5424, 16
        %v5558 = vor.u32 %v5555, %v5556
        %v5559 = vsel %vm516, %v5551, %v5558
        %v5560 = vrot.slane %v5555, 4
        %s5585 = scalar_lea.vmem [#allocation3], 108
        %v5586 = vld [vmem:[%s5585] sm:$0xf]
        %v5587 = vsel %vm3308, %v5431, %v5586
        %5588 = vst [vmem:[%s5585] sm:$0xf] %v5587
        %5589 = vst [vmem:[%s5585 + $0x4] sm:$0xf] %v5440
        %v5590 = vld [vmem:[%s5585 + $0x8] sm:$0x1]
        %v5591 = vsel %vm373, %v5441, %v5590
        %5592 = vst [vmem:[%s5585 + $0x8] sm:$0x1] %v5591
        %v5593 = vld [vmem:[%s5585 + $0xc] sm:$0xf]
        %v5594 = vsel %vm3308, %v5448, %v5593
        %5595 = vst [vmem:[%s5585 + $0xc] sm:$0xf] %v5594
        %5596 = vst [vmem:[%s5585 + $0x10] sm:$0xf] %v5457
        %v5597 = vld [vmem:[%s5585 + $0x14] sm:$0x1]
        %v5598 = vsel %vm373, %v5458, %v5597
        %5599 = vst [vmem:[%s5585 + $0x14] sm:$0x1] %v5598
        %v5600 = vld [vmem:[%s5585 + $0x18] sm:$0xf]
        %v5601 = vsel %vm3308, %v5465, %v5600
        %5602 = vst [vmem:[%s5585 + $0x18] sm:$0xf] %v5601
        %5603 = vst [vmem:[%s5585 + $0x1c] sm:$0xf] %v5474
        %v5604 = vld [vmem:[%s5585 + $0x20] sm:$0x1]
        %v5605 = vsel %vm373, %v5475, %v5604
        %5606 = vst [vmem:[%s5585 + $0x20] sm:$0x1] %v5605
        %v5607 = vld [vmem:[%s5585 + $0x24] sm:$0xf]
        %v5608 = vsel %vm3308, %v5482, %v5607
        %5609 = vst [vmem:[%s5585 + $0x24] sm:$0xf] %v5608
        %5610 = vst [vmem:[%s5585 + $0x28] sm:$0xf] %v5491
        %v5611 = vld [vmem:[%s5585 + $0x2c] sm:$0x1]
        %v5612 = vsel %vm373, %v5492, %v5611
        %5613 = vst [vmem:[%s5585 + $0x2c] sm:$0x1] %v5612
        %v5614 = vld [vmem:[%s5585 + $0x30] sm:$0xf]
        %v5615 = vsel %vm3308, %v5499, %v5614
        %5616 = vst [vmem:[%s5585 + $0x30] sm:$0xf] %v5615
        %5617 = vst [vmem:[%s5585 + $0x34] sm:$0xf] %v5508
        %v5618 = vld [vmem:[%s5585 + $0x38] sm:$0x1]
        %v5619 = vsel %vm373, %v5509, %v5618
        %5620 = vst [vmem:[%s5585 + $0x38] sm:$0x1] %v5619
        %v5621 = vld [vmem:[%s5585 + $0x3c] sm:$0xf]
        %v5622 = vsel %vm3308, %v5516, %v5621
        %5623 = vst [vmem:[%s5585 + $0x3c] sm:$0xf] %v5622
        %5624 = vst [vmem:[%s5585 + $0x40] sm:$0xf] %v5525
        %v5625 = vld [vmem:[%s5585 + $0x44] sm:$0x1]
        %v5626 = vsel %vm373, %v5526, %v5625
        %5627 = vst [vmem:[%s5585 + $0x44] sm:$0x1] %v5626
        %v5628 = vld [vmem:[%s5585 + $0x48] sm:$0xf]
        %v5629 = vsel %vm3308, %v5533, %v5628
        %5630 = vst [vmem:[%s5585 + $0x48] sm:$0xf] %v5629
        %5631 = vst [vmem:[%s5585 + $0x4c] sm:$0xf] %v5542
        %v5632 = vld [vmem:[%s5585 + $0x50] sm:$0x1]
        %v5633 = vsel %vm373, %v5543, %v5632
        %5634 = vst [vmem:[%s5585 + $0x50] sm:$0x1] %v5633
        %v5635 = vld [vmem:[%s5585 + $0x54] sm:$0xf]
        %v5636 = vsel %vm3308, %v5550, %v5635
        %5637 = vst [vmem:[%s5585 + $0x54] sm:$0xf] %v5636
        %5638 = vst [vmem:[%s5585 + $0x58] sm:$0xf] %v5559
        %v5639 = vld [vmem:[%s5585 + $0x5c] sm:$0x1]
        %v5640 = vsel %vm373, %v5560, %v5639
        %5641 = vst [vmem:[%s5585 + $0x5c] sm:$0x1] %v5640
        %v5642 = vld [vmem:[#allocation3] sm:$0xf]
        %v5643 = vld [vmem:[#allocation3 + $0x4] sm:$0xf]
        %v5644 = vld [vmem:[#allocation3 + $0xc] sm:$0xf]
        %v5645 = vld [vmem:[#allocation3 + $0x10] sm:$0xf]
        %v5646 = vld [vmem:[#allocation3 + $0x18] sm:$0xf]
        %v5647 = vld [vmem:[#allocation3 + $0x1c] sm:$0xf]
        %v5648 = vld [vmem:[#allocation3 + $0x24] sm:$0xf]
        %v5649 = vld [vmem:[#allocation3 + $0x28] sm:$0xf]
        %v5650 = vld [vmem:[#allocation3 + $0x30] sm:$0xf]
        %v5651 = vld [vmem:[#allocation3 + $0x34] sm:$0xf]
        %v5652 = vld [vmem:[#allocation3 + $0x3c] sm:$0xf]
        %v5653 = vld [vmem:[#allocation3 + $0x40] sm:$0xf]
        %v5654 = vld [vmem:[#allocation3 + $0x48] sm:$0xf]
        %v5655 = vld [vmem:[#allocation3 + $0x4c] sm:$0xf]
        %v5656 = vld [vmem:[#allocation3 + $0x54] sm:$0xf]
        %v5657 = vld [vmem:[#allocation3 + $0x58] sm:$0xf]
        %v5658 = vld [vmem:[#allocation4] sm:$0xf]
        %v5659 = vld [vmem:[#allocation4 + $0x4] sm:$0xf]
        %v5660 = vld [vmem:[#allocation4 + $0x8] sm:$0xf]
        %v5661 = vld [vmem:[#allocation4 + $0xc] sm:$0xf]
        %v5662 = vld [vmem:[#allocation4 + $0x10] sm:$0xf]
        %v5663 = vld [vmem:[#allocation4 + $0x14] sm:$0xf]
        %v5664 = vld [vmem:[#allocation4 + $0x18] sm:$0xf]
        %v5665 = vld [vmem:[#allocation4 + $0x1c] sm:$0xf]
        %v5666 = vld [vmem:[#allocation4 + $0x20] sm:$0xf]
        %v5667 = vld [vmem:[#allocation4 + $0x24] sm:$0xf]
        %v5668 = vld [vmem:[#allocation4 + $0x28] sm:$0xf]
        %v5669 = vld [vmem:[#allocation4 + $0x2c] sm:$0xf]
        %v5670 = vld [vmem:[#allocation4 + $0x30] sm:$0xf]
        %v5671 = vld [vmem:[#allocation4 + $0x34] sm:$0xf]
        %v5672 = vld [vmem:[#allocation4 + $0x38] sm:$0xf]
        %v5673 = vld [vmem:[#allocation4 + $0x3c] sm:$0xf]
        %v5674 = vld [vmem:[#allocation3 + $0x8] sm:$0x1]
        %v5675 = vld [vmem:[#allocation3 + $0x14] sm:$0x1]
        %v5676 = vld [vmem:[#allocation3 + $0x20] sm:$0x1]
        %v5677 = vld [vmem:[#allocation3 + $0x2c] sm:$0x1]
        %v5678 = vld [vmem:[#allocation3 + $0x38] sm:$0x1]
        %v5679 = vld [vmem:[#allocation3 + $0x44] sm:$0x1]
        %v5680 = vld [vmem:[#allocation3 + $0x50] sm:$0x1]
        %v5681 = vld [vmem:[#allocation3 + $0x5c] sm:$0x1]
        %v5683 = vshrl.u32 %v5642, 16
        %v5685 = vrot.slane %v5683, 4
        %v5686 = vshll.u32 %v5642, 16
        %v5688 = vrot.slane %v5686, 5
        %v5689 = vor.u32 %v5685, %v5688
        %v5690 = vrot.slane %v5689, 4
        %v5692 = vshll.u32 %v5643, 16
        %v5694 = vrot.slane %v5692, 5
        %v5695 = vsel %vm1099, %v5690, %v5694
        %v5696 = vshrl.u32 %v5643, 16
        %v5698 = vrot.slane %v5696, 4
        %v5699 = vor.u32 %v5698, %v5694
        %v5700 = vrot.slane %v5699, 4
        %v5702 = vshll.u32 %v5674, 16
        %v5704 = vrot.slane %v5702, 5
        %v5705 = vsel %vm1099, %v5700, %v5704
        %v5707 = vshrl.u32 %v5644, 16
        %v5709 = vrot.slane %v5707, 4
        %v5710 = vshll.u32 %v5644, 16
        %v5712 = vrot.slane %v5710, 5
        %v5713 = vor.u32 %v5709, %v5712
        %v5714 = vrot.slane %v5713, 4
        %v5716 = vshll.u32 %v5645, 16
        %v5718 = vrot.slane %v5716, 5
        %v5719 = vsel %vm1099, %v5714, %v5718
        %v5720 = vshrl.u32 %v5645, 16
        %v5722 = vrot.slane %v5720, 4
        %v5723 = vor.u32 %v5722, %v5718
        %v5724 = vrot.slane %v5723, 4
        %v5726 = vshll.u32 %v5675, 16
        %v5728 = vrot.slane %v5726, 5
        %v5729 = vsel %vm1099, %v5724, %v5728
        %v5731 = vshrl.u32 %v5646, 16
        %v5733 = vrot.slane %v5731, 4
        %v5734 = vshll.u32 %v5646, 16
        %v5736 = vrot.slane %v5734, 5
        %v5737 = vor.u32 %v5733, %v5736
        %v5738 = vrot.slane %v5737, 4
        %v5740 = vshll.u32 %v5647, 16
        %v5742 = vrot.slane %v5740, 5
        %v5743 = vsel %vm1099, %v5738, %v5742
        %v5744 = vshrl.u32 %v5647, 16
        %v5746 = vrot.slane %v5744, 4
        %v5747 = vor.u32 %v5746, %v5742
        %v5748 = vrot.slane %v5747, 4
        %v5750 = vshll.u32 %v5676, 16
        %v5752 = vrot.slane %v5750, 5
        %v5753 = vsel %vm1099, %v5748, %v5752
        %v5755 = vshrl.u32 %v5648, 16
        %v5757 = vrot.slane %v5755, 4
        %v5758 = vshll.u32 %v5648, 16
        %v5760 = vrot.slane %v5758, 5
        %v5761 = vor.u32 %v5757, %v5760
        %v5762 = vrot.slane %v5761, 4
        %v5764 = vshll.u32 %v5649, 16
        %v5766 = vrot.slane %v5764, 5
        %v5767 = vsel %vm1099, %v5762, %v5766
        %v5768 = vshrl.u32 %v5649, 16
        %v5770 = vrot.slane %v5768, 4
        %v5771 = vor.u32 %v5770, %v5766
        %v5772 = vrot.slane %v5771, 4
        %v5774 = vshll.u32 %v5677, 16
        %v5776 = vrot.slane %v5774, 5
        %v5777 = vsel %vm1099, %v5772, %v5776
        %v5779 = vshrl.u32 %v5650, 16
        %v5781 = vrot.slane %v5779, 4
        %v5782 = vshll.u32 %v5650, 16
        %v5784 = vrot.slane %v5782, 5
        %v5785 = vor.u32 %v5781, %v5784
        %v5786 = vrot.slane %v5785, 4
        %v5788 = vshll.u32 %v5651, 16
        %v5790 = vrot.slane %v5788, 5
        %v5791 = vsel %vm1099, %v5786, %v5790
        %v5792 = vshrl.u32 %v5651, 16
        %v5794 = vrot.slane %v5792, 4
        %v5795 = vor.u32 %v5794, %v5790
        %v5796 = vrot.slane %v5795, 4
        %v5798 = vshll.u32 %v5678, 16
        %v5800 = vrot.slane %v5798, 5
        %v5801 = vsel %vm1099, %v5796, %v5800
        %v5803 = vshrl.u32 %v5652, 16
        %v5805 = vrot.slane %v5803, 4
        %v5806 = vshll.u32 %v5652, 16
        %v5808 = vrot.slane %v5806, 5
        %v5809 = vor.u32 %v5805, %v5808
        %v5810 = vrot.slane %v5809, 4
        %v5812 = vshll.u32 %v5653, 16
        %v5814 = vrot.slane %v5812, 5
        %v5815 = vsel %vm1099, %v5810, %v5814
        %v5816 = vshrl.u32 %v5653, 16
        %v5818 = vrot.slane %v5816, 4
        %v5819 = vor.u32 %v5818, %v5814
        %v5820 = vrot.slane %v5819, 4
        %v5822 = vshll.u32 %v5679, 16
        %v5824 = vrot.slane %v5822, 5
        %v5825 = vsel %vm1099, %v5820, %v5824
        %v5827 = vshrl.u32 %v5654, 16
        %v5829 = vrot.slane %v5827, 4
        %v5830 = vshll.u32 %v5654, 16
        %v5832 = vrot.slane %v5830, 5
        %v5833 = vor.u32 %v5829, %v5832
        %v5834 = vrot.slane %v5833, 4
        %v5836 = vshll.u32 %v5655, 16
        %v5838 = vrot.slane %v5836, 5
        %v5839 = vsel %vm1099, %v5834, %v5838
        %v5840 = vshrl.u32 %v5655, 16
        %v5842 = vrot.slane %v5840, 4
        %v5843 = vor.u32 %v5842, %v5838
        %v5844 = vrot.slane %v5843, 4
        %v5846 = vshll.u32 %v5680, 16
        %v5848 = vrot.slane %v5846, 5
        %v5849 = vsel %vm1099, %v5844, %v5848
        %v5851 = vshrl.u32 %v5656, 16
        %v5853 = vrot.slane %v5851, 4
        %v5854 = vshll.u32 %v5656, 16
        %v5856 = vrot.slane %v5854, 5
        %v5857 = vor.u32 %v5853, %v5856
        %v5858 = vrot.slane %v5857, 4
        %v5860 = vshll.u32 %v5657, 16
        %v5862 = vrot.slane %v5860, 5
        %v5863 = vsel %vm1099, %v5858, %v5862
        %v5864 = vshrl.u32 %v5657, 16
        %v5866 = vrot.slane %v5864, 4
        %v5867 = vor.u32 %v5866, %v5862
        %v5868 = vrot.slane %v5867, 4
        %v5870 = vshll.u32 %v5681, 16
        %v5872 = vrot.slane %v5870, 5
        %v5873 = vsel %vm1099, %v5868, %v5872
        %s5874 = scalar_lea.vmem [#allocation4], 64
        %v5875 = vld [vmem:[%s5874] sm:$0xf]
        %v5876 = vld [vmem:[%s5874 + $0x4] sm:$0xf]
        %v5877 = vld [vmem:[%s5874 + $0x8] sm:$0xf]
        %v5878 = vld [vmem:[%s5874 + $0xc] sm:$0xf]
        %v5879 = vld [vmem:[%s5874 + $0x10] sm:$0xf]
        %v5880 = vld [vmem:[%s5874 + $0x14] sm:$0xf]
        %v5881 = vld [vmem:[%s5874 + $0x18] sm:$0xf]
        %v5882 = vld [vmem:[%s5874 + $0x1c] sm:$0xf]
        %v5883 = vld [vmem:[%s5874 + $0x20] sm:$0xf]
        %v5884 = vld [vmem:[%s5874 + $0x24] sm:$0xf]
        %v5885 = vld [vmem:[%s5874 + $0x28] sm:$0xf]
        %v5886 = vld [vmem:[%s5874 + $0x2c] sm:$0xf]
        %v5887 = vld [vmem:[%s5874 + $0x30] sm:$0xf]
        %v5888 = vld [vmem:[%s5874 + $0x34] sm:$0xf]
        %v5889 = vld [vmem:[%s5874 + $0x38] sm:$0xf]
        %v5890 = vld [vmem:[%s5874 + $0x3c] sm:$0xf]
        %v5891 = vunpack.c.l.b16 %v5695
        %v5892 = vunpack.c.l.b16 %v5705
        %v5893 = vunpack.c.l.b16 %v5719
        %v5894 = vunpack.c.l.b16 %v5729
        %v5895 = vunpack.c.l.b16 %v5743
        %v5896 = vunpack.c.l.b16 %v5753
        %v5897 = vunpack.c.l.b16 %v5767
        %v5898 = vunpack.c.l.b16 %v5777
        %v5899 = vunpack.c.l.b16 %v5791
        %v5900 = vunpack.c.l.b16 %v5801
        %v5901 = vunpack.c.l.b16 %v5815
        %v5902 = vunpack.c.l.b16 %v5825
        %v5903 = vunpack.c.l.b16 %v5839
        %v5904 = vunpack.c.l.b16 %v5849
        %v5905 = vunpack.c.l.b16 %v5863
        %v5906 = vunpack.c.l.b16 %v5873
        %v5907 = vpack.c.b16 %v5892, %v5891
        %v5908 = vpack.c.b16 %v5894, %v5893
        %v5909 = vpack.c.b16 %v5896, %v5895
        %v5910 = vpack.c.b16 %v5898, %v5897
        %v5911 = vpack.c.b16 %v5900, %v5899
        %v5912 = vpack.c.b16 %v5902, %v5901
        %v5913 = vpack.c.b16 %v5904, %v5903
        %v5914 = vpack.c.b16 %v5906, %v5905
        %v5939 = vunpack.c.l.b16 %v5875
        %v5940 = vunpack.c.l.b16 %v5876
        %v5941 = vunpack.c.l.b16 %v5877
        %v5942 = vunpack.c.l.b16 %v5878
        %v5943 = vunpack.c.l.b16 %v5879
        %v5944 = vunpack.c.l.b16 %v5880
        %v5945 = vunpack.c.l.b16 %v5881
        %v5946 = vunpack.c.l.b16 %v5882
        %v5947 = vunpack.c.l.b16 %v5883
        %v5948 = vunpack.c.l.b16 %v5884
        %v5949 = vunpack.c.l.b16 %v5885
        %v5950 = vunpack.c.l.b16 %v5886
        %v5951 = vunpack.c.l.b16 %v5887
        %v5952 = vunpack.c.l.b16 %v5888
        %v5953 = vunpack.c.l.b16 %v5889
        %v5954 = vunpack.c.l.b16 %v5890
        %v5955 = vpack.c.b16 %v5940, %v5939
        %v5956 = vpack.c.b16 %v5942, %v5941
        %v5957 = vpack.c.b16 %v5944, %v5943
        %v5958 = vpack.c.b16 %v5946, %v5945
        %v5959 = vpack.c.b16 %v5948, %v5947
        %v5960 = vpack.c.b16 %v5950, %v5949
        %v5961 = vpack.c.b16 %v5952, %v5951
        %v5962 = vpack.c.b16 %v5954, %v5953
        %5971 = vmatpush.bf16.msra.mxu0 %v5962
        %5972 = vmatpush.bf16.msra.mxu0 %v5961
        %5973 = vmatpush.bf16.msra.mxu0 %v5960
        %5974 = vmatpush.bf16.msra.mxu0 %v5959
        %5975 = vmatpush.bf16.msra.mxu0 %v5958
        %5976 = vmatpush.bf16.msra.mxu0 %v5957
        %5977 = vmatpush.bf16.msra.mxu0 %v5956
        %5978 = vmatpush.bf16.msra.mxu0 %v5955
        %5979 = vmatmul.bf16.gmra.mxu0 %v5907
        %v5980 = vpop.f32.mrf.mxu0
        %v5981 = vadd.f32 0.0, %v5980
        %v5982 = vpop.f32.mrf.mxu0
        %v5983 = vadd.f32 0.0, %v5982
        %5984 = vmatmul.bf16.gmra.mxu0 %v5908
        %v5985 = vpop.f32.mrf.mxu0
        %v5986 = vadd.f32 0.0, %v5985
        %v5987 = vpop.f32.mrf.mxu0
        %v5988 = vadd.f32 0.0, %v5987
        %5989 = vmatmul.bf16.gmra.mxu0 %v5909
        %v5990 = vpop.f32.mrf.mxu0
        %v5991 = vadd.f32 0.0, %v5990
        %v5992 = vpop.f32.mrf.mxu0
        %v5993 = vadd.f32 0.0, %v5992
        %5994 = vmatmul.bf16.gmra.mxu0 %v5910
        %v5995 = vpop.f32.mrf.mxu0
        %v5996 = vadd.f32 0.0, %v5995
        %v5997 = vpop.f32.mrf.mxu0
        %v5998 = vadd.f32 0.0, %v5997
        %5999 = vmatmul.bf16.gmra.mxu0 %v5911
        %v6000 = vpop.f32.mrf.mxu0
        %v6001 = vadd.f32 0.0, %v6000
        %v6002 = vpop.f32.mrf.mxu0
        %v6003 = vadd.f32 0.0, %v6002
        %6004 = vmatmul.bf16.gmra.mxu0 %v5912
        %v6005 = vpop.f32.mrf.mxu0
        %v6006 = vadd.f32 0.0, %v6005
        %v6007 = vpop.f32.mrf.mxu0
        %v6008 = vadd.f32 0.0, %v6007
        %6009 = vmatmul.bf16.gmra.mxu0 %v5913
        %v6010 = vpop.f32.mrf.mxu0
        %v6011 = vadd.f32 0.0, %v6010
        %v6012 = vpop.f32.mrf.mxu0
        %v6013 = vadd.f32 0.0, %v6012
        %6014 = vmatmul.bf16.gmra.mxu0 %v5914
        %v6015 = vpop.f32.mrf.mxu0
        %v6016 = vadd.f32 0.0, %v6015
        %v6017 = vpop.f32.mrf.mxu0
        %v6018 = vadd.f32 0.0, %v6017
        %6019 = vdwg.mxu0
        %v6036 = vunpack.c.l.b16 %v5642
        %v6037 = vunpack.c.l.b16 %v5643
        %v6038 = vunpack.c.l.b16 %v5644
        %v6039 = vunpack.c.l.b16 %v5645
        %v6040 = vunpack.c.l.b16 %v5646
        %v6041 = vunpack.c.l.b16 %v5647
        %v6042 = vunpack.c.l.b16 %v5648
        %v6043 = vunpack.c.l.b16 %v5649
        %v6044 = vunpack.c.l.b16 %v5650
        %v6045 = vunpack.c.l.b16 %v5651
        %v6046 = vunpack.c.l.b16 %v5652
        %v6047 = vunpack.c.l.b16 %v5653
        %v6048 = vunpack.c.l.b16 %v5654
        %v6049 = vunpack.c.l.b16 %v5655
        %v6050 = vunpack.c.l.b16 %v5656
        %v6051 = vunpack.c.l.b16 %v5657
        %v6052 = vpack.c.b16 %v6037, %v6036
        %v6053 = vpack.c.b16 %v6039, %v6038
        %v6054 = vpack.c.b16 %v6041, %v6040
        %v6055 = vpack.c.b16 %v6043, %v6042
        %v6056 = vpack.c.b16 %v6045, %v6044
        %v6057 = vpack.c.b16 %v6047, %v6046
        %v6058 = vpack.c.b16 %v6049, %v6048
        %v6059 = vpack.c.b16 %v6051, %v6050
        %v6084 = vunpack.c.l.b16 %v5658
        %v6085 = vunpack.c.l.b16 %v5659
        %v6086 = vunpack.c.l.b16 %v5660
        %v6087 = vunpack.c.l.b16 %v5661
        %v6088 = vunpack.c.l.b16 %v5662
        %v6089 = vunpack.c.l.b16 %v5663
        %v6090 = vunpack.c.l.b16 %v5664
        %v6091 = vunpack.c.l.b16 %v5665
        %v6092 = vunpack.c.l.b16 %v5666
        %v6093 = vunpack.c.l.b16 %v5667
        %v6094 = vunpack.c.l.b16 %v5668
        %v6095 = vunpack.c.l.b16 %v5669
        %v6096 = vunpack.c.l.b16 %v5670
        %v6097 = vunpack.c.l.b16 %v5671
        %v6098 = vunpack.c.l.b16 %v5672
        %v6099 = vunpack.c.l.b16 %v5673
        %v6100 = vpack.c.b16 %v6085, %v6084
        %v6101 = vpack.c.b16 %v6087, %v6086
        %v6102 = vpack.c.b16 %v6089, %v6088
        %v6103 = vpack.c.b16 %v6091, %v6090
        %v6104 = vpack.c.b16 %v6093, %v6092
        %v6105 = vpack.c.b16 %v6095, %v6094
        %v6106 = vpack.c.b16 %v6097, %v6096
        %v6107 = vpack.c.b16 %v6099, %v6098
        %6116 = vmatpush.bf16.msra.mxu0 %v6107
        %6117 = vmatpush.bf16.msra.mxu0 %v6106
        %6118 = vmatpush.bf16.msra.mxu0 %v6105
        %6119 = vmatpush.bf16.msra.mxu0 %v6104
        %6120 = vmatpush.bf16.msra.mxu0 %v6103
        %6121 = vmatpush.bf16.msra.mxu0 %v6102
        %6122 = vmatpush.bf16.msra.mxu0 %v6101
        %6123 = vmatpush.bf16.msra.mxu0 %v6100
        %6124 = vmatmul.bf16.gmra.mxu0 %v6052
        %v6125 = vpop.f32.mrf.mxu0
        %v6126 = vadd.f32 %v5981, %v6125
        %v6127 = vpop.f32.mrf.mxu0
        %v6128 = vadd.f32 %v5983, %v6127
        %6129 = vmatmul.bf16.gmra.mxu0 %v6053
        %v6130 = vpop.f32.mrf.mxu0
        %v6131 = vadd.f32 %v5986, %v6130
        %v6132 = vpop.f32.mrf.mxu0
        %v6133 = vadd.f32 %v5988, %v6132
        %6134 = vmatmul.bf16.gmra.mxu0 %v6054
        %v6135 = vpop.f32.mrf.mxu0
        %v6136 = vadd.f32 %v5991, %v6135
        %v6137 = vpop.f32.mrf.mxu0
        %v6138 = vadd.f32 %v5993, %v6137
        %6139 = vmatmul.bf16.gmra.mxu0 %v6055
        %v6140 = vpop.f32.mrf.mxu0
        %v6141 = vadd.f32 %v5996, %v6140
        %v6142 = vpop.f32.mrf.mxu0
        %v6143 = vadd.f32 %v5998, %v6142
        %6144 = vmatmul.bf16.gmra.mxu0 %v6056
        %v6145 = vpop.f32.mrf.mxu0
        %v6146 = vadd.f32 %v6001, %v6145
        %v6147 = vpop.f32.mrf.mxu0
        %v6148 = vadd.f32 %v6003, %v6147
        %6149 = vmatmul.bf16.gmra.mxu0 %v6057
        %v6150 = vpop.f32.mrf.mxu0
        %v6151 = vadd.f32 %v6006, %v6150
        %v6152 = vpop.f32.mrf.mxu0
        %v6153 = vadd.f32 %v6008, %v6152
        %6154 = vmatmul.bf16.gmra.mxu0 %v6058
        %v6155 = vpop.f32.mrf.mxu0
        %v6156 = vadd.f32 %v6011, %v6155
        %v6157 = vpop.f32.mrf.mxu0
        %v6158 = vadd.f32 %v6013, %v6157
        %6159 = vmatmul.bf16.gmra.mxu0 %v6059
        %v6160 = vpop.f32.mrf.mxu0
        %v6161 = vadd.f32 %v6016, %v6160
        %v6162 = vpop.f32.mrf.mxu0
        %v6163 = vadd.f32 %v6018, %v6162
        %6164 = vdwg.mxu0
        %v6165 = vld [vmem:[#allocation3] sm:$0xe]
        %v6166 = vld [vmem:[#allocation3 + $0xc] sm:$0xe]
        %v6167 = vld [vmem:[#allocation3 + $0x18] sm:$0xe]
        %v6168 = vld [vmem:[#allocation3 + $0x24] sm:$0xe]
        %v6169 = vld [vmem:[#allocation3 + $0x30] sm:$0xe]
        %v6170 = vld [vmem:[#allocation3 + $0x3c] sm:$0xe]
        %v6171 = vld [vmem:[#allocation3 + $0x48] sm:$0xe]
        %v6172 = vld [vmem:[#allocation3 + $0x54] sm:$0xe]
        %v6189 = vrot.slane %v6165, 5
        %v6190 = vrot.slane %v6189, 4
        %v6191 = vrot.slane %v5643, 5
        %v6192 = vsel %vm1538, %v6190, %v6191
        %v6193 = vrot.slane %v6191, 4
        %v6194 = vrot.slane %v5674, 5
        %v6195 = vsel %vm1538, %v6193, %v6194
        %v6196 = vrot.slane %v6166, 5
        %v6197 = vrot.slane %v6196, 4
        %v6198 = vrot.slane %v5645, 5
        %v6199 = vsel %vm1538, %v6197, %v6198
        %v6200 = vrot.slane %v6198, 4
        %v6201 = vrot.slane %v5675, 5
        %v6202 = vsel %vm1538, %v6200, %v6201
        %v6203 = vrot.slane %v6167, 5
        %v6204 = vrot.slane %v6203, 4
        %v6205 = vrot.slane %v5647, 5
        %v6206 = vsel %vm1538, %v6204, %v6205
        %v6207 = vrot.slane %v6205, 4
        %v6208 = vrot.slane %v5676, 5
        %v6209 = vsel %vm1538, %v6207, %v6208
        %v6210 = vrot.slane %v6168, 5
        %v6211 = vrot.slane %v6210, 4
        %v6212 = vrot.slane %v5649, 5
        %v6213 = vsel %vm1538, %v6211, %v6212
        %v6214 = vrot.slane %v6212, 4
        %v6215 = vrot.slane %v5677, 5
        %v6216 = vsel %vm1538, %v6214, %v6215
        %v6217 = vrot.slane %v6169, 5
        %v6218 = vrot.slane %v6217, 4
        %v6219 = vrot.slane %v5651, 5
        %v6220 = vsel %vm1538, %v6218, %v6219
        %v6221 = vrot.slane %v6219, 4
        %v6222 = vrot.slane %v5678, 5
        %v6223 = vsel %vm1538, %v6221, %v6222
        %v6224 = vrot.slane %v6170, 5
        %v6225 = vrot.slane %v6224, 4
        %v6226 = vrot.slane %v5653, 5
        %v6227 = vsel %vm1538, %v6225, %v6226
        %v6228 = vrot.slane %v6226, 4
        %v6229 = vrot.slane %v5679, 5
        %v6230 = vsel %vm1538, %v6228, %v6229
        %v6231 = vrot.slane %v6171, 5
        %v6232 = vrot.slane %v6231, 4
        %v6233 = vrot.slane %v5655, 5
        %v6234 = vsel %vm1538, %v6232, %v6233
        %v6235 = vrot.slane %v6233, 4
        %v6236 = vrot.slane %v5680, 5
        %v6237 = vsel %vm1538, %v6235, %v6236
        %v6238 = vrot.slane %v6172, 5
        %v6239 = vrot.slane %v6238, 4
        %v6240 = vrot.slane %v5657, 5
        %v6241 = vsel %vm1538, %v6239, %v6240
        %v6242 = vrot.slane %v6240, 4
        %v6243 = vrot.slane %v5681, 5
        %v6244 = vsel %vm1538, %v6242, %v6243
        %s6245 = scalar_lea.vmem [#allocation4], 128
        %v6246 = vld [vmem:[%s6245] sm:$0xf]
        %v6247 = vld [vmem:[%s6245 + $0x4] sm:$0xf]
        %v6248 = vld [vmem:[%s6245 + $0x8] sm:$0xf]
        %v6249 = vld [vmem:[%s6245 + $0xc] sm:$0xf]
        %v6250 = vld [vmem:[%s6245 + $0x10] sm:$0xf]
        %v6251 = vld [vmem:[%s6245 + $0x14] sm:$0xf]
        %v6252 = vld [vmem:[%s6245 + $0x18] sm:$0xf]
        %v6253 = vld [vmem:[%s6245 + $0x1c] sm:$0xf]
        %v6254 = vld [vmem:[%s6245 + $0x20] sm:$0xf]
        %v6255 = vld [vmem:[%s6245 + $0x24] sm:$0xf]
        %v6256 = vld [vmem:[%s6245 + $0x28] sm:$0xf]
        %v6257 = vld [vmem:[%s6245 + $0x2c] sm:$0xf]
        %v6258 = vld [vmem:[%s6245 + $0x30] sm:$0xf]
        %v6259 = vld [vmem:[%s6245 + $0x34] sm:$0xf]
        %v6260 = vld [vmem:[%s6245 + $0x38] sm:$0xf]
        %v6261 = vld [vmem:[%s6245 + $0x3c] sm:$0xf]
        %v6262 = vunpack.c.l.b16 %v6192
        %v6263 = vunpack.c.l.b16 %v6195
        %v6264 = vunpack.c.l.b16 %v6199
        %v6265 = vunpack.c.l.b16 %v6202
        %v6266 = vunpack.c.l.b16 %v6206
        %v6267 = vunpack.c.l.b16 %v6209
        %v6268 = vunpack.c.l.b16 %v6213
        %v6269 = vunpack.c.l.b16 %v6216
        %v6270 = vunpack.c.l.b16 %v6220
        %v6271 = vunpack.c.l.b16 %v6223
        %v6272 = vunpack.c.l.b16 %v6227
        %v6273 = vunpack.c.l.b16 %v6230
        %v6274 = vunpack.c.l.b16 %v6234
        %v6275 = vunpack.c.l.b16 %v6237
        %v6276 = vunpack.c.l.b16 %v6241
        %v6277 = vunpack.c.l.b16 %v6244
        %v6278 = vpack.c.b16 %v6263, %v6262
        %v6279 = vpack.c.b16 %v6265, %v6264
        %v6280 = vpack.c.b16 %v6267, %v6266
        %v6281 = vpack.c.b16 %v6269, %v6268
        %v6282 = vpack.c.b16 %v6271, %v6270
        %v6283 = vpack.c.b16 %v6273, %v6272
        %v6284 = vpack.c.b16 %v6275, %v6274
        %v6285 = vpack.c.b16 %v6277, %v6276
        %v6310 = vunpack.c.l.b16 %v6246
        %v6311 = vunpack.c.l.b16 %v6247
        %v6312 = vunpack.c.l.b16 %v6248
        %v6313 = vunpack.c.l.b16 %v6249
        %v6314 = vunpack.c.l.b16 %v6250
        %v6315 = vunpack.c.l.b16 %v6251
        %v6316 = vunpack.c.l.b16 %v6252
        %v6317 = vunpack.c.l.b16 %v6253
        %v6318 = vunpack.c.l.b16 %v6254
        %v6319 = vunpack.c.l.b16 %v6255
        %v6320 = vunpack.c.l.b16 %v6256
        %v6321 = vunpack.c.l.b16 %v6257
        %v6322 = vunpack.c.l.b16 %v6258
        %v6323 = vunpack.c.l.b16 %v6259
        %v6324 = vunpack.c.l.b16 %v6260
        %v6325 = vunpack.c.l.b16 %v6261
        %v6326 = vpack.c.b16 %v6311, %v6310
        %v6327 = vpack.c.b16 %v6313, %v6312
        %v6328 = vpack.c.b16 %v6315, %v6314
        %v6329 = vpack.c.b16 %v6317, %v6316
        %v6330 = vpack.c.b16 %v6319, %v6318
        %v6331 = vpack.c.b16 %v6321, %v6320
        %v6332 = vpack.c.b16 %v6323, %v6322
        %v6333 = vpack.c.b16 %v6325, %v6324
        %6342 = vmatpush.bf16.msra.mxu0 %v6333
        %6343 = vmatpush.bf16.msra.mxu0 %v6332
        %6344 = vmatpush.bf16.msra.mxu0 %v6331
        %6345 = vmatpush.bf16.msra.mxu0 %v6330
        %6346 = vmatpush.bf16.msra.mxu0 %v6329
        %6347 = vmatpush.bf16.msra.mxu0 %v6328
        %6348 = vmatpush.bf16.msra.mxu0 %v6327
        %6349 = vmatpush.bf16.msra.mxu0 %v6326
        %6350 = vmatmul.bf16.gmra.mxu0 %v6278
        %v6351 = vpop.f32.mrf.mxu0
        %v6352 = vadd.f32 0.0, %v6351
        %v6353 = vpop.f32.mrf.mxu0
        %v6354 = vadd.f32 0.0, %v6353
        %6355 = vmatmul.bf16.gmra.mxu0 %v6279
        %v6356 = vpop.f32.mrf.mxu0
        %v6357 = vadd.f32 0.0, %v6356
        %v6358 = vpop.f32.mrf.mxu0
        %v6359 = vadd.f32 0.0, %v6358
        %6360 = vmatmul.bf16.gmra.mxu0 %v6280
        %v6361 = vpop.f32.mrf.mxu0
        %v6362 = vadd.f32 0.0, %v6361
        %v6363 = vpop.f32.mrf.mxu0
        %v6364 = vadd.f32 0.0, %v6363
        %6365 = vmatmul.bf16.gmra.mxu0 %v6281
        %v6366 = vpop.f32.mrf.mxu0
        %v6367 = vadd.f32 0.0, %v6366
        %v6368 = vpop.f32.mrf.mxu0
        %v6369 = vadd.f32 0.0, %v6368
        %6370 = vmatmul.bf16.gmra.mxu0 %v6282
        %v6371 = vpop.f32.mrf.mxu0
        %v6372 = vadd.f32 0.0, %v6371
        %v6373 = vpop.f32.mrf.mxu0
        %v6374 = vadd.f32 0.0, %v6373
        %6375 = vmatmul.bf16.gmra.mxu0 %v6283
        %v6376 = vpop.f32.mrf.mxu0
        %v6377 = vadd.f32 0.0, %v6376
        %v6378 = vpop.f32.mrf.mxu0
        %v6379 = vadd.f32 0.0, %v6378
        %6380 = vmatmul.bf16.gmra.mxu0 %v6284
        %v6381 = vpop.f32.mrf.mxu0
        %v6382 = vadd.f32 0.0, %v6381
        %v6383 = vpop.f32.mrf.mxu0
        %v6384 = vadd.f32 0.0, %v6383
        %6385 = vmatmul.bf16.gmra.mxu0 %v6285
        %v6386 = vpop.f32.mrf.mxu0
        %v6387 = vadd.f32 0.0, %v6386
        %v6388 = vpop.f32.mrf.mxu0
        %v6389 = vadd.f32 0.0, %v6388
        %6390 = vdwg.mxu0
        %v6391 = vadd.f32 %v6126, %v6352
        %v6392 = vadd.f32 %v6128, %v6354
        %v6393 = vadd.f32 %v6131, %v6357
        %v6394 = vadd.f32 %v6133, %v6359
        %v6395 = vadd.f32 %v6136, %v6362
        %v6396 = vadd.f32 %v6138, %v6364
        %v6397 = vadd.f32 %v6141, %v6367
        %v6398 = vadd.f32 %v6143, %v6369
        %v6399 = vadd.f32 %v6146, %v6372
        %v6400 = vadd.f32 %v6148, %v6374
        %v6401 = vadd.f32 %v6151, %v6377
        %v6402 = vadd.f32 %v6153, %v6379
        %v6403 = vadd.f32 %v6156, %v6382
        %v6404 = vadd.f32 %v6158, %v6384
        %v6405 = vadd.f32 %v6161, %v6387
        %v6406 = vadd.f32 %v6163, %v6389
        %v6407 = vld [vmem:[%s3306] sm:$0xf]
        %v6408 = vld [vmem:[%s3306 + $0x4] sm:$0xf]
        %v6409 = vld [vmem:[%s3306 + $0xc] sm:$0xf]
        %v6410 = vld [vmem:[%s3306 + $0x10] sm:$0xf]
        %v6411 = vld [vmem:[%s3306 + $0x18] sm:$0xf]
        %v6412 = vld [vmem:[%s3306 + $0x1c] sm:$0xf]
        %v6413 = vld [vmem:[%s3306 + $0x24] sm:$0xf]
        %v6414 = vld [vmem:[%s3306 + $0x28] sm:$0xf]
        %v6415 = vld [vmem:[%s3306 + $0x30] sm:$0xf]
        %v6416 = vld [vmem:[%s3306 + $0x34] sm:$0xf]
        %v6417 = vld [vmem:[%s3306 + $0x3c] sm:$0xf]
        %v6418 = vld [vmem:[%s3306 + $0x40] sm:$0xf]
        %v6419 = vld [vmem:[%s3306 + $0x48] sm:$0xf]
        %v6420 = vld [vmem:[%s3306 + $0x4c] sm:$0xf]
        %v6421 = vld [vmem:[%s3306 + $0x54] sm:$0xf]
        %v6422 = vld [vmem:[%s3306 + $0x58] sm:$0xf]
        %s6423 = scalar_lea.vmem [#allocation4], 192
        %v6424 = vld [vmem:[%s6423] sm:$0xf]
        %v6425 = vld [vmem:[%s6423 + $0x4] sm:$0xf]
        %v6426 = vld [vmem:[%s6423 + $0x8] sm:$0xf]
        %v6427 = vld [vmem:[%s6423 + $0xc] sm:$0xf]
        %v6428 = vld [vmem:[%s6423 + $0x10] sm:$0xf]
        %v6429 = vld [vmem:[%s6423 + $0x14] sm:$0xf]
        %v6430 = vld [vmem:[%s6423 + $0x18] sm:$0xf]
        %v6431 = vld [vmem:[%s6423 + $0x1c] sm:$0xf]
        %v6432 = vld [vmem:[%s6423 + $0x20] sm:$0xf]
        %v6433 = vld [vmem:[%s6423 + $0x24] sm:$0xf]
        %v6434 = vld [vmem:[%s6423 + $0x28] sm:$0xf]
        %v6435 = vld [vmem:[%s6423 + $0x2c] sm:$0xf]
        %v6436 = vld [vmem:[%s6423 + $0x30] sm:$0xf]
        %v6437 = vld [vmem:[%s6423 + $0x34] sm:$0xf]
        %v6438 = vld [vmem:[%s6423 + $0x38] sm:$0xf]
        %v6439 = vld [vmem:[%s6423 + $0x3c] sm:$0xf]
        %v6456 = vunpack.c.l.b16 %v6407
        %v6457 = vunpack.c.l.b16 %v6408
        %v6458 = vunpack.c.l.b16 %v6409
        %v6459 = vunpack.c.l.b16 %v6410
        %v6460 = vunpack.c.l.b16 %v6411
        %v6461 = vunpack.c.l.b16 %v6412
        %v6462 = vunpack.c.l.b16 %v6413
        %v6463 = vunpack.c.l.b16 %v6414
        %v6464 = vunpack.c.l.b16 %v6415
        %v6465 = vunpack.c.l.b16 %v6416
        %v6466 = vunpack.c.l.b16 %v6417
        %v6467 = vunpack.c.l.b16 %v6418
        %v6468 = vunpack.c.l.b16 %v6419
        %v6469 = vunpack.c.l.b16 %v6420
        %v6470 = vunpack.c.l.b16 %v6421
        %v6471 = vunpack.c.l.b16 %v6422
        %v6472 = vpack.c.b16 %v6457, %v6456
        %v6473 = vpack.c.b16 %v6459, %v6458
        %v6474 = vpack.c.b16 %v6461, %v6460
        %v6475 = vpack.c.b16 %v6463, %v6462
        %v6476 = vpack.c.b16 %v6465, %v6464
        %v6477 = vpack.c.b16 %v6467, %v6466
        %v6478 = vpack.c.b16 %v6469, %v6468
        %v6479 = vpack.c.b16 %v6471, %v6470
        %v6504 = vunpack.c.l.b16 %v6424
        %v6505 = vunpack.c.l.b16 %v6425
        %v6506 = vunpack.c.l.b16 %v6426
        %v6507 = vunpack.c.l.b16 %v6427
        %v6508 = vunpack.c.l.b16 %v6428
        %v6509 = vunpack.c.l.b16 %v6429
        %v6510 = vunpack.c.l.b16 %v6430
        %v6511 = vunpack.c.l.b16 %v6431
        %v6512 = vunpack.c.l.b16 %v6432
        %v6513 = vunpack.c.l.b16 %v6433
        %v6514 = vunpack.c.l.b16 %v6434
        %v6515 = vunpack.c.l.b16 %v6435
        %v6516 = vunpack.c.l.b16 %v6436
        %v6517 = vunpack.c.l.b16 %v6437
        %v6518 = vunpack.c.l.b16 %v6438
        %v6519 = vunpack.c.l.b16 %v6439
        %v6520 = vpack.c.b16 %v6505, %v6504
        %v6521 = vpack.c.b16 %v6507, %v6506
        %v6522 = vpack.c.b16 %v6509, %v6508
        %v6523 = vpack.c.b16 %v6511, %v6510
        %v6524 = vpack.c.b16 %v6513, %v6512
        %v6525 = vpack.c.b16 %v6515, %v6514
        %v6526 = vpack.c.b16 %v6517, %v6516
        %v6527 = vpack.c.b16 %v6519, %v6518
        %6536 = vmatpush.bf16.msra.mxu0 %v6527
        %6537 = vmatpush.bf16.msra.mxu0 %v6526
        %6538 = vmatpush.bf16.msra.mxu0 %v6525
        %6539 = vmatpush.bf16.msra.mxu0 %v6524
        %6540 = vmatpush.bf16.msra.mxu0 %v6523
        %6541 = vmatpush.bf16.msra.mxu0 %v6522
        %6542 = vmatpush.bf16.msra.mxu0 %v6521
        %6543 = vmatpush.bf16.msra.mxu0 %v6520
        %6544 = vmatmul.bf16.gmra.mxu0 %v6472
        %v6545 = vpop.f32.mrf.mxu0
        %v6546 = vadd.f32 0.0, %v6545
        %v6547 = vpop.f32.mrf.mxu0
        %v6548 = vadd.f32 0.0, %v6547
        %6549 = vmatmul.bf16.gmra.mxu0 %v6473
        %v6550 = vpop.f32.mrf.mxu0
        %v6551 = vadd.f32 0.0, %v6550
        %v6552 = vpop.f32.mrf.mxu0
        %v6553 = vadd.f32 0.0, %v6552
        %6554 = vmatmul.bf16.gmra.mxu0 %v6474
        %v6555 = vpop.f32.mrf.mxu0
        %v6556 = vadd.f32 0.0, %v6555
        %v6557 = vpop.f32.mrf.mxu0
        %v6558 = vadd.f32 0.0, %v6557
        %6559 = vmatmul.bf16.gmra.mxu0 %v6475
        %v6560 = vpop.f32.mrf.mxu0
        %v6561 = vadd.f32 0.0, %v6560
        %v6562 = vpop.f32.mrf.mxu0
        %v6563 = vadd.f32 0.0, %v6562
        %6564 = vmatmul.bf16.gmra.mxu0 %v6476
        %v6565 = vpop.f32.mrf.mxu0
        %v6566 = vadd.f32 0.0, %v6565
        %v6567 = vpop.f32.mrf.mxu0
        %v6568 = vadd.f32 0.0, %v6567
        %6569 = vmatmul.bf16.gmra.mxu0 %v6477
        %v6570 = vpop.f32.mrf.mxu0
        %v6571 = vadd.f32 0.0, %v6570
        %v6572 = vpop.f32.mrf.mxu0
        %v6573 = vadd.f32 0.0, %v6572
        %6574 = vmatmul.bf16.gmra.mxu0 %v6478
        %v6575 = vpop.f32.mrf.mxu0
        %v6576 = vadd.f32 0.0, %v6575
        %v6577 = vpop.f32.mrf.mxu0
        %v6578 = vadd.f32 0.0, %v6577
        %6579 = vmatmul.bf16.gmra.mxu0 %v6479
        %v6580 = vpop.f32.mrf.mxu0
        %v6581 = vadd.f32 0.0, %v6580
        %v6582 = vpop.f32.mrf.mxu0
        %v6583 = vadd.f32 0.0, %v6582
        %6584 = vdwg.mxu0
        %v6585 = vadd.f32 %v6391, %v6546
        %v6586 = vadd.f32 %v6392, %v6548
        %v6587 = vadd.f32 %v6393, %v6551
        %v6588 = vadd.f32 %v6394, %v6553
        %v6589 = vadd.f32 %v6395, %v6556
        %v6590 = vadd.f32 %v6396, %v6558
        %v6591 = vadd.f32 %v6397, %v6561
        %v6592 = vadd.f32 %v6398, %v6563
        %v6593 = vadd.f32 %v6399, %v6566
        %v6594 = vadd.f32 %v6400, %v6568
        %v6595 = vadd.f32 %v6401, %v6571
        %v6596 = vadd.f32 %v6402, %v6573
        %v6597 = vadd.f32 %v6403, %v6576
        %v6598 = vadd.f32 %v6404, %v6578
        %v6599 = vadd.f32 %v6405, %v6581
        %v6600 = vadd.f32 %v6406, %v6583
        %v6601 = vld [vmem:[%s3306] sm:$0xf]
        %v6602 = vld [vmem:[%s3306 + $0x4] sm:$0xf]
        %v6603 = vld [vmem:[%s3306 + $0x8] sm:$0x1]
        %v6604 = vld [vmem:[%s3306 + $0xc] sm:$0xf]
        %v6605 = vld [vmem:[%s3306 + $0x10] sm:$0xf]
        %v6606 = vld [vmem:[%s3306 + $0x14] sm:$0x1]
        %v6607 = vld [vmem:[%s3306 + $0x18] sm:$0xf]
        %v6608 = vld [vmem:[%s3306 + $0x1c] sm:$0xf]
        %v6609 = vld [vmem:[%s3306 + $0x20] sm:$0x1]
        %v6610 = vld [vmem:[%s3306 + $0x24] sm:$0xf]
        %v6611 = vld [vmem:[%s3306 + $0x28] sm:$0xf]
        %v6612 = vld [vmem:[%s3306 + $0x2c] sm:$0x1]
        %v6613 = vld [vmem:[%s3306 + $0x30] sm:$0xf]
        %v6614 = vld [vmem:[%s3306 + $0x34] sm:$0xf]
        %v6615 = vld [vmem:[%s3306 + $0x38] sm:$0x1]
        %v6616 = vld [vmem:[%s3306 + $0x3c] sm:$0xf]
        %v6617 = vld [vmem:[%s3306 + $0x40] sm:$0xf]
        %v6618 = vld [vmem:[%s3306 + $0x44] sm:$0x1]
        %v6619 = vld [vmem:[%s3306 + $0x48] sm:$0xf]
        %v6620 = vld [vmem:[%s3306 + $0x4c] sm:$0xf]
        %v6621 = vld [vmem:[%s3306 + $0x50] sm:$0x1]
        %v6622 = vld [vmem:[%s3306 + $0x54] sm:$0xf]
        %v6623 = vld [vmem:[%s3306 + $0x58] sm:$0xf]
        %v6624 = vld [vmem:[%s3306 + $0x5c] sm:$0x1]
        %v6626 = vshrl.u32 %v6601, 16
        %v6628 = vrot.slane %v6626, 4
        %v6629 = vshll.u32 %v6601, 16
        %v6631 = vrot.slane %v6629, 5
        %v6632 = vor.u32 %v6628, %v6631
        %v6633 = vrot.slane %v6632, 4
        %v6635 = vshll.u32 %v6602, 16
        %v6637 = vrot.slane %v6635, 5
        %v6638 = vsel %vm1099, %v6633, %v6637
        %v6639 = vshrl.u32 %v6602, 16
        %v6641 = vrot.slane %v6639, 4
        %v6642 = vor.u32 %v6641, %v6637
        %v6643 = vrot.slane %v6642, 4
        %v6645 = vshll.u32 %v6603, 16
        %v6647 = vrot.slane %v6645, 5
        %v6648 = vsel %vm1099, %v6643, %v6647
        %v6650 = vshrl.u32 %v6604, 16
        %v6652 = vrot.slane %v6650, 4
        %v6653 = vshll.u32 %v6604, 16
        %v6655 = vrot.slane %v6653, 5
        %v6656 = vor.u32 %v6652, %v6655
        %v6657 = vrot.slane %v6656, 4
        %v6659 = vshll.u32 %v6605, 16
        %v6661 = vrot.slane %v6659, 5
        %v6662 = vsel %vm1099, %v6657, %v6661
        %v6663 = vshrl.u32 %v6605, 16
        %v6665 = vrot.slane %v6663, 4
        %v6666 = vor.u32 %v6665, %v6661
        %v6667 = vrot.slane %v6666, 4
        %v6669 = vshll.u32 %v6606, 16
        %v6671 = vrot.slane %v6669, 5
        %v6672 = vsel %vm1099, %v6667, %v6671
        %v6674 = vshrl.u32 %v6607, 16
        %v6676 = vrot.slane %v6674, 4
        %v6677 = vshll.u32 %v6607, 16
        %v6679 = vrot.slane %v6677, 5
        %v6680 = vor.u32 %v6676, %v6679
        %v6681 = vrot.slane %v6680, 4
        %v6683 = vshll.u32 %v6608, 16
        %v6685 = vrot.slane %v6683, 5
        %v6686 = vsel %vm1099, %v6681, %v6685
        %v6687 = vshrl.u32 %v6608, 16
        %v6689 = vrot.slane %v6687, 4
        %v6690 = vor.u32 %v6689, %v6685
        %v6691 = vrot.slane %v6690, 4
        %v6693 = vshll.u32 %v6609, 16
        %v6695 = vrot.slane %v6693, 5
        %v6696 = vsel %vm1099, %v6691, %v6695
        %v6698 = vshrl.u32 %v6610, 16
        %v6700 = vrot.slane %v6698, 4
        %v6701 = vshll.u32 %v6610, 16
        %v6703 = vrot.slane %v6701, 5
        %v6704 = vor.u32 %v6700, %v6703
        %v6705 = vrot.slane %v6704, 4
        %v6707 = vshll.u32 %v6611, 16
        %v6709 = vrot.slane %v6707, 5
        %v6710 = vsel %vm1099, %v6705, %v6709
        %v6711 = vshrl.u32 %v6611, 16
        %v6713 = vrot.slane %v6711, 4
        %v6714 = vor.u32 %v6713, %v6709
        %v6715 = vrot.slane %v6714, 4
        %v6717 = vshll.u32 %v6612, 16
        %v6719 = vrot.slane %v6717, 5
        %v6720 = vsel %vm1099, %v6715, %v6719
        %v6722 = vshrl.u32 %v6613, 16
        %v6724 = vrot.slane %v6722, 4
        %v6725 = vshll.u32 %v6613, 16
        %v6727 = vrot.slane %v6725, 5
        %v6728 = vor.u32 %v6724, %v6727
        %v6729 = vrot.slane %v6728, 4
        %v6731 = vshll.u32 %v6614, 16
        %v6733 = vrot.slane %v6731, 5
        %v6734 = vsel %vm1099, %v6729, %v6733
        %v6735 = vshrl.u32 %v6614, 16
        %v6737 = vrot.slane %v6735, 4
        %v6738 = vor.u32 %v6737, %v6733
        %v6739 = vrot.slane %v6738, 4
        %v6741 = vshll.u32 %v6615, 16
        %v6743 = vrot.slane %v6741, 5
        %v6744 = vsel %vm1099, %v6739, %v6743
        %v6746 = vshrl.u32 %v6616, 16
        %v6748 = vrot.slane %v6746, 4
        %v6749 = vshll.u32 %v6616, 16
        %v6751 = vrot.slane %v6749, 5
        %v6752 = vor.u32 %v6748, %v6751
        %v6753 = vrot.slane %v6752, 4
        %v6755 = vshll.u32 %v6617, 16
        %v6757 = vrot.slane %v6755, 5
        %v6758 = vsel %vm1099, %v6753, %v6757
        %v6759 = vshrl.u32 %v6617, 16
        %v6761 = vrot.slane %v6759, 4
        %v6762 = vor.u32 %v6761, %v6757
        %v6763 = vrot.slane %v6762, 4
        %v6765 = vshll.u32 %v6618, 16
        %v6767 = vrot.slane %v6765, 5
        %v6768 = vsel %vm1099, %v6763, %v6767
        %v6770 = vshrl.u32 %v6619, 16
        %v6772 = vrot.slane %v6770, 4
        %v6773 = vshll.u32 %v6619, 16
        %v6775 = vrot.slane %v6773, 5
        %v6776 = vor.u32 %v6772, %v6775
        %v6777 = vrot.slane %v6776, 4
        %v6779 = vshll.u32 %v6620, 16
        %v6781 = vrot.slane %v6779, 5
        %v6782 = vsel %vm1099, %v6777, %v6781
        %v6783 = vshrl.u32 %v6620, 16
        %v6785 = vrot.slane %v6783, 4
        %v6786 = vor.u32 %v6785, %v6781
        %v6787 = vrot.slane %v6786, 4
        %v6789 = vshll.u32 %v6621, 16
        %v6791 = vrot.slane %v6789, 5
        %v6792 = vsel %vm1099, %v6787, %v6791
        %v6794 = vshrl.u32 %v6622, 16
        %v6796 = vrot.slane %v6794, 4
        %v6797 = vshll.u32 %v6622, 16
        %v6799 = vrot.slane %v6797, 5
        %v6800 = vor.u32 %v6796, %v6799
        %v6801 = vrot.slane %v6800, 4
        %v6803 = vshll.u32 %v6623, 16
        %v6805 = vrot.slane %v6803, 5
        %v6806 = vsel %vm1099, %v6801, %v6805
        %v6807 = vshrl.u32 %v6623, 16
        %v6809 = vrot.slane %v6807, 4
        %v6810 = vor.u32 %v6809, %v6805
        %v6811 = vrot.slane %v6810, 4
        %v6813 = vshll.u32 %v6624, 16
        %v6815 = vrot.slane %v6813, 5
        %v6816 = vsel %vm1099, %v6811, %v6815
        %s6817 = scalar_lea.vmem [#allocation4], 256
        %v6818 = vld [vmem:[%s6817] sm:$0xf]
        %v6819 = vld [vmem:[%s6817 + $0x4] sm:$0xf]
        %v6820 = vld [vmem:[%s6817 + $0x8] sm:$0xf]
        %v6821 = vld [vmem:[%s6817 + $0xc] sm:$0xf]
        %v6822 = vld [vmem:[%s6817 + $0x10] sm:$0xf]
        %v6823 = vld [vmem:[%s6817 + $0x14] sm:$0xf]
        %v6824 = vld [vmem:[%s6817 + $0x18] sm:$0xf]
        %v6825 = vld [vmem:[%s6817 + $0x1c] sm:$0xf]
        %v6826 = vld [vmem:[%s6817 + $0x20] sm:$0xf]
        %v6827 = vld [vmem:[%s6817 + $0x24] sm:$0xf]
        %v6828 = vld [vmem:[%s6817 + $0x28] sm:$0xf]
        %v6829 = vld [vmem:[%s6817 + $0x2c] sm:$0xf]
        %v6830 = vld [vmem:[%s6817 + $0x30] sm:$0xf]
        %v6831 = vld [vmem:[%s6817 + $0x34] sm:$0xf]
        %v6832 = vld [vmem:[%s6817 + $0x38] sm:$0xf]
        %v6833 = vld [vmem:[%s6817 + $0x3c] sm:$0xf]
        %v6834 = vunpack.c.l.b16 %v6638
        %v6835 = vunpack.c.l.b16 %v6648
        %v6836 = vunpack.c.l.b16 %v6662
        %v6837 = vunpack.c.l.b16 %v6672
        %v6838 = vunpack.c.l.b16 %v6686
        %v6839 = vunpack.c.l.b16 %v6696
        %v6840 = vunpack.c.l.b16 %v6710
        %v6841 = vunpack.c.l.b16 %v6720
        %v6842 = vunpack.c.l.b16 %v6734
        %v6843 = vunpack.c.l.b16 %v6744
        %v6844 = vunpack.c.l.b16 %v6758
        %v6845 = vunpack.c.l.b16 %v6768
        %v6846 = vunpack.c.l.b16 %v6782
        %v6847 = vunpack.c.l.b16 %v6792
        %v6848 = vunpack.c.l.b16 %v6806
        %v6849 = vunpack.c.l.b16 %v6816
        %v6850 = vpack.c.b16 %v6835, %v6834
        %v6851 = vpack.c.b16 %v6837, %v6836
        %v6852 = vpack.c.b16 %v6839, %v6838
        %v6853 = vpack.c.b16 %v6841, %v6840
        %v6854 = vpack.c.b16 %v6843, %v6842
        %v6855 = vpack.c.b16 %v6845, %v6844
        %v6856 = vpack.c.b16 %v6847, %v6846
        %v6857 = vpack.c.b16 %v6849, %v6848
        %v6882 = vunpack.c.l.b16 %v6818
        %v6883 = vunpack.c.l.b16 %v6819
        %v6884 = vunpack.c.l.b16 %v6820
        %v6885 = vunpack.c.l.b16 %v6821
        %v6886 = vunpack.c.l.b16 %v6822
        %v6887 = vunpack.c.l.b16 %v6823
        %v6888 = vunpack.c.l.b16 %v6824
        %v6889 = vunpack.c.l.b16 %v6825
        %v6890 = vunpack.c.l.b16 %v6826
        %v6891 = vunpack.c.l.b16 %v6827
        %v6892 = vunpack.c.l.b16 %v6828
        %v6893 = vunpack.c.l.b16 %v6829
        %v6894 = vunpack.c.l.b16 %v6830
        %v6895 = vunpack.c.l.b16 %v6831
        %v6896 = vunpack.c.l.b16 %v6832
        %v6897 = vunpack.c.l.b16 %v6833
        %v6898 = vpack.c.b16 %v6883, %v6882
        %v6899 = vpack.c.b16 %v6885, %v6884
        %v6900 = vpack.c.b16 %v6887, %v6886
        %v6901 = vpack.c.b16 %v6889, %v6888
        %v6902 = vpack.c.b16 %v6891, %v6890
        %v6903 = vpack.c.b16 %v6893, %v6892
        %v6904 = vpack.c.b16 %v6895, %v6894
        %v6905 = vpack.c.b16 %v6897, %v6896
        %6914 = vmatpush.bf16.msra.mxu0 %v6905
        %6915 = vmatpush.bf16.msra.mxu0 %v6904
        %6916 = vmatpush.bf16.msra.mxu0 %v6903
        %6917 = vmatpush.bf16.msra.mxu0 %v6902
        %6918 = vmatpush.bf16.msra.mxu0 %v6901
        %6919 = vmatpush.bf16.msra.mxu0 %v6900
        %6920 = vmatpush.bf16.msra.mxu0 %v6899
        %6921 = vmatpush.bf16.msra.mxu0 %v6898
        %6922 = vmatmul.bf16.gmra.mxu0 %v6850
        %v6923 = vpop.f32.mrf.mxu0
        %v6924 = vadd.f32 0.0, %v6923
        %v6925 = vpop.f32.mrf.mxu0
        %v6926 = vadd.f32 0.0, %v6925
        %6927 = vmatmul.bf16.gmra.mxu0 %v6851
        %v6928 = vpop.f32.mrf.mxu0
        %v6929 = vadd.f32 0.0, %v6928
        %v6930 = vpop.f32.mrf.mxu0
        %v6931 = vadd.f32 0.0, %v6930
        %6932 = vmatmul.bf16.gmra.mxu0 %v6852
        %v6933 = vpop.f32.mrf.mxu0
        %v6934 = vadd.f32 0.0, %v6933
        %v6935 = vpop.f32.mrf.mxu0
        %v6936 = vadd.f32 0.0, %v6935
        %6937 = vmatmul.bf16.gmra.mxu0 %v6853
        %v6938 = vpop.f32.mrf.mxu0
        %v6939 = vadd.f32 0.0, %v6938
        %v6940 = vpop.f32.mrf.mxu0
        %v6941 = vadd.f32 0.0, %v6940
        %6942 = vmatmul.bf16.gmra.mxu0 %v6854
        %v6943 = vpop.f32.mrf.mxu0
        %v6944 = vadd.f32 0.0, %v6943
        %v6945 = vpop.f32.mrf.mxu0
        %v6946 = vadd.f32 0.0, %v6945
        %6947 = vmatmul.bf16.gmra.mxu0 %v6855
        %v6948 = vpop.f32.mrf.mxu0
        %v6949 = vadd.f32 0.0, %v6948
        %v6950 = vpop.f32.mrf.mxu0
        %v6951 = vadd.f32 0.0, %v6950
        %6952 = vmatmul.bf16.gmra.mxu0 %v6856
        %v6953 = vpop.f32.mrf.mxu0
        %v6954 = vadd.f32 0.0, %v6953
        %v6955 = vpop.f32.mrf.mxu0
        %v6956 = vadd.f32 0.0, %v6955
        %6957 = vmatmul.bf16.gmra.mxu0 %v6857
        %v6958 = vpop.f32.mrf.mxu0
        %v6959 = vadd.f32 0.0, %v6958
        %v6960 = vpop.f32.mrf.mxu0
        %v6961 = vadd.f32 0.0, %v6960
        %6962 = vdwg.mxu0
        %v6963 = vadd.f32 %v6585, %v6924
        %v6964 = vadd.f32 %v6586, %v6926
        %v6965 = vadd.f32 %v6587, %v6929
        %v6966 = vadd.f32 %v6588, %v6931
        %v6967 = vadd.f32 %v6589, %v6934
        %v6968 = vadd.f32 %v6590, %v6936
        %v6969 = vadd.f32 %v6591, %v6939
        %v6970 = vadd.f32 %v6592, %v6941
        %v6971 = vadd.f32 %v6593, %v6944
        %v6972 = vadd.f32 %v6594, %v6946
        %v6973 = vadd.f32 %v6595, %v6949
        %v6974 = vadd.f32 %v6596, %v6951
        %v6975 = vadd.f32 %v6597, %v6954
        %v6976 = vadd.f32 %v6598, %v6956
        %v6977 = vadd.f32 %v6599, %v6959
        %v6978 = vadd.f32 %v6600, %v6961
        %v6979 = vld [vmem:[%s3306] sm:$0xe]
        %v6980 = vld [vmem:[%s3306 + $0xc] sm:$0xe]
        %v6981 = vld [vmem:[%s3306 + $0x18] sm:$0xe]
        %v6982 = vld [vmem:[%s3306 + $0x24] sm:$0xe]
        %v6983 = vld [vmem:[%s3306 + $0x30] sm:$0xe]
        %v6984 = vld [vmem:[%s3306 + $0x3c] sm:$0xe]
        %v6985 = vld [vmem:[%s3306 + $0x48] sm:$0xe]
        %v6986 = vld [vmem:[%s3306 + $0x54] sm:$0xe]
        %v7011 = vrot.slane %v6979, 5
        %v7012 = vrot.slane %v7011, 4
        %v7013 = vrot.slane %v6602, 5
        %v7014 = vsel %vm1538, %v7012, %v7013
        %v7015 = vrot.slane %v7013, 4
        %v7016 = vrot.slane %v6603, 5
        %v7017 = vsel %vm1538, %v7015, %v7016
        %v7018 = vrot.slane %v6980, 5
        %v7019 = vrot.slane %v7018, 4
        %v7020 = vrot.slane %v6605, 5
        %v7021 = vsel %vm1538, %v7019, %v7020
        %v7022 = vrot.slane %v7020, 4
        %v7023 = vrot.slane %v6606, 5
        %v7024 = vsel %vm1538, %v7022, %v7023
        %v7025 = vrot.slane %v6981, 5
        %v7026 = vrot.slane %v7025, 4
        %v7027 = vrot.slane %v6608, 5
        %v7028 = vsel %vm1538, %v7026, %v7027
        %v7029 = vrot.slane %v7027, 4
        %v7030 = vrot.slane %v6609, 5
        %v7031 = vsel %vm1538, %v7029, %v7030
        %v7032 = vrot.slane %v6982, 5
        %v7033 = vrot.slane %v7032, 4
        %v7034 = vrot.slane %v6611, 5
        %v7035 = vsel %vm1538, %v7033, %v7034
        %v7036 = vrot.slane %v7034, 4
        %v7037 = vrot.slane %v6612, 5
        %v7038 = vsel %vm1538, %v7036, %v7037
        %v7039 = vrot.slane %v6983, 5
        %v7040 = vrot.slane %v7039, 4
        %v7041 = vrot.slane %v6614, 5
        %v7042 = vsel %vm1538, %v7040, %v7041
        %v7043 = vrot.slane %v7041, 4
        %v7044 = vrot.slane %v6615, 5
        %v7045 = vsel %vm1538, %v7043, %v7044
        %v7046 = vrot.slane %v6984, 5
        %v7047 = vrot.slane %v7046, 4
        %v7048 = vrot.slane %v6617, 5
        %v7049 = vsel %vm1538, %v7047, %v7048
        %v7050 = vrot.slane %v7048, 4
        %v7051 = vrot.slane %v6618, 5
        %v7052 = vsel %vm1538, %v7050, %v7051
        %v7053 = vrot.slane %v6985, 5
        %v7054 = vrot.slane %v7053, 4
        %v7055 = vrot.slane %v6620, 5
        %v7056 = vsel %vm1538, %v7054, %v7055
        %v7057 = vrot.slane %v7055, 4
        %v7058 = vrot.slane %v6621, 5
        %v7059 = vsel %vm1538, %v7057, %v7058
        %v7060 = vrot.slane %v6986, 5
        %v7061 = vrot.slane %v7060, 4
        %v7062 = vrot.slane %v6623, 5
        %v7063 = vsel %vm1538, %v7061, %v7062
        %v7064 = vrot.slane %v7062, 4
        %v7065 = vrot.slane %v6624, 5
        %v7066 = vsel %vm1538, %v7064, %v7065
        %s7067 = scalar_lea.vmem [#allocation4], 320
        %v7068 = vld [vmem:[%s7067] sm:$0xf]
        %v7069 = vld [vmem:[%s7067 + $0x4] sm:$0xf]
        %v7070 = vld [vmem:[%s7067 + $0x8] sm:$0xf]
        %v7071 = vld [vmem:[%s7067 + $0xc] sm:$0xf]
        %v7072 = vld [vmem:[%s7067 + $0x10] sm:$0xf]
        %v7073 = vld [vmem:[%s7067 + $0x14] sm:$0xf]
        %v7074 = vld [vmem:[%s7067 + $0x18] sm:$0xf]
        %v7075 = vld [vmem:[%s7067 + $0x1c] sm:$0xf]
        %v7076 = vld [vmem:[%s7067 + $0x20] sm:$0xf]
        %v7077 = vld [vmem:[%s7067 + $0x24] sm:$0xf]
        %v7078 = vld [vmem:[%s7067 + $0x28] sm:$0xf]
        %v7079 = vld [vmem:[%s7067 + $0x2c] sm:$0xf]
        %v7080 = vld [vmem:[%s7067 + $0x30] sm:$0xf]
        %v7081 = vld [vmem:[%s7067 + $0x34] sm:$0xf]
        %v7082 = vld [vmem:[%s7067 + $0x38] sm:$0xf]
        %v7083 = vld [vmem:[%s7067 + $0x3c] sm:$0xf]
        %v7084 = vunpack.c.l.b16 %v7014
        %v7085 = vunpack.c.l.b16 %v7017
        %v7086 = vunpack.c.l.b16 %v7021
        %v7087 = vunpack.c.l.b16 %v7024
        %v7088 = vunpack.c.l.b16 %v7028
        %v7089 = vunpack.c.l.b16 %v7031
        %v7090 = vunpack.c.l.b16 %v7035
        %v7091 = vunpack.c.l.b16 %v7038
        %v7092 = vunpack.c.l.b16 %v7042
        %v7093 = vunpack.c.l.b16 %v7045
        %v7094 = vunpack.c.l.b16 %v7049
        %v7095 = vunpack.c.l.b16 %v7052
        %v7096 = vunpack.c.l.b16 %v7056
        %v7097 = vunpack.c.l.b16 %v7059
        %v7098 = vunpack.c.l.b16 %v7063
        %v7099 = vunpack.c.l.b16 %v7066
        %v7100 = vpack.c.b16 %v7085, %v7084
        %v7101 = vpack.c.b16 %v7087, %v7086
        %v7102 = vpack.c.b16 %v7089, %v7088
        %v7103 = vpack.c.b16 %v7091, %v7090
        %v7104 = vpack.c.b16 %v7093, %v7092
        %v7105 = vpack.c.b16 %v7095, %v7094
        %v7106 = vpack.c.b16 %v7097, %v7096
        %v7107 = vpack.c.b16 %v7099, %v7098
        %v7132 = vunpack.c.l.b16 %v7068
        %v7133 = vunpack.c.l.b16 %v7069
        %v7134 = vunpack.c.l.b16 %v7070
        %v7135 = vunpack.c.l.b16 %v7071
        %v7136 = vunpack.c.l.b16 %v7072
        %v7137 = vunpack.c.l.b16 %v7073
        %v7138 = vunpack.c.l.b16 %v7074
        %v7139 = vunpack.c.l.b16 %v7075
        %v7140 = vunpack.c.l.b16 %v7076
        %v7141 = vunpack.c.l.b16 %v7077
        %v7142 = vunpack.c.l.b16 %v7078
        %v7143 = vunpack.c.l.b16 %v7079
        %v7144 = vunpack.c.l.b16 %v7080
        %v7145 = vunpack.c.l.b16 %v7081
        %v7146 = vunpack.c.l.b16 %v7082
        %v7147 = vunpack.c.l.b16 %v7083
        %v7148 = vpack.c.b16 %v7133, %v7132
        %v7149 = vpack.c.b16 %v7135, %v7134
        %v7150 = vpack.c.b16 %v7137, %v7136
        %v7151 = vpack.c.b16 %v7139, %v7138
        %v7152 = vpack.c.b16 %v7141, %v7140
        %v7153 = vpack.c.b16 %v7143, %v7142
        %v7154 = vpack.c.b16 %v7145, %v7144
        %v7155 = vpack.c.b16 %v7147, %v7146
        %7164 = vmatpush.bf16.msra.mxu0 %v7155
        %7165 = vmatpush.bf16.msra.mxu0 %v7154
        %7166 = vmatpush.bf16.msra.mxu0 %v7153
        %7167 = vmatpush.bf16.msra.mxu0 %v7152
        %7168 = vmatpush.bf16.msra.mxu0 %v7151
        %7169 = vmatpush.bf16.msra.mxu0 %v7150
        %7170 = vmatpush.bf16.msra.mxu0 %v7149
        %7171 = vmatpush.bf16.msra.mxu0 %v7148
        %7172 = vmatmul.bf16.gmra.mxu0 %v7100
        %v7173 = vpop.f32.mrf.mxu0
        %v7174 = vadd.f32 0.0, %v7173
        %v7175 = vpop.f32.mrf.mxu0
        %v7176 = vadd.f32 0.0, %v7175
        %7177 = vmatmul.bf16.gmra.mxu0 %v7101
        %v7178 = vpop.f32.mrf.mxu0
        %v7179 = vadd.f32 0.0, %v7178
        %v7180 = vpop.f32.mrf.mxu0
        %v7181 = vadd.f32 0.0, %v7180
        %7182 = vmatmul.bf16.gmra.mxu0 %v7102
        %v7183 = vpop.f32.mrf.mxu0
        %v7184 = vadd.f32 0.0, %v7183
        %v7185 = vpop.f32.mrf.mxu0
        %v7186 = vadd.f32 0.0, %v7185
        %7187 = vmatmul.bf16.gmra.mxu0 %v7103
        %v7188 = vpop.f32.mrf.mxu0
        %v7189 = vadd.f32 0.0, %v7188
        %v7190 = vpop.f32.mrf.mxu0
        %v7191 = vadd.f32 0.0, %v7190
        %7192 = vmatmul.bf16.gmra.mxu0 %v7104
        %v7193 = vpop.f32.mrf.mxu0
        %v7194 = vadd.f32 0.0, %v7193
        %v7195 = vpop.f32.mrf.mxu0
        %v7196 = vadd.f32 0.0, %v7195
        %7197 = vmatmul.bf16.gmra.mxu0 %v7105
        %v7198 = vpop.f32.mrf.mxu0
        %v7199 = vadd.f32 0.0, %v7198
        %v7200 = vpop.f32.mrf.mxu0
        %v7201 = vadd.f32 0.0, %v7200
        %7202 = vmatmul.bf16.gmra.mxu0 %v7106
        %v7203 = vpop.f32.mrf.mxu0
        %v7204 = vadd.f32 0.0, %v7203
        %v7205 = vpop.f32.mrf.mxu0
        %v7206 = vadd.f32 0.0, %v7205
        %7207 = vmatmul.bf16.gmra.mxu0 %v7107
        %v7208 = vpop.f32.mrf.mxu0
        %v7209 = vadd.f32 0.0, %v7208
        %v7210 = vpop.f32.mrf.mxu0
        %v7211 = vadd.f32 0.0, %v7210
        %7212 = vdwg.mxu0
        %v7213 = vadd.f32 %v6963, %v7174
        %v7214 = vadd.f32 %v6964, %v7176
        %v7215 = vadd.f32 %v6965, %v7179
        %v7216 = vadd.f32 %v6966, %v7181
        %v7217 = vadd.f32 %v6967, %v7184
        %v7218 = vadd.f32 %v6968, %v7186
        %v7219 = vadd.f32 %v6969, %v7189
        %v7220 = vadd.f32 %v6970, %v7191
        %v7221 = vadd.f32 %v6971, %v7194
        %v7222 = vadd.f32 %v6972, %v7196
        %v7223 = vadd.f32 %v6973, %v7199
        %v7224 = vadd.f32 %v6974, %v7201
        %v7225 = vadd.f32 %v6975, %v7204
        %v7226 = vadd.f32 %v6976, %v7206
        %v7227 = vadd.f32 %v6977, %v7209
        %v7228 = vadd.f32 %v6978, %v7211
        %s7229 = scalar_lea.vmem [#allocation3], 24
        %v7230 = vld [vmem:[%s7229] sm:$0xf]
        %v7231 = vld [vmem:[%s7229 + $0x4] sm:$0xf]
        %v7232 = vld [vmem:[%s7229 + $0xc] sm:$0xf]
        %v7233 = vld [vmem:[%s7229 + $0x10] sm:$0xf]
        %v7234 = vld [vmem:[%s7229 + $0x18] sm:$0xf]
        %v7235 = vld [vmem:[%s7229 + $0x1c] sm:$0xf]
        %v7236 = vld [vmem:[%s7229 + $0x24] sm:$0xf]
        %v7237 = vld [vmem:[%s7229 + $0x28] sm:$0xf]
        %v7238 = vld [vmem:[%s7229 + $0x30] sm:$0xf]
        %v7239 = vld [vmem:[%s7229 + $0x34] sm:$0xf]
        %v7240 = vld [vmem:[%s7229 + $0x3c] sm:$0xf]
        %v7241 = vld [vmem:[%s7229 + $0x40] sm:$0xf]
        %v7242 = vld [vmem:[%s7229 + $0x48] sm:$0xf]
        %v7243 = vld [vmem:[%s7229 + $0x4c] sm:$0xf]
        %v7244 = vld [vmem:[%s7229 + $0x54] sm:$0xf]
        %v7245 = vld [vmem:[%s7229 + $0x58] sm:$0xf]
        %s7246 = scalar_lea.vmem [#allocation4], 384
        %v7247 = vld [vmem:[%s7246] sm:$0xf]
        %v7248 = vld [vmem:[%s7246 + $0x4] sm:$0xf]
        %v7249 = vld [vmem:[%s7246 + $0x8] sm:$0xf]
        %v7250 = vld [vmem:[%s7246 + $0xc] sm:$0xf]
        %v7251 = vld [vmem:[%s7246 + $0x10] sm:$0xf]
        %v7252 = vld [vmem:[%s7246 + $0x14] sm:$0xf]
        %v7253 = vld [vmem:[%s7246 + $0x18] sm:$0xf]
        %v7254 = vld [vmem:[%s7246 + $0x1c] sm:$0xf]
        %v7255 = vld [vmem:[%s7246 + $0x20] sm:$0xf]
        %v7256 = vld [vmem:[%s7246 + $0x24] sm:$0xf]
        %v7257 = vld [vmem:[%s7246 + $0x28] sm:$0xf]
        %v7258 = vld [vmem:[%s7246 + $0x2c] sm:$0xf]
        %v7259 = vld [vmem:[%s7246 + $0x30] sm:$0xf]
        %v7260 = vld [vmem:[%s7246 + $0x34] sm:$0xf]
        %v7261 = vld [vmem:[%s7246 + $0x38] sm:$0xf]
        %v7262 = vld [vmem:[%s7246 + $0x3c] sm:$0xf]
        %v7279 = vunpack.c.l.b16 %v7230
        %v7280 = vunpack.c.l.b16 %v7231
        %v7281 = vunpack.c.l.b16 %v7232
        %v7282 = vunpack.c.l.b16 %v7233
        %v7283 = vunpack.c.l.b16 %v7234
        %v7284 = vunpack.c.l.b16 %v7235
        %v7285 = vunpack.c.l.b16 %v7236
        %v7286 = vunpack.c.l.b16 %v7237
        %v7287 = vunpack.c.l.b16 %v7238
        %v7288 = vunpack.c.l.b16 %v7239
        %v7289 = vunpack.c.l.b16 %v7240
        %v7290 = vunpack.c.l.b16 %v7241
        %v7291 = vunpack.c.l.b16 %v7242
        %v7292 = vunpack.c.l.b16 %v7243
        %v7293 = vunpack.c.l.b16 %v7244
        %v7294 = vunpack.c.l.b16 %v7245
        %v7295 = vpack.c.b16 %v7280, %v7279
        %v7296 = vpack.c.b16 %v7282, %v7281
        %v7297 = vpack.c.b16 %v7284, %v7283
        %v7298 = vpack.c.b16 %v7286, %v7285
        %v7299 = vpack.c.b16 %v7288, %v7287
        %v7300 = vpack.c.b16 %v7290, %v7289
        %v7301 = vpack.c.b16 %v7292, %v7291
        %v7302 = vpack.c.b16 %v7294, %v7293
        %v7327 = vunpack.c.l.b16 %v7247
        %v7328 = vunpack.c.l.b16 %v7248
        %v7329 = vunpack.c.l.b16 %v7249
        %v7330 = vunpack.c.l.b16 %v7250
        %v7331 = vunpack.c.l.b16 %v7251
        %v7332 = vunpack.c.l.b16 %v7252
        %v7333 = vunpack.c.l.b16 %v7253
        %v7334 = vunpack.c.l.b16 %v7254
        %v7335 = vunpack.c.l.b16 %v7255
        %v7336 = vunpack.c.l.b16 %v7256
        %v7337 = vunpack.c.l.b16 %v7257
        %v7338 = vunpack.c.l.b16 %v7258
        %v7339 = vunpack.c.l.b16 %v7259
        %v7340 = vunpack.c.l.b16 %v7260
        %v7341 = vunpack.c.l.b16 %v7261
        %v7342 = vunpack.c.l.b16 %v7262
        %v7343 = vpack.c.b16 %v7328, %v7327
        %v7344 = vpack.c.b16 %v7330, %v7329
        %v7345 = vpack.c.b16 %v7332, %v7331
        %v7346 = vpack.c.b16 %v7334, %v7333
        %v7347 = vpack.c.b16 %v7336, %v7335
        %v7348 = vpack.c.b16 %v7338, %v7337
        %v7349 = vpack.c.b16 %v7340, %v7339
        %v7350 = vpack.c.b16 %v7342, %v7341
        %7359 = vmatpush.bf16.msra.mxu0 %v7350
        %7360 = vmatpush.bf16.msra.mxu0 %v7349
        %7361 = vmatpush.bf16.msra.mxu0 %v7348
        %7362 = vmatpush.bf16.msra.mxu0 %v7347
        %7363 = vmatpush.bf16.msra.mxu0 %v7346
        %7364 = vmatpush.bf16.msra.mxu0 %v7345
        %7365 = vmatpush.bf16.msra.mxu0 %v7344
        %7366 = vmatpush.bf16.msra.mxu0 %v7343
        %7367 = vmatmul.bf16.gmra.mxu0 %v7295
        %v7368 = vpop.f32.mrf.mxu0
        %v7369 = vadd.f32 0.0, %v7368
        %v7370 = vpop.f32.mrf.mxu0
        %v7371 = vadd.f32 0.0, %v7370
        %7372 = vmatmul.bf16.gmra.mxu0 %v7296
        %v7373 = vpop.f32.mrf.mxu0
        %v7374 = vadd.f32 0.0, %v7373
        %v7375 = vpop.f32.mrf.mxu0
        %v7376 = vadd.f32 0.0, %v7375
        %7377 = vmatmul.bf16.gmra.mxu0 %v7297
        %v7378 = vpop.f32.mrf.mxu0
        %v7379 = vadd.f32 0.0, %v7378
        %v7380 = vpop.f32.mrf.mxu0
        %v7381 = vadd.f32 0.0, %v7380
        %7382 = vmatmul.bf16.gmra.mxu0 %v7298
        %v7383 = vpop.f32.mrf.mxu0
        %v7384 = vadd.f32 0.0, %v7383
        %v7385 = vpop.f32.mrf.mxu0
        %v7386 = vadd.f32 0.0, %v7385
        %7387 = vmatmul.bf16.gmra.mxu0 %v7299
        %v7388 = vpop.f32.mrf.mxu0
        %v7389 = vadd.f32 0.0, %v7388
        %v7390 = vpop.f32.mrf.mxu0
        %v7391 = vadd.f32 0.0, %v7390
        %7392 = vmatmul.bf16.gmra.mxu0 %v7300
        %v7393 = vpop.f32.mrf.mxu0
        %v7394 = vadd.f32 0.0, %v7393
        %v7395 = vpop.f32.mrf.mxu0
        %v7396 = vadd.f32 0.0, %v7395
        %7397 = vmatmul.bf16.gmra.mxu0 %v7301
        %v7398 = vpop.f32.mrf.mxu0
        %v7399 = vadd.f32 0.0, %v7398
        %v7400 = vpop.f32.mrf.mxu0
        %v7401 = vadd.f32 0.0, %v7400
        %7402 = vmatmul.bf16.gmra.mxu0 %v7302
        %v7403 = vpop.f32.mrf.mxu0
        %v7404 = vadd.f32 0.0, %v7403
        %v7405 = vpop.f32.mrf.mxu0
        %v7406 = vadd.f32 0.0, %v7405
        %7407 = vdwg.mxu0
        %v7408 = vadd.f32 %v7213, %v7369
        %v7409 = vadd.f32 %v7214, %v7371
        %v7410 = vadd.f32 %v7215, %v7374
        %v7411 = vadd.f32 %v7216, %v7376
        %v7412 = vadd.f32 %v7217, %v7379
        %v7413 = vadd.f32 %v7218, %v7381
        %v7414 = vadd.f32 %v7219, %v7384
        %v7415 = vadd.f32 %v7220, %v7386
        %v7416 = vadd.f32 %v7221, %v7389
        %v7417 = vadd.f32 %v7222, %v7391
        %v7418 = vadd.f32 %v7223, %v7394
        %v7419 = vadd.f32 %v7224, %v7396
        %v7420 = vadd.f32 %v7225, %v7399
        %v7421 = vadd.f32 %v7226, %v7401
        %v7422 = vadd.f32 %v7227, %v7404
        %v7423 = vadd.f32 %v7228, %v7406
        %v7424 = vld [vmem:[%s7229] sm:$0xf]
        %v7425 = vld [vmem:[%s7229 + $0x4] sm:$0xf]
        %v7426 = vld [vmem:[%s7229 + $0x8] sm:$0x1]
        %v7427 = vld [vmem:[%s7229 + $0xc] sm:$0xf]
        %v7428 = vld [vmem:[%s7229 + $0x10] sm:$0xf]
        %v7429 = vld [vmem:[%s7229 + $0x14] sm:$0x1]
        %v7430 = vld [vmem:[%s7229 + $0x18] sm:$0xf]
        %v7431 = vld [vmem:[%s7229 + $0x1c] sm:$0xf]
        %v7432 = vld [vmem:[%s7229 + $0x20] sm:$0x1]
        %v7433 = vld [vmem:[%s7229 + $0x24] sm:$0xf]
        %v7434 = vld [vmem:[%s7229 + $0x28] sm:$0xf]
        %v7435 = vld [vmem:[%s7229 + $0x2c] sm:$0x1]
        %v7436 = vld [vmem:[%s7229 + $0x30] sm:$0xf]
        %v7437 = vld [vmem:[%s7229 + $0x34] sm:$0xf]
        %v7438 = vld [vmem:[%s7229 + $0x38] sm:$0x1]
        %v7439 = vld [vmem:[%s7229 + $0x3c] sm:$0xf]
        %v7440 = vld [vmem:[%s7229 + $0x40] sm:$0xf]
        %v7441 = vld [vmem:[%s7229 + $0x44] sm:$0x1]
        %v7442 = vld [vmem:[%s7229 + $0x48] sm:$0xf]
        %v7443 = vld [vmem:[%s7229 + $0x4c] sm:$0xf]
        %v7444 = vld [vmem:[%s7229 + $0x50] sm:$0x1]
        %v7445 = vld [vmem:[%s7229 + $0x54] sm:$0xf]
        %v7446 = vld [vmem:[%s7229 + $0x58] sm:$0xf]
        %v7447 = vld [vmem:[%s7229 + $0x5c] sm:$0x1]
        %v7449 = vshrl.u32 %v7424, 16
        %v7451 = vrot.slane %v7449, 4
        %v7452 = vshll.u32 %v7424, 16
        %v7454 = vrot.slane %v7452, 5
        %v7455 = vor.u32 %v7451, %v7454
        %v7456 = vrot.slane %v7455, 4
        %v7458 = vshll.u32 %v7425, 16
        %v7460 = vrot.slane %v7458, 5
        %v7461 = vsel %vm1099, %v7456, %v7460
        %v7462 = vshrl.u32 %v7425, 16
        %v7464 = vrot.slane %v7462, 4
        %v7465 = vor.u32 %v7464, %v7460
        %v7466 = vrot.slane %v7465, 4
        %v7468 = vshll.u32 %v7426, 16
        %v7470 = vrot.slane %v7468, 5
        %v7471 = vsel %vm1099, %v7466, %v7470
        %v7473 = vshrl.u32 %v7427, 16
        %v7475 = vrot.slane %v7473, 4
        %v7476 = vshll.u32 %v7427, 16
        %v7478 = vrot.slane %v7476, 5
        %v7479 = vor.u32 %v7475, %v7478
        %v7480 = vrot.slane %v7479, 4
        %v7482 = vshll.u32 %v7428, 16
        %v7484 = vrot.slane %v7482, 5
        %v7485 = vsel %vm1099, %v7480, %v7484
        %v7486 = vshrl.u32 %v7428, 16
        %v7488 = vrot.slane %v7486, 4
        %v7489 = vor.u32 %v7488, %v7484
        %v7490 = vrot.slane %v7489, 4
        %v7492 = vshll.u32 %v7429, 16
        %v7494 = vrot.slane %v7492, 5
        %v7495 = vsel %vm1099, %v7490, %v7494
        %v7497 = vshrl.u32 %v7430, 16
        %v7499 = vrot.slane %v7497, 4
        %v7500 = vshll.u32 %v7430, 16
        %v7502 = vrot.slane %v7500, 5
        %v7503 = vor.u32 %v7499, %v7502
        %v7504 = vrot.slane %v7503, 4
        %v7506 = vshll.u32 %v7431, 16
        %v7508 = vrot.slane %v7506, 5
        %v7509 = vsel %vm1099, %v7504, %v7508
        %v7510 = vshrl.u32 %v7431, 16
        %v7512 = vrot.slane %v7510, 4
        %v7513 = vor.u32 %v7512, %v7508
        %v7514 = vrot.slane %v7513, 4
        %v7516 = vshll.u32 %v7432, 16
        %v7518 = vrot.slane %v7516, 5
        %v7519 = vsel %vm1099, %v7514, %v7518
        %v7521 = vshrl.u32 %v7433, 16
        %v7523 = vrot.slane %v7521, 4
        %v7524 = vshll.u32 %v7433, 16
        %v7526 = vrot.slane %v7524, 5
        %v7527 = vor.u32 %v7523, %v7526
        %v7528 = vrot.slane %v7527, 4
        %v7530 = vshll.u32 %v7434, 16
        %v7532 = vrot.slane %v7530, 5
        %v7533 = vsel %vm1099, %v7528, %v7532
        %v7534 = vshrl.u32 %v7434, 16
        %v7536 = vrot.slane %v7534, 4
        %v7537 = vor.u32 %v7536, %v7532
        %v7538 = vrot.slane %v7537, 4
        %v7540 = vshll.u32 %v7435, 16
        %v7542 = vrot.slane %v7540, 5
        %v7543 = vsel %vm1099, %v7538, %v7542
        %v7545 = vshrl.u32 %v7436, 16
        %v7547 = vrot.slane %v7545, 4
        %v7548 = vshll.u32 %v7436, 16
        %v7550 = vrot.slane %v7548, 5
        %v7551 = vor.u32 %v7547, %v7550
        %v7552 = vrot.slane %v7551, 4
        %v7554 = vshll.u32 %v7437, 16
        %v7556 = vrot.slane %v7554, 5
        %v7557 = vsel %vm1099, %v7552, %v7556
        %v7558 = vshrl.u32 %v7437, 16
        %v7560 = vrot.slane %v7558, 4
        %v7561 = vor.u32 %v7560, %v7556
        %v7562 = vrot.slane %v7561, 4
        %v7564 = vshll.u32 %v7438, 16
        %v7566 = vrot.slane %v7564, 5
        %v7567 = vsel %vm1099, %v7562, %v7566
        %v7569 = vshrl.u32 %v7439, 16
        %v7571 = vrot.slane %v7569, 4
        %v7572 = vshll.u32 %v7439, 16
        %v7574 = vrot.slane %v7572, 5
        %v7575 = vor.u32 %v7571, %v7574
        %v7576 = vrot.slane %v7575, 4
        %v7578 = vshll.u32 %v7440, 16
        %v7580 = vrot.slane %v7578, 5
        %v7581 = vsel %vm1099, %v7576, %v7580
        %v7582 = vshrl.u32 %v7440, 16
        %v7584 = vrot.slane %v7582, 4
        %v7585 = vor.u32 %v7584, %v7580
        %v7586 = vrot.slane %v7585, 4
        %v7588 = vshll.u32 %v7441, 16
        %v7590 = vrot.slane %v7588, 5
        %v7591 = vsel %vm1099, %v7586, %v7590
        %v7593 = vshrl.u32 %v7442, 16
        %v7595 = vrot.slane %v7593, 4
        %v7596 = vshll.u32 %v7442, 16
        %v7598 = vrot.slane %v7596, 5
        %v7599 = vor.u32 %v7595, %v7598
        %v7600 = vrot.slane %v7599, 4
        %v7602 = vshll.u32 %v7443, 16
        %v7604 = vrot.slane %v7602, 5
        %v7605 = vsel %vm1099, %v7600, %v7604
        %v7606 = vshrl.u32 %v7443, 16
        %v7608 = vrot.slane %v7606, 4
        %v7609 = vor.u32 %v7608, %v7604
        %v7610 = vrot.slane %v7609, 4
        %v7612 = vshll.u32 %v7444, 16
        %v7614 = vrot.slane %v7612, 5
        %v7615 = vsel %vm1099, %v7610, %v7614
        %v7617 = vshrl.u32 %v7445, 16
        %v7619 = vrot.slane %v7617, 4
        %v7620 = vshll.u32 %v7445, 16
        %v7622 = vrot.slane %v7620, 5
        %v7623 = vor.u32 %v7619, %v7622
        %v7624 = vrot.slane %v7623, 4
        %v7626 = vshll.u32 %v7446, 16
        %v7628 = vrot.slane %v7626, 5
        %v7629 = vsel %vm1099, %v7624, %v7628
        %v7630 = vshrl.u32 %v7446, 16
        %v7632 = vrot.slane %v7630, 4
        %v7633 = vor.u32 %v7632, %v7628
        %v7634 = vrot.slane %v7633, 4
        %v7636 = vshll.u32 %v7447, 16
        %v7638 = vrot.slane %v7636, 5
        %v7639 = vsel %vm1099, %v7634, %v7638
        %s7640 = scalar_lea.vmem [#allocation4], 448
        %v7641 = vld [vmem:[%s7640] sm:$0xf]
        %v7642 = vld [vmem:[%s7640 + $0x4] sm:$0xf]
        %v7643 = vld [vmem:[%s7640 + $0x8] sm:$0xf]
        %v7644 = vld [vmem:[%s7640 + $0xc] sm:$0xf]
        %v7645 = vld [vmem:[%s7640 + $0x10] sm:$0xf]
        %v7646 = vld [vmem:[%s7640 + $0x14] sm:$0xf]
        %v7647 = vld [vmem:[%s7640 + $0x18] sm:$0xf]
        %v7648 = vld [vmem:[%s7640 + $0x1c] sm:$0xf]
        %v7649 = vld [vmem:[%s7640 + $0x20] sm:$0xf]
        %v7650 = vld [vmem:[%s7640 + $0x24] sm:$0xf]
        %v7651 = vld [vmem:[%s7640 + $0x28] sm:$0xf]
        %v7652 = vld [vmem:[%s7640 + $0x2c] sm:$0xf]
        %v7653 = vld [vmem:[%s7640 + $0x30] sm:$0xf]
        %v7654 = vld [vmem:[%s7640 + $0x34] sm:$0xf]
        %v7655 = vld [vmem:[%s7640 + $0x38] sm:$0xf]
        %v7656 = vld [vmem:[%s7640 + $0x3c] sm:$0xf]
        %v7657 = vunpack.c.l.b16 %v7461
        %v7658 = vunpack.c.l.b16 %v7471
        %v7659 = vunpack.c.l.b16 %v7485
        %v7660 = vunpack.c.l.b16 %v7495
        %v7661 = vunpack.c.l.b16 %v7509
        %v7662 = vunpack.c.l.b16 %v7519
        %v7663 = vunpack.c.l.b16 %v7533
        %v7664 = vunpack.c.l.b16 %v7543
        %v7665 = vunpack.c.l.b16 %v7557
        %v7666 = vunpack.c.l.b16 %v7567
        %v7667 = vunpack.c.l.b16 %v7581
        %v7668 = vunpack.c.l.b16 %v7591
        %v7669 = vunpack.c.l.b16 %v7605
        %v7670 = vunpack.c.l.b16 %v7615
        %v7671 = vunpack.c.l.b16 %v7629
        %v7672 = vunpack.c.l.b16 %v7639
        %v7673 = vpack.c.b16 %v7658, %v7657
        %v7674 = vpack.c.b16 %v7660, %v7659
        %v7675 = vpack.c.b16 %v7662, %v7661
        %v7676 = vpack.c.b16 %v7664, %v7663
        %v7677 = vpack.c.b16 %v7666, %v7665
        %v7678 = vpack.c.b16 %v7668, %v7667
        %v7679 = vpack.c.b16 %v7670, %v7669
        %v7680 = vpack.c.b16 %v7672, %v7671
        %v7705 = vunpack.c.l.b16 %v7641
        %v7706 = vunpack.c.l.b16 %v7642
        %v7707 = vunpack.c.l.b16 %v7643
        %v7708 = vunpack.c.l.b16 %v7644
        %v7709 = vunpack.c.l.b16 %v7645
        %v7710 = vunpack.c.l.b16 %v7646
        %v7711 = vunpack.c.l.b16 %v7647
        %v7712 = vunpack.c.l.b16 %v7648
        %v7713 = vunpack.c.l.b16 %v7649
        %v7714 = vunpack.c.l.b16 %v7650
        %v7715 = vunpack.c.l.b16 %v7651
        %v7716 = vunpack.c.l.b16 %v7652
        %v7717 = vunpack.c.l.b16 %v7653
        %v7718 = vunpack.c.l.b16 %v7654
        %v7719 = vunpack.c.l.b16 %v7655
        %v7720 = vunpack.c.l.b16 %v7656
        %v7721 = vpack.c.b16 %v7706, %v7705
        %v7722 = vpack.c.b16 %v7708, %v7707
        %v7723 = vpack.c.b16 %v7710, %v7709
        %v7724 = vpack.c.b16 %v7712, %v7711
        %v7725 = vpack.c.b16 %v7714, %v7713
        %v7726 = vpack.c.b16 %v7716, %v7715
        %v7727 = vpack.c.b16 %v7718, %v7717
        %v7728 = vpack.c.b16 %v7720, %v7719
        %7737 = vmatpush.bf16.msra.mxu0 %v7728
        %7738 = vmatpush.bf16.msra.mxu0 %v7727
        %7739 = vmatpush.bf16.msra.mxu0 %v7726
        %7740 = vmatpush.bf16.msra.mxu0 %v7725
        %7741 = vmatpush.bf16.msra.mxu0 %v7724
        %7742 = vmatpush.bf16.msra.mxu0 %v7723
        %7743 = vmatpush.bf16.msra.mxu0 %v7722
        %7744 = vmatpush.bf16.msra.mxu0 %v7721
        %7745 = vmatmul.bf16.gmra.mxu0 %v7673
        %v7746 = vpop.f32.mrf.mxu0
        %v7747 = vadd.f32 0.0, %v7746
        %v7748 = vpop.f32.mrf.mxu0
        %v7749 = vadd.f32 0.0, %v7748
        %7750 = vmatmul.bf16.gmra.mxu0 %v7674
        %v7751 = vpop.f32.mrf.mxu0
        %v7752 = vadd.f32 0.0, %v7751
        %v7753 = vpop.f32.mrf.mxu0
        %v7754 = vadd.f32 0.0, %v7753
        %7755 = vmatmul.bf16.gmra.mxu0 %v7675
        %v7756 = vpop.f32.mrf.mxu0
        %v7757 = vadd.f32 0.0, %v7756
        %v7758 = vpop.f32.mrf.mxu0
        %v7759 = vadd.f32 0.0, %v7758
        %7760 = vmatmul.bf16.gmra.mxu0 %v7676
        %v7761 = vpop.f32.mrf.mxu0
        %v7762 = vadd.f32 0.0, %v7761
        %v7763 = vpop.f32.mrf.mxu0
        %v7764 = vadd.f32 0.0, %v7763
        %7765 = vmatmul.bf16.gmra.mxu0 %v7677
        %v7766 = vpop.f32.mrf.mxu0
        %v7767 = vadd.f32 0.0, %v7766
        %v7768 = vpop.f32.mrf.mxu0
        %v7769 = vadd.f32 0.0, %v7768
        %7770 = vmatmul.bf16.gmra.mxu0 %v7678
        %v7771 = vpop.f32.mrf.mxu0
        %v7772 = vadd.f32 0.0, %v7771
        %v7773 = vpop.f32.mrf.mxu0
        %v7774 = vadd.f32 0.0, %v7773
        %7775 = vmatmul.bf16.gmra.mxu0 %v7679
        %v7776 = vpop.f32.mrf.mxu0
        %v7777 = vadd.f32 0.0, %v7776
        %v7778 = vpop.f32.mrf.mxu0
        %v7779 = vadd.f32 0.0, %v7778
        %7780 = vmatmul.bf16.gmra.mxu0 %v7680
        %v7781 = vpop.f32.mrf.mxu0
        %v7782 = vadd.f32 0.0, %v7781
        %v7783 = vpop.f32.mrf.mxu0
        %v7784 = vadd.f32 0.0, %v7783
        %7785 = vdwg.mxu0
        %v7786 = vadd.f32 %v7408, %v7747
        %v7787 = vadd.f32 %v7409, %v7749
        %v7788 = vadd.f32 %v7410, %v7752
        %v7789 = vadd.f32 %v7411, %v7754
        %v7790 = vadd.f32 %v7412, %v7757
        %v7791 = vadd.f32 %v7413, %v7759
        %v7792 = vadd.f32 %v7414, %v7762
        %v7793 = vadd.f32 %v7415, %v7764
        %v7794 = vadd.f32 %v7416, %v7767
        %v7795 = vadd.f32 %v7417, %v7769
        %v7796 = vadd.f32 %v7418, %v7772
        %v7797 = vadd.f32 %v7419, %v7774
        %v7798 = vadd.f32 %v7420, %v7777
        %v7799 = vadd.f32 %v7421, %v7779
        %v7800 = vadd.f32 %v7422, %v7782
        %v7801 = vadd.f32 %v7423, %v7784
        %v7802 = vld [vmem:[%s7229] sm:$0xe]
        %v7803 = vld [vmem:[%s7229 + $0xc] sm:$0xe]
        %v7804 = vld [vmem:[%s7229 + $0x18] sm:$0xe]
        %v7805 = vld [vmem:[%s7229 + $0x24] sm:$0xe]
        %v7806 = vld [vmem:[%s7229 + $0x30] sm:$0xe]
        %v7807 = vld [vmem:[%s7229 + $0x3c] sm:$0xe]
        %v7808 = vld [vmem:[%s7229 + $0x48] sm:$0xe]
        %v7809 = vld [vmem:[%s7229 + $0x54] sm:$0xe]
        %v7834 = vrot.slane %v7802, 5
        %v7835 = vrot.slane %v7834, 4
        %v7836 = vrot.slane %v7425, 5
        %v7837 = vsel %vm1538, %v7835, %v7836
        %v7838 = vrot.slane %v7836, 4
        %v7839 = vrot.slane %v7426, 5
        %v7840 = vsel %vm1538, %v7838, %v7839
        %v7841 = vrot.slane %v7803, 5
        %v7842 = vrot.slane %v7841, 4
        %v7843 = vrot.slane %v7428, 5
        %v7844 = vsel %vm1538, %v7842, %v7843
        %v7845 = vrot.slane %v7843, 4
        %v7846 = vrot.slane %v7429, 5
        %v7847 = vsel %vm1538, %v7845, %v7846
        %v7848 = vrot.slane %v7804, 5
        %v7849 = vrot.slane %v7848, 4
        %v7850 = vrot.slane %v7431, 5
        %v7851 = vsel %vm1538, %v7849, %v7850
        %v7852 = vrot.slane %v7850, 4
        %v7853 = vrot.slane %v7432, 5
        %v7854 = vsel %vm1538, %v7852, %v7853
        %v7855 = vrot.slane %v7805, 5
        %v7856 = vrot.slane %v7855, 4
        %v7857 = vrot.slane %v7434, 5
        %v7858 = vsel %vm1538, %v7856, %v7857
        %v7859 = vrot.slane %v7857, 4
        %v7860 = vrot.slane %v7435, 5
        %v7861 = vsel %vm1538, %v7859, %v7860
        %v7862 = vrot.slane %v7806, 5
        %v7863 = vrot.slane %v7862, 4
        %v7864 = vrot.slane %v7437, 5
        %v7865 = vsel %vm1538, %v7863, %v7864
        %v7866 = vrot.slane %v7864, 4
        %v7867 = vrot.slane %v7438, 5
        %v7868 = vsel %vm1538, %v7866, %v7867
        %v7869 = vrot.slane %v7807, 5
        %v7870 = vrot.slane %v7869, 4
        %v7871 = vrot.slane %v7440, 5
        %v7872 = vsel %vm1538, %v7870, %v7871
        %v7873 = vrot.slane %v7871, 4
        %v7874 = vrot.slane %v7441, 5
        %v7875 = vsel %vm1538, %v7873, %v7874
        %v7876 = vrot.slane %v7808, 5
        %v7877 = vrot.slane %v7876, 4
        %v7878 = vrot.slane %v7443, 5
        %v7879 = vsel %vm1538, %v7877, %v7878
        %v7880 = vrot.slane %v7878, 4
        %v7881 = vrot.slane %v7444, 5
        %v7882 = vsel %vm1538, %v7880, %v7881
        %v7883 = vrot.slane %v7809, 5
        %v7884 = vrot.slane %v7883, 4
        %v7885 = vrot.slane %v7446, 5
        %v7886 = vsel %vm1538, %v7884, %v7885
        %v7887 = vrot.slane %v7885, 4
        %v7888 = vrot.slane %v7447, 5
        %v7889 = vsel %vm1538, %v7887, %v7888
        %s7890 = scalar_lea.vmem [#allocation4], 512
        %v7891 = vld [vmem:[%s7890] sm:$0xf]
        %v7892 = vld [vmem:[%s7890 + $0x4] sm:$0xf]
        %v7893 = vld [vmem:[%s7890 + $0x8] sm:$0xf]
        %v7894 = vld [vmem:[%s7890 + $0xc] sm:$0xf]
        %v7895 = vld [vmem:[%s7890 + $0x10] sm:$0xf]
        %v7896 = vld [vmem:[%s7890 + $0x14] sm:$0xf]
        %v7897 = vld [vmem:[%s7890 + $0x18] sm:$0xf]
        %v7898 = vld [vmem:[%s7890 + $0x1c] sm:$0xf]
        %v7899 = vld [vmem:[%s7890 + $0x20] sm:$0xf]
        %v7900 = vld [vmem:[%s7890 + $0x24] sm:$0xf]
        %v7901 = vld [vmem:[%s7890 + $0x28] sm:$0xf]
        %v7902 = vld [vmem:[%s7890 + $0x2c] sm:$0xf]
        %v7903 = vld [vmem:[%s7890 + $0x30] sm:$0xf]
        %v7904 = vld [vmem:[%s7890 + $0x34] sm:$0xf]
        %v7905 = vld [vmem:[%s7890 + $0x38] sm:$0xf]
        %v7906 = vld [vmem:[%s7890 + $0x3c] sm:$0xf]
        %v7907 = vunpack.c.l.b16 %v7837
        %v7908 = vunpack.c.l.b16 %v7840
        %v7909 = vunpack.c.l.b16 %v7844
        %v7910 = vunpack.c.l.b16 %v7847
        %v7911 = vunpack.c.l.b16 %v7851
        %v7912 = vunpack.c.l.b16 %v7854
        %v7913 = vunpack.c.l.b16 %v7858
        %v7914 = vunpack.c.l.b16 %v7861
        %v7915 = vunpack.c.l.b16 %v7865
        %v7916 = vunpack.c.l.b16 %v7868
        %v7917 = vunpack.c.l.b16 %v7872
        %v7918 = vunpack.c.l.b16 %v7875
        %v7919 = vunpack.c.l.b16 %v7879
        %v7920 = vunpack.c.l.b16 %v7882
        %v7921 = vunpack.c.l.b16 %v7886
        %v7922 = vunpack.c.l.b16 %v7889
        %v7923 = vpack.c.b16 %v7908, %v7907
        %v7924 = vpack.c.b16 %v7910, %v7909
        %v7925 = vpack.c.b16 %v7912, %v7911
        %v7926 = vpack.c.b16 %v7914, %v7913
        %v7927 = vpack.c.b16 %v7916, %v7915
        %v7928 = vpack.c.b16 %v7918, %v7917
        %v7929 = vpack.c.b16 %v7920, %v7919
        %v7930 = vpack.c.b16 %v7922, %v7921
        %v7955 = vunpack.c.l.b16 %v7891
        %v7956 = vunpack.c.l.b16 %v7892
        %v7957 = vunpack.c.l.b16 %v7893
        %v7958 = vunpack.c.l.b16 %v7894
        %v7959 = vunpack.c.l.b16 %v7895
        %v7960 = vunpack.c.l.b16 %v7896
        %v7961 = vunpack.c.l.b16 %v7897
        %v7962 = vunpack.c.l.b16 %v7898
        %v7963 = vunpack.c.l.b16 %v7899
        %v7964 = vunpack.c.l.b16 %v7900
        %v7965 = vunpack.c.l.b16 %v7901
        %v7966 = vunpack.c.l.b16 %v7902
        %v7967 = vunpack.c.l.b16 %v7903
        %v7968 = vunpack.c.l.b16 %v7904
        %v7969 = vunpack.c.l.b16 %v7905
        %v7970 = vunpack.c.l.b16 %v7906
        %v7971 = vpack.c.b16 %v7956, %v7955
        %v7972 = vpack.c.b16 %v7958, %v7957
        %v7973 = vpack.c.b16 %v7960, %v7959
        %v7974 = vpack.c.b16 %v7962, %v7961
        %v7975 = vpack.c.b16 %v7964, %v7963
        %v7976 = vpack.c.b16 %v7966, %v7965
        %v7977 = vpack.c.b16 %v7968, %v7967
        %v7978 = vpack.c.b16 %v7970, %v7969
        %7987 = vmatpush.bf16.msra.mxu0 %v7978
        %7988 = vmatpush.bf16.msra.mxu0 %v7977
        %7989 = vmatpush.bf16.msra.mxu0 %v7976
        %7990 = vmatpush.bf16.msra.mxu0 %v7975
        %7991 = vmatpush.bf16.msra.mxu0 %v7974
        %7992 = vmatpush.bf16.msra.mxu0 %v7973
        %7993 = vmatpush.bf16.msra.mxu0 %v7972
        %7994 = vmatpush.bf16.msra.mxu0 %v7971
        %7995 = vmatmul.bf16.gmra.mxu0 %v7923
        %v7996 = vpop.f32.mrf.mxu0
        %v7997 = vadd.f32 0.0, %v7996
        %v7998 = vpop.f32.mrf.mxu0
        %v7999 = vadd.f32 0.0, %v7998
        %8000 = vmatmul.bf16.gmra.mxu0 %v7924
        %v8001 = vpop.f32.mrf.mxu0
        %v8002 = vadd.f32 0.0, %v8001
        %v8003 = vpop.f32.mrf.mxu0
        %v8004 = vadd.f32 0.0, %v8003
        %8005 = vmatmul.bf16.gmra.mxu0 %v7925
        %v8006 = vpop.f32.mrf.mxu0
        %v8007 = vadd.f32 0.0, %v8006
        %v8008 = vpop.f32.mrf.mxu0
        %v8009 = vadd.f32 0.0, %v8008
        %8010 = vmatmul.bf16.gmra.mxu0 %v7926
        %v8011 = vpop.f32.mrf.mxu0
        %v8012 = vadd.f32 0.0, %v8011
        %v8013 = vpop.f32.mrf.mxu0
        %v8014 = vadd.f32 0.0, %v8013
        %8015 = vmatmul.bf16.gmra.mxu0 %v7927
        %v8016 = vpop.f32.mrf.mxu0
        %v8017 = vadd.f32 0.0, %v8016
        %v8018 = vpop.f32.mrf.mxu0
        %v8019 = vadd.f32 0.0, %v8018
        %8020 = vmatmul.bf16.gmra.mxu0 %v7928
        %v8021 = vpop.f32.mrf.mxu0
        %v8022 = vadd.f32 0.0, %v8021
        %v8023 = vpop.f32.mrf.mxu0
        %v8024 = vadd.f32 0.0, %v8023
        %8025 = vmatmul.bf16.gmra.mxu0 %v7929
        %v8026 = vpop.f32.mrf.mxu0
        %v8027 = vadd.f32 0.0, %v8026
        %v8028 = vpop.f32.mrf.mxu0
        %v8029 = vadd.f32 0.0, %v8028
        %8030 = vmatmul.bf16.gmra.mxu0 %v7930
        %v8031 = vpop.f32.mrf.mxu0
        %v8032 = vadd.f32 0.0, %v8031
        %v8033 = vpop.f32.mrf.mxu0
        %v8034 = vadd.f32 0.0, %v8033
        %8035 = vdwg.mxu0
        %v8036 = vadd.f32 %v7786, %v7997
        %v8037 = vadd.f32 %v7787, %v7999
        %v8038 = vadd.f32 %v7788, %v8002
        %v8039 = vadd.f32 %v7789, %v8004
        %v8040 = vadd.f32 %v7790, %v8007
        %v8041 = vadd.f32 %v7791, %v8009
        %v8042 = vadd.f32 %v7792, %v8012
        %v8043 = vadd.f32 %v7793, %v8014
        %v8044 = vadd.f32 %v7794, %v8017
        %v8045 = vadd.f32 %v7795, %v8019
        %v8046 = vadd.f32 %v7796, %v8022
        %v8047 = vadd.f32 %v7797, %v8024
        %v8048 = vadd.f32 %v7798, %v8027
        %v8049 = vadd.f32 %v7799, %v8029
        %v8050 = vadd.f32 %v7800, %v8032
        %v8051 = vadd.f32 %v7801, %v8034
        %v8052 = vld [vmem:[%s4] sm:$0x1]
        %v8054 = vperm.slane %v8052, 0
        %v8056 = vadd.f32 %v8036, %v8054
        %v8057 = vadd.f32 %v8037, %v8054
        %v8058 = vadd.f32 %v8038, %v8054
        %v8059 = vadd.f32 %v8039, %v8054
        %v8060 = vadd.f32 %v8040, %v8054
        %v8061 = vadd.f32 %v8041, %v8054
        %v8062 = vadd.f32 %v8042, %v8054
        %v8063 = vadd.f32 %v8043, %v8054
        %v8064 = vadd.f32 %v8044, %v8054
        %v8065 = vadd.f32 %v8045, %v8054
        %v8066 = vadd.f32 %v8046, %v8054
        %v8067 = vadd.f32 %v8047, %v8054
        %v8068 = vadd.f32 %v8048, %v8054
        %v8069 = vadd.f32 %v8049, %v8054
        %v8070 = vadd.f32 %v8050, %v8054
        %v8071 = vadd.f32 %v8051, %v8054
        %v8072 = vmax.f32 %v8056, 0.0
        %v8073 = vmax.f32 %v8057, 0.0
        %v8074 = vmax.f32 %v8058, 0.0
        %v8075 = vmax.f32 %v8059, 0.0
        %v8076 = vmax.f32 %v8060, 0.0
        %v8077 = vmax.f32 %v8061, 0.0
        %v8078 = vmax.f32 %v8062, 0.0
        %v8079 = vmax.f32 %v8063, 0.0
        %v8080 = vmax.f32 %v8064, 0.0
        %v8081 = vmax.f32 %v8065, 0.0
        %v8082 = vmax.f32 %v8066, 0.0
        %v8083 = vmax.f32 %v8067, 0.0
        %v8084 = vmax.f32 %v8068, 0.0
        %v8085 = vmax.f32 %v8069, 0.0
        %v8086 = vmax.f32 %v8070, 0.0
        %v8087 = vmax.f32 %v8071, 0.0
        %v8088 = vpack.c.bf16 %v8072, %v8072
        %v8089 = vpack.c.bf16 %v8073, %v8073
        %v8090 = vpack.c.bf16 %v8074, %v8074
        %v8091 = vpack.c.bf16 %v8075, %v8075
        %v8092 = vpack.c.bf16 %v8076, %v8076
        %v8093 = vpack.c.bf16 %v8077, %v8077
        %v8094 = vpack.c.bf16 %v8078, %v8078
        %v8095 = vpack.c.bf16 %v8079, %v8079
        %v8096 = vpack.c.bf16 %v8080, %v8080
        %v8097 = vpack.c.bf16 %v8081, %v8081
        %v8098 = vpack.c.bf16 %v8082, %v8082
        %v8099 = vpack.c.bf16 %v8083, %v8083
        %v8100 = vpack.c.bf16 %v8084, %v8084
        %v8101 = vpack.c.bf16 %v8085, %v8085
        %v8102 = vpack.c.bf16 %v8086, %v8086
        %v8103 = vpack.c.bf16 %v8087, %v8087
        %8104 = vst.msk [vmem:[%s241] sm:$0xf] %vm243, %v8088
        %8105 = vst.msk [vmem:[%s241 + $0x4] sm:$0xf] %vm243, %v8089
        %8106 = vst.msk [vmem:[%s241 + $0x8] sm:$0xf] %vm243, %v8090
        %8107 = vst.msk [vmem:[%s241 + $0xc] sm:$0xf] %vm243, %v8091
        %8108 = vst.msk [vmem:[%s241 + $0x10] sm:$0xf] %vm243, %v8092
        %8109 = vst.msk [vmem:[%s241 + $0x14] sm:$0xf] %vm243, %v8093
        %8110 = vst.msk [vmem:[%s241 + $0x18] sm:$0xf] %vm243, %v8094
        %8111 = vst.msk [vmem:[%s241 + $0x1c] sm:$0xf] %vm243, %v8095
        %8112 = vst.msk [vmem:[%s241 + $0x20] sm:$0xf] %vm243, %v8096
        %8113 = vst.msk [vmem:[%s241 + $0x24] sm:$0xf] %vm243, %v8097
        %8114 = vst.msk [vmem:[%s241 + $0x28] sm:$0xf] %vm243, %v8098
        %8115 = vst.msk [vmem:[%s241 + $0x2c] sm:$0xf] %vm243, %v8099
        %8116 = vst.msk [vmem:[%s241 + $0x30] sm:$0xf] %vm243, %v8100
        %8117 = vst.msk [vmem:[%s241 + $0x34] sm:$0xf] %vm243, %v8101
        %8118 = vst.msk [vmem:[%s241 + $0x38] sm:$0xf] %vm243, %v8102
        %8119 = vst.msk [vmem:[%s241 + $0x3c] sm:$0xf] %vm243, %v8103
        %s8120 = scalar_lea.vmem [#allocation3], 96
        %v8121 = vld [vmem:[%s8120] sm:$0xf]
        %v8122 = vld [vmem:[%s8120 + $0x4] sm:$0xf]
        %v8123 = vld [vmem:[%s8120 + $0xc] sm:$0xf]
        %v8124 = vld [vmem:[%s8120 + $0x10] sm:$0xf]
        %v8125 = vld [vmem:[%s8120 + $0x18] sm:$0xf]
        %v8126 = vld [vmem:[%s8120 + $0x1c] sm:$0xf]
        %v8127 = vld [vmem:[%s8120 + $0x24] sm:$0xf]
        %v8128 = vld [vmem:[%s8120 + $0x28] sm:$0xf]
        %v8129 = vld [vmem:[%s8120 + $0x30] sm:$0xf]
        %v8130 = vld [vmem:[%s8120 + $0x34] sm:$0xf]
        %v8131 = vld [vmem:[%s8120 + $0x3c] sm:$0xf]
        %v8132 = vld [vmem:[%s8120 + $0x40] sm:$0xf]
        %v8133 = vld [vmem:[%s8120 + $0x48] sm:$0xf]
        %v8134 = vld [vmem:[%s8120 + $0x4c] sm:$0xf]
        %v8135 = vld [vmem:[%s8120 + $0x54] sm:$0xf]
        %v8136 = vld [vmem:[%s8120 + $0x58] sm:$0xf]
        %v8137 = vld [vmem:[#allocation4] sm:$0xf]
        %v8138 = vld [vmem:[#allocation4 + $0x4] sm:$0xf]
        %v8139 = vld [vmem:[#allocation4 + $0x8] sm:$0xf]
        %v8140 = vld [vmem:[#allocation4 + $0xc] sm:$0xf]
        %v8141 = vld [vmem:[#allocation4 + $0x10] sm:$0xf]
        %v8142 = vld [vmem:[#allocation4 + $0x14] sm:$0xf]
        %v8143 = vld [vmem:[#allocation4 + $0x18] sm:$0xf]
        %v8144 = vld [vmem:[#allocation4 + $0x1c] sm:$0xf]
        %v8145 = vld [vmem:[#allocation4 + $0x20] sm:$0xf]
        %v8146 = vld [vmem:[#allocation4 + $0x24] sm:$0xf]
        %v8147 = vld [vmem:[#allocation4 + $0x28] sm:$0xf]
        %v8148 = vld [vmem:[#allocation4 + $0x2c] sm:$0xf]
        %v8149 = vld [vmem:[#allocation4 + $0x30] sm:$0xf]
        %v8150 = vld [vmem:[#allocation4 + $0x34] sm:$0xf]
        %v8151 = vld [vmem:[#allocation4 + $0x38] sm:$0xf]
        %v8152 = vld [vmem:[#allocation4 + $0x3c] sm:$0xf]
        %v8153 = vld [vmem:[%s8120 + $0x8] sm:$0x1]
        %v8154 = vld [vmem:[%s8120 + $0x14] sm:$0x1]
        %v8155 = vld [vmem:[%s8120 + $0x20] sm:$0x1]
        %v8156 = vld [vmem:[%s8120 + $0x2c] sm:$0x1]
        %v8157 = vld [vmem:[%s8120 + $0x38] sm:$0x1]
        %v8158 = vld [vmem:[%s8120 + $0x44] sm:$0x1]
        %v8159 = vld [vmem:[%s8120 + $0x50] sm:$0x1]
        %v8160 = vld [vmem:[%s8120 + $0x5c] sm:$0x1]
        %v8162 = vshrl.u32 %v8121, 16
        %v8164 = vrot.slane %v8162, 4
        %v8165 = vshll.u32 %v8121, 16
        %v8167 = vrot.slane %v8165, 5
        %v8168 = vor.u32 %v8164, %v8167
        %v8169 = vrot.slane %v8168, 4
        %v8171 = vshll.u32 %v8122, 16
        %v8173 = vrot.slane %v8171, 5
        %v8174 = vsel %vm1099, %v8169, %v8173
        %v8175 = vshrl.u32 %v8122, 16
        %v8177 = vrot.slane %v8175, 4
        %v8178 = vor.u32 %v8177, %v8173
        %v8179 = vrot.slane %v8178, 4
        %v8181 = vshll.u32 %v8153, 16
        %v8183 = vrot.slane %v8181, 5
        %v8184 = vsel %vm1099, %v8179, %v8183
        %v8186 = vshrl.u32 %v8123, 16
        %v8188 = vrot.slane %v8186, 4
        %v8189 = vshll.u32 %v8123, 16
        %v8191 = vrot.slane %v8189, 5
        %v8192 = vor.u32 %v8188, %v8191
        %v8193 = vrot.slane %v8192, 4
        %v8195 = vshll.u32 %v8124, 16
        %v8197 = vrot.slane %v8195, 5
        %v8198 = vsel %vm1099, %v8193, %v8197
        %v8199 = vshrl.u32 %v8124, 16
        %v8201 = vrot.slane %v8199, 4
        %v8202 = vor.u32 %v8201, %v8197
        %v8203 = vrot.slane %v8202, 4
        %v8205 = vshll.u32 %v8154, 16
        %v8207 = vrot.slane %v8205, 5
        %v8208 = vsel %vm1099, %v8203, %v8207
        %v8210 = vshrl.u32 %v8125, 16
        %v8212 = vrot.slane %v8210, 4
        %v8213 = vshll.u32 %v8125, 16
        %v8215 = vrot.slane %v8213, 5
        %v8216 = vor.u32 %v8212, %v8215
        %v8217 = vrot.slane %v8216, 4
        %v8219 = vshll.u32 %v8126, 16
        %v8221 = vrot.slane %v8219, 5
        %v8222 = vsel %vm1099, %v8217, %v8221
        %v8223 = vshrl.u32 %v8126, 16
        %v8225 = vrot.slane %v8223, 4
        %v8226 = vor.u32 %v8225, %v8221
        %v8227 = vrot.slane %v8226, 4
        %v8229 = vshll.u32 %v8155, 16
        %v8231 = vrot.slane %v8229, 5
        %v8232 = vsel %vm1099, %v8227, %v8231
        %v8234 = vshrl.u32 %v8127, 16
        %v8236 = vrot.slane %v8234, 4
        %v8237 = vshll.u32 %v8127, 16
        %v8239 = vrot.slane %v8237, 5
        %v8240 = vor.u32 %v8236, %v8239
        %v8241 = vrot.slane %v8240, 4
        %v8243 = vshll.u32 %v8128, 16
        %v8245 = vrot.slane %v8243, 5
        %v8246 = vsel %vm1099, %v8241, %v8245
        %v8247 = vshrl.u32 %v8128, 16
        %v8249 = vrot.slane %v8247, 4
        %v8250 = vor.u32 %v8249, %v8245
        %v8251 = vrot.slane %v8250, 4
        %v8253 = vshll.u32 %v8156, 16
        %v8255 = vrot.slane %v8253, 5
        %v8256 = vsel %vm1099, %v8251, %v8255
        %v8258 = vshrl.u32 %v8129, 16
        %v8260 = vrot.slane %v8258, 4
        %v8261 = vshll.u32 %v8129, 16
        %v8263 = vrot.slane %v8261, 5
        %v8264 = vor.u32 %v8260, %v8263
        %v8265 = vrot.slane %v8264, 4
        %v8267 = vshll.u32 %v8130, 16
        %v8269 = vrot.slane %v8267, 5
        %v8270 = vsel %vm1099, %v8265, %v8269
        %v8271 = vshrl.u32 %v8130, 16
        %v8273 = vrot.slane %v8271, 4
        %v8274 = vor.u32 %v8273, %v8269
        %v8275 = vrot.slane %v8274, 4
        %v8277 = vshll.u32 %v8157, 16
        %v8279 = vrot.slane %v8277, 5
        %v8280 = vsel %vm1099, %v8275, %v8279
        %v8282 = vshrl.u32 %v8131, 16
        %v8284 = vrot.slane %v8282, 4
        %v8285 = vshll.u32 %v8131, 16
        %v8287 = vrot.slane %v8285, 5
        %v8288 = vor.u32 %v8284, %v8287
        %v8289 = vrot.slane %v8288, 4
        %v8291 = vshll.u32 %v8132, 16
        %v8293 = vrot.slane %v8291, 5
        %v8294 = vsel %vm1099, %v8289, %v8293
        %v8295 = vshrl.u32 %v8132, 16
        %v8297 = vrot.slane %v8295, 4
        %v8298 = vor.u32 %v8297, %v8293
        %v8299 = vrot.slane %v8298, 4
        %v8301 = vshll.u32 %v8158, 16
        %v8303 = vrot.slane %v8301, 5
        %v8304 = vsel %vm1099, %v8299, %v8303
        %v8306 = vshrl.u32 %v8133, 16
        %v8308 = vrot.slane %v8306, 4
        %v8309 = vshll.u32 %v8133, 16
        %v8311 = vrot.slane %v8309, 5
        %v8312 = vor.u32 %v8308, %v8311
        %v8313 = vrot.slane %v8312, 4
        %v8315 = vshll.u32 %v8134, 16
        %v8317 = vrot.slane %v8315, 5
        %v8318 = vsel %vm1099, %v8313, %v8317
        %v8319 = vshrl.u32 %v8134, 16
        %v8321 = vrot.slane %v8319, 4
        %v8322 = vor.u32 %v8321, %v8317
        %v8323 = vrot.slane %v8322, 4
        %v8325 = vshll.u32 %v8159, 16
        %v8327 = vrot.slane %v8325, 5
        %v8328 = vsel %vm1099, %v8323, %v8327
        %v8330 = vshrl.u32 %v8135, 16
        %v8332 = vrot.slane %v8330, 4
        %v8333 = vshll.u32 %v8135, 16
        %v8335 = vrot.slane %v8333, 5
        %v8336 = vor.u32 %v8332, %v8335
        %v8337 = vrot.slane %v8336, 4
        %v8339 = vshll.u32 %v8136, 16
        %v8341 = vrot.slane %v8339, 5
        %v8342 = vsel %vm1099, %v8337, %v8341
        %v8343 = vshrl.u32 %v8136, 16
        %v8345 = vrot.slane %v8343, 4
        %v8346 = vor.u32 %v8345, %v8341
        %v8347 = vrot.slane %v8346, 4
        %v8349 = vshll.u32 %v8160, 16
        %v8351 = vrot.slane %v8349, 5
        %v8352 = vsel %vm1099, %v8347, %v8351
        %v8353 = vld [vmem:[%s5874] sm:$0xf]
        %v8354 = vld [vmem:[%s5874 + $0x4] sm:$0xf]
        %v8355 = vld [vmem:[%s5874 + $0x8] sm:$0xf]
        %v8356 = vld [vmem:[%s5874 + $0xc] sm:$0xf]
        %v8357 = vld [vmem:[%s5874 + $0x10] sm:$0xf]
        %v8358 = vld [vmem:[%s5874 + $0x14] sm:$0xf]
        %v8359 = vld [vmem:[%s5874 + $0x18] sm:$0xf]
        %v8360 = vld [vmem:[%s5874 + $0x1c] sm:$0xf]
        %v8361 = vld [vmem:[%s5874 + $0x20] sm:$0xf]
        %v8362 = vld [vmem:[%s5874 + $0x24] sm:$0xf]
        %v8363 = vld [vmem:[%s5874 + $0x28] sm:$0xf]
        %v8364 = vld [vmem:[%s5874 + $0x2c] sm:$0xf]
        %v8365 = vld [vmem:[%s5874 + $0x30] sm:$0xf]
        %v8366 = vld [vmem:[%s5874 + $0x34] sm:$0xf]
        %v8367 = vld [vmem:[%s5874 + $0x38] sm:$0xf]
        %v8368 = vld [vmem:[%s5874 + $0x3c] sm:$0xf]
        %v8369 = vunpack.c.l.b16 %v8174
        %v8370 = vunpack.c.l.b16 %v8184
        %v8371 = vunpack.c.l.b16 %v8198
        %v8372 = vunpack.c.l.b16 %v8208
        %v8373 = vunpack.c.l.b16 %v8222
        %v8374 = vunpack.c.l.b16 %v8232
        %v8375 = vunpack.c.l.b16 %v8246
        %v8376 = vunpack.c.l.b16 %v8256
        %v8377 = vunpack.c.l.b16 %v8270
        %v8378 = vunpack.c.l.b16 %v8280
        %v8379 = vunpack.c.l.b16 %v8294
        %v8380 = vunpack.c.l.b16 %v8304
        %v8381 = vunpack.c.l.b16 %v8318
        %v8382 = vunpack.c.l.b16 %v8328
        %v8383 = vunpack.c.l.b16 %v8342
        %v8384 = vunpack.c.l.b16 %v8352
        %v8385 = vpack.c.b16 %v8370, %v8369
        %v8386 = vpack.c.b16 %v8372, %v8371
        %v8387 = vpack.c.b16 %v8374, %v8373
        %v8388 = vpack.c.b16 %v8376, %v8375
        %v8389 = vpack.c.b16 %v8378, %v8377
        %v8390 = vpack.c.b16 %v8380, %v8379
        %v8391 = vpack.c.b16 %v8382, %v8381
        %v8392 = vpack.c.b16 %v8384, %v8383
        %v8417 = vunpack.c.l.b16 %v8353
        %v8418 = vunpack.c.l.b16 %v8354
        %v8419 = vunpack.c.l.b16 %v8355
        %v8420 = vunpack.c.l.b16 %v8356
        %v8421 = vunpack.c.l.b16 %v8357
        %v8422 = vunpack.c.l.b16 %v8358
        %v8423 = vunpack.c.l.b16 %v8359
        %v8424 = vunpack.c.l.b16 %v8360
        %v8425 = vunpack.c.l.b16 %v8361
        %v8426 = vunpack.c.l.b16 %v8362
        %v8427 = vunpack.c.l.b16 %v8363
        %v8428 = vunpack.c.l.b16 %v8364
        %v8429 = vunpack.c.l.b16 %v8365
        %v8430 = vunpack.c.l.b16 %v8366
        %v8431 = vunpack.c.l.b16 %v8367
        %v8432 = vunpack.c.l.b16 %v8368
        %v8433 = vpack.c.b16 %v8418, %v8417
        %v8434 = vpack.c.b16 %v8420, %v8419
        %v8435 = vpack.c.b16 %v8422, %v8421
        %v8436 = vpack.c.b16 %v8424, %v8423
        %v8437 = vpack.c.b16 %v8426, %v8425
        %v8438 = vpack.c.b16 %v8428, %v8427
        %v8439 = vpack.c.b16 %v8430, %v8429
        %v8440 = vpack.c.b16 %v8432, %v8431
        %8449 = vmatpush.bf16.msra.mxu0 %v8440
        %8450 = vmatpush.bf16.msra.mxu0 %v8439
        %8451 = vmatpush.bf16.msra.mxu0 %v8438
        %8452 = vmatpush.bf16.msra.mxu0 %v8437
        %8453 = vmatpush.bf16.msra.mxu0 %v8436
        %8454 = vmatpush.bf16.msra.mxu0 %v8435
        %8455 = vmatpush.bf16.msra.mxu0 %v8434
        %8456 = vmatpush.bf16.msra.mxu0 %v8433
        %8457 = vmatmul.bf16.gmra.mxu0 %v8385
        %v8458 = vpop.f32.mrf.mxu0
        %v8459 = vadd.f32 0.0, %v8458
        %v8460 = vpop.f32.mrf.mxu0
        %v8461 = vadd.f32 0.0, %v8460
        %8462 = vmatmul.bf16.gmra.mxu0 %v8386
        %v8463 = vpop.f32.mrf.mxu0
        %v8464 = vadd.f32 0.0, %v8463
        %v8465 = vpop.f32.mrf.mxu0
        %v8466 = vadd.f32 0.0, %v8465
        %8467 = vmatmul.bf16.gmra.mxu0 %v8387
        %v8468 = vpop.f32.mrf.mxu0
        %v8469 = vadd.f32 0.0, %v8468
        %v8470 = vpop.f32.mrf.mxu0
        %v8471 = vadd.f32 0.0, %v8470
        %8472 = vmatmul.bf16.gmra.mxu0 %v8388
        %v8473 = vpop.f32.mrf.mxu0
        %v8474 = vadd.f32 0.0, %v8473
        %v8475 = vpop.f32.mrf.mxu0
        %v8476 = vadd.f32 0.0, %v8475
        %8477 = vmatmul.bf16.gmra.mxu0 %v8389
        %v8478 = vpop.f32.mrf.mxu0
        %v8479 = vadd.f32 0.0, %v8478
        %v8480 = vpop.f32.mrf.mxu0
        %v8481 = vadd.f32 0.0, %v8480
        %8482 = vmatmul.bf16.gmra.mxu0 %v8390
        %v8483 = vpop.f32.mrf.mxu0
        %v8484 = vadd.f32 0.0, %v8483
        %v8485 = vpop.f32.mrf.mxu0
        %v8486 = vadd.f32 0.0, %v8485
        %8487 = vmatmul.bf16.gmra.mxu0 %v8391
        %v8488 = vpop.f32.mrf.mxu0
        %v8489 = vadd.f32 0.0, %v8488
        %v8490 = vpop.f32.mrf.mxu0
        %v8491 = vadd.f32 0.0, %v8490
        %8492 = vmatmul.bf16.gmra.mxu0 %v8392
        %v8493 = vpop.f32.mrf.mxu0
        %v8494 = vadd.f32 0.0, %v8493
        %v8495 = vpop.f32.mrf.mxu0
        %v8496 = vadd.f32 0.0, %v8495
        %8497 = vdwg.mxu0
        %v8514 = vunpack.c.l.b16 %v8121
        %v8515 = vunpack.c.l.b16 %v8122
        %v8516 = vunpack.c.l.b16 %v8123
        %v8517 = vunpack.c.l.b16 %v8124
        %v8518 = vunpack.c.l.b16 %v8125
        %v8519 = vunpack.c.l.b16 %v8126
        %v8520 = vunpack.c.l.b16 %v8127
        %v8521 = vunpack.c.l.b16 %v8128
        %v8522 = vunpack.c.l.b16 %v8129
        %v8523 = vunpack.c.l.b16 %v8130
        %v8524 = vunpack.c.l.b16 %v8131
        %v8525 = vunpack.c.l.b16 %v8132
        %v8526 = vunpack.c.l.b16 %v8133
        %v8527 = vunpack.c.l.b16 %v8134
        %v8528 = vunpack.c.l.b16 %v8135
        %v8529 = vunpack.c.l.b16 %v8136
        %v8530 = vpack.c.b16 %v8515, %v8514
        %v8531 = vpack.c.b16 %v8517, %v8516
        %v8532 = vpack.c.b16 %v8519, %v8518
        %v8533 = vpack.c.b16 %v8521, %v8520
        %v8534 = vpack.c.b16 %v8523, %v8522
        %v8535 = vpack.c.b16 %v8525, %v8524
        %v8536 = vpack.c.b16 %v8527, %v8526
        %v8537 = vpack.c.b16 %v8529, %v8528
        %v8562 = vunpack.c.l.b16 %v8137
        %v8563 = vunpack.c.l.b16 %v8138
        %v8564 = vunpack.c.l.b16 %v8139
        %v8565 = vunpack.c.l.b16 %v8140
        %v8566 = vunpack.c.l.b16 %v8141
        %v8567 = vunpack.c.l.b16 %v8142
        %v8568 = vunpack.c.l.b16 %v8143
        %v8569 = vunpack.c.l.b16 %v8144
        %v8570 = vunpack.c.l.b16 %v8145
        %v8571 = vunpack.c.l.b16 %v8146
        %v8572 = vunpack.c.l.b16 %v8147
        %v8573 = vunpack.c.l.b16 %v8148
        %v8574 = vunpack.c.l.b16 %v8149
        %v8575 = vunpack.c.l.b16 %v8150
        %v8576 = vunpack.c.l.b16 %v8151
        %v8577 = vunpack.c.l.b16 %v8152
        %v8578 = vpack.c.b16 %v8563, %v8562
        %v8579 = vpack.c.b16 %v8565, %v8564
        %v8580 = vpack.c.b16 %v8567, %v8566
        %v8581 = vpack.c.b16 %v8569, %v8568
        %v8582 = vpack.c.b16 %v8571, %v8570
        %v8583 = vpack.c.b16 %v8573, %v8572
        %v8584 = vpack.c.b16 %v8575, %v8574
        %v8585 = vpack.c.b16 %v8577, %v8576
        %8594 = vmatpush.bf16.msra.mxu0 %v8585
        %8595 = vmatpush.bf16.msra.mxu0 %v8584
        %8596 = vmatpush.bf16.msra.mxu0 %v8583
        %8597 = vmatpush.bf16.msra.mxu0 %v8582
        %8598 = vmatpush.bf16.msra.mxu0 %v8581
        %8599 = vmatpush.bf16.msra.mxu0 %v8580
        %8600 = vmatpush.bf16.msra.mxu0 %v8579
        %8601 = vmatpush.bf16.msra.mxu0 %v8578
        %8602 = vmatmul.bf16.gmra.mxu0 %v8530
        %v8603 = vpop.f32.mrf.mxu0
        %v8604 = vadd.f32 %v8459, %v8603
        %v8605 = vpop.f32.mrf.mxu0
        %v8606 = vadd.f32 %v8461, %v8605
        %8607 = vmatmul.bf16.gmra.mxu0 %v8531
        %v8608 = vpop.f32.mrf.mxu0
        %v8609 = vadd.f32 %v8464, %v8608
        %v8610 = vpop.f32.mrf.mxu0
        %v8611 = vadd.f32 %v8466, %v8610
        %8612 = vmatmul.bf16.gmra.mxu0 %v8532
        %v8613 = vpop.f32.mrf.mxu0
        %v8614 = vadd.f32 %v8469, %v8613
        %v8615 = vpop.f32.mrf.mxu0
        %v8616 = vadd.f32 %v8471, %v8615
        %8617 = vmatmul.bf16.gmra.mxu0 %v8533
        %v8618 = vpop.f32.mrf.mxu0
        %v8619 = vadd.f32 %v8474, %v8618
        %v8620 = vpop.f32.mrf.mxu0
        %v8621 = vadd.f32 %v8476, %v8620
        %8622 = vmatmul.bf16.gmra.mxu0 %v8534
        %v8623 = vpop.f32.mrf.mxu0
        %v8624 = vadd.f32 %v8479, %v8623
        %v8625 = vpop.f32.mrf.mxu0
        %v8626 = vadd.f32 %v8481, %v8625
        %8627 = vmatmul.bf16.gmra.mxu0 %v8535
        %v8628 = vpop.f32.mrf.mxu0
        %v8629 = vadd.f32 %v8484, %v8628
        %v8630 = vpop.f32.mrf.mxu0
        %v8631 = vadd.f32 %v8486, %v8630
        %8632 = vmatmul.bf16.gmra.mxu0 %v8536
        %v8633 = vpop.f32.mrf.mxu0
        %v8634 = vadd.f32 %v8489, %v8633
        %v8635 = vpop.f32.mrf.mxu0
        %v8636 = vadd.f32 %v8491, %v8635
        %8637 = vmatmul.bf16.gmra.mxu0 %v8537
        %v8638 = vpop.f32.mrf.mxu0
        %v8639 = vadd.f32 %v8494, %v8638
        %v8640 = vpop.f32.mrf.mxu0
        %v8641 = vadd.f32 %v8496, %v8640
        %8642 = vdwg.mxu0
        %v8643 = vld [vmem:[%s8120] sm:$0xe]
        %v8644 = vld [vmem:[%s8120 + $0xc] sm:$0xe]
        %v8645 = vld [vmem:[%s8120 + $0x18] sm:$0xe]
        %v8646 = vld [vmem:[%s8120 + $0x24] sm:$0xe]
        %v8647 = vld [vmem:[%s8120 + $0x30] sm:$0xe]
        %v8648 = vld [vmem:[%s8120 + $0x3c] sm:$0xe]
        %v8649 = vld [vmem:[%s8120 + $0x48] sm:$0xe]
        %v8650 = vld [vmem:[%s8120 + $0x54] sm:$0xe]
        %v8667 = vrot.slane %v8643, 5
        %v8668 = vrot.slane %v8667, 4
        %v8669 = vrot.slane %v8122, 5
        %v8670 = vsel %vm1538, %v8668, %v8669
        %v8671 = vrot.slane %v8669, 4
        %v8672 = vrot.slane %v8153, 5
        %v8673 = vsel %vm1538, %v8671, %v8672
        %v8674 = vrot.slane %v8644, 5
        %v8675 = vrot.slane %v8674, 4
        %v8676 = vrot.slane %v8124, 5
        %v8677 = vsel %vm1538, %v8675, %v8676
        %v8678 = vrot.slane %v8676, 4
        %v8679 = vrot.slane %v8154, 5
        %v8680 = vsel %vm1538, %v8678, %v8679
        %v8681 = vrot.slane %v8645, 5
        %v8682 = vrot.slane %v8681, 4
        %v8683 = vrot.slane %v8126, 5
        %v8684 = vsel %vm1538, %v8682, %v8683
        %v8685 = vrot.slane %v8683, 4
        %v8686 = vrot.slane %v8155, 5
        %v8687 = vsel %vm1538, %v8685, %v8686
        %v8688 = vrot.slane %v8646, 5
        %v8689 = vrot.slane %v8688, 4
        %v8690 = vrot.slane %v8128, 5
        %v8691 = vsel %vm1538, %v8689, %v8690
        %v8692 = vrot.slane %v8690, 4
        %v8693 = vrot.slane %v8156, 5
        %v8694 = vsel %vm1538, %v8692, %v8693
        %v8695 = vrot.slane %v8647, 5
        %v8696 = vrot.slane %v8695, 4
        %v8697 = vrot.slane %v8130, 5
        %v8698 = vsel %vm1538, %v8696, %v8697
        %v8699 = vrot.slane %v8697, 4
        %v8700 = vrot.slane %v8157, 5
        %v8701 = vsel %vm1538, %v8699, %v8700
        %v8702 = vrot.slane %v8648, 5
        %v8703 = vrot.slane %v8702, 4
        %v8704 = vrot.slane %v8132, 5
        %v8705 = vsel %vm1538, %v8703, %v8704
        %v8706 = vrot.slane %v8704, 4
        %v8707 = vrot.slane %v8158, 5
        %v8708 = vsel %vm1538, %v8706, %v8707
        %v8709 = vrot.slane %v8649, 5
        %v8710 = vrot.slane %v8709, 4
        %v8711 = vrot.slane %v8134, 5
        %v8712 = vsel %vm1538, %v8710, %v8711
        %v8713 = vrot.slane %v8711, 4
        %v8714 = vrot.slane %v8159, 5
        %v8715 = vsel %vm1538, %v8713, %v8714
        %v8716 = vrot.slane %v8650, 5
        %v8717 = vrot.slane %v8716, 4
        %v8718 = vrot.slane %v8136, 5
        %v8719 = vsel %vm1538, %v8717, %v8718
        %v8720 = vrot.slane %v8718, 4
        %v8721 = vrot.slane %v8160, 5
        %v8722 = vsel %vm1538, %v8720, %v8721
        %v8723 = vld [vmem:[%s6245] sm:$0xf]
        %v8724 = vld [vmem:[%s6245 + $0x4] sm:$0xf]
        %v8725 = vld [vmem:[%s6245 + $0x8] sm:$0xf]
        %v8726 = vld [vmem:[%s6245 + $0xc] sm:$0xf]
        %v8727 = vld [vmem:[%s6245 + $0x10] sm:$0xf]
        %v8728 = vld [vmem:[%s6245 + $0x14] sm:$0xf]
        %v8729 = vld [vmem:[%s6245 + $0x18] sm:$0xf]
        %v8730 = vld [vmem:[%s6245 + $0x1c] sm:$0xf]
        %v8731 = vld [vmem:[%s6245 + $0x20] sm:$0xf]
        %v8732 = vld [vmem:[%s6245 + $0x24] sm:$0xf]
        %v8733 = vld [vmem:[%s6245 + $0x28] sm:$0xf]
        %v8734 = vld [vmem:[%s6245 + $0x2c] sm:$0xf]
        %v8735 = vld [vmem:[%s6245 + $0x30] sm:$0xf]
        %v8736 = vld [vmem:[%s6245 + $0x34] sm:$0xf]
        %v8737 = vld [vmem:[%s6245 + $0x38] sm:$0xf]
        %v8738 = vld [vmem:[%s6245 + $0x3c] sm:$0xf]
        %v8739 = vunpack.c.l.b16 %v8670
        %v8740 = vunpack.c.l.b16 %v8673
        %v8741 = vunpack.c.l.b16 %v8677
        %v8742 = vunpack.c.l.b16 %v8680
        %v8743 = vunpack.c.l.b16 %v8684
        %v8744 = vunpack.c.l.b16 %v8687
        %v8745 = vunpack.c.l.b16 %v8691
        %v8746 = vunpack.c.l.b16 %v8694
        %v8747 = vunpack.c.l.b16 %v8698
        %v8748 = vunpack.c.l.b16 %v8701
        %v8749 = vunpack.c.l.b16 %v8705
        %v8750 = vunpack.c.l.b16 %v8708
        %v8751 = vunpack.c.l.b16 %v8712
        %v8752 = vunpack.c.l.b16 %v8715
        %v8753 = vunpack.c.l.b16 %v8719
        %v8754 = vunpack.c.l.b16 %v8722
        %v8755 = vpack.c.b16 %v8740, %v8739
        %v8756 = vpack.c.b16 %v8742, %v8741
        %v8757 = vpack.c.b16 %v8744, %v8743
        %v8758 = vpack.c.b16 %v8746, %v8745
        %v8759 = vpack.c.b16 %v8748, %v8747
        %v8760 = vpack.c.b16 %v8750, %v8749
        %v8761 = vpack.c.b16 %v8752, %v8751
        %v8762 = vpack.c.b16 %v8754, %v8753
        %v8787 = vunpack.c.l.b16 %v8723
        %v8788 = vunpack.c.l.b16 %v8724
        %v8789 = vunpack.c.l.b16 %v8725
        %v8790 = vunpack.c.l.b16 %v8726
        %v8791 = vunpack.c.l.b16 %v8727
        %v8792 = vunpack.c.l.b16 %v8728
        %v8793 = vunpack.c.l.b16 %v8729
        %v8794 = vunpack.c.l.b16 %v8730
        %v8795 = vunpack.c.l.b16 %v8731
        %v8796 = vunpack.c.l.b16 %v8732
        %v8797 = vunpack.c.l.b16 %v8733
        %v8798 = vunpack.c.l.b16 %v8734
        %v8799 = vunpack.c.l.b16 %v8735
        %v8800 = vunpack.c.l.b16 %v8736
        %v8801 = vunpack.c.l.b16 %v8737
        %v8802 = vunpack.c.l.b16 %v8738
        %v8803 = vpack.c.b16 %v8788, %v8787
        %v8804 = vpack.c.b16 %v8790, %v8789
        %v8805 = vpack.c.b16 %v8792, %v8791
        %v8806 = vpack.c.b16 %v8794, %v8793
        %v8807 = vpack.c.b16 %v8796, %v8795
        %v8808 = vpack.c.b16 %v8798, %v8797
        %v8809 = vpack.c.b16 %v8800, %v8799
        %v8810 = vpack.c.b16 %v8802, %v8801
        %8819 = vmatpush.bf16.msra.mxu0 %v8810
        %8820 = vmatpush.bf16.msra.mxu0 %v8809
        %8821 = vmatpush.bf16.msra.mxu0 %v8808
        %8822 = vmatpush.bf16.msra.mxu0 %v8807
        %8823 = vmatpush.bf16.msra.mxu0 %v8806
        %8824 = vmatpush.bf16.msra.mxu0 %v8805
        %8825 = vmatpush.bf16.msra.mxu0 %v8804
        %8826 = vmatpush.bf16.msra.mxu0 %v8803
        %8827 = vmatmul.bf16.gmra.mxu0 %v8755
        %v8828 = vpop.f32.mrf.mxu0
        %v8829 = vadd.f32 0.0, %v8828
        %v8830 = vpop.f32.mrf.mxu0
        %v8831 = vadd.f32 0.0, %v8830
        %8832 = vmatmul.bf16.gmra.mxu0 %v8756
        %v8833 = vpop.f32.mrf.mxu0
        %v8834 = vadd.f32 0.0, %v8833
        %v8835 = vpop.f32.mrf.mxu0
        %v8836 = vadd.f32 0.0, %v8835
        %8837 = vmatmul.bf16.gmra.mxu0 %v8757
        %v8838 = vpop.f32.mrf.mxu0
        %v8839 = vadd.f32 0.0, %v8838
        %v8840 = vpop.f32.mrf.mxu0
        %v8841 = vadd.f32 0.0, %v8840
        %8842 = vmatmul.bf16.gmra.mxu0 %v8758
        %v8843 = vpop.f32.mrf.mxu0
        %v8844 = vadd.f32 0.0, %v8843
        %v8845 = vpop.f32.mrf.mxu0
        %v8846 = vadd.f32 0.0, %v8845
        %8847 = vmatmul.bf16.gmra.mxu0 %v8759
        %v8848 = vpop.f32.mrf.mxu0
        %v8849 = vadd.f32 0.0, %v8848
        %v8850 = vpop.f32.mrf.mxu0
        %v8851 = vadd.f32 0.0, %v8850
        %8852 = vmatmul.bf16.gmra.mxu0 %v8760
        %v8853 = vpop.f32.mrf.mxu0
        %v8854 = vadd.f32 0.0, %v8853
        %v8855 = vpop.f32.mrf.mxu0
        %v8856 = vadd.f32 0.0, %v8855
        %8857 = vmatmul.bf16.gmra.mxu0 %v8761
        %v8858 = vpop.f32.mrf.mxu0
        %v8859 = vadd.f32 0.0, %v8858
        %v8860 = vpop.f32.mrf.mxu0
        %v8861 = vadd.f32 0.0, %v8860
        %8862 = vmatmul.bf16.gmra.mxu0 %v8762
        %v8863 = vpop.f32.mrf.mxu0
        %v8864 = vadd.f32 0.0, %v8863
        %v8865 = vpop.f32.mrf.mxu0
        %v8866 = vadd.f32 0.0, %v8865
        %8867 = vdwg.mxu0
        %v8868 = vadd.f32 %v8604, %v8829
        %v8869 = vadd.f32 %v8606, %v8831
        %v8870 = vadd.f32 %v8609, %v8834
        %v8871 = vadd.f32 %v8611, %v8836
        %v8872 = vadd.f32 %v8614, %v8839
        %v8873 = vadd.f32 %v8616, %v8841
        %v8874 = vadd.f32 %v8619, %v8844
        %v8875 = vadd.f32 %v8621, %v8846
        %v8876 = vadd.f32 %v8624, %v8849
        %v8877 = vadd.f32 %v8626, %v8851
        %v8878 = vadd.f32 %v8629, %v8854
        %v8879 = vadd.f32 %v8631, %v8856
        %v8880 = vadd.f32 %v8634, %v8859
        %v8881 = vadd.f32 %v8636, %v8861
        %v8882 = vadd.f32 %v8639, %v8864
        %v8883 = vadd.f32 %v8641, %v8866
        %v8884 = vld [vmem:[%s5585] sm:$0xf]
        %v8885 = vld [vmem:[%s5585 + $0x4] sm:$0xf]
        %v8886 = vld [vmem:[%s5585 + $0xc] sm:$0xf]
        %v8887 = vld [vmem:[%s5585 + $0x10] sm:$0xf]
        %v8888 = vld [vmem:[%s5585 + $0x18] sm:$0xf]
        %v8889 = vld [vmem:[%s5585 + $0x1c] sm:$0xf]
        %v8890 = vld [vmem:[%s5585 + $0x24] sm:$0xf]
        %v8891 = vld [vmem:[%s5585 + $0x28] sm:$0xf]
        %v8892 = vld [vmem:[%s5585 + $0x30] sm:$0xf]
        %v8893 = vld [vmem:[%s5585 + $0x34] sm:$0xf]
        %v8894 = vld [vmem:[%s5585 + $0x3c] sm:$0xf]
        %v8895 = vld [vmem:[%s5585 + $0x40] sm:$0xf]
        %v8896 = vld [vmem:[%s5585 + $0x48] sm:$0xf]
        %v8897 = vld [vmem:[%s5585 + $0x4c] sm:$0xf]
        %v8898 = vld [vmem:[%s5585 + $0x54] sm:$0xf]
        %v8899 = vld [vmem:[%s5585 + $0x58] sm:$0xf]
        %v8900 = vld [vmem:[%s6423] sm:$0xf]
        %v8901 = vld [vmem:[%s6423 + $0x4] sm:$0xf]
        %v8902 = vld [vmem:[%s6423 + $0x8] sm:$0xf]
        %v8903 = vld [vmem:[%s6423 + $0xc] sm:$0xf]
        %v8904 = vld [vmem:[%s6423 + $0x10] sm:$0xf]
        %v8905 = vld [vmem:[%s6423 + $0x14] sm:$0xf]
        %v8906 = vld [vmem:[%s6423 + $0x18] sm:$0xf]
        %v8907 = vld [vmem:[%s6423 + $0x1c] sm:$0xf]
        %v8908 = vld [vmem:[%s6423 + $0x20] sm:$0xf]
        %v8909 = vld [vmem:[%s6423 + $0x24] sm:$0xf]
        %v8910 = vld [vmem:[%s6423 + $0x28] sm:$0xf]
        %v8911 = vld [vmem:[%s6423 + $0x2c] sm:$0xf]
        %v8912 = vld [vmem:[%s6423 + $0x30] sm:$0xf]
        %v8913 = vld [vmem:[%s6423 + $0x34] sm:$0xf]
        %v8914 = vld [vmem:[%s6423 + $0x38] sm:$0xf]
        %v8915 = vld [vmem:[%s6423 + $0x3c] sm:$0xf]
        %v8932 = vunpack.c.l.b16 %v8884
        %v8933 = vunpack.c.l.b16 %v8885
        %v8934 = vunpack.c.l.b16 %v8886
        %v8935 = vunpack.c.l.b16 %v8887
        %v8936 = vunpack.c.l.b16 %v8888
        %v8937 = vunpack.c.l.b16 %v8889
        %v8938 = vunpack.c.l.b16 %v8890
        %v8939 = vunpack.c.l.b16 %v8891
        %v8940 = vunpack.c.l.b16 %v8892
        %v8941 = vunpack.c.l.b16 %v8893
        %v8942 = vunpack.c.l.b16 %v8894
        %v8943 = vunpack.c.l.b16 %v8895
        %v8944 = vunpack.c.l.b16 %v8896
        %v8945 = vunpack.c.l.b16 %v8897
        %v8946 = vunpack.c.l.b16 %v8898
        %v8947 = vunpack.c.l.b16 %v8899
        %v8948 = vpack.c.b16 %v8933, %v8932
        %v8949 = vpack.c.b16 %v8935, %v8934
        %v8950 = vpack.c.b16 %v8937, %v8936
        %v8951 = vpack.c.b16 %v8939, %v8938
        %v8952 = vpack.c.b16 %v8941, %v8940
        %v8953 = vpack.c.b16 %v8943, %v8942
        %v8954 = vpack.c.b16 %v8945, %v8944
        %v8955 = vpack.c.b16 %v8947, %v8946
        %v8980 = vunpack.c.l.b16 %v8900
        %v8981 = vunpack.c.l.b16 %v8901
        %v8982 = vunpack.c.l.b16 %v8902
        %v8983 = vunpack.c.l.b16 %v8903
        %v8984 = vunpack.c.l.b16 %v8904
        %v8985 = vunpack.c.l.b16 %v8905
        %v8986 = vunpack.c.l.b16 %v8906
        %v8987 = vunpack.c.l.b16 %v8907
        %v8988 = vunpack.c.l.b16 %v8908
        %v8989 = vunpack.c.l.b16 %v8909
        %v8990 = vunpack.c.l.b16 %v8910
        %v8991 = vunpack.c.l.b16 %v8911
        %v8992 = vunpack.c.l.b16 %v8912
        %v8993 = vunpack.c.l.b16 %v8913
        %v8994 = vunpack.c.l.b16 %v8914
        %v8995 = vunpack.c.l.b16 %v8915
        %v8996 = vpack.c.b16 %v8981, %v8980
        %v8997 = vpack.c.b16 %v8983, %v8982
        %v8998 = vpack.c.b16 %v8985, %v8984
        %v8999 = vpack.c.b16 %v8987, %v8986
        %v9000 = vpack.c.b16 %v8989, %v8988
        %v9001 = vpack.c.b16 %v8991, %v8990
        %v9002 = vpack.c.b16 %v8993, %v8992
        %v9003 = vpack.c.b16 %v8995, %v8994
        %9012 = vmatpush.bf16.msra.mxu0 %v9003
        %9013 = vmatpush.bf16.msra.mxu0 %v9002
        %9014 = vmatpush.bf16.msra.mxu0 %v9001
        %9015 = vmatpush.bf16.msra.mxu0 %v9000
        %9016 = vmatpush.bf16.msra.mxu0 %v8999
        %9017 = vmatpush.bf16.msra.mxu0 %v8998
        %9018 = vmatpush.bf16.msra.mxu0 %v8997
        %9019 = vmatpush.bf16.msra.mxu0 %v8996
        %9020 = vmatmul.bf16.gmra.mxu0 %v8948
        %v9021 = vpop.f32.mrf.mxu0
        %v9022 = vadd.f32 0.0, %v9021
        %v9023 = vpop.f32.mrf.mxu0
        %v9024 = vadd.f32 0.0, %v9023
        %9025 = vmatmul.bf16.gmra.mxu0 %v8949
        %v9026 = vpop.f32.mrf.mxu0
        %v9027 = vadd.f32 0.0, %v9026
        %v9028 = vpop.f32.mrf.mxu0
        %v9029 = vadd.f32 0.0, %v9028
        %9030 = vmatmul.bf16.gmra.mxu0 %v8950
        %v9031 = vpop.f32.mrf.mxu0
        %v9032 = vadd.f32 0.0, %v9031
        %v9033 = vpop.f32.mrf.mxu0
        %v9034 = vadd.f32 0.0, %v9033
        %9035 = vmatmul.bf16.gmra.mxu0 %v8951
        %v9036 = vpop.f32.mrf.mxu0
        %v9037 = vadd.f32 0.0, %v9036
        %v9038 = vpop.f32.mrf.mxu0
        %v9039 = vadd.f32 0.0, %v9038
        %9040 = vmatmul.bf16.gmra.mxu0 %v8952
        %v9041 = vpop.f32.mrf.mxu0
        %v9042 = vadd.f32 0.0, %v9041
        %v9043 = vpop.f32.mrf.mxu0
        %v9044 = vadd.f32 0.0, %v9043
        %9045 = vmatmul.bf16.gmra.mxu0 %v8953
        %v9046 = vpop.f32.mrf.mxu0
        %v9047 = vadd.f32 0.0, %v9046
        %v9048 = vpop.f32.mrf.mxu0
        %v9049 = vadd.f32 0.0, %v9048
        %9050 = vmatmul.bf16.gmra.mxu0 %v8954
        %v9051 = vpop.f32.mrf.mxu0
        %v9052 = vadd.f32 0.0, %v9051
        %v9053 = vpop.f32.mrf.mxu0
        %v9054 = vadd.f32 0.0, %v9053
        %9055 = vmatmul.bf16.gmra.mxu0 %v8955
        %v9056 = vpop.f32.mrf.mxu0
        %v9057 = vadd.f32 0.0, %v9056
        %v9058 = vpop.f32.mrf.mxu0
        %v9059 = vadd.f32 0.0, %v9058
        %9060 = vdwg.mxu0
        %v9061 = vadd.f32 %v8868, %v9022
        %v9062 = vadd.f32 %v8869, %v9024
        %v9063 = vadd.f32 %v8870, %v9027
        %v9064 = vadd.f32 %v8871, %v9029
        %v9065 = vadd.f32 %v8872, %v9032
        %v9066 = vadd.f32 %v8873, %v9034
        %v9067 = vadd.f32 %v8874, %v9037
        %v9068 = vadd.f32 %v8875, %v9039
        %v9069 = vadd.f32 %v8876, %v9042
        %v9070 = vadd.f32 %v8877, %v9044
        %v9071 = vadd.f32 %v8878, %v9047
        %v9072 = vadd.f32 %v8879, %v9049
        %v9073 = vadd.f32 %v8880, %v9052
        %v9074 = vadd.f32 %v8881, %v9054
        %v9075 = vadd.f32 %v8882, %v9057
        %v9076 = vadd.f32 %v8883, %v9059
        %v9077 = vld [vmem:[%s5585] sm:$0xf]
        %v9078 = vld [vmem:[%s5585 + $0x4] sm:$0xf]
        %v9079 = vld [vmem:[%s5585 + $0x8] sm:$0x1]
        %v9080 = vld [vmem:[%s5585 + $0xc] sm:$0xf]
        %v9081 = vld [vmem:[%s5585 + $0x10] sm:$0xf]
        %v9082 = vld [vmem:[%s5585 + $0x14] sm:$0x1]
        %v9083 = vld [vmem:[%s5585 + $0x18] sm:$0xf]
        %v9084 = vld [vmem:[%s5585 + $0x1c] sm:$0xf]
        %v9085 = vld [vmem:[%s5585 + $0x20] sm:$0x1]
        %v9086 = vld [vmem:[%s5585 + $0x24] sm:$0xf]
        %v9087 = vld [vmem:[%s5585 + $0x28] sm:$0xf]
        %v9088 = vld [vmem:[%s5585 + $0x2c] sm:$0x1]
        %v9089 = vld [vmem:[%s5585 + $0x30] sm:$0xf]
        %v9090 = vld [vmem:[%s5585 + $0x34] sm:$0xf]
        %v9091 = vld [vmem:[%s5585 + $0x38] sm:$0x1]
        %v9092 = vld [vmem:[%s5585 + $0x3c] sm:$0xf]
        %v9093 = vld [vmem:[%s5585 + $0x40] sm:$0xf]
        %v9094 = vld [vmem:[%s5585 + $0x44] sm:$0x1]
        %v9095 = vld [vmem:[%s5585 + $0x48] sm:$0xf]
        %v9096 = vld [vmem:[%s5585 + $0x4c] sm:$0xf]
        %v9097 = vld [vmem:[%s5585 + $0x50] sm:$0x1]
        %v9098 = vld [vmem:[%s5585 + $0x54] sm:$0xf]
        %v9099 = vld [vmem:[%s5585 + $0x58] sm:$0xf]
        %v9100 = vld [vmem:[%s5585 + $0x5c] sm:$0x1]
        %v9102 = vshrl.u32 %v9077, 16
        %v9104 = vrot.slane %v9102, 4
        %v9105 = vshll.u32 %v9077, 16
        %v9107 = vrot.slane %v9105, 5
        %v9108 = vor.u32 %v9104, %v9107
        %v9109 = vrot.slane %v9108, 4
        %v9111 = vshll.u32 %v9078, 16
        %v9113 = vrot.slane %v9111, 5
        %v9114 = vsel %vm1099, %v9109, %v9113
        %v9115 = vshrl.u32 %v9078, 16
        %v9117 = vrot.slane %v9115, 4
        %v9118 = vor.u32 %v9117, %v9113
        %v9119 = vrot.slane %v9118, 4
        %v9121 = vshll.u32 %v9079, 16
        %v9123 = vrot.slane %v9121, 5
        %v9124 = vsel %vm1099, %v9119, %v9123
        %v9126 = vshrl.u32 %v9080, 16
        %v9128 = vrot.slane %v9126, 4
        %v9129 = vshll.u32 %v9080, 16
        %v9131 = vrot.slane %v9129, 5
        %v9132 = vor.u32 %v9128, %v9131
        %v9133 = vrot.slane %v9132, 4
        %v9135 = vshll.u32 %v9081, 16
        %v9137 = vrot.slane %v9135, 5
        %v9138 = vsel %vm1099, %v9133, %v9137
        %v9139 = vshrl.u32 %v9081, 16
        %v9141 = vrot.slane %v9139, 4
        %v9142 = vor.u32 %v9141, %v9137
        %v9143 = vrot.slane %v9142, 4
        %v9145 = vshll.u32 %v9082, 16
        %v9147 = vrot.slane %v9145, 5
        %v9148 = vsel %vm1099, %v9143, %v9147
        %v9150 = vshrl.u32 %v9083, 16
        %v9152 = vrot.slane %v9150, 4
        %v9153 = vshll.u32 %v9083, 16
        %v9155 = vrot.slane %v9153, 5
        %v9156 = vor.u32 %v9152, %v9155
        %v9157 = vrot.slane %v9156, 4
        %v9159 = vshll.u32 %v9084, 16
        %v9161 = vrot.slane %v9159, 5
        %v9162 = vsel %vm1099, %v9157, %v9161
        %v9163 = vshrl.u32 %v9084, 16
        %v9165 = vrot.slane %v9163, 4
        %v9166 = vor.u32 %v9165, %v9161
        %v9167 = vrot.slane %v9166, 4
        %v9169 = vshll.u32 %v9085, 16
        %v9171 = vrot.slane %v9169, 5
        %v9172 = vsel %vm1099, %v9167, %v9171
        %v9174 = vshrl.u32 %v9086, 16
        %v9176 = vrot.slane %v9174, 4
        %v9177 = vshll.u32 %v9086, 16
        %v9179 = vrot.slane %v9177, 5
        %v9180 = vor.u32 %v9176, %v9179
        %v9181 = vrot.slane %v9180, 4
        %v9183 = vshll.u32 %v9087, 16
        %v9185 = vrot.slane %v9183, 5
        %v9186 = vsel %vm1099, %v9181, %v9185
        %v9187 = vshrl.u32 %v9087, 16
        %v9189 = vrot.slane %v9187, 4
        %v9190 = vor.u32 %v9189, %v9185
        %v9191 = vrot.slane %v9190, 4
        %v9193 = vshll.u32 %v9088, 16
        %v9195 = vrot.slane %v9193, 5
        %v9196 = vsel %vm1099, %v9191, %v9195
        %v9198 = vshrl.u32 %v9089, 16
        %v9200 = vrot.slane %v9198, 4
        %v9201 = vshll.u32 %v9089, 16
        %v9203 = vrot.slane %v9201, 5
        %v9204 = vor.u32 %v9200, %v9203
        %v9205 = vrot.slane %v9204, 4
        %v9207 = vshll.u32 %v9090, 16
        %v9209 = vrot.slane %v9207, 5
        %v9210 = vsel %vm1099, %v9205, %v9209
        %v9211 = vshrl.u32 %v9090, 16
        %v9213 = vrot.slane %v9211, 4
        %v9214 = vor.u32 %v9213, %v9209
        %v9215 = vrot.slane %v9214, 4
        %v9217 = vshll.u32 %v9091, 16
        %v9219 = vrot.slane %v9217, 5
        %v9220 = vsel %vm1099, %v9215, %v9219
        %v9222 = vshrl.u32 %v9092, 16
        %v9224 = vrot.slane %v9222, 4
        %v9225 = vshll.u32 %v9092, 16
        %v9227 = vrot.slane %v9225, 5
        %v9228 = vor.u32 %v9224, %v9227
        %v9229 = vrot.slane %v9228, 4
        %v9231 = vshll.u32 %v9093, 16
        %v9233 = vrot.slane %v9231, 5
        %v9234 = vsel %vm1099, %v9229, %v9233
        %v9235 = vshrl.u32 %v9093, 16
        %v9237 = vrot.slane %v9235, 4
        %v9238 = vor.u32 %v9237, %v9233
        %v9239 = vrot.slane %v9238, 4
        %v9241 = vshll.u32 %v9094, 16
        %v9243 = vrot.slane %v9241, 5
        %v9244 = vsel %vm1099, %v9239, %v9243
        %v9246 = vshrl.u32 %v9095, 16
        %v9248 = vrot.slane %v9246, 4
        %v9249 = vshll.u32 %v9095, 16
        %v9251 = vrot.slane %v9249, 5
        %v9252 = vor.u32 %v9248, %v9251
        %v9253 = vrot.slane %v9252, 4
        %v9255 = vshll.u32 %v9096, 16
        %v9257 = vrot.slane %v9255, 5
        %v9258 = vsel %vm1099, %v9253, %v9257
        %v9259 = vshrl.u32 %v9096, 16
        %v9261 = vrot.slane %v9259, 4
        %v9262 = vor.u32 %v9261, %v9257
        %v9263 = vrot.slane %v9262, 4
        %v9265 = vshll.u32 %v9097, 16
        %v9267 = vrot.slane %v9265, 5
        %v9268 = vsel %vm1099, %v9263, %v9267
        %v9270 = vshrl.u32 %v9098, 16
        %v9272 = vrot.slane %v9270, 4
        %v9273 = vshll.u32 %v9098, 16
        %v9275 = vrot.slane %v9273, 5
        %v9276 = vor.u32 %v9272, %v9275
        %v9277 = vrot.slane %v9276, 4
        %v9279 = vshll.u32 %v9099, 16
        %v9281 = vrot.slane %v9279, 5
        %v9282 = vsel %vm1099, %v9277, %v9281
        %v9283 = vshrl.u32 %v9099, 16
        %v9285 = vrot.slane %v9283, 4
        %v9286 = vor.u32 %v9285, %v9281
        %v9287 = vrot.slane %v9286, 4
        %v9289 = vshll.u32 %v9100, 16
        %v9291 = vrot.slane %v9289, 5
        %v9292 = vsel %vm1099, %v9287, %v9291
        %v9293 = vld [vmem:[%s6817] sm:$0xf]
        %v9294 = vld [vmem:[%s6817 + $0x4] sm:$0xf]
        %v9295 = vld [vmem:[%s6817 + $0x8] sm:$0xf]
        %v9296 = vld [vmem:[%s6817 + $0xc] sm:$0xf]
        %v9297 = vld [vmem:[%s6817 + $0x10] sm:$0xf]
        %v9298 = vld [vmem:[%s6817 + $0x14] sm:$0xf]
        %v9299 = vld [vmem:[%s6817 + $0x18] sm:$0xf]
        %v9300 = vld [vmem:[%s6817 + $0x1c] sm:$0xf]
        %v9301 = vld [vmem:[%s6817 + $0x20] sm:$0xf]
        %v9302 = vld [vmem:[%s6817 + $0x24] sm:$0xf]
        %v9303 = vld [vmem:[%s6817 + $0x28] sm:$0xf]
        %v9304 = vld [vmem:[%s6817 + $0x2c] sm:$0xf]
        %v9305 = vld [vmem:[%s6817 + $0x30] sm:$0xf]
        %v9306 = vld [vmem:[%s6817 + $0x34] sm:$0xf]
        %v9307 = vld [vmem:[%s6817 + $0x38] sm:$0xf]
        %v9308 = vld [vmem:[%s6817 + $0x3c] sm:$0xf]
        %v9309 = vunpack.c.l.b16 %v9114
        %v9310 = vunpack.c.l.b16 %v9124
        %v9311 = vunpack.c.l.b16 %v9138
        %v9312 = vunpack.c.l.b16 %v9148
        %v9313 = vunpack.c.l.b16 %v9162
        %v9314 = vunpack.c.l.b16 %v9172
        %v9315 = vunpack.c.l.b16 %v9186
        %v9316 = vunpack.c.l.b16 %v9196
        %v9317 = vunpack.c.l.b16 %v9210
        %v9318 = vunpack.c.l.b16 %v9220
        %v9319 = vunpack.c.l.b16 %v9234
        %v9320 = vunpack.c.l.b16 %v9244
        %v9321 = vunpack.c.l.b16 %v9258
        %v9322 = vunpack.c.l.b16 %v9268
        %v9323 = vunpack.c.l.b16 %v9282
        %v9324 = vunpack.c.l.b16 %v9292
        %v9325 = vpack.c.b16 %v9310, %v9309
        %v9326 = vpack.c.b16 %v9312, %v9311
        %v9327 = vpack.c.b16 %v9314, %v9313
        %v9328 = vpack.c.b16 %v9316, %v9315
        %v9329 = vpack.c.b16 %v9318, %v9317
        %v9330 = vpack.c.b16 %v9320, %v9319
        %v9331 = vpack.c.b16 %v9322, %v9321
        %v9332 = vpack.c.b16 %v9324, %v9323
        %v9357 = vunpack.c.l.b16 %v9293
        %v9358 = vunpack.c.l.b16 %v9294
        %v9359 = vunpack.c.l.b16 %v9295
        %v9360 = vunpack.c.l.b16 %v9296
        %v9361 = vunpack.c.l.b16 %v9297
        %v9362 = vunpack.c.l.b16 %v9298
        %v9363 = vunpack.c.l.b16 %v9299
        %v9364 = vunpack.c.l.b16 %v9300
        %v9365 = vunpack.c.l.b16 %v9301
        %v9366 = vunpack.c.l.b16 %v9302
        %v9367 = vunpack.c.l.b16 %v9303
        %v9368 = vunpack.c.l.b16 %v9304
        %v9369 = vunpack.c.l.b16 %v9305
        %v9370 = vunpack.c.l.b16 %v9306
        %v9371 = vunpack.c.l.b16 %v9307
        %v9372 = vunpack.c.l.b16 %v9308
        %v9373 = vpack.c.b16 %v9358, %v9357
        %v9374 = vpack.c.b16 %v9360, %v9359
        %v9375 = vpack.c.b16 %v9362, %v9361
        %v9376 = vpack.c.b16 %v9364, %v9363
        %v9377 = vpack.c.b16 %v9366, %v9365
        %v9378 = vpack.c.b16 %v9368, %v9367
        %v9379 = vpack.c.b16 %v9370, %v9369
        %v9380 = vpack.c.b16 %v9372, %v9371
        %9389 = vmatpush.bf16.msra.mxu0 %v9380
        %9390 = vmatpush.bf16.msra.mxu0 %v9379
        %9391 = vmatpush.bf16.msra.mxu0 %v9378
        %9392 = vmatpush.bf16.msra.mxu0 %v9377
        %9393 = vmatpush.bf16.msra.mxu0 %v9376
        %9394 = vmatpush.bf16.msra.mxu0 %v9375
        %9395 = vmatpush.bf16.msra.mxu0 %v9374
        %9396 = vmatpush.bf16.msra.mxu0 %v9373
        %9397 = vmatmul.bf16.gmra.mxu0 %v9325
        %v9398 = vpop.f32.mrf.mxu0
        %v9399 = vadd.f32 0.0, %v9398
        %v9400 = vpop.f32.mrf.mxu0
        %v9401 = vadd.f32 0.0, %v9400
        %9402 = vmatmul.bf16.gmra.mxu0 %v9326
        %v9403 = vpop.f32.mrf.mxu0
        %v9404 = vadd.f32 0.0, %v9403
        %v9405 = vpop.f32.mrf.mxu0
        %v9406 = vadd.f32 0.0, %v9405
        %9407 = vmatmul.bf16.gmra.mxu0 %v9327
        %v9408 = vpop.f32.mrf.mxu0
        %v9409 = vadd.f32 0.0, %v9408
        %v9410 = vpop.f32.mrf.mxu0
        %v9411 = vadd.f32 0.0, %v9410
        %9412 = vmatmul.bf16.gmra.mxu0 %v9328
        %v9413 = vpop.f32.mrf.mxu0
        %v9414 = vadd.f32 0.0, %v9413
        %v9415 = vpop.f32.mrf.mxu0
        %v9416 = vadd.f32 0.0, %v9415
        %9417 = vmatmul.bf16.gmra.mxu0 %v9329
        %v9418 = vpop.f32.mrf.mxu0
        %v9419 = vadd.f32 0.0, %v9418
        %v9420 = vpop.f32.mrf.mxu0
        %v9421 = vadd.f32 0.0, %v9420
        %9422 = vmatmul.bf16.gmra.mxu0 %v9330
        %v9423 = vpop.f32.mrf.mxu0
        %v9424 = vadd.f32 0.0, %v9423
        %v9425 = vpop.f32.mrf.mxu0
        %v9426 = vadd.f32 0.0, %v9425
        %9427 = vmatmul.bf16.gmra.mxu0 %v9331
        %v9428 = vpop.f32.mrf.mxu0
        %v9429 = vadd.f32 0.0, %v9428
        %v9430 = vpop.f32.mrf.mxu0
        %v9431 = vadd.f32 0.0, %v9430
        %9432 = vmatmul.bf16.gmra.mxu0 %v9332
        %v9433 = vpop.f32.mrf.mxu0
        %v9434 = vadd.f32 0.0, %v9433
        %v9435 = vpop.f32.mrf.mxu0
        %v9436 = vadd.f32 0.0, %v9435
        %9437 = vdwg.mxu0
        %v9438 = vadd.f32 %v9061, %v9399
        %v9439 = vadd.f32 %v9062, %v9401
        %v9440 = vadd.f32 %v9063, %v9404
        %v9441 = vadd.f32 %v9064, %v9406
        %v9442 = vadd.f32 %v9065, %v9409
        %v9443 = vadd.f32 %v9066, %v9411
        %v9444 = vadd.f32 %v9067, %v9414
        %v9445 = vadd.f32 %v9068, %v9416
        %v9446 = vadd.f32 %v9069, %v9419
        %v9447 = vadd.f32 %v9070, %v9421
        %v9448 = vadd.f32 %v9071, %v9424
        %v9449 = vadd.f32 %v9072, %v9426
        %v9450 = vadd.f32 %v9073, %v9429
        %v9451 = vadd.f32 %v9074, %v9431
        %v9452 = vadd.f32 %v9075, %v9434
        %v9453 = vadd.f32 %v9076, %v9436
        %v9454 = vld [vmem:[%s5585] sm:$0xe]
        %v9455 = vld [vmem:[%s5585 + $0xc] sm:$0xe]
        %v9456 = vld [vmem:[%s5585 + $0x18] sm:$0xe]
        %v9457 = vld [vmem:[%s5585 + $0x24] sm:$0xe]
        %v9458 = vld [vmem:[%s5585 + $0x30] sm:$0xe]
        %v9459 = vld [vmem:[%s5585 + $0x3c] sm:$0xe]
        %v9460 = vld [vmem:[%s5585 + $0x48] sm:$0xe]
        %v9461 = vld [vmem:[%s5585 + $0x54] sm:$0xe]
        %v9486 = vrot.slane %v9454, 5
        %v9487 = vrot.slane %v9486, 4
        %v9488 = vrot.slane %v9078, 5
        %v9489 = vsel %vm1538, %v9487, %v9488
        %v9490 = vrot.slane %v9488, 4
        %v9491 = vrot.slane %v9079, 5
        %v9492 = vsel %vm1538, %v9490, %v9491
        %v9493 = vrot.slane %v9455, 5
        %v9494 = vrot.slane %v9493, 4
        %v9495 = vrot.slane %v9081, 5
        %v9496 = vsel %vm1538, %v9494, %v9495
        %v9497 = vrot.slane %v9495, 4
        %v9498 = vrot.slane %v9082, 5
        %v9499 = vsel %vm1538, %v9497, %v9498
        %v9500 = vrot.slane %v9456, 5
        %v9501 = vrot.slane %v9500, 4
        %v9502 = vrot.slane %v9084, 5
        %v9503 = vsel %vm1538, %v9501, %v9502
        %v9504 = vrot.slane %v9502, 4
        %v9505 = vrot.slane %v9085, 5
        %v9506 = vsel %vm1538, %v9504, %v9505
        %v9507 = vrot.slane %v9457, 5
        %v9508 = vrot.slane %v9507, 4
        %v9509 = vrot.slane %v9087, 5
        %v9510 = vsel %vm1538, %v9508, %v9509
        %v9511 = vrot.slane %v9509, 4
        %v9512 = vrot.slane %v9088, 5
        %v9513 = vsel %vm1538, %v9511, %v9512
        %v9514 = vrot.slane %v9458, 5
        %v9515 = vrot.slane %v9514, 4
        %v9516 = vrot.slane %v9090, 5
        %v9517 = vsel %vm1538, %v9515, %v9516
        %v9518 = vrot.slane %v9516, 4
        %v9519 = vrot.slane %v9091, 5
        %v9520 = vsel %vm1538, %v9518, %v9519
        %v9521 = vrot.slane %v9459, 5
        %v9522 = vrot.slane %v9521, 4
        %v9523 = vrot.slane %v9093, 5
        %v9524 = vsel %vm1538, %v9522, %v9523
        %v9525 = vrot.slane %v9523, 4
        %v9526 = vrot.slane %v9094, 5
        %v9527 = vsel %vm1538, %v9525, %v9526
        %v9528 = vrot.slane %v9460, 5
        %v9529 = vrot.slane %v9528, 4
        %v9530 = vrot.slane %v9096, 5
        %v9531 = vsel %vm1538, %v9529, %v9530
        %v9532 = vrot.slane %v9530, 4
        %v9533 = vrot.slane %v9097, 5
        %v9534 = vsel %vm1538, %v9532, %v9533
        %v9535 = vrot.slane %v9461, 5
        %v9536 = vrot.slane %v9535, 4
        %v9537 = vrot.slane %v9099, 5
        %v9538 = vsel %vm1538, %v9536, %v9537
        %v9539 = vrot.slane %v9537, 4
        %v9540 = vrot.slane %v9100, 5
        %v9541 = vsel %vm1538, %v9539, %v9540
        %v9542 = vld [vmem:[%s7067] sm:$0xf]
        %v9543 = vld [vmem:[%s7067 + $0x4] sm:$0xf]
        %v9544 = vld [vmem:[%s7067 + $0x8] sm:$0xf]
        %v9545 = vld [vmem:[%s7067 + $0xc] sm:$0xf]
        %v9546 = vld [vmem:[%s7067 + $0x10] sm:$0xf]
        %v9547 = vld [vmem:[%s7067 + $0x14] sm:$0xf]
        %v9548 = vld [vmem:[%s7067 + $0x18] sm:$0xf]
        %v9549 = vld [vmem:[%s7067 + $0x1c] sm:$0xf]
        %v9550 = vld [vmem:[%s7067 + $0x20] sm:$0xf]
        %v9551 = vld [vmem:[%s7067 + $0x24] sm:$0xf]
        %v9552 = vld [vmem:[%s7067 + $0x28] sm:$0xf]
        %v9553 = vld [vmem:[%s7067 + $0x2c] sm:$0xf]
        %v9554 = vld [vmem:[%s7067 + $0x30] sm:$0xf]
        %v9555 = vld [vmem:[%s7067 + $0x34] sm:$0xf]
        %v9556 = vld [vmem:[%s7067 + $0x38] sm:$0xf]
        %v9557 = vld [vmem:[%s7067 + $0x3c] sm:$0xf]
        %v9558 = vunpack.c.l.b16 %v9489
        %v9559 = vunpack.c.l.b16 %v9492
        %v9560 = vunpack.c.l.b16 %v9496
        %v9561 = vunpack.c.l.b16 %v9499
        %v9562 = vunpack.c.l.b16 %v9503
        %v9563 = vunpack.c.l.b16 %v9506
        %v9564 = vunpack.c.l.b16 %v9510
        %v9565 = vunpack.c.l.b16 %v9513
        %v9566 = vunpack.c.l.b16 %v9517
        %v9567 = vunpack.c.l.b16 %v9520
        %v9568 = vunpack.c.l.b16 %v9524
        %v9569 = vunpack.c.l.b16 %v9527
        %v9570 = vunpack.c.l.b16 %v9531
        %v9571 = vunpack.c.l.b16 %v9534
        %v9572 = vunpack.c.l.b16 %v9538
        %v9573 = vunpack.c.l.b16 %v9541
        %v9574 = vpack.c.b16 %v9559, %v9558
        %v9575 = vpack.c.b16 %v9561, %v9560
        %v9576 = vpack.c.b16 %v9563, %v9562
        %v9577 = vpack.c.b16 %v9565, %v9564
        %v9578 = vpack.c.b16 %v9567, %v9566
        %v9579 = vpack.c.b16 %v9569, %v9568
        %v9580 = vpack.c.b16 %v9571, %v9570
        %v9581 = vpack.c.b16 %v9573, %v9572
        %v9606 = vunpack.c.l.b16 %v9542
        %v9607 = vunpack.c.l.b16 %v9543
        %v9608 = vunpack.c.l.b16 %v9544
        %v9609 = vunpack.c.l.b16 %v9545
        %v9610 = vunpack.c.l.b16 %v9546
        %v9611 = vunpack.c.l.b16 %v9547
        %v9612 = vunpack.c.l.b16 %v9548
        %v9613 = vunpack.c.l.b16 %v9549
        %v9614 = vunpack.c.l.b16 %v9550
        %v9615 = vunpack.c.l.b16 %v9551
        %v9616 = vunpack.c.l.b16 %v9552
        %v9617 = vunpack.c.l.b16 %v9553
        %v9618 = vunpack.c.l.b16 %v9554
        %v9619 = vunpack.c.l.b16 %v9555
        %v9620 = vunpack.c.l.b16 %v9556
        %v9621 = vunpack.c.l.b16 %v9557
        %v9622 = vpack.c.b16 %v9607, %v9606
        %v9623 = vpack.c.b16 %v9609, %v9608
        %v9624 = vpack.c.b16 %v9611, %v9610
        %v9625 = vpack.c.b16 %v9613, %v9612
        %v9626 = vpack.c.b16 %v9615, %v9614
        %v9627 = vpack.c.b16 %v9617, %v9616
        %v9628 = vpack.c.b16 %v9619, %v9618
        %v9629 = vpack.c.b16 %v9621, %v9620
        %9638 = vmatpush.bf16.msra.mxu0 %v9629
        %9639 = vmatpush.bf16.msra.mxu0 %v9628
        %9640 = vmatpush.bf16.msra.mxu0 %v9627
        %9641 = vmatpush.bf16.msra.mxu0 %v9626
        %9642 = vmatpush.bf16.msra.mxu0 %v9625
        %9643 = vmatpush.bf16.msra.mxu0 %v9624
        %9644 = vmatpush.bf16.msra.mxu0 %v9623
        %9645 = vmatpush.bf16.msra.mxu0 %v9622
        %9646 = vmatmul.bf16.gmra.mxu0 %v9574
        %v9647 = vpop.f32.mrf.mxu0
        %v9648 = vadd.f32 0.0, %v9647
        %v9649 = vpop.f32.mrf.mxu0
        %v9650 = vadd.f32 0.0, %v9649
        %9651 = vmatmul.bf16.gmra.mxu0 %v9575
        %v9652 = vpop.f32.mrf.mxu0
        %v9653 = vadd.f32 0.0, %v9652
        %v9654 = vpop.f32.mrf.mxu0
        %v9655 = vadd.f32 0.0, %v9654
        %9656 = vmatmul.bf16.gmra.mxu0 %v9576
        %v9657 = vpop.f32.mrf.mxu0
        %v9658 = vadd.f32 0.0, %v9657
        %v9659 = vpop.f32.mrf.mxu0
        %v9660 = vadd.f32 0.0, %v9659
        %9661 = vmatmul.bf16.gmra.mxu0 %v9577
        %v9662 = vpop.f32.mrf.mxu0
        %v9663 = vadd.f32 0.0, %v9662
        %v9664 = vpop.f32.mrf.mxu0
        %v9665 = vadd.f32 0.0, %v9664
        %9666 = vmatmul.bf16.gmra.mxu0 %v9578
        %v9667 = vpop.f32.mrf.mxu0
        %v9668 = vadd.f32 0.0, %v9667
        %v9669 = vpop.f32.mrf.mxu0
        %v9670 = vadd.f32 0.0, %v9669
        %9671 = vmatmul.bf16.gmra.mxu0 %v9579
        %v9672 = vpop.f32.mrf.mxu0
        %v9673 = vadd.f32 0.0, %v9672
        %v9674 = vpop.f32.mrf.mxu0
        %v9675 = vadd.f32 0.0, %v9674
        %9676 = vmatmul.bf16.gmra.mxu0 %v9580
        %v9677 = vpop.f32.mrf.mxu0
        %v9678 = vadd.f32 0.0, %v9677
        %v9679 = vpop.f32.mrf.mxu0
        %v9680 = vadd.f32 0.0, %v9679
        %9681 = vmatmul.bf16.gmra.mxu0 %v9581
        %v9682 = vpop.f32.mrf.mxu0
        %v9683 = vadd.f32 0.0, %v9682
        %v9684 = vpop.f32.mrf.mxu0
        %v9685 = vadd.f32 0.0, %v9684
        %9686 = vdwg.mxu0
        %v9687 = vadd.f32 %v9438, %v9648
        %v9688 = vadd.f32 %v9439, %v9650
        %v9689 = vadd.f32 %v9440, %v9653
        %v9690 = vadd.f32 %v9441, %v9655
        %v9691 = vadd.f32 %v9442, %v9658
        %v9692 = vadd.f32 %v9443, %v9660
        %v9693 = vadd.f32 %v9444, %v9663
        %v9694 = vadd.f32 %v9445, %v9665
        %v9695 = vadd.f32 %v9446, %v9668
        %v9696 = vadd.f32 %v9447, %v9670
        %v9697 = vadd.f32 %v9448, %v9673
        %v9698 = vadd.f32 %v9449, %v9675
        %v9699 = vadd.f32 %v9450, %v9678
        %v9700 = vadd.f32 %v9451, %v9680
        %v9701 = vadd.f32 %v9452, %v9683
        %v9702 = vadd.f32 %v9453, %v9685
        %s9703 = scalar_lea.vmem [#allocation3], 120
        %v9704 = vld [vmem:[%s9703] sm:$0xf]
        %v9705 = vld [vmem:[%s9703 + $0x4] sm:$0xf]
        %v9706 = vld [vmem:[%s9703 + $0xc] sm:$0xf]
        %v9707 = vld [vmem:[%s9703 + $0x10] sm:$0xf]
        %v9708 = vld [vmem:[%s9703 + $0x18] sm:$0xf]
        %v9709 = vld [vmem:[%s9703 + $0x1c] sm:$0xf]
        %v9710 = vld [vmem:[%s9703 + $0x24] sm:$0xf]
        %v9711 = vld [vmem:[%s9703 + $0x28] sm:$0xf]
        %v9712 = vld [vmem:[%s9703 + $0x30] sm:$0xf]
        %v9713 = vld [vmem:[%s9703 + $0x34] sm:$0xf]
        %v9714 = vld [vmem:[%s9703 + $0x3c] sm:$0xf]
        %v9715 = vld [vmem:[%s9703 + $0x40] sm:$0xf]
        %v9716 = vld [vmem:[%s9703 + $0x48] sm:$0xf]
        %v9717 = vld [vmem:[%s9703 + $0x4c] sm:$0xf]
        %v9718 = vld [vmem:[%s9703 + $0x54] sm:$0xf]
        %v9719 = vld [vmem:[%s9703 + $0x58] sm:$0xf]
        %v9720 = vld [vmem:[%s7246] sm:$0xf]
        %v9721 = vld [vmem:[%s7246 + $0x4] sm:$0xf]
        %v9722 = vld [vmem:[%s7246 + $0x8] sm:$0xf]
        %v9723 = vld [vmem:[%s7246 + $0xc] sm:$0xf]
        %v9724 = vld [vmem:[%s7246 + $0x10] sm:$0xf]
        %v9725 = vld [vmem:[%s7246 + $0x14] sm:$0xf]
        %v9726 = vld [vmem:[%s7246 + $0x18] sm:$0xf]
        %v9727 = vld [vmem:[%s7246 + $0x1c] sm:$0xf]
        %v9728 = vld [vmem:[%s7246 + $0x20] sm:$0xf]
        %v9729 = vld [vmem:[%s7246 + $0x24] sm:$0xf]
        %v9730 = vld [vmem:[%s7246 + $0x28] sm:$0xf]
        %v9731 = vld [vmem:[%s7246 + $0x2c] sm:$0xf]
        %v9732 = vld [vmem:[%s7246 + $0x30] sm:$0xf]
        %v9733 = vld [vmem:[%s7246 + $0x34] sm:$0xf]
        %v9734 = vld [vmem:[%s7246 + $0x38] sm:$0xf]
        %v9735 = vld [vmem:[%s7246 + $0x3c] sm:$0xf]
        %v9752 = vunpack.c.l.b16 %v9704
        %v9753 = vunpack.c.l.b16 %v9705
        %v9754 = vunpack.c.l.b16 %v9706
        %v9755 = vunpack.c.l.b16 %v9707
        %v9756 = vunpack.c.l.b16 %v9708
        %v9757 = vunpack.c.l.b16 %v9709
        %v9758 = vunpack.c.l.b16 %v9710
        %v9759 = vunpack.c.l.b16 %v9711
        %v9760 = vunpack.c.l.b16 %v9712
        %v9761 = vunpack.c.l.b16 %v9713
        %v9762 = vunpack.c.l.b16 %v9714
        %v9763 = vunpack.c.l.b16 %v9715
        %v9764 = vunpack.c.l.b16 %v9716
        %v9765 = vunpack.c.l.b16 %v9717
        %v9766 = vunpack.c.l.b16 %v9718
        %v9767 = vunpack.c.l.b16 %v9719
        %v9768 = vpack.c.b16 %v9753, %v9752
        %v9769 = vpack.c.b16 %v9755, %v9754
        %v9770 = vpack.c.b16 %v9757, %v9756
        %v9771 = vpack.c.b16 %v9759, %v9758
        %v9772 = vpack.c.b16 %v9761, %v9760
        %v9773 = vpack.c.b16 %v9763, %v9762
        %v9774 = vpack.c.b16 %v9765, %v9764
        %v9775 = vpack.c.b16 %v9767, %v9766
        %v9800 = vunpack.c.l.b16 %v9720
        %v9801 = vunpack.c.l.b16 %v9721
        %v9802 = vunpack.c.l.b16 %v9722
        %v9803 = vunpack.c.l.b16 %v9723
        %v9804 = vunpack.c.l.b16 %v9724
        %v9805 = vunpack.c.l.b16 %v9725
        %v9806 = vunpack.c.l.b16 %v9726
        %v9807 = vunpack.c.l.b16 %v9727
        %v9808 = vunpack.c.l.b16 %v9728
        %v9809 = vunpack.c.l.b16 %v9729
        %v9810 = vunpack.c.l.b16 %v9730
        %v9811 = vunpack.c.l.b16 %v9731
        %v9812 = vunpack.c.l.b16 %v9732
        %v9813 = vunpack.c.l.b16 %v9733
        %v9814 = vunpack.c.l.b16 %v9734
        %v9815 = vunpack.c.l.b16 %v9735
        %v9816 = vpack.c.b16 %v9801, %v9800
        %v9817 = vpack.c.b16 %v9803, %v9802
        %v9818 = vpack.c.b16 %v9805, %v9804
        %v9819 = vpack.c.b16 %v9807, %v9806
        %v9820 = vpack.c.b16 %v9809, %v9808
        %v9821 = vpack.c.b16 %v9811, %v9810
        %v9822 = vpack.c.b16 %v9813, %v9812
        %v9823 = vpack.c.b16 %v9815, %v9814
        %9832 = vmatpush.bf16.msra.mxu0 %v9823
        %9833 = vmatpush.bf16.msra.mxu0 %v9822
        %9834 = vmatpush.bf16.msra.mxu0 %v9821
        %9835 = vmatpush.bf16.msra.mxu0 %v9820
        %9836 = vmatpush.bf16.msra.mxu0 %v9819
        %9837 = vmatpush.bf16.msra.mxu0 %v9818
        %9838 = vmatpush.bf16.msra.mxu0 %v9817
        %9839 = vmatpush.bf16.msra.mxu0 %v9816
        %9840 = vmatmul.bf16.gmra.mxu0 %v9768
        %v9841 = vpop.f32.mrf.mxu0
        %v9842 = vadd.f32 0.0, %v9841
        %v9843 = vpop.f32.mrf.mxu0
        %v9844 = vadd.f32 0.0, %v9843
        %9845 = vmatmul.bf16.gmra.mxu0 %v9769
        %v9846 = vpop.f32.mrf.mxu0
        %v9847 = vadd.f32 0.0, %v9846
        %v9848 = vpop.f32.mrf.mxu0
        %v9849 = vadd.f32 0.0, %v9848
        %9850 = vmatmul.bf16.gmra.mxu0 %v9770
        %v9851 = vpop.f32.mrf.mxu0
        %v9852 = vadd.f32 0.0, %v9851
        %v9853 = vpop.f32.mrf.mxu0
        %v9854 = vadd.f32 0.0, %v9853
        %9855 = vmatmul.bf16.gmra.mxu0 %v9771
        %v9856 = vpop.f32.mrf.mxu0
        %v9857 = vadd.f32 0.0, %v9856
        %v9858 = vpop.f32.mrf.mxu0
        %v9859 = vadd.f32 0.0, %v9858
        %9860 = vmatmul.bf16.gmra.mxu0 %v9772
        %v9861 = vpop.f32.mrf.mxu0
        %v9862 = vadd.f32 0.0, %v9861
        %v9863 = vpop.f32.mrf.mxu0
        %v9864 = vadd.f32 0.0, %v9863
        %9865 = vmatmul.bf16.gmra.mxu0 %v9773
        %v9866 = vpop.f32.mrf.mxu0
        %v9867 = vadd.f32 0.0, %v9866
        %v9868 = vpop.f32.mrf.mxu0
        %v9869 = vadd.f32 0.0, %v9868
        %9870 = vmatmul.bf16.gmra.mxu0 %v9774
        %v9871 = vpop.f32.mrf.mxu0
        %v9872 = vadd.f32 0.0, %v9871
        %v9873 = vpop.f32.mrf.mxu0
        %v9874 = vadd.f32 0.0, %v9873
        %9875 = vmatmul.bf16.gmra.mxu0 %v9775
        %v9876 = vpop.f32.mrf.mxu0
        %v9877 = vadd.f32 0.0, %v9876
        %v9878 = vpop.f32.mrf.mxu0
        %v9879 = vadd.f32 0.0, %v9878
        %9880 = vdwg.mxu0
        %v9881 = vadd.f32 %v9687, %v9842
        %v9882 = vadd.f32 %v9688, %v9844
        %v9883 = vadd.f32 %v9689, %v9847
        %v9884 = vadd.f32 %v9690, %v9849
        %v9885 = vadd.f32 %v9691, %v9852
        %v9886 = vadd.f32 %v9692, %v9854
        %v9887 = vadd.f32 %v9693, %v9857
        %v9888 = vadd.f32 %v9694, %v9859
        %v9889 = vadd.f32 %v9695, %v9862
        %v9890 = vadd.f32 %v9696, %v9864
        %v9891 = vadd.f32 %v9697, %v9867
        %v9892 = vadd.f32 %v9698, %v9869
        %v9893 = vadd.f32 %v9699, %v9872
        %v9894 = vadd.f32 %v9700, %v9874
        %v9895 = vadd.f32 %v9701, %v9877
        %v9896 = vadd.f32 %v9702, %v9879
        %v9897 = vld [vmem:[%s9703] sm:$0xf]
        %v9898 = vld [vmem:[%s9703 + $0x4] sm:$0xf]
        %v9899 = vld [vmem:[%s9703 + $0x8] sm:$0x1]
        %v9900 = vld [vmem:[%s9703 + $0xc] sm:$0xf]
        %v9901 = vld [vmem:[%s9703 + $0x10] sm:$0xf]
        %v9902 = vld [vmem:[%s9703 + $0x14] sm:$0x1]
        %v9903 = vld [vmem:[%s9703 + $0x18] sm:$0xf]
        %v9904 = vld [vmem:[%s9703 + $0x1c] sm:$0xf]
        %v9905 = vld [vmem:[%s9703 + $0x20] sm:$0x1]
        %v9906 = vld [vmem:[%s9703 + $0x24] sm:$0xf]
        %v9907 = vld [vmem:[%s9703 + $0x28] sm:$0xf]
        %v9908 = vld [vmem:[%s9703 + $0x2c] sm:$0x1]
        %v9909 = vld [vmem:[%s9703 + $0x30] sm:$0xf]
        %v9910 = vld [vmem:[%s9703 + $0x34] sm:$0xf]
        %v9911 = vld [vmem:[%s9703 + $0x38] sm:$0x1]
        %v9912 = vld [vmem:[%s9703 + $0x3c] sm:$0xf]
        %v9913 = vld [vmem:[%s9703 + $0x40] sm:$0xf]
        %v9914 = vld [vmem:[%s9703 + $0x44] sm:$0x1]
        %v9915 = vld [vmem:[%s9703 + $0x48] sm:$0xf]
        %v9916 = vld [vmem:[%s9703 + $0x4c] sm:$0xf]
        %v9917 = vld [vmem:[%s9703 + $0x50] sm:$0x1]
        %v9918 = vld [vmem:[%s9703 + $0x54] sm:$0xf]
        %v9919 = vld [vmem:[%s9703 + $0x58] sm:$0xf]
        %v9920 = vld [vmem:[%s9703 + $0x5c] sm:$0x1]
        %v9922 = vshrl.u32 %v9897, 16
        %v9924 = vrot.slane %v9922, 4
        %v9925 = vshll.u32 %v9897, 16
        %v9927 = vrot.slane %v9925, 5
        %v9928 = vor.u32 %v9924, %v9927
        %v9929 = vrot.slane %v9928, 4
        %v9931 = vshll.u32 %v9898, 16
        %v9933 = vrot.slane %v9931, 5
        %v9934 = vsel %vm1099, %v9929, %v9933
        %v9935 = vshrl.u32 %v9898, 16
        %v9937 = vrot.slane %v9935, 4
        %v9938 = vor.u32 %v9937, %v9933
        %v9939 = vrot.slane %v9938, 4
        %v9941 = vshll.u32 %v9899, 16
        %v9943 = vrot.slane %v9941, 5
        %v9944 = vsel %vm1099, %v9939, %v9943
        %v9946 = vshrl.u32 %v9900, 16
        %v9948 = vrot.slane %v9946, 4
        %v9949 = vshll.u32 %v9900, 16
        %v9951 = vrot.slane %v9949, 5
        %v9952 = vor.u32 %v9948, %v9951
        %v9953 = vrot.slane %v9952, 4
        %v9955 = vshll.u32 %v9901, 16
        %v9957 = vrot.slane %v9955, 5
        %v9958 = vsel %vm1099, %v9953, %v9957
        %v9959 = vshrl.u32 %v9901, 16
        %v9961 = vrot.slane %v9959, 4
        %v9962 = vor.u32 %v9961, %v9957
        %v9963 = vrot.slane %v9962, 4
        %v9965 = vshll.u32 %v9902, 16
        %v9967 = vrot.slane %v9965, 5
        %v9968 = vsel %vm1099, %v9963, %v9967
        %v9970 = vshrl.u32 %v9903, 16
        %v9972 = vrot.slane %v9970, 4
        %v9973 = vshll.u32 %v9903, 16
        %v9975 = vrot.slane %v9973, 5
        %v9976 = vor.u32 %v9972, %v9975
        %v9977 = vrot.slane %v9976, 4
        %v9979 = vshll.u32 %v9904, 16
        %v9981 = vrot.slane %v9979, 5
        %v9982 = vsel %vm1099, %v9977, %v9981
        %v9983 = vshrl.u32 %v9904, 16
        %v9985 = vrot.slane %v9983, 4
        %v9986 = vor.u32 %v9985, %v9981
        %v9987 = vrot.slane %v9986, 4
        %v9989 = vshll.u32 %v9905, 16
        %v9991 = vrot.slane %v9989, 5
        %v9992 = vsel %vm1099, %v9987, %v9991
        %v9994 = vshrl.u32 %v9906, 16
        %v9996 = vrot.slane %v9994, 4
        %v9997 = vshll.u32 %v9906, 16
        %v9999 = vrot.slane %v9997, 5
        %v10000 = vor.u32 %v9996, %v9999
        %v10001 = vrot.slane %v10000, 4
        %v10003 = vshll.u32 %v9907, 16
        %v10005 = vrot.slane %v10003, 5
        %v10006 = vsel %vm1099, %v10001, %v10005
        %v10007 = vshrl.u32 %v9907, 16
        %v10009 = vrot.slane %v10007, 4
        %v10010 = vor.u32 %v10009, %v10005
        %v10011 = vrot.slane %v10010, 4
        %v10013 = vshll.u32 %v9908, 16
        %v10015 = vrot.slane %v10013, 5
        %v10016 = vsel %vm1099, %v10011, %v10015
        %v10018 = vshrl.u32 %v9909, 16
        %v10020 = vrot.slane %v10018, 4
        %v10021 = vshll.u32 %v9909, 16
        %v10023 = vrot.slane %v10021, 5
        %v10024 = vor.u32 %v10020, %v10023
        %v10025 = vrot.slane %v10024, 4
        %v10027 = vshll.u32 %v9910, 16
        %v10029 = vrot.slane %v10027, 5
        %v10030 = vsel %vm1099, %v10025, %v10029
        %v10031 = vshrl.u32 %v9910, 16
        %v10033 = vrot.slane %v10031, 4
        %v10034 = vor.u32 %v10033, %v10029
        %v10035 = vrot.slane %v10034, 4
        %v10037 = vshll.u32 %v9911, 16
        %v10039 = vrot.slane %v10037, 5
        %v10040 = vsel %vm1099, %v10035, %v10039
        %v10042 = vshrl.u32 %v9912, 16
        %v10044 = vrot.slane %v10042, 4
        %v10045 = vshll.u32 %v9912, 16
        %v10047 = vrot.slane %v10045, 5
        %v10048 = vor.u32 %v10044, %v10047
        %v10049 = vrot.slane %v10048, 4
        %v10051 = vshll.u32 %v9913, 16
        %v10053 = vrot.slane %v10051, 5
        %v10054 = vsel %vm1099, %v10049, %v10053
        %v10055 = vshrl.u32 %v9913, 16
        %v10057 = vrot.slane %v10055, 4
        %v10058 = vor.u32 %v10057, %v10053
        %v10059 = vrot.slane %v10058, 4
        %v10061 = vshll.u32 %v9914, 16
        %v10063 = vrot.slane %v10061, 5
        %v10064 = vsel %vm1099, %v10059, %v10063
        %v10066 = vshrl.u32 %v9915, 16
        %v10068 = vrot.slane %v10066, 4
        %v10069 = vshll.u32 %v9915, 16
        %v10071 = vrot.slane %v10069, 5
        %v10072 = vor.u32 %v10068, %v10071
        %v10073 = vrot.slane %v10072, 4
        %v10075 = vshll.u32 %v9916, 16
        %v10077 = vrot.slane %v10075, 5
        %v10078 = vsel %vm1099, %v10073, %v10077
        %v10079 = vshrl.u32 %v9916, 16
        %v10081 = vrot.slane %v10079, 4
        %v10082 = vor.u32 %v10081, %v10077
        %v10083 = vrot.slane %v10082, 4
        %v10085 = vshll.u32 %v9917, 16
        %v10087 = vrot.slane %v10085, 5
        %v10088 = vsel %vm1099, %v10083, %v10087
        %v10090 = vshrl.u32 %v9918, 16
        %v10092 = vrot.slane %v10090, 4
        %v10093 = vshll.u32 %v9918, 16
        %v10095 = vrot.slane %v10093, 5
        %v10096 = vor.u32 %v10092, %v10095
        %v10097 = vrot.slane %v10096, 4
        %v10099 = vshll.u32 %v9919, 16
        %v10101 = vrot.slane %v10099, 5
        %v10102 = vsel %vm1099, %v10097, %v10101
        %v10103 = vshrl.u32 %v9919, 16
        %v10105 = vrot.slane %v10103, 4
        %v10106 = vor.u32 %v10105, %v10101
        %v10107 = vrot.slane %v10106, 4
        %v10109 = vshll.u32 %v9920, 16
        %v10111 = vrot.slane %v10109, 5
        %v10112 = vsel %vm1099, %v10107, %v10111
        %v10113 = vld [vmem:[%s7640] sm:$0xf]
        %v10114 = vld [vmem:[%s7640 + $0x4] sm:$0xf]
        %v10115 = vld [vmem:[%s7640 + $0x8] sm:$0xf]
        %v10116 = vld [vmem:[%s7640 + $0xc] sm:$0xf]
        %v10117 = vld [vmem:[%s7640 + $0x10] sm:$0xf]
        %v10118 = vld [vmem:[%s7640 + $0x14] sm:$0xf]
        %v10119 = vld [vmem:[%s7640 + $0x18] sm:$0xf]
        %v10120 = vld [vmem:[%s7640 + $0x1c] sm:$0xf]
        %v10121 = vld [vmem:[%s7640 + $0x20] sm:$0xf]
        %v10122 = vld [vmem:[%s7640 + $0x24] sm:$0xf]
        %v10123 = vld [vmem:[%s7640 + $0x28] sm:$0xf]
        %v10124 = vld [vmem:[%s7640 + $0x2c] sm:$0xf]
        %v10125 = vld [vmem:[%s7640 + $0x30] sm:$0xf]
        %v10126 = vld [vmem:[%s7640 + $0x34] sm:$0xf]
        %v10127 = vld [vmem:[%s7640 + $0x38] sm:$0xf]
        %v10128 = vld [vmem:[%s7640 + $0x3c] sm:$0xf]
        %v10129 = vunpack.c.l.b16 %v9934
        %v10130 = vunpack.c.l.b16 %v9944
        %v10131 = vunpack.c.l.b16 %v9958
        %v10132 = vunpack.c.l.b16 %v9968
        %v10133 = vunpack.c.l.b16 %v9982
        %v10134 = vunpack.c.l.b16 %v9992
        %v10135 = vunpack.c.l.b16 %v10006
        %v10136 = vunpack.c.l.b16 %v10016
        %v10137 = vunpack.c.l.b16 %v10030
        %v10138 = vunpack.c.l.b16 %v10040
        %v10139 = vunpack.c.l.b16 %v10054
        %v10140 = vunpack.c.l.b16 %v10064
        %v10141 = vunpack.c.l.b16 %v10078
        %v10142 = vunpack.c.l.b16 %v10088
        %v10143 = vunpack.c.l.b16 %v10102
        %v10144 = vunpack.c.l.b16 %v10112
        %v10145 = vpack.c.b16 %v10130, %v10129
        %v10146 = vpack.c.b16 %v10132, %v10131
        %v10147 = vpack.c.b16 %v10134, %v10133
        %v10148 = vpack.c.b16 %v10136, %v10135
        %v10149 = vpack.c.b16 %v10138, %v10137
        %v10150 = vpack.c.b16 %v10140, %v10139
        %v10151 = vpack.c.b16 %v10142, %v10141
        %v10152 = vpack.c.b16 %v10144, %v10143
        %v10177 = vunpack.c.l.b16 %v10113
        %v10178 = vunpack.c.l.b16 %v10114
        %v10179 = vunpack.c.l.b16 %v10115
        %v10180 = vunpack.c.l.b16 %v10116
        %v10181 = vunpack.c.l.b16 %v10117
        %v10182 = vunpack.c.l.b16 %v10118
        %v10183 = vunpack.c.l.b16 %v10119
        %v10184 = vunpack.c.l.b16 %v10120
        %v10185 = vunpack.c.l.b16 %v10121
        %v10186 = vunpack.c.l.b16 %v10122
        %v10187 = vunpack.c.l.b16 %v10123
        %v10188 = vunpack.c.l.b16 %v10124
        %v10189 = vunpack.c.l.b16 %v10125
        %v10190 = vunpack.c.l.b16 %v10126
        %v10191 = vunpack.c.l.b16 %v10127
        %v10192 = vunpack.c.l.b16 %v10128
        %v10193 = vpack.c.b16 %v10178, %v10177
        %v10194 = vpack.c.b16 %v10180, %v10179
        %v10195 = vpack.c.b16 %v10182, %v10181
        %v10196 = vpack.c.b16 %v10184, %v10183
        %v10197 = vpack.c.b16 %v10186, %v10185
        %v10198 = vpack.c.b16 %v10188, %v10187
        %v10199 = vpack.c.b16 %v10190, %v10189
        %v10200 = vpack.c.b16 %v10192, %v10191
        %10209 = vmatpush.bf16.msra.mxu0 %v10200
        %10210 = vmatpush.bf16.msra.mxu0 %v10199
        %10211 = vmatpush.bf16.msra.mxu0 %v10198
        %10212 = vmatpush.bf16.msra.mxu0 %v10197
        %10213 = vmatpush.bf16.msra.mxu0 %v10196
        %10214 = vmatpush.bf16.msra.mxu0 %v10195
        %10215 = vmatpush.bf16.msra.mxu0 %v10194
        %10216 = vmatpush.bf16.msra.mxu0 %v10193
        %10217 = vmatmul.bf16.gmra.mxu0 %v10145
        %v10218 = vpop.f32.mrf.mxu0
        %v10219 = vadd.f32 0.0, %v10218
        %v10220 = vpop.f32.mrf.mxu0
        %v10221 = vadd.f32 0.0, %v10220
        %10222 = vmatmul.bf16.gmra.mxu0 %v10146
        %v10223 = vpop.f32.mrf.mxu0
        %v10224 = vadd.f32 0.0, %v10223
        %v10225 = vpop.f32.mrf.mxu0
        %v10226 = vadd.f32 0.0, %v10225
        %10227 = vmatmul.bf16.gmra.mxu0 %v10147
        %v10228 = vpop.f32.mrf.mxu0
        %v10229 = vadd.f32 0.0, %v10228
        %v10230 = vpop.f32.mrf.mxu0
        %v10231 = vadd.f32 0.0, %v10230
        %10232 = vmatmul.bf16.gmra.mxu0 %v10148
        %v10233 = vpop.f32.mrf.mxu0
        %v10234 = vadd.f32 0.0, %v10233
        %v10235 = vpop.f32.mrf.mxu0
        %v10236 = vadd.f32 0.0, %v10235
        %10237 = vmatmul.bf16.gmra.mxu0 %v10149
        %v10238 = vpop.f32.mrf.mxu0
        %v10239 = vadd.f32 0.0, %v10238
        %v10240 = vpop.f32.mrf.mxu0
        %v10241 = vadd.f32 0.0, %v10240
        %10242 = vmatmul.bf16.gmra.mxu0 %v10150
        %v10243 = vpop.f32.mrf.mxu0
        %v10244 = vadd.f32 0.0, %v10243
        %v10245 = vpop.f32.mrf.mxu0
        %v10246 = vadd.f32 0.0, %v10245
        %10247 = vmatmul.bf16.gmra.mxu0 %v10151
        %v10248 = vpop.f32.mrf.mxu0
        %v10249 = vadd.f32 0.0, %v10248
        %v10250 = vpop.f32.mrf.mxu0
        %v10251 = vadd.f32 0.0, %v10250
        %10252 = vmatmul.bf16.gmra.mxu0 %v10152
        %v10253 = vpop.f32.mrf.mxu0
        %v10254 = vadd.f32 0.0, %v10253
        %v10255 = vpop.f32.mrf.mxu0
        %v10256 = vadd.f32 0.0, %v10255
        %10257 = vdwg.mxu0
        %v10258 = vadd.f32 %v9881, %v10219
        %v10259 = vadd.f32 %v9882, %v10221
        %v10260 = vadd.f32 %v9883, %v10224
        %v10261 = vadd.f32 %v9884, %v10226
        %v10262 = vadd.f32 %v9885, %v10229
        %v10263 = vadd.f32 %v9886, %v10231
        %v10264 = vadd.f32 %v9887, %v10234
        %v10265 = vadd.f32 %v9888, %v10236
        %v10266 = vadd.f32 %v9889, %v10239
        %v10267 = vadd.f32 %v9890, %v10241
        %v10268 = vadd.f32 %v9891, %v10244
        %v10269 = vadd.f32 %v9892, %v10246
        %v10270 = vadd.f32 %v9893, %v10249
        %v10271 = vadd.f32 %v9894, %v10251
        %v10272 = vadd.f32 %v9895, %v10254
        %v10273 = vadd.f32 %v9896, %v10256
        %v10274 = vld [vmem:[%s9703] sm:$0xe]
        %v10275 = vld [vmem:[%s9703 + $0xc] sm:$0xe]
        %v10276 = vld [vmem:[%s9703 + $0x18] sm:$0xe]
        %v10277 = vld [vmem:[%s9703 + $0x24] sm:$0xe]
        %v10278 = vld [vmem:[%s9703 + $0x30] sm:$0xe]
        %v10279 = vld [vmem:[%s9703 + $0x3c] sm:$0xe]
        %v10280 = vld [vmem:[%s9703 + $0x48] sm:$0xe]
        %v10281 = vld [vmem:[%s9703 + $0x54] sm:$0xe]
        %v10306 = vrot.slane %v10274, 5
        %v10307 = vrot.slane %v10306, 4
        %v10308 = vrot.slane %v9898, 5
        %v10309 = vsel %vm1538, %v10307, %v10308
        %v10310 = vrot.slane %v10308, 4
        %v10311 = vrot.slane %v9899, 5
        %v10312 = vsel %vm1538, %v10310, %v10311
        %v10313 = vrot.slane %v10275, 5
        %v10314 = vrot.slane %v10313, 4
        %v10315 = vrot.slane %v9901, 5
        %v10316 = vsel %vm1538, %v10314, %v10315
        %v10317 = vrot.slane %v10315, 4
        %v10318 = vrot.slane %v9902, 5
        %v10319 = vsel %vm1538, %v10317, %v10318
        %v10320 = vrot.slane %v10276, 5
        %v10321 = vrot.slane %v10320, 4
        %v10322 = vrot.slane %v9904, 5
        %v10323 = vsel %vm1538, %v10321, %v10322
        %v10324 = vrot.slane %v10322, 4
        %v10325 = vrot.slane %v9905, 5
        %v10326 = vsel %vm1538, %v10324, %v10325
        %v10327 = vrot.slane %v10277, 5
        %v10328 = vrot.slane %v10327, 4
        %v10329 = vrot.slane %v9907, 5
        %v10330 = vsel %vm1538, %v10328, %v10329
        %v10331 = vrot.slane %v10329, 4
        %v10332 = vrot.slane %v9908, 5
        %v10333 = vsel %vm1538, %v10331, %v10332
        %v10334 = vrot.slane %v10278, 5
        %v10335 = vrot.slane %v10334, 4
        %v10336 = vrot.slane %v9910, 5
        %v10337 = vsel %vm1538, %v10335, %v10336
        %v10338 = vrot.slane %v10336, 4
        %v10339 = vrot.slane %v9911, 5
        %v10340 = vsel %vm1538, %v10338, %v10339
        %v10341 = vrot.slane %v10279, 5
        %v10342 = vrot.slane %v10341, 4
        %v10343 = vrot.slane %v9913, 5
        %v10344 = vsel %vm1538, %v10342, %v10343
        %v10345 = vrot.slane %v10343, 4
        %v10346 = vrot.slane %v9914, 5
        %v10347 = vsel %vm1538, %v10345, %v10346
        %v10348 = vrot.slane %v10280, 5
        %v10349 = vrot.slane %v10348, 4
        %v10350 = vrot.slane %v9916, 5
        %v10351 = vsel %vm1538, %v10349, %v10350
        %v10352 = vrot.slane %v10350, 4
        %v10353 = vrot.slane %v9917, 5
        %v10354 = vsel %vm1538, %v10352, %v10353
        %v10355 = vrot.slane %v10281, 5
        %v10356 = vrot.slane %v10355, 4
        %v10357 = vrot.slane %v9919, 5
        %v10358 = vsel %vm1538, %v10356, %v10357
        %v10359 = vrot.slane %v10357, 4
        %v10360 = vrot.slane %v9920, 5
        %v10361 = vsel %vm1538, %v10359, %v10360
        %v10362 = vld [vmem:[%s7890] sm:$0xf]
        %v10363 = vld [vmem:[%s7890 + $0x4] sm:$0xf]
        %v10364 = vld [vmem:[%s7890 + $0x8] sm:$0xf]
        %v10365 = vld [vmem:[%s7890 + $0xc] sm:$0xf]
        %v10366 = vld [vmem:[%s7890 + $0x10] sm:$0xf]
        %v10367 = vld [vmem:[%s7890 + $0x14] sm:$0xf]
        %v10368 = vld [vmem:[%s7890 + $0x18] sm:$0xf]
        %v10369 = vld [vmem:[%s7890 + $0x1c] sm:$0xf]
        %v10370 = vld [vmem:[%s7890 + $0x20] sm:$0xf]
        %v10371 = vld [vmem:[%s7890 + $0x24] sm:$0xf]
        %v10372 = vld [vmem:[%s7890 + $0x28] sm:$0xf]
        %v10373 = vld [vmem:[%s7890 + $0x2c] sm:$0xf]
        %v10374 = vld [vmem:[%s7890 + $0x30] sm:$0xf]
        %v10375 = vld [vmem:[%s7890 + $0x34] sm:$0xf]
        %v10376 = vld [vmem:[%s7890 + $0x38] sm:$0xf]
        %v10377 = vld [vmem:[%s7890 + $0x3c] sm:$0xf]
        %v10378 = vunpack.c.l.b16 %v10309
        %v10379 = vunpack.c.l.b16 %v10312
        %v10380 = vunpack.c.l.b16 %v10316
        %v10381 = vunpack.c.l.b16 %v10319
        %v10382 = vunpack.c.l.b16 %v10323
        %v10383 = vunpack.c.l.b16 %v10326
        %v10384 = vunpack.c.l.b16 %v10330
        %v10385 = vunpack.c.l.b16 %v10333
        %v10386 = vunpack.c.l.b16 %v10337
        %v10387 = vunpack.c.l.b16 %v10340
        %v10388 = vunpack.c.l.b16 %v10344
        %v10389 = vunpack.c.l.b16 %v10347
        %v10390 = vunpack.c.l.b16 %v10351
        %v10391 = vunpack.c.l.b16 %v10354
        %v10392 = vunpack.c.l.b16 %v10358
        %v10393 = vunpack.c.l.b16 %v10361
        %v10394 = vpack.c.b16 %v10379, %v10378
        %v10395 = vpack.c.b16 %v10381, %v10380
        %v10396 = vpack.c.b16 %v10383, %v10382
        %v10397 = vpack.c.b16 %v10385, %v10384
        %v10398 = vpack.c.b16 %v10387, %v10386
        %v10399 = vpack.c.b16 %v10389, %v10388
        %v10400 = vpack.c.b16 %v10391, %v10390
        %v10401 = vpack.c.b16 %v10393, %v10392
        %v10426 = vunpack.c.l.b16 %v10362
        %v10427 = vunpack.c.l.b16 %v10363
        %v10428 = vunpack.c.l.b16 %v10364
        %v10429 = vunpack.c.l.b16 %v10365
        %v10430 = vunpack.c.l.b16 %v10366
        %v10431 = vunpack.c.l.b16 %v10367
        %v10432 = vunpack.c.l.b16 %v10368
        %v10433 = vunpack.c.l.b16 %v10369
        %v10434 = vunpack.c.l.b16 %v10370
        %v10435 = vunpack.c.l.b16 %v10371
        %v10436 = vunpack.c.l.b16 %v10372
        %v10437 = vunpack.c.l.b16 %v10373
        %v10438 = vunpack.c.l.b16 %v10374
        %v10439 = vunpack.c.l.b16 %v10375
        %v10440 = vunpack.c.l.b16 %v10376
        %v10441 = vunpack.c.l.b16 %v10377
        %v10442 = vpack.c.b16 %v10427, %v10426
        %v10443 = vpack.c.b16 %v10429, %v10428
        %v10444 = vpack.c.b16 %v10431, %v10430
        %v10445 = vpack.c.b16 %v10433, %v10432
        %v10446 = vpack.c.b16 %v10435, %v10434
        %v10447 = vpack.c.b16 %v10437, %v10436
        %v10448 = vpack.c.b16 %v10439, %v10438
        %v10449 = vpack.c.b16 %v10441, %v10440
        %10458 = vmatpush.bf16.msra.mxu0 %v10449
        %10459 = vmatpush.bf16.msra.mxu0 %v10448
        %10460 = vmatpush.bf16.msra.mxu0 %v10447
        %10461 = vmatpush.bf16.msra.mxu0 %v10446
        %10462 = vmatpush.bf16.msra.mxu0 %v10445
        %10463 = vmatpush.bf16.msra.mxu0 %v10444
        %10464 = vmatpush.bf16.msra.mxu0 %v10443
        %10465 = vmatpush.bf16.msra.mxu0 %v10442
        %10466 = vmatmul.bf16.gmra.mxu0 %v10394
        %v10467 = vpop.f32.mrf.mxu0
        %v10468 = vadd.f32 0.0, %v10467
        %v10469 = vpop.f32.mrf.mxu0
        %v10470 = vadd.f32 0.0, %v10469
        %10471 = vmatmul.bf16.gmra.mxu0 %v10395
        %v10472 = vpop.f32.mrf.mxu0
        %v10473 = vadd.f32 0.0, %v10472
        %v10474 = vpop.f32.mrf.mxu0
        %v10475 = vadd.f32 0.0, %v10474
        %10476 = vmatmul.bf16.gmra.mxu0 %v10396
        %v10477 = vpop.f32.mrf.mxu0
        %v10478 = vadd.f32 0.0, %v10477
        %v10479 = vpop.f32.mrf.mxu0
        %v10480 = vadd.f32 0.0, %v10479
        %10481 = vmatmul.bf16.gmra.mxu0 %v10397
        %v10482 = vpop.f32.mrf.mxu0
        %v10483 = vadd.f32 0.0, %v10482
        %v10484 = vpop.f32.mrf.mxu0
        %v10485 = vadd.f32 0.0, %v10484
        %10486 = vmatmul.bf16.gmra.mxu0 %v10398
        %v10487 = vpop.f32.mrf.mxu0
        %v10488 = vadd.f32 0.0, %v10487
        %v10489 = vpop.f32.mrf.mxu0
        %v10490 = vadd.f32 0.0, %v10489
        %10491 = vmatmul.bf16.gmra.mxu0 %v10399
        %v10492 = vpop.f32.mrf.mxu0
        %v10493 = vadd.f32 0.0, %v10492
        %v10494 = vpop.f32.mrf.mxu0
        %v10495 = vadd.f32 0.0, %v10494
        %10496 = vmatmul.bf16.gmra.mxu0 %v10400
        %v10497 = vpop.f32.mrf.mxu0
        %v10498 = vadd.f32 0.0, %v10497
        %v10499 = vpop.f32.mrf.mxu0
        %v10500 = vadd.f32 0.0, %v10499
        %10501 = vmatmul.bf16.gmra.mxu0 %v10401
        %v10502 = vpop.f32.mrf.mxu0
        %v10503 = vadd.f32 0.0, %v10502
        %v10504 = vpop.f32.mrf.mxu0
        %v10505 = vadd.f32 0.0, %v10504
        %10506 = vdwg.mxu0
        %v10507 = vadd.f32 %v10258, %v10468
        %v10508 = vadd.f32 %v10259, %v10470
        %v10509 = vadd.f32 %v10260, %v10473
        %v10510 = vadd.f32 %v10261, %v10475
        %v10511 = vadd.f32 %v10262, %v10478
        %v10512 = vadd.f32 %v10263, %v10480
        %v10513 = vadd.f32 %v10264, %v10483
        %v10514 = vadd.f32 %v10265, %v10485
        %v10515 = vadd.f32 %v10266, %v10488
        %v10516 = vadd.f32 %v10267, %v10490
        %v10517 = vadd.f32 %v10268, %v10493
        %v10518 = vadd.f32 %v10269, %v10495
        %v10519 = vadd.f32 %v10270, %v10498
        %v10520 = vadd.f32 %v10271, %v10500
        %v10521 = vadd.f32 %v10272, %v10503
        %v10522 = vadd.f32 %v10273, %v10505
        %v10523 = vld [vmem:[%s4] sm:$0x1]
        %v10525 = vperm.slane %v10523, 0
        %v10527 = vadd.f32 %v10507, %v10525
        %v10528 = vadd.f32 %v10508, %v10525
        %v10529 = vadd.f32 %v10509, %v10525
        %v10530 = vadd.f32 %v10510, %v10525
        %v10531 = vadd.f32 %v10511, %v10525
        %v10532 = vadd.f32 %v10512, %v10525
        %v10533 = vadd.f32 %v10513, %v10525
        %v10534 = vadd.f32 %v10514, %v10525
        %v10535 = vadd.f32 %v10515, %v10525
        %v10536 = vadd.f32 %v10516, %v10525
        %v10537 = vadd.f32 %v10517, %v10525
        %v10538 = vadd.f32 %v10518, %v10525
        %v10539 = vadd.f32 %v10519, %v10525
        %v10540 = vadd.f32 %v10520, %v10525
        %v10541 = vadd.f32 %v10521, %v10525
        %v10542 = vadd.f32 %v10522, %v10525
        %v10543 = vmax.f32 %v10527, 0.0
        %v10544 = vmax.f32 %v10528, 0.0
        %v10545 = vmax.f32 %v10529, 0.0
        %v10546 = vmax.f32 %v10530, 0.0
        %v10547 = vmax.f32 %v10531, 0.0
        %v10548 = vmax.f32 %v10532, 0.0
        %v10549 = vmax.f32 %v10533, 0.0
        %v10550 = vmax.f32 %v10534, 0.0
        %v10551 = vmax.f32 %v10535, 0.0
        %v10552 = vmax.f32 %v10536, 0.0
        %v10553 = vmax.f32 %v10537, 0.0
        %v10554 = vmax.f32 %v10538, 0.0
        %v10555 = vmax.f32 %v10539, 0.0
        %v10556 = vmax.f32 %v10540, 0.0
        %v10557 = vmax.f32 %v10541, 0.0
        %v10558 = vmax.f32 %v10542, 0.0
        %v10559 = vpack.c.bf16 %v10543, %v10543
        %v10560 = vpack.c.bf16 %v10544, %v10544
        %v10561 = vpack.c.bf16 %v10545, %v10545
        %v10562 = vpack.c.bf16 %v10546, %v10546
        %v10563 = vpack.c.bf16 %v10547, %v10547
        %v10564 = vpack.c.bf16 %v10548, %v10548
        %v10565 = vpack.c.bf16 %v10549, %v10549
        %v10566 = vpack.c.bf16 %v10550, %v10550
        %v10567 = vpack.c.bf16 %v10551, %v10551
        %v10568 = vpack.c.bf16 %v10552, %v10552
        %v10569 = vpack.c.bf16 %v10553, %v10553
        %v10570 = vpack.c.bf16 %v10554, %v10554
        %v10571 = vpack.c.bf16 %v10555, %v10555
        %v10572 = vpack.c.bf16 %v10556, %v10556
        %v10573 = vpack.c.bf16 %v10557, %v10557
        %v10574 = vpack.c.bf16 %v10558, %v10558
        %s10575 = scalar_lea.vmem %s241, 64
        %10576 = vst.msk [vmem:[%s10575] sm:$0xf] %vm243, %v10559
        %10577 = vst.msk [vmem:[%s10575 + $0x4] sm:$0xf] %vm243, %v10560
        %10578 = vst.msk [vmem:[%s10575 + $0x8] sm:$0xf] %vm243, %v10561
        %10579 = vst.msk [vmem:[%s10575 + $0xc] sm:$0xf] %vm243, %v10562
        %10580 = vst.msk [vmem:[%s10575 + $0x10] sm:$0xf] %vm243, %v10563
        %10581 = vst.msk [vmem:[%s10575 + $0x14] sm:$0xf] %vm243, %v10564
        %10582 = vst.msk [vmem:[%s10575 + $0x18] sm:$0xf] %vm243, %v10565
        %10583 = vst.msk [vmem:[%s10575 + $0x1c] sm:$0xf] %vm243, %v10566
        %10584 = vst.msk [vmem:[%s10575 + $0x20] sm:$0xf] %vm243, %v10567
        %10585 = vst.msk [vmem:[%s10575 + $0x24] sm:$0xf] %vm243, %v10568
        %10586 = vst.msk [vmem:[%s10575 + $0x28] sm:$0xf] %vm243, %v10569
        %10587 = vst.msk [vmem:[%s10575 + $0x2c] sm:$0xf] %vm243, %v10570
        %10588 = vst.msk [vmem:[%s10575 + $0x30] sm:$0xf] %vm243, %v10571
        %10589 = vst.msk [vmem:[%s10575 + $0x34] sm:$0xf] %vm243, %v10572
        %10590 = vst.msk [vmem:[%s10575 + $0x38] sm:$0xf] %vm243, %v10573
        %10591 = vst.msk [vmem:[%s10575 + $0x3c] sm:$0xf] %vm243, %v10574
        %p10592 = scmp.lt.s32.totalorder %s17, 1
        %s10593 = scalar_select %p10592, %s17, 1
        %s10594 = smul.addr %s10593, 32
        %s10595 = smul.addr %s10594, 4
        %s10596 = scalar_lea.vmem %s5, %s10595
        // Predicated region
        $region45: #{base_conv_forward.1} parent=39 // pred_check
          %p10597 = pneg %p145
        $region46: #{base_conv_forward.1} parent=39 // pred_check_branch
          %10599 = sbr.rel (%p10597) target = $region48
        $region47: #{base_conv_forward.1} parent=39 // pred_region
          _
        $region48: #{base_conv_forward.1} parent=39 // pred_fallthru
          _
      $region40: #{base_conv_forward.1} parent=5 // pred_fallthru
        _
      %p10600 = scmp.le.s32.totalorder 2, %s12
      // Predicated region
      $region49: #{base_conv_forward.1} parent=5 // pred_check
        %p10601 = pneg %p10600
      $region50: #{base_conv_forward.1} parent=5 // pred_check_branch
        %10603 = sbr.rel (%p10601) target = $region52
      $region51: #{base_conv_forward.1} parent=5 // pred_region
        %s10604 = ssub.s32 %s12, 2
        // Predicated region
        $region53: #{base_conv_forward.1} parent=51 // pred_check
          %p10605 = pneg %p151
        $region54: #{base_conv_forward.1} parent=51 // pred_check_branch
          %10607 = sbr.rel (%p10605) target = $region56
        $region55: #{base_conv_forward.1} parent=51 // pred_region
          %p10608 = scmp.lt.s32.totalorder %s18, 1
          %s10609 = scalar_select %p10608, %s18, 1
          %s10610 = smul.addr %s10609, 32
          %s10611 = smul.addr %s10610, 4
          %s10612 = scalar_lea.vmem %s5, %s10611
        $region56: #{base_conv_forward.1} parent=51 // pred_fallthru
          _
      $region52: #{base_conv_forward.1} parent=5 // pred_fallthru
        _
    $region6: #{base_conv_forward.1} parent=1 // loop_footer
      %s16 = sadd.s32 1, %s12
    $region7: #{base_conv_forward.1} parent=1 // loop_footer_branch
      %11 = sbr.rel target = $region3
    $region8: #{base_conv_forward.1} parent=1 // loop_exit
      _
    %10613 = vsyncpa [#allocation5], 1
    %s10614 = scalar_lea.sflag [#allocation5], 1
    %10615 = vsyncpa %s10614, 1

</llo_original>
